<compile_context>
chip_gen: v6e
topology: v6e:2x2x1
jax: 0.10.0
libtpu: 0.0.40
codegen_flags: <defaults>
</compile_context>

<pallas_src>
import functools

import jax
import jax.numpy as jnp
from jax import lax
from jax.experimental import pallas as pl
from jax.experimental.pallas import tpu as pltpu

BERT_DIM = 768


def _round_up(x, m):
    return (x + m - 1) // m * m


def _vmem_limit_bytes(working_set_bytes):
    # Explicit scoped-VMEM request: above v5e's 16 MiB default, below v7x's
    # 64 MiB physical VMEM (with headroom).
    return int(min(max(2 * working_set_bytes, 32 << 20), 48 << 20))


# ----------------------------------------------------------------------------
# Kernel 1: fused per-layer (bi)RNN — hoisted input projection + recurrence.
# ----------------------------------------------------------------------------
def _make_rnn_layer_kernel(S, Hp, bidir, unroll):
    def kernel(x_ref, wih_ref, whh_ref, b_ref, out_ref, xw_scr, h_scr):
        # x_ref:   (S, tb, Kin) bf16     wih_ref: (Kin, C) bf16
        # whh_ref: (C, C) bf16 (block-diag)   b_ref: (1, C) f32
        # out_ref: (S, tb, C) bf16
        # xw_scr:  (S, tb, C) f32        h_scr: (tb, C) f32
        bias = b_ref[...]
        whh = whh_ref[...]

        # ---- Phase 1: input projection, off the recurrent critical path. ---
        if bidir:
            w_f = wih_ref[:, :Hp]          # (Kin, Hp) bf16, lane-tile aligned
            w_r = wih_ref[:, Hp:]

            def proj(t, carry):
                pf = jnp.dot(x_ref[t], w_f, preferred_element_type=jnp.float32)
                # reverse-direction projection is stored time-aligned with its
                # own recurrence step index (step t reads original time S-1-t)
                pr = jnp.dot(x_ref[S - 1 - t], w_r,
                             preferred_element_type=jnp.float32)
                xw_scr[t] = jnp.concatenate([pf, pr], axis=-1) + bias
                return carry
        else:
            w_f = wih_ref[...]

            def proj(t, carry):
                xw_scr[t] = jnp.dot(x_ref[t], w_f,
                                    preferred_element_type=jnp.float32) + bias
                return carry

        lax.fori_loop(0, S, proj, 0, unroll=unroll)

        # ---- Phase 2: sequential recurrence; only h @ W_hh in the loop. ----
        h_scr[...] = jnp.zeros_like(h_scr)

        def step(t, carry):
            hh = jnp.dot(h_scr[...].astype(jnp.bfloat16), whh,
                         preferred_element_type=jnp.float32)
            h = jnp.tanh(xw_scr[t] + hh)                  # (tb, C) f32
            h_scr[...] = h
            if bidir:
                out_ref[t, :, :Hp] = h[:, :Hp].astype(out_ref.dtype)
                out_ref[S - 1 - t, :, Hp:] = h[:, Hp:].astype(out_ref.dtype)
            else:
                out_ref[t] = h.astype(out_ref.dtype)
            return carry

        lax.fori_loop(0, S, step, 0, unroll=unroll)

    return kernel


def _pick_batch_tile(B, S, Kin, C, budget=24 << 20):
    """Largest batch tile (multiple of 8 dividing B) fitting the VMEM budget."""
    def ws(tb):
        return (S * tb * (2 * Kin * 2 + 2 * C * 2 + C * 4)      # x, out (dbl-buf), xw
                + (Kin * C + C * C + C) * 2 * 2)                # weights

    if B % 8 != 0:
        return B, ws(B)            # cannot split on sublane granularity
    cands = [tb for tb in range(8, B + 1, 8) if B % tb == 0]
    good = [tb for tb in cands if ws(tb) <= budget]
    tb = max(good) if good else min(cands)
    return tb, ws(tb)


def rnn_layer(x, wih, whh, bias, *, Hp, bidir):
    """x: (S, B, Kin) bf16 -> (S, B, C) bf16, out[t] = [h_fwd(t) | h_rev(t)]."""
    S, B, Kin = x.shape
    C = wih.shape[1]
    tb, ws = _pick_batch_tile(B, S, Kin, C)
    unroll = max(1, min(S, 16))
    kernel = _make_rnn_layer_kernel(S, Hp, bidir, unroll)
    return pl.pallas_call(
        kernel,
        out_shape=jax.ShapeDtypeStruct((S, B, C), jnp.bfloat16),
        grid=(B // tb,),
        in_specs=[
            pl.BlockSpec((S, tb, Kin), lambda i: (0, i, 0)),
            pl.BlockSpec((Kin, C), lambda i: (0, 0)),
            pl.BlockSpec((C, C), lambda i: (0, 0)),
            pl.BlockSpec((1, C), lambda i: (0, 0)),
        ],
        out_specs=pl.BlockSpec((S, tb, C), lambda i: (0, i, 0)),
        scratch_shapes=[pltpu.VMEM((S, tb, C), jnp.float32),
                        pltpu.VMEM((tb, C), jnp.float32)],
        compiler_params=pltpu.CompilerParams(
            dimension_semantics=("parallel",),
            vmem_limit_bytes=_vmem_limit_bytes(ws)),
    )(x, wih, whh, bias)


# ----------------------------------------------------------------------------
# Kernel 2: classifier + argmax, gridded over tokens, lane-dense int32 output.
# ----------------------------------------------------------------------------
def _make_cls_kernel(t_pad):
    dn = (((1,), (1,)), ((), ()))   # contract last dims: (T,K) x (N,K) -> (T,N)

    def kernel(x_ref, w_ref, b_ref, o_ref):
        logits = lax.dot_general(w_ref[...], x_ref[...], dn,
                                 preferred_element_type=jnp.float32)
        logits = logits + b_ref[...]                        # (T_pad, tn)
        m = jnp.max(logits, axis=0, keepdims=True)          # (1, tn)
        ids = lax.broadcasted_iota(jnp.int32, logits.shape, 0).astype(jnp.float32)
        cand = jnp.where(logits == m, ids, jnp.float32(t_pad))
        # first-index tie-break, like torch.argmax
        o_ref[...] = jnp.min(cand, axis=0, keepdims=True).astype(jnp.int32)

    return kernel


def classifier_argmax(x, w, b):
    """x: (N_pad, C) bf16; w: (T_pad, C) bf16; b: (T_pad, 1) f32 -> (1, N_pad) i32."""
    n_pad, c = x.shape
    t_pad = w.shape[0]
    tn = n_pad
    for cand in (2048, 1024, 512, 256, 128):
        if n_pad % cand == 0:
            tn = cand
            break
    ws = 2 * (tn * c * 2) + t_pad * c * 2 + t_pad * tn * 4 + 2 * tn * 4
    return pl.pallas_call(
        _make_cls_kernel(t_pad),
        out_shape=jax.ShapeDtypeStruct((1, n_pad), jnp.int32),
        grid=(n_pad // tn,),
        in_specs=[pl.BlockSpec((tn, c), lambda i: (i, 0)),
                  pl.BlockSpec((t_pad, c), lambda i: (0, 0)),
                  pl.BlockSpec((t_pad, 1), lambda i: (0, 0))],
        out_specs=pl.BlockSpec((1, tn), lambda i: (0, i)),
        compiler_params=pltpu.CompilerParams(
            dimension_semantics=("parallel",),
            vmem_limit_bytes=_vmem_limit_bytes(ws)),
    )(x, w, b)


# ----------------------------------------------------------------------------
# Parameter packing into the padded lane-dense layout
# ----------------------------------------------------------------------------
def _pack_wih(wih_list, segments, cin, Hp, H):
    D = len(wih_list)
    C = D * Hp
    out = jnp.zeros((cin, C), jnp.float32)
    for d, w in enumerate(wih_list):
        for (src, dst, ln) in segments:
            out = out.at[dst:dst + ln, d * Hp:d * Hp + H].set(w[src:src + ln, :])
    return out.astype(jnp.bfloat16)


def _pack_whh(whh_list, Hp, H):
    D = len(whh_list)
    C = D * Hp
    out = jnp.zeros((C, C), jnp.float32)
    for d, w in enumerate(whh_list):
        out = out.at[d * Hp:d * Hp + H, d * Hp:d * Hp + H].set(w)
    return out.astype(jnp.bfloat16)


def _pack_bias(b_list, Hp, H):
    D = len(b_list)
    C = D * Hp
    out = jnp.zeros((1, C), jnp.float32)
    for d, b in enumerate(b_list):
        out = out.at[0, d * Hp:d * Hp + H].set(b)
    return out


# ----------------------------------------------------------------------------
# Parameter construction (deterministic, mimics nn.RNN / nn.Linear init)
# ----------------------------------------------------------------------------
def init_params(key, hidden_size, tag_num, vocab_size, bi=True):
    num_dirs = 2 if bi else 1
    k = 1.0 / jnp.sqrt(hidden_size)
    params = {}
    keys = jax.random.split(key, 32)
    ki = iter(range(32))

    def unif(shape, bound):
        return jax.random.uniform(keys[next(ki)], shape, jnp.float32, -bound, bound)

    # surrogate for the BERT encoder (see TODO(synk) above)
    params["emb"] = unif((vocab_size, BERT_DIM), 0.05)

    # nn.RNN(input_size=768, hidden_size=H, num_layers=2, bidirectional=bi)
    for layer in range(2):
        in_dim = BERT_DIM if layer == 0 else hidden_size * num_dirs
        for d in range(num_dirs):
            name = f"l{layer}_d{d}"
            params[name + "_wih_t"] = unif((in_dim, hidden_size), k)       # weight_ih.T
            params[name + "_whh_t"] = unif((hidden_size, hidden_size), k)  # weight_hh.T
            params[name + "_b"] = unif((hidden_size,), k) + unif((hidden_size,), k)

    # nn.Linear(hidden_size * num_dirs, tag_num)
    kc = 1.0 / jnp.sqrt(hidden_size * num_dirs)
    params["cls_w_t"] = unif((hidden_size * num_dirs, tag_num), kc)
    params["cls_b"] = unif((tag_num,), kc)
    return params


# ----------------------------------------------------------------------------
# Forward pass (inference path: label=None -> argmax(...).squeeze(0))
# ----------------------------------------------------------------------------
def forward(params, x_ids, hidden_size, bi=True):
    B, S = x_ids.shape
    D = 2 if bi else 1
    H = hidden_size
    Hp = _round_up(H, 128)        # lane-dense padded hidden width
    C = D * Hp

    # "bert_0" surrogate features, generated directly time-major (S, B, 768)
    # in bf16 so the projection reads bf16 and no big transpose is needed.
    emb = params["emb"].astype(jnp.bfloat16)
    x = emb[x_ids.T]              # (S, B, 768) bf16

    for layer in range(2):
        wih_list = [params[f"l{layer}_d{d}_wih_t"] for d in range(D)]
        whh_list = [params[f"l{layer}_d{d}_whh_t"] for d in range(D)]
        b_list = [params[f"l{layer}_d{d}_b"] for d in range(D)]
        if layer == 0:
            cin = BERT_DIM
            segments = [(0, 0, BERT_DIM)]                   # dense BERT features
        else:
            cin = C
            segments = [(d * H, d * Hp, H) for d in range(D)]  # padded prev-layer slab
        wih_c = _pack_wih(wih_list, segments, cin, Hp, H)
        whh_c = _pack_whh(whh_list, Hp, H)
        b_c = _pack_bias(b_list, Hp, H)
        x = rnn_layer(x, wih_c, whh_c, b_c, Hp=Hp, bidir=bi)   # (S, B, C) bf16

    # classifier + argmax (tag dim padded to a sublane multiple, -1e30 on pads)
    T = params["cls_b"].shape[0]
    T_pad = max(8, _round_up(T, 8))
    cls_w = params["cls_w_t"].T                              # (T, D*H)
    w_cls = jnp.zeros((T_pad, C), jnp.float32)
    for d in range(D):
        w_cls = w_cls.at[:T, d * Hp:d * Hp + H].set(cls_w[:, d * H:(d + 1) * H])
    w_cls = w_cls.astype(jnp.bfloat16)
    b_cls = jnp.pad(params["cls_b"], (0, T_pad - T),
                    constant_values=-1e30).reshape(T_pad, 1)

    N = S * B
    N_pad = _round_up(N, 128)
    acts = jnp.pad(x.reshape(N, C), ((0, N_pad - N), (0, 0)))  # free reshape + tiny pad
    pred_flat = classifier_argmax(acts, w_cls, b_cls)          # (1, N_pad) int32
    pred = pred_flat[0, :N].reshape(S, B).T                    # tiny int32 transpose

    # torch.argmax(pre, dim=-1).squeeze(0): squeeze only if batch dim is 1.
    if B == 1:
        pred = pred[0]
    return pred


# ----------------------------------------------------------------------------
if __name__ == "__main__":
    B, S = 2, 8
    HIDDEN = 32
    TAG_NUM = 8
    VOCAB = 30
    BI = True

    key = jax.random.PRNGKey(0)
    k_par, k_ids = jax.random.split(key)

    params = init_params(k_par, HIDDEN, TAG_NUM, VOCAB, bi=BI)
    # token ids > 0 (nonzero, mimicking valid tokens for the attention mask)
    x_ids = jax.random.randint(k_ids, (B, S), 1, VOCAB, dtype=jnp.int32)

    fwd = jax.jit(functools.partial(forward, hidden_size=HIDDEN, bi=BI))
    out = jax.block_until_ready(fwd(params, x_ids))
    assert out.shape == (B, S) and out.dtype == jnp.int32
    print("KERNEL_OK")
</pallas_src>

<mosaic_0001>
module attributes {stable_mosaic.version = 11 : i64} {
  func.func @kernel(%arg0: i32, %arg1: memref<8x2x768xbf16, #tpu.memory_space<vmem>>, %arg2: memref<768x256xbf16, #tpu.memory_space<vmem>>, %arg3: memref<256x256xbf16, #tpu.memory_space<vmem>>, %arg4: memref<1x256xf32, #tpu.memory_space<vmem>>, %arg5: memref<8x2x256xbf16, #tpu.memory_space<vmem>>, %arg6: memref<8x2x256xf32, #tpu.memory_space<vmem>>, %arg7: memref<2x256xf32, #tpu.memory_space<vmem>>) attributes {dimension_semantics = [#tpu.dimension_semantics<parallel>], iteration_bounds = array<i64: 1>, scalar_prefetch = 0 : i64, scratch_operands = 2 : i64, tpu.core_type = #tpu.core_type<tc>, window_params = [{transform_indices = @transform_0, window_bounds = array<i64: 8, 2, 768>}, {pipeline_mode = #tpu.pipeline_mode<synchronous>, transform_indices = @transform_1, window_bounds = array<i64: 768, 256>}, {pipeline_mode = #tpu.pipeline_mode<synchronous>, transform_indices = @transform_2, window_bounds = array<i64: 256, 256>}, {pipeline_mode = #tpu.pipeline_mode<synchronous>, transform_indices = @transform_3, window_bounds = array<i64: 1, 256>}, {transform_indices = @transform_4, window_bounds = array<i64: 8, 2, 256>}]} {
    %c0 = arith.constant 0 : index
    %c0_0 = arith.constant 0 : index
    %0 = vector.load %arg4[%c0, %c0_0] : memref<1x256xf32, #tpu.memory_space<vmem>>, vector<1x256xf32>
    %c0_1 = arith.constant 0 : index
    %c0_2 = arith.constant 0 : index
    %1 = vector.load %arg3[%c0_1, %c0_2] : memref<256x256xbf16, #tpu.memory_space<vmem>>, vector<256x256xbf16>
    %c0_3 = arith.constant 0 : index
    %c0_4 = arith.constant 0 : index
    %2 = vector.load %arg2[%c0_3, %c0_4] : memref<768x256xbf16, #tpu.memory_space<vmem>>, vector<768x128xbf16>
    %c0_5 = arith.constant 0 : index
    %c128 = arith.constant 128 : index
    %3 = vector.load %arg2[%c0_5, %c128] : memref<768x256xbf16, #tpu.memory_space<vmem>>, vector<768x128xbf16>
    %c0_i32 = arith.constant 0 : i32
    %4 = arith.index_cast %c0_i32 : i32 to index
    %c0_6 = arith.constant 0 : index
    %c0_7 = arith.constant 0 : index
    %5 = vector.load %arg1[%4, %c0_6, %c0_7] : memref<8x2x768xbf16, #tpu.memory_space<vmem>>, vector<1x2x768xbf16>
    %6 = vector.shape_cast %5 : vector<1x2x768xbf16> to vector<2x768xbf16>
    %cst = arith.constant dense<0.000000e+00> : vector<2x128xf32>
    %7 = tpu.matmul %6, %2, %cst {dimension_numbers = #tpu.dot_dimension_numbers<[1], [0], [0], [1], [0, 0, 1, 1], [], []>} : vector<2x768xbf16>, vector<768x128xbf16>, vector<2x128xf32> -> vector<2x128xf32>
    %c7_i32 = arith.constant 7 : i32
    %8 = arith.subi %c7_i32, %c0_i32 : i32
    %9 = arith.index_cast %8 : i32 to index
    %c0_8 = arith.constant 0 : index
    %c0_9 = arith.constant 0 : index
    %10 = vector.load %arg1[%9, %c0_8, %c0_9] : memref<8x2x768xbf16, #tpu.memory_space<vmem>>, vector<1x2x768xbf16>
    %11 = vector.shape_cast %10 : vector<1x2x768xbf16> to vector<2x768xbf16>
    %cst_10 = arith.constant dense<0.000000e+00> : vector<2x128xf32>
    %12 = tpu.matmul %11, %3, %cst_10 {dimension_numbers = #tpu.dot_dimension_numbers<[1], [0], [0], [1], [0, 0, 1, 1], [], []>} : vector<2x768xbf16>, vector<768x128xbf16>, vector<2x128xf32> -> vector<2x128xf32>
    %13 = tpu.concatenate %7, %12 in 1 : vector<2x128xf32>, vector<2x128xf32> -> vector<2x256xf32>
    %14 = vector.broadcast %0 : vector<1x256xf32> to vector<2x256xf32>
    %15 = arith.addf %13, %14 : vector<2x256xf32>
    %16 = arith.index_cast %c0_i32 : i32 to index
    %c0_11 = arith.constant 0 : index
    %c0_12 = arith.constant 0 : index
    %17 = vector.load %arg6[%16, %c0_11, %c0_12] : memref<8x2x256xf32, #tpu.memory_space<vmem>>, vector<1x2x256xf32>
    %18 = vector.shape_cast %17 : vector<1x2x256xf32> to vector<2x256xf32>
    %19 = vector.shape_cast %15 : vector<2x256xf32> to vector<1x2x256xf32>
    tpu.vector_store %arg6[%16, %c0_11, %c0_12], %19 {strides = array<i32>} : memref<8x2x256xf32, #tpu.memory_space<vmem>>, vector<1x2x256xf32>,
    %c1_i32 = arith.constant 1 : i32
    %20 = arith.index_cast %c1_i32 : i32 to index
    %c0_13 = arith.constant 0 : index
    %c0_14 = arith.constant 0 : index
    %21 = vector.load %arg1[%20, %c0_13, %c0_14] : memref<8x2x768xbf16, #tpu.memory_space<vmem>>, vector<1x2x768xbf16>
    %22 = vector.shape_cast %21 : vector<1x2x768xbf16> to vector<2x768xbf16>
    %cst_15 = arith.constant dense<0.000000e+00> : vector<2x128xf32>
    %23 = tpu.matmul %22, %2, %cst_15 {dimension_numbers = #tpu.dot_dimension_numbers<[1], [0], [0], [1], [0, 0, 1, 1], [], []>} : vector<2x768xbf16>, vector<768x128xbf16>, vector<2x128xf32> -> vector<2x128xf32>
    %c7_i32_16 = arith.constant 7 : i32
    %24 = arith.subi %c7_i32_16, %c1_i32 : i32
    %25 = arith.index_cast %24 : i32 to index
    %c0_17 = arith.constant 0 : index
    %c0_18 = arith.constant 0 : index
    %26 = vector.load %arg1[%25, %c0_17, %c0_18] : memref<8x2x768xbf16, #tpu.memory_space<vmem>>, vector<1x2x768xbf16>
    %27 = vector.shape_cast %26 : vector<1x2x768xbf16> to vector<2x768xbf16>
    %cst_19 = arith.constant dense<0.000000e+00> : vector<2x128xf32>
    %28 = tpu.matmul %27, %3, %cst_19 {dimension_numbers = #tpu.dot_dimension_numbers<[1], [0], [0], [1], [0, 0, 1, 1], [], []>} : vector<2x768xbf16>, vector<768x128xbf16>, vector<2x128xf32> -> vector<2x128xf32>
    %29 = tpu.concatenate %23, %28 in 1 : vector<2x128xf32>, vector<2x128xf32> -> vector<2x256xf32>
    %30 = vector.broadcast %0 : vector<1x256xf32> to vector<2x256xf32>
    %31 = arith.addf %29, %30 : vector<2x256xf32>
    %32 = arith.index_cast %c1_i32 : i32 to index
    %c0_20 = arith.constant 0 : index
    %c0_21 = arith.constant 0 : index
    %33 = vector.load %arg6[%32, %c0_20, %c0_21] : memref<8x2x256xf32, #tpu.memory_space<vmem>>, vector<1x2x256xf32>
    %34 = vector.shape_cast %33 : vector<1x2x256xf32> to vector<2x256xf32>
    %35 = vector.shape_cast %31 : vector<2x256xf32> to vector<1x2x256xf32>
    tpu.vector_store %arg6[%32, %c0_20, %c0_21], %35 {strides = array<i32>} : memref<8x2x256xf32, #tpu.memory_space<vmem>>, vector<1x2x256xf32>,
    %c2_i32 = arith.constant 2 : i32
    %36 = arith.index_cast %c2_i32 : i32 to index
    %c0_22 = arith.constant 0 : index
    %c0_23 = arith.constant 0 : index
    %37 = vector.load %arg1[%36, %c0_22, %c0_23] : memref<8x2x768xbf16, #tpu.memory_space<vmem>>, vector<1x2x768xbf16>
    %38 = vector.shape_cast %37 : vector<1x2x768xbf16> to vector<2x768xbf16>
    %cst_24 = arith.constant dense<0.000000e+00> : vector<2x128xf32>
    %39 = tpu.matmul %38, %2, %cst_24 {dimension_numbers = #tpu.dot_dimension_numbers<[1], [0], [0], [1], [0, 0, 1, 1], [], []>} : vector<2x768xbf16>, vector<768x128xbf16>, vector<2x128xf32> -> vector<2x128xf32>
    %c7_i32_25 = arith.constant 7 : i32
    %40 = arith.subi %c7_i32_25, %c2_i32 : i32
    %41 = arith.index_cast %40 : i32 to index
    %c0_26 = arith.constant 0 : index
    %c0_27 = arith.constant 0 : index
    %42 = vector.load %arg1[%41, %c0_26, %c0_27] : memref<8x2x768xbf16, #tpu.memory_space<vmem>>, vector<1x2x768xbf16>
    %43 = vector.shape_cast %42 : vector<1x2x768xbf16> to vector<2x768xbf16>
    %cst_28 = arith.constant dense<0.000000e+00> : vector<2x128xf32>
    %44 = tpu.matmul %43, %3, %cst_28 {dimension_numbers = #tpu.dot_dimension_numbers<[1], [0], [0], [1], [0, 0, 1, 1], [], []>} : vector<2x768xbf16>, vector<768x128xbf16>, vector<2x128xf32> -> vector<2x128xf32>
    %45 = tpu.concatenate %39, %44 in 1 : vector<2x128xf32>, vector<2x128xf32> -> vector<2x256xf32>
    %46 = vector.broadcast %0 : vector<1x256xf32> to vector<2x256xf32>
    %47 = arith.addf %45, %46 : vector<2x256xf32>
    %48 = arith.index_cast %c2_i32 : i32 to index
    %c0_29 = arith.constant 0 : index
    %c0_30 = arith.constant 0 : index
    %49 = vector.load %arg6[%48, %c0_29, %c0_30] : memref<8x2x256xf32, #tpu.memory_space<vmem>>, vector<1x2x256xf32>
    %50 = vector.shape_cast %49 : vector<1x2x256xf32> to vector<2x256xf32>
    %51 = vector.shape_cast %47 : vector<2x256xf32> to vector<1x2x256xf32>
    tpu.vector_store %arg6[%48, %c0_29, %c0_30], %51 {strides = array<i32>} : memref<8x2x256xf32, #tpu.memory_space<vmem>>, vector<1x2x256xf32>,
    %c3_i32 = arith.constant 3 : i32
    %52 = arith.index_cast %c3_i32 : i32 to index
    %c0_31 = arith.constant 0 : index
    %c0_32 = arith.constant 0 : index
    %53 = vector.load %arg1[%52, %c0_31, %c0_32] : memref<8x2x768xbf16, #tpu.memory_space<vmem>>, vector<1x2x768xbf16>
    %54 = vector.shape_cast %53 : vector<1x2x768xbf16> to vector<2x768xbf16>
    %cst_33 = arith.constant dense<0.000000e+00> : vector<2x128xf32>
    %55 = tpu.matmul %54, %2, %cst_33 {dimension_numbers = #tpu.dot_dimension_numbers<[1], [0], [0], [1], [0, 0, 1, 1], [], []>} : vector<2x768xbf16>, vector<768x128xbf16>, vector<2x128xf32> -> vector<2x128xf32>
    %c7_i32_34 = arith.constant 7 : i32
    %56 = arith.subi %c7_i32_34, %c3_i32 : i32
    %57 = arith.index_cast %56 : i32 to index
    %c0_35 = arith.constant 0 : index
    %c0_36 = arith.constant 0 : index
    %58 = vector.load %arg1[%57, %c0_35, %c0_36] : memref<8x2x768xbf16, #tpu.memory_space<vmem>>, vector<1x2x768xbf16>
    %59 = vector.shape_cast %58 : vector<1x2x768xbf16> to vector<2x768xbf16>
    %cst_37 = arith.constant dense<0.000000e+00> : vector<2x128xf32>
    %60 = tpu.matmul %59, %3, %cst_37 {dimension_numbers = #tpu.dot_dimension_numbers<[1], [0], [0], [1], [0, 0, 1, 1], [], []>} : vector<2x768xbf16>, vector<768x128xbf16>, vector<2x128xf32> -> vector<2x128xf32>
    %61 = tpu.concatenate %55, %60 in 1 : vector<2x128xf32>, vector<2x128xf32> -> vector<2x256xf32>
    %62 = vector.broadcast %0 : vector<1x256xf32> to vector<2x256xf32>
    %63 = arith.addf %61, %62 : vector<2x256xf32>
    %64 = arith.index_cast %c3_i32 : i32 to index
    %c0_38 = arith.constant 0 : index
    %c0_39 = arith.constant 0 : index
    %65 = vector.load %arg6[%64, %c0_38, %c0_39] : memref<8x2x256xf32, #tpu.memory_space<vmem>>, vector<1x2x256xf32>
    %66 = vector.shape_cast %65 : vector<1x2x256xf32> to vector<2x256xf32>
    %67 = vector.shape_cast %63 : vector<2x256xf32> to vector<1x2x256xf32>
    tpu.vector_store %arg6[%64, %c0_38, %c0_39], %67 {strides = array<i32>} : memref<8x2x256xf32, #tpu.memory_space<vmem>>, vector<1x2x256xf32>,
    %c4_i32 = arith.constant 4 : i32
    %68 = arith.index_cast %c4_i32 : i32 to index
    %c0_40 = arith.constant 0 : index
    %c0_41 = arith.constant 0 : index
    %69 = vector.load %arg1[%68, %c0_40, %c0_41] : memref<8x2x768xbf16, #tpu.memory_space<vmem>>, vector<1x2x768xbf16>
    %70 = vector.shape_cast %69 : vector<1x2x768xbf16> to vector<2x768xbf16>
    %cst_42 = arith.constant dense<0.000000e+00> : vector<2x128xf32>
    %71 = tpu.matmul %70, %2, %cst_42 {dimension_numbers = #tpu.dot_dimension_numbers<[1], [0], [0], [1], [0, 0, 1, 1], [], []>} : vector<2x768xbf16>, vector<768x128xbf16>, vector<2x128xf32> -> vector<2x128xf32>
    %c7_i32_43 = arith.constant 7 : i32
    %72 = arith.subi %c7_i32_43, %c4_i32 : i32
    %73 = arith.index_cast %72 : i32 to index
    %c0_44 = arith.constant 0 : index
    %c0_45 = arith.constant 0 : index
    %74 = vector.load %arg1[%73, %c0_44, %c0_45] : memref<8x2x768xbf16, #tpu.memory_space<vmem>>, vector<1x2x768xbf16>
    %75 = vector.shape_cast %74 : vector<1x2x768xbf16> to vector<2x768xbf16>
    %cst_46 = arith.constant dense<0.000000e+00> : vector<2x128xf32>
    %76 = tpu.matmul %75, %3, %cst_46 {dimension_numbers = #tpu.dot_dimension_numbers<[1], [0], [0], [1], [0, 0, 1, 1], [], []>} : vector<2x768xbf16>, vector<768x128xbf16>, vector<2x128xf32> -> vector<2x128xf32>
    %77 = tpu.concatenate %71, %76 in 1 : vector<2x128xf32>, vector<2x128xf32> -> vector<2x256xf32>
    %78 = vector.broadcast %0 : vector<1x256xf32> to vector<2x256xf32>
    %79 = arith.addf %77, %78 : vector<2x256xf32>
    %80 = arith.index_cast %c4_i32 : i32 to index
    %c0_47 = arith.constant 0 : index
    %c0_48 = arith.constant 0 : index
    %81 = vector.load %arg6[%80, %c0_47, %c0_48] : memref<8x2x256xf32, #tpu.memory_space<vmem>>, vector<1x2x256xf32>
    %82 = vector.shape_cast %81 : vector<1x2x256xf32> to vector<2x256xf32>
    %83 = vector.shape_cast %79 : vector<2x256xf32> to vector<1x2x256xf32>
    tpu.vector_store %arg6[%80, %c0_47, %c0_48], %83 {strides = array<i32>} : memref<8x2x256xf32, #tpu.memory_space<vmem>>, vector<1x2x256xf32>,
    %c5_i32 = arith.constant 5 : i32
    %84 = arith.index_cast %c5_i32 : i32 to index
    %c0_49 = arith.constant 0 : index
    %c0_50 = arith.constant 0 : index
    %85 = vector.load %arg1[%84, %c0_49, %c0_50] : memref<8x2x768xbf16, #tpu.memory_space<vmem>>, vector<1x2x768xbf16>
    %86 = vector.shape_cast %85 : vector<1x2x768xbf16> to vector<2x768xbf16>
    %cst_51 = arith.constant dense<0.000000e+00> : vector<2x128xf32>
    %87 = tpu.matmul %86, %2, %cst_51 {dimension_numbers = #tpu.dot_dimension_numbers<[1], [0], [0], [1], [0, 0, 1, 1], [], []>} : vector<2x768xbf16>, vector<768x128xbf16>, vector<2x128xf32> -> vector<2x128xf32>
    %c7_i32_52 = arith.constant 7 : i32
    %88 = arith.subi %c7_i32_52, %c5_i32 : i32
    %89 = arith.index_cast %88 : i32 to index
    %c0_53 = arith.constant 0 : index
    %c0_54 = arith.constant 0 : index
    %90 = vector.load %arg1[%89, %c0_53, %c0_54] : memref<8x2x768xbf16, #tpu.memory_space<vmem>>, vector<1x2x768xbf16>
    %91 = vector.shape_cast %90 : vector<1x2x768xbf16> to vector<2x768xbf16>
    %cst_55 = arith.constant dense<0.000000e+00> : vector<2x128xf32>
    %92 = tpu.matmul %91, %3, %cst_55 {dimension_numbers = #tpu.dot_dimension_numbers<[1], [0], [0], [1], [0, 0, 1, 1], [], []>} : vector<2x768xbf16>, vector<768x128xbf16>, vector<2x128xf32> -> vector<2x128xf32>
    %93 = tpu.concatenate %87, %92 in 1 : vector<2x128xf32>, vector<2x128xf32> -> vector<2x256xf32>
    %94 = vector.broadcast %0 : vector<1x256xf32> to vector<2x256xf32>
    %95 = arith.addf %93, %94 : vector<2x256xf32>
    %96 = arith.index_cast %c5_i32 : i32 to index
    %c0_56 = arith.constant 0 : index
    %c0_57 = arith.constant 0 : index
    %97 = vector.load %arg6[%96, %c0_56, %c0_57] : memref<8x2x256xf32, #tpu.memory_space<vmem>>, vector<1x2x256xf32>
    %98 = vector.shape_cast %97 : vector<1x2x256xf32> to vector<2x256xf32>
    %99 = vector.shape_cast %95 : vector<2x256xf32> to vector<1x2x256xf32>
    tpu.vector_store %arg6[%96, %c0_56, %c0_57], %99 {strides = array<i32>} : memref<8x2x256xf32, #tpu.memory_space<vmem>>, vector<1x2x256xf32>,
    %c6_i32 = arith.constant 6 : i32
    %100 = arith.index_cast %c6_i32 : i32 to index
    %c0_58 = arith.constant 0 : index
    %c0_59 = arith.constant 0 : index
    %101 = vector.load %arg1[%100, %c0_58, %c0_59] : memref<8x2x768xbf16, #tpu.memory_space<vmem>>, vector<1x2x768xbf16>
    %102 = vector.shape_cast %101 : vector<1x2x768xbf16> to vector<2x768xbf16>
    %cst_60 = arith.constant dense<0.000000e+00> : vector<2x128xf32>
    %103 = tpu.matmul %102, %2, %cst_60 {dimension_numbers = #tpu.dot_dimension_numbers<[1], [0], [0], [1], [0, 0, 1, 1], [], []>} : vector<2x768xbf16>, vector<768x128xbf16>, vector<2x128xf32> -> vector<2x128xf32>
    %c7_i32_61 = arith.constant 7 : i32
    %104 = arith.subi %c7_i32_61, %c6_i32 : i32
    %105 = arith.index_cast %104 : i32 to index
    %c0_62 = arith.constant 0 : index
    %c0_63 = arith.constant 0 : index
    %106 = vector.load %arg1[%105, %c0_62, %c0_63] : memref<8x2x768xbf16, #tpu.memory_space<vmem>>, vector<1x2x768xbf16>
    %107 = vector.shape_cast %106 : vector<1x2x768xbf16> to vector<2x768xbf16>
    %cst_64 = arith.constant dense<0.000000e+00> : vector<2x128xf32>
    %108 = tpu.matmul %107, %3, %cst_64 {dimension_numbers = #tpu.dot_dimension_numbers<[1], [0], [0], [1], [0, 0, 1, 1], [], []>} : vector<2x768xbf16>, vector<768x128xbf16>, vector<2x128xf32> -> vector<2x128xf32>
    %109 = tpu.concatenate %103, %108 in 1 : vector<2x128xf32>, vector<2x128xf32> -> vector<2x256xf32>
    %110 = vector.broadcast %0 : vector<1x256xf32> to vector<2x256xf32>
    %111 = arith.addf %109, %110 : vector<2x256xf32>
    %112 = arith.index_cast %c6_i32 : i32 to index
    %c0_65 = arith.constant 0 : index
    %c0_66 = arith.constant 0 : index
    %113 = vector.load %arg6[%112, %c0_65, %c0_66] : memref<8x2x256xf32, #tpu.memory_space<vmem>>, vector<1x2x256xf32>
    %114 = vector.shape_cast %113 : vector<1x2x256xf32> to vector<2x256xf32>
    %115 = vector.shape_cast %111 : vector<2x256xf32> to vector<1x2x256xf32>
    tpu.vector_store %arg6[%112, %c0_65, %c0_66], %115 {strides = array<i32>} : memref<8x2x256xf32, #tpu.memory_space<vmem>>, vector<1x2x256xf32>,
    %c7_i32_67 = arith.constant 7 : i32
    %116 = arith.index_cast %c7_i32_67 : i32 to index
    %c0_68 = arith.constant 0 : index
    %c0_69 = arith.constant 0 : index
    %117 = vector.load %arg1[%116, %c0_68, %c0_69] : memref<8x2x768xbf16, #tpu.memory_space<vmem>>, vector<1x2x768xbf16>
    %118 = vector.shape_cast %117 : vector<1x2x768xbf16> to vector<2x768xbf16>
    %cst_70 = arith.constant dense<0.000000e+00> : vector<2x128xf32>
    %119 = tpu.matmul %118, %2, %cst_70 {dimension_numbers = #tpu.dot_dimension_numbers<[1], [0], [0], [1], [0, 0, 1, 1], [], []>} : vector<2x768xbf16>, vector<768x128xbf16>, vector<2x128xf32> -> vector<2x128xf32>
    %c7_i32_71 = arith.constant 7 : i32
    %120 = arith.subi %c7_i32_71, %c7_i32_67 : i32
    %121 = arith.index_cast %120 : i32 to index
    %c0_72 = arith.constant 0 : index
    %c0_73 = arith.constant 0 : index
    %122 = vector.load %arg1[%121, %c0_72, %c0_73] : memref<8x2x768xbf16, #tpu.memory_space<vmem>>, vector<1x2x768xbf16>
    %123 = vector.shape_cast %122 : vector<1x2x768xbf16> to vector<2x768xbf16>
    %cst_74 = arith.constant dense<0.000000e+00> : vector<2x128xf32>
    %124 = tpu.matmul %123, %3, %cst_74 {dimension_numbers = #tpu.dot_dimension_numbers<[1], [0], [0], [1], [0, 0, 1, 1], [], []>} : vector<2x768xbf16>, vector<768x128xbf16>, vector<2x128xf32> -> vector<2x128xf32>
    %125 = tpu.concatenate %119, %124 in 1 : vector<2x128xf32>, vector<2x128xf32> -> vector<2x256xf32>
    %126 = vector.broadcast %0 : vector<1x256xf32> to vector<2x256xf32>
    %127 = arith.addf %125, %126 : vector<2x256xf32>
    %128 = arith.index_cast %c7_i32_67 : i32 to index
    %c0_75 = arith.constant 0 : index
    %c0_76 = arith.constant 0 : index
    %129 = vector.load %arg6[%128, %c0_75, %c0_76] : memref<8x2x256xf32, #tpu.memory_space<vmem>>, vector<1x2x256xf32>
    %130 = vector.shape_cast %129 : vector<1x2x256xf32> to vector<2x256xf32>
    %131 = vector.shape_cast %127 : vector<2x256xf32> to vector<1x2x256xf32>
    tpu.vector_store %arg6[%128, %c0_75, %c0_76], %131 {strides = array<i32>} : memref<8x2x256xf32, #tpu.memory_space<vmem>>, vector<1x2x256xf32>,
    %c8_i32 = arith.constant 8 : i32
    %cst_77 = arith.constant 0.000000e+00 : f32
    %132 = vector.broadcast %cst_77 : f32 to vector<2x256xf32>
    %c0_78 = arith.constant 0 : index
    %c0_79 = arith.constant 0 : index
    %133 = vector.load %arg7[%c0_78, %c0_79] : memref<2x256xf32, #tpu.memory_space<vmem>>, vector<2x256xf32>
    tpu.vector_store %arg7[%c0_78, %c0_79], %132 {strides = array<i32>} : memref<2x256xf32, #tpu.memory_space<vmem>>, vector<2x256xf32>,
    %c0_i32_80 = arith.constant 0 : i32
    %c0_81 = arith.constant 0 : index
    %c0_82 = arith.constant 0 : index
    %134 = vector.load %arg7[%c0_81, %c0_82] : memref<2x256xf32, #tpu.memory_space<vmem>>, vector<2x256xf32>
    %135 = arith.truncf %134 : vector<2x256xf32> to vector<2x256xbf16>
    %cst_83 = arith.constant dense<0.000000e+00> : vector<2x256xf32>
    %136 = tpu.matmul %135, %1, %cst_83 {dimension_numbers = #tpu.dot_dimension_numbers<[1], [0], [0], [1], [0, 0, 1, 1], [], []>} : vector<2x256xbf16>, vector<256x256xbf16>, vector<2x256xf32> -> vector<2x256xf32>
    %137 = arith.index_cast %c0_i32_80 : i32 to index
    %c0_84 = arith.constant 0 : index
    %c0_85 = arith.constant 0 : index
    %138 = vector.load %arg6[%137, %c0_84, %c0_85] : memref<8x2x256xf32, #tpu.memory_space<vmem>>, vector<1x2x256xf32>
    %139 = vector.shape_cast %138 : vector<1x2x256xf32> to vector<2x256xf32>
    %140 = arith.addf %139, %136 : vector<2x256xf32>
    %141 = math.tanh %140 : vector<2x256xf32>
    %c0_86 = arith.constant 0 : index
    %c0_87 = arith.constant 0 : index
    %142 = vector.load %arg7[%c0_86, %c0_87] : memref<2x256xf32, #tpu.memory_space<vmem>>, vector<2x256xf32>
    tpu.vector_store %arg7[%c0_86, %c0_87], %141 {strides = array<i32>} : memref<2x256xf32, #tpu.memory_space<vmem>>, vector<2x256xf32>,
    %143 = vector.extract_strided_slice %141 {offsets = [0, 0], sizes = [2, 128], strides = [1, 1]} : vector<2x256xf32> to vector<2x128xf32>
    %144 = arith.truncf %143 : vector<2x128xf32> to vector<2x128xbf16>
    %145 = arith.index_cast %c0_i32_80 : i32 to index
    %c0_88 = arith.constant 0 : index
    %c0_89 = arith.constant 0 : index
    %146 = vector.load %arg5[%145, %c0_88, %c0_89] : memref<8x2x256xbf16, #tpu.memory_space<vmem>>, vector<1x2x128xbf16>
    %147 = vector.shape_cast %146 : vector<1x2x128xbf16> to vector<2x128xbf16>
    %148 = vector.shape_cast %144 : vector<2x128xbf16> to vector<1x2x128xbf16>
    tpu.vector_store %arg5[%145, %c0_88, %c0_89], %148 {strides = array<i32>} : memref<8x2x256xbf16, #tpu.memory_space<vmem>>, vector<1x2x128xbf16>,
    %149 = vector.extract_strided_slice %141 {offsets = [0, 128], sizes = [2, 128], strides = [1, 1]} : vector<2x256xf32> to vector<2x128xf32>
    %150 = arith.truncf %149 : vector<2x128xf32> to vector<2x128xbf16>
    %c7_i32_90 = arith.constant 7 : i32
    %151 = arith.subi %c7_i32_90, %c0_i32_80 : i32
    %152 = arith.index_cast %151 : i32 to index
    %c0_91 = arith.constant 0 : index
    %c128_92 = arith.constant 128 : index
    %153 = vector.load %arg5[%152, %c0_91, %c128_92] : memref<8x2x256xbf16, #tpu.memory_space<vmem>>, vector<1x2x128xbf16>
    %154 = vector.shape_cast %153 : vector<1x2x128xbf16> to vector<2x128xbf16>
    %155 = vector.shape_cast %150 : vector<2x128xbf16> to vector<1x2x128xbf16>
    tpu.vector_store %arg5[%152, %c0_91, %c128_92], %155 {strides = array<i32>} : memref<8x2x256xbf16, #tpu.memory_space<vmem>>, vector<1x2x128xbf16>,
    %c1_i32_93 = arith.constant 1 : i32
    %c0_94 = arith.constant 0 : index
    %c0_95 = arith.constant 0 : index
    %156 = vector.load %arg7[%c0_94, %c0_95] : memref<2x256xf32, #tpu.memory_space<vmem>>, vector<2x256xf32>
    %157 = arith.truncf %156 : vector<2x256xf32> to vector<2x256xbf16>
    %cst_96 = arith.constant dense<0.000000e+00> : vector<2x256xf32>
    %158 = tpu.matmul %157, %1, %cst_96 {dimension_numbers = #tpu.dot_dimension_numbers<[1], [0], [0], [1], [0, 0, 1, 1], [], []>} : vector<2x256xbf16>, vector<256x256xbf16>, vector<2x256xf32> -> vector<2x256xf32>
    %159 = arith.index_cast %c1_i32_93 : i32 to index
    %c0_97 = arith.constant 0 : index
    %c0_98 = arith.constant 0 : index
    %160 = vector.load %arg6[%159, %c0_97, %c0_98] : memref<8x2x256xf32, #tpu.memory_space<vmem>>, vector<1x2x256xf32>
    %161 = vector.shape_cast %160 : vector<1x2x256xf32> to vector<2x256xf32>
    %162 = arith.addf %161, %158 : vector<2x256xf32>
    %163 = math.tanh %162 : vector<2x256xf32>
    %c0_99 = arith.constant 0 : index
    %c0_100 = arith.constant 0 : index
    %164 = vector.load %arg7[%c0_99, %c0_100] : memref<2x256xf32, #tpu.memory_space<vmem>>, vector<2x256xf32>
    tpu.vector_store %arg7[%c0_99, %c0_100], %163 {strides = array<i32>} : memref<2x256xf32, #tpu.memory_space<vmem>>, vector<2x256xf32>,
    %165 = vector.extract_strided_slice %163 {offsets = [0, 0], sizes = [2, 128], strides = [1, 1]} : vector<2x256xf32> to vector<2x128xf32>
    %166 = arith.truncf %165 : vector<2x128xf32> to vector<2x128xbf16>
    %167 = arith.index_cast %c1_i32_93 : i32 to index
    %c0_101 = arith.constant 0 : index
    %c0_102 = arith.constant 0 : index
    %168 = vector.load %arg5[%167, %c0_101, %c0_102] : memref<8x2x256xbf16, #tpu.memory_space<vmem>>, vector<1x2x128xbf16>
    %169 = vector.shape_cast %168 : vector<1x2x128xbf16> to vector<2x128xbf16>
    %170 = vector.shape_cast %166 : vector<2x128xbf16> to vector<1x2x128xbf16>
    tpu.vector_store %arg5[%167, %c0_101, %c0_102], %170 {strides = array<i32>} : memref<8x2x256xbf16, #tpu.memory_space<vmem>>, vector<1x2x128xbf16>,
    %171 = vector.extract_strided_slice %163 {offsets = [0, 128], sizes = [2, 128], strides = [1, 1]} : vector<2x256xf32> to vector<2x128xf32>
    %172 = arith.truncf %171 : vector<2x128xf32> to vector<2x128xbf16>
    %c7_i32_103 = arith.constant 7 : i32
    %173 = arith.subi %c7_i32_103, %c1_i32_93 : i32
    %174 = arith.index_cast %173 : i32 to index
    %c0_104 = arith.constant 0 : index
    %c128_105 = arith.constant 128 : index
    %175 = vector.load %arg5[%174, %c0_104, %c128_105] : memref<8x2x256xbf16, #tpu.memory_space<vmem>>, vector<1x2x128xbf16>
    %176 = vector.shape_cast %175 : vector<1x2x128xbf16> to vector<2x128xbf16>
    %177 = vector.shape_cast %172 : vector<2x128xbf16> to vector<1x2x128xbf16>
    tpu.vector_store %arg5[%174, %c0_104, %c128_105], %177 {strides = array<i32>} : memref<8x2x256xbf16, #tpu.memory_space<vmem>>, vector<1x2x128xbf16>,
    %c2_i32_106 = arith.constant 2 : i32
    %c0_107 = arith.constant 0 : index
    %c0_108 = arith.constant 0 : index
    %178 = vector.load %arg7[%c0_107, %c0_108] : memref<2x256xf32, #tpu.memory_space<vmem>>, vector<2x256xf32>
    %179 = arith.truncf %178 : vector<2x256xf32> to vector<2x256xbf16>
    %cst_109 = arith.constant dense<0.000000e+00> : vector<2x256xf32>
    %180 = tpu.matmul %179, %1, %cst_109 {dimension_numbers = #tpu.dot_dimension_numbers<[1], [0], [0], [1], [0, 0, 1, 1], [], []>} : vector<2x256xbf16>, vector<256x256xbf16>, vector<2x256xf32> -> vector<2x256xf32>
    %181 = arith.index_cast %c2_i32_106 : i32 to index
    %c0_110 = arith.constant 0 : index
    %c0_111 = arith.constant 0 : index
    %182 = vector.load %arg6[%181, %c0_110, %c0_111] : memref<8x2x256xf32, #tpu.memory_space<vmem>>, vector<1x2x256xf32>
    %183 = vector.shape_cast %182 : vector<1x2x256xf32> to vector<2x256xf32>
    %184 = arith.addf %183, %180 : vector<2x256xf32>
    %185 = math.tanh %184 : vector<2x256xf32>
    %c0_112 = arith.constant 0 : index
    %c0_113 = arith.constant 0 : index
    %186 = vector.load %arg7[%c0_112, %c0_113] : memref<2x256xf32, #tpu.memory_space<vmem>>, vector<2x256xf32>
    tpu.vector_store %arg7[%c0_112, %c0_113], %185 {strides = array<i32>} : memref<2x256xf32, #tpu.memory_space<vmem>>, vector<2x256xf32>,
    %187 = vector.extract_strided_slice %185 {offsets = [0, 0], sizes = [2, 128], strides = [1, 1]} : vector<2x256xf32> to vector<2x128xf32>
    %188 = arith.truncf %187 : vector<2x128xf32> to vector<2x128xbf16>
    %189 = arith.index_cast %c2_i32_106 : i32 to index
    %c0_114 = arith.constant 0 : index
    %c0_115 = arith.constant 0 : index
    %190 = vector.load %arg5[%189, %c0_114, %c0_115] : memref<8x2x256xbf16, #tpu.memory_space<vmem>>, vector<1x2x128xbf16>
    %191 = vector.shape_cast %190 : vector<1x2x128xbf16> to vector<2x128xbf16>
    %192 = vector.shape_cast %188 : vector<2x128xbf16> to vector<1x2x128xbf16>
    tpu.vector_store %arg5[%189, %c0_114, %c0_115], %192 {strides = array<i32>} : memref<8x2x256xbf16, #tpu.memory_space<vmem>>, vector<1x2x128xbf16>,
    %193 = vector.extract_strided_slice %185 {offsets = [0, 128], sizes = [2, 128], strides = [1, 1]} : vector<2x256xf32> to vector<2x128xf32>
    %194 = arith.truncf %193 : vector<2x128xf32> to vector<2x128xbf16>
    %c7_i32_116 = arith.constant 7 : i32
    %195 = arith.subi %c7_i32_116, %c2_i32_106 : i32
    %196 = arith.index_cast %195 : i32 to index
    %c0_117 = arith.constant 0 : index
    %c128_118 = arith.constant 128 : index
    %197 = vector.load %arg5[%196, %c0_117, %c128_118] : memref<8x2x256xbf16, #tpu.memory_space<vmem>>, vector<1x2x128xbf16>
    %198 = vector.shape_cast %197 : vector<1x2x128xbf16> to vector<2x128xbf16>
    %199 = vector.shape_cast %194 : vector<2x128xbf16> to vector<1x2x128xbf16>
    tpu.vector_store %arg5[%196, %c0_117, %c128_118], %199 {strides = array<i32>} : memref<8x2x256xbf16, #tpu.memory_space<vmem>>, vector<1x2x128xbf16>,
    %c3_i32_119 = arith.constant 3 : i32
    %c0_120 = arith.constant 0 : index
    %c0_121 = arith.constant 0 : index
    %200 = vector.load %arg7[%c0_120, %c0_121] : memref<2x256xf32, #tpu.memory_space<vmem>>, vector<2x256xf32>
    %201 = arith.truncf %200 : vector<2x256xf32> to vector<2x256xbf16>
    %cst_122 = arith.constant dense<0.000000e+00> : vector<2x256xf32>
    %202 = tpu.matmul %201, %1, %cst_122 {dimension_numbers = #tpu.dot_dimension_numbers<[1], [0], [0], [1], [0, 0, 1, 1], [], []>} : vector<2x256xbf16>, vector<256x256xbf16>, vector<2x256xf32> -> vector<2x256xf32>
    %203 = arith.index_cast %c3_i32_119 : i32 to index
    %c0_123 = arith.constant 0 : index
    %c0_124 = arith.constant 0 : index
    %204 = vector.load %arg6[%203, %c0_123, %c0_124] : memref<8x2x256xf32, #tpu.memory_space<vmem>>, vector<1x2x256xf32>
    %205 = vector.shape_cast %204 : vector<1x2x256xf32> to vector<2x256xf32>
    %206 = arith.addf %205, %202 : vector<2x256xf32>
    %207 = math.tanh %206 : vector<2x256xf32>
    %c0_125 = arith.constant 0 : index
    %c0_126 = arith.constant 0 : index
    %208 = vector.load %arg7[%c0_125, %c0_126] : memref<2x256xf32, #tpu.memory_space<vmem>>, vector<2x256xf32>
    tpu.vector_store %arg7[%c0_125, %c0_126], %207 {strides = array<i32>} : memref<2x256xf32, #tpu.memory_space<vmem>>, vector<2x256xf32>,
    %209 = vector.extract_strided_slice %207 {offsets = [0, 0], sizes = [2, 128], strides = [1, 1]} : vector<2x256xf32> to vector<2x128xf32>
    %210 = arith.truncf %209 : vector<2x128xf32> to vector<2x128xbf16>
    %211 = arith.index_cast %c3_i32_119 : i32 to index
    %c0_127 = arith.constant 0 : index
    %c0_128 = arith.constant 0 : index
    %212 = vector.load %arg5[%211, %c0_127, %c0_128] : memref<8x2x256xbf16, #tpu.memory_space<vmem>>, vector<1x2x128xbf16>
    %213 = vector.shape_cast %212 : vector<1x2x128xbf16> to vector<2x128xbf16>
    %214 = vector.shape_cast %210 : vector<2x128xbf16> to vector<1x2x128xbf16>
    tpu.vector_store %arg5[%211, %c0_127, %c0_128], %214 {strides = array<i32>} : memref<8x2x256xbf16, #tpu.memory_space<vmem>>, vector<1x2x128xbf16>,
    %215 = vector.extract_strided_slice %207 {offsets = [0, 128], sizes = [2, 128], strides = [1, 1]} : vector<2x256xf32> to vector<2x128xf32>
    %216 = arith.truncf %215 : vector<2x128xf32> to vector<2x128xbf16>
    %c7_i32_129 = arith.constant 7 : i32
    %217 = arith.subi %c7_i32_129, %c3_i32_119 : i32
    %218 = arith.index_cast %217 : i32 to index
    %c0_130 = arith.constant 0 : index
    %c128_131 = arith.constant 128 : index
    %219 = vector.load %arg5[%218, %c0_130, %c128_131] : memref<8x2x256xbf16, #tpu.memory_space<vmem>>, vector<1x2x128xbf16>
    %220 = vector.shape_cast %219 : vector<1x2x128xbf16> to vector<2x128xbf16>
    %221 = vector.shape_cast %216 : vector<2x128xbf16> to vector<1x2x128xbf16>
    tpu.vector_store %arg5[%218, %c0_130, %c128_131], %221 {strides = array<i32>} : memref<8x2x256xbf16, #tpu.memory_space<vmem>>, vector<1x2x128xbf16>,
    %c4_i32_132 = arith.constant 4 : i32
    %c0_133 = arith.constant 0 : index
    %c0_134 = arith.constant 0 : index
    %222 = vector.load %arg7[%c0_133, %c0_134] : memref<2x256xf32, #tpu.memory_space<vmem>>, vector<2x256xf32>
    %223 = arith.truncf %222 : vector<2x256xf32> to vector<2x256xbf16>
    %cst_135 = arith.constant dense<0.000000e+00> : vector<2x256xf32>
    %224 = tpu.matmul %223, %1, %cst_135 {dimension_numbers = #tpu.dot_dimension_numbers<[1], [0], [0], [1], [0, 0, 1, 1], [], []>} : vector<2x256xbf16>, vector<256x256xbf16>, vector<2x256xf32> -> vector<2x256xf32>
    %225 = arith.index_cast %c4_i32_132 : i32 to index
    %c0_136 = arith.constant 0 : index
    %c0_137 = arith.constant 0 : index
    %226 = vector.load %arg6[%225, %c0_136, %c0_137] : memref<8x2x256xf32, #tpu.memory_space<vmem>>, vector<1x2x256xf32>
    %227 = vector.shape_cast %226 : vector<1x2x256xf32> to vector<2x256xf32>
    %228 = arith.addf %227, %224 : vector<2x256xf32>
    %229 = math.tanh %228 : vector<2x256xf32>
    %c0_138 = arith.constant 0 : index
    %c0_139 = arith.constant 0 : index
    %230 = vector.load %arg7[%c0_138, %c0_139] : memref<2x256xf32, #tpu.memory_space<vmem>>, vector<2x256xf32>
    tpu.vector_store %arg7[%c0_138, %c0_139], %229 {strides = array<i32>} : memref<2x256xf32, #tpu.memory_space<vmem>>, vector<2x256xf32>,
    %231 = vector.extract_strided_slice %229 {offsets = [0, 0], sizes = [2, 128], strides = [1, 1]} : vector<2x256xf32> to vector<2x128xf32>
    %232 = arith.truncf %231 : vector<2x128xf32> to vector<2x128xbf16>
    %233 = arith.index_cast %c4_i32_132 : i32 to index
    %c0_140 = arith.constant 0 : index
    %c0_141 = arith.constant 0 : index
    %234 = vector.load %arg5[%233, %c0_140, %c0_141] : memref<8x2x256xbf16, #tpu.memory_space<vmem>>, vector<1x2x128xbf16>
    %235 = vector.shape_cast %234 : vector<1x2x128xbf16> to vector<2x128xbf16>
    %236 = vector.shape_cast %232 : vector<2x128xbf16> to vector<1x2x128xbf16>
    tpu.vector_store %arg5[%233, %c0_140, %c0_141], %236 {strides = array<i32>} : memref<8x2x256xbf16, #tpu.memory_space<vmem>>, vector<1x2x128xbf16>,
    %237 = vector.extract_strided_slice %229 {offsets = [0, 128], sizes = [2, 128], strides = [1, 1]} : vector<2x256xf32> to vector<2x128xf32>
    %238 = arith.truncf %237 : vector<2x128xf32> to vector<2x128xbf16>
    %c7_i32_142 = arith.constant 7 : i32
    %239 = arith.subi %c7_i32_142, %c4_i32_132 : i32
    %240 = arith.index_cast %239 : i32 to index
    %c0_143 = arith.constant 0 : index
    %c128_144 = arith.constant 128 : index
    %241 = vector.load %arg5[%240, %c0_143, %c128_144] : memref<8x2x256xbf16, #tpu.memory_space<vmem>>, vector<1x2x128xbf16>
    %242 = vector.shape_cast %241 : vector<1x2x128xbf16> to vector<2x128xbf16>
    %243 = vector.shape_cast %238 : vector<2x128xbf16> to vector<1x2x128xbf16>
    tpu.vector_store %arg5[%240, %c0_143, %c128_144], %243 {strides = array<i32>} : memref<8x2x256xbf16, #tpu.memory_space<vmem>>, vector<1x2x128xbf16>,
    %c5_i32_145 = arith.constant 5 : i32
    %c0_146 = arith.constant 0 : index
    %c0_147 = arith.constant 0 : index
    %244 = vector.load %arg7[%c0_146, %c0_147] : memref<2x256xf32, #tpu.memory_space<vmem>>, vector<2x256xf32>
    %245 = arith.truncf %244 : vector<2x256xf32> to vector<2x256xbf16>
    %cst_148 = arith.constant dense<0.000000e+00> : vector<2x256xf32>
    %246 = tpu.matmul %245, %1, %cst_148 {dimension_numbers = #tpu.dot_dimension_numbers<[1], [0], [0], [1], [0, 0, 1, 1], [], []>} : vector<2x256xbf16>, vector<256x256xbf16>, vector<2x256xf32> -> vector<2x256xf32>
    %247 = arith.index_cast %c5_i32_145 : i32 to index
    %c0_149 = arith.constant 0 : index
    %c0_150 = arith.constant 0 : index
    %248 = vector.load %arg6[%247, %c0_149, %c0_150] : memref<8x2x256xf32, #tpu.memory_space<vmem>>, vector<1x2x256xf32>
    %249 = vector.shape_cast %248 : vector<1x2x256xf32> to vector<2x256xf32>
    %250 = arith.addf %249, %246 : vector<2x256xf32>
    %251 = math.tanh %250 : vector<2x256xf32>
    %c0_151 = arith.constant 0 : index
    %c0_152 = arith.constant 0 : index
    %252 = vector.load %arg7[%c0_151, %c0_152] : memref<2x256xf32, #tpu.memory_space<vmem>>, vector<2x256xf32>
    tpu.vector_store %arg7[%c0_151, %c0_152], %251 {strides = array<i32>} : memref<2x256xf32, #tpu.memory_space<vmem>>, vector<2x256xf32>,
    %253 = vector.extract_strided_slice %251 {offsets = [0, 0], sizes = [2, 128], strides = [1, 1]} : vector<2x256xf32> to vector<2x128xf32>
    %254 = arith.truncf %253 : vector<2x128xf32> to vector<2x128xbf16>
    %255 = arith.index_cast %c5_i32_145 : i32 to index
    %c0_153 = arith.constant 0 : index
    %c0_154 = arith.constant 0 : index
    %256 = vector.load %arg5[%255, %c0_153, %c0_154] : memref<8x2x256xbf16, #tpu.memory_space<vmem>>, vector<1x2x128xbf16>
    %257 = vector.shape_cast %256 : vector<1x2x128xbf16> to vector<2x128xbf16>
    %258 = vector.shape_cast %254 : vector<2x128xbf16> to vector<1x2x128xbf16>
    tpu.vector_store %arg5[%255, %c0_153, %c0_154], %258 {strides = array<i32>} : memref<8x2x256xbf16, #tpu.memory_space<vmem>>, vector<1x2x128xbf16>,
    %259 = vector.extract_strided_slice %251 {offsets = [0, 128], sizes = [2, 128], strides = [1, 1]} : vector<2x256xf32> to vector<2x128xf32>
    %260 = arith.truncf %259 : vector<2x128xf32> to vector<2x128xbf16>
    %c7_i32_155 = arith.constant 7 : i32
    %261 = arith.subi %c7_i32_155, %c5_i32_145 : i32
    %262 = arith.index_cast %261 : i32 to index
    %c0_156 = arith.constant 0 : index
    %c128_157 = arith.constant 128 : index
    %263 = vector.load %arg5[%262, %c0_156, %c128_157] : memref<8x2x256xbf16, #tpu.memory_space<vmem>>, vector<1x2x128xbf16>
    %264 = vector.shape_cast %263 : vector<1x2x128xbf16> to vector<2x128xbf16>
    %265 = vector.shape_cast %260 : vector<2x128xbf16> to vector<1x2x128xbf16>
    tpu.vector_store %arg5[%262, %c0_156, %c128_157], %265 {strides = array<i32>} : memref<8x2x256xbf16, #tpu.memory_space<vmem>>, vector<1x2x128xbf16>,
    %c6_i32_158 = arith.constant 6 : i32
    %c0_159 = arith.constant 0 : index
    %c0_160 = arith.constant 0 : index
    %266 = vector.load %arg7[%c0_159, %c0_160] : memref<2x256xf32, #tpu.memory_space<vmem>>, vector<2x256xf32>
    %267 = arith.truncf %266 : vector<2x256xf32> to vector<2x256xbf16>
    %cst_161 = arith.constant dense<0.000000e+00> : vector<2x256xf32>
    %268 = tpu.matmul %267, %1, %cst_161 {dimension_numbers = #tpu.dot_dimension_numbers<[1], [0], [0], [1], [0, 0, 1, 1], [], []>} : vector<2x256xbf16>, vector<256x256xbf16>, vector<2x256xf32> -> vector<2x256xf32>
    %269 = arith.index_cast %c6_i32_158 : i32 to index
    %c0_162 = arith.constant 0 : index
    %c0_163 = arith.constant 0 : index
    %270 = vector.load %arg6[%269, %c0_162, %c0_163] : memref<8x2x256xf32, #tpu.memory_space<vmem>>, vector<1x2x256xf32>
    %271 = vector.shape_cast %270 : vector<1x2x256xf32> to vector<2x256xf32>
    %272 = arith.addf %271, %268 : vector<2x256xf32>
    %273 = math.tanh %272 : vector<2x256xf32>
    %c0_164 = arith.constant 0 : index
    %c0_165 = arith.constant 0 : index
    %274 = vector.load %arg7[%c0_164, %c0_165] : memref<2x256xf32, #tpu.memory_space<vmem>>, vector<2x256xf32>
    tpu.vector_store %arg7[%c0_164, %c0_165], %273 {strides = array<i32>} : memref<2x256xf32, #tpu.memory_space<vmem>>, vector<2x256xf32>,
    %275 = vector.extract_strided_slice %273 {offsets = [0, 0], sizes = [2, 128], strides = [1, 1]} : vector<2x256xf32> to vector<2x128xf32>
    %276 = arith.truncf %275 : vector<2x128xf32> to vector<2x128xbf16>
    %277 = arith.index_cast %c6_i32_158 : i32 to index
    %c0_166 = arith.constant 0 : index
    %c0_167 = arith.constant 0 : index
    %278 = vector.load %arg5[%277, %c0_166, %c0_167] : memref<8x2x256xbf16, #tpu.memory_space<vmem>>, vector<1x2x128xbf16>
    %279 = vector.shape_cast %278 : vector<1x2x128xbf16> to vector<2x128xbf16>
    %280 = vector.shape_cast %276 : vector<2x128xbf16> to vector<1x2x128xbf16>
    tpu.vector_store %arg5[%277, %c0_166, %c0_167], %280 {strides = array<i32>} : memref<8x2x256xbf16, #tpu.memory_space<vmem>>, vector<1x2x128xbf16>,
    %281 = vector.extract_strided_slice %273 {offsets = [0, 128], sizes = [2, 128], strides = [1, 1]} : vector<2x256xf32> to vector<2x128xf32>
    %282 = arith.truncf %281 : vector<2x128xf32> to vector<2x128xbf16>
    %c7_i32_168 = arith.constant 7 : i32
    %283 = arith.subi %c7_i32_168, %c6_i32_158 : i32
    %284 = arith.index_cast %283 : i32 to index
    %c0_169 = arith.constant 0 : index
    %c128_170 = arith.constant 128 : index
    %285 = vector.load %arg5[%284, %c0_169, %c128_170] : memref<8x2x256xbf16, #tpu.memory_space<vmem>>, vector<1x2x128xbf16>
    %286 = vector.shape_cast %285 : vector<1x2x128xbf16> to vector<2x128xbf16>
    %287 = vector.shape_cast %282 : vector<2x128xbf16> to vector<1x2x128xbf16>
    tpu.vector_store %arg5[%284, %c0_169, %c128_170], %287 {strides = array<i32>} : memref<8x2x256xbf16, #tpu.memory_space<vmem>>, vector<1x2x128xbf16>,
    %c7_i32_171 = arith.constant 7 : i32
    %c0_172 = arith.constant 0 : index
    %c0_173 = arith.constant 0 : index
    %288 = vector.load %arg7[%c0_172, %c0_173] : memref<2x256xf32, #tpu.memory_space<vmem>>, vector<2x256xf32>
    %289 = arith.truncf %288 : vector<2x256xf32> to vector<2x256xbf16>
    %cst_174 = arith.constant dense<0.000000e+00> : vector<2x256xf32>
    %290 = tpu.matmul %289, %1, %cst_174 {dimension_numbers = #tpu.dot_dimension_numbers<[1], [0], [0], [1], [0, 0, 1, 1], [], []>} : vector<2x256xbf16>, vector<256x256xbf16>, vector<2x256xf32> -> vector<2x256xf32>
    %291 = arith.index_cast %c7_i32_171 : i32 to index
    %c0_175 = arith.constant 0 : index
    %c0_176 = arith.constant 0 : index
    %292 = vector.load %arg6[%291, %c0_175, %c0_176] : memref<8x2x256xf32, #tpu.memory_space<vmem>>, vector<1x2x256xf32>
    %293 = vector.shape_cast %292 : vector<1x2x256xf32> to vector<2x256xf32>
    %294 = arith.addf %293, %290 : vector<2x256xf32>
    %295 = math.tanh %294 : vector<2x256xf32>
    %c0_177 = arith.constant 0 : index
    %c0_178 = arith.constant 0 : index
    %296 = vector.load %arg7[%c0_177, %c0_178] : memref<2x256xf32, #tpu.memory_space<vmem>>, vector<2x256xf32>
    tpu.vector_store %arg7[%c0_177, %c0_178], %295 {strides = array<i32>} : memref<2x256xf32, #tpu.memory_space<vmem>>, vector<2x256xf32>,
    %297 = vector.extract_strided_slice %295 {offsets = [0, 0], sizes = [2, 128], strides = [1, 1]} : vector<2x256xf32> to vector<2x128xf32>
    %298 = arith.truncf %297 : vector<2x128xf32> to vector<2x128xbf16>
    %299 = arith.index_cast %c7_i32_171 : i32 to index
    %c0_179 = arith.constant 0 : index
    %c0_180 = arith.constant 0 : index
    %300 = vector.load %arg5[%299, %c0_179, %c0_180] : memref<8x2x256xbf16, #tpu.memory_space<vmem>>, vector<1x2x128xbf16>
    %301 = vector.shape_cast %300 : vector<1x2x128xbf16> to vector<2x128xbf16>
    %302 = vector.shape_cast %298 : vector<2x128xbf16> to vector<1x2x128xbf16>
    tpu.vector_store %arg5[%299, %c0_179, %c0_180], %302 {strides = array<i32>} : memref<8x2x256xbf16, #tpu.memory_space<vmem>>, vector<1x2x128xbf16>,
    %303 = vector.extract_strided_slice %295 {offsets = [0, 128], sizes = [2, 128], strides = [1, 1]} : vector<2x256xf32> to vector<2x128xf32>
    %304 = arith.truncf %303 : vector<2x128xf32> to vector<2x128xbf16>
    %c7_i32_181 = arith.constant 7 : i32
    %305 = arith.subi %c7_i32_181, %c7_i32_171 : i32
    %306 = arith.index_cast %305 : i32 to index
    %c0_182 = arith.constant 0 : index
    %c128_183 = arith.constant 128 : index
    %307 = vector.load %arg5[%306, %c0_182, %c128_183] : memref<8x2x256xbf16, #tpu.memory_space<vmem>>, vector<1x2x128xbf16>
    %308 = vector.shape_cast %307 : vector<1x2x128xbf16> to vector<2x128xbf16>
    %309 = vector.shape_cast %304 : vector<2x128xbf16> to vector<1x2x128xbf16>
    tpu.vector_store %arg5[%306, %c0_182, %c128_183], %309 {strides = array<i32>} : memref<8x2x256xbf16, #tpu.memory_space<vmem>>, vector<1x2x128xbf16>,
    %c8_i32_184 = arith.constant 8 : i32
    return
  }
  func.func @transform_0(%arg0: i32) -> (i32, i32, i32) {
    %c0_i32 = arith.constant 0 : i32
    %c0_i32_0 = arith.constant 0 : i32
    %c0_i32_1 = arith.constant 0 : i32
    return %c0_i32, %arg0, %c0_i32_0 : i32, i32, i32
  }
  func.func @transform_1(%arg0: i32) -> (i32, i32) {
    %c0_i32 = arith.constant 0 : i32
    %c0_i32_0 = arith.constant 0 : i32
    %c0_i32_1 = arith.constant 0 : i32
    return %c0_i32, %c0_i32_0 : i32, i32
  }
  func.func @transform_2(%arg0: i32) -> (i32, i32) {
    %c0_i32 = arith.constant 0 : i32
    %c0_i32_0 = arith.constant 0 : i32
    %c0_i32_1 = arith.constant 0 : i32
    return %c0_i32, %c0_i32_0 : i32, i32
  }
  func.func @transform_3(%arg0: i32) -> (i32, i32) {
    %c0_i32 = arith.constant 0 : i32
    %c0_i32_0 = arith.constant 0 : i32
    %c0_i32_1 = arith.constant 0 : i32
    return %c0_i32, %c0_i32_0 : i32, i32
  }
  func.func @transform_4(%arg0: i32) -> (i32, i32, i32) {
    %c0_i32 = arith.constant 0 : i32
    %c0_i32_0 = arith.constant 0 : i32
    %c0_i32_1 = arith.constant 0 : i32
    return %c0_i32, %arg0, %c0_i32_0 : i32, i32, i32
  }
}

module attributes {stable_mosaic.version = 11 : i64} {
  func.func @kernel(%arg0: i32, %arg1: memref<8x2x256xbf16, #tpu.memory_space<vmem>>, %arg2: memref<256x256xbf16, #tpu.memory_space<vmem>>, %arg3: memref<256x256xbf16, #tpu.memory_space<vmem>>, %arg4: memref<1x256xf32, #tpu.memory_space<vmem>>, %arg5: memref<8x2x256xbf16, #tpu.memory_space<vmem>>, %arg6: memref<8x2x256xf32, #tpu.memory_space<vmem>>, %arg7: memref<2x256xf32, #tpu.memory_space<vmem>>) attributes {dimension_semantics = [#tpu.dimension_semantics<parallel>], iteration_bounds = array<i64: 1>, scalar_prefetch = 0 : i64, scratch_operands = 2 : i64, tpu.core_type = #tpu.core_type<tc>, window_params = [{transform_indices = @transform_0, window_bounds = array<i64: 8, 2, 256>}, {pipeline_mode = #tpu.pipeline_mode<synchronous>, transform_indices = @transform_1, window_bounds = array<i64: 256, 256>}, {pipeline_mode = #tpu.pipeline_mode<synchronous>, transform_indices = @transform_2, window_bounds = array<i64: 256, 256>}, {pipeline_mode = #tpu.pipeline_mode<synchronous>, transform_indices = @transform_3, window_bounds = array<i64: 1, 256>}, {transform_indices = @transform_4, window_bounds = array<i64: 8, 2, 256>}]} {
    %c0 = arith.constant 0 : index
    %c0_0 = arith.constant 0 : index
    %0 = vector.load %arg4[%c0, %c0_0] : memref<1x256xf32, #tpu.memory_space<vmem>>, vector<1x256xf32>
    %c0_1 = arith.constant 0 : index
    %c0_2 = arith.constant 0 : index
    %1 = vector.load %arg3[%c0_1, %c0_2] : memref<256x256xbf16, #tpu.memory_space<vmem>>, vector<256x256xbf16>
    %c0_3 = arith.constant 0 : index
    %c0_4 = arith.constant 0 : index
    %2 = vector.load %arg2[%c0_3, %c0_4] : memref<256x256xbf16, #tpu.memory_space<vmem>>, vector<256x128xbf16>
    %c0_5 = arith.constant 0 : index
    %c128 = arith.constant 128 : index
    %3 = vector.load %arg2[%c0_5, %c128] : memref<256x256xbf16, #tpu.memory_space<vmem>>, vector<256x128xbf16>
    %c0_i32 = arith.constant 0 : i32
    %4 = arith.index_cast %c0_i32 : i32 to index
    %c0_6 = arith.constant 0 : index
    %c0_7 = arith.constant 0 : index
    %5 = vector.load %arg1[%4, %c0_6, %c0_7] : memref<8x2x256xbf16, #tpu.memory_space<vmem>>, vector<1x2x256xbf16>
    %6 = vector.shape_cast %5 : vector<1x2x256xbf16> to vector<2x256xbf16>
    %cst = arith.constant dense<0.000000e+00> : vector<2x128xf32>
    %7 = tpu.matmul %6, %2, %cst {dimension_numbers = #tpu.dot_dimension_numbers<[1], [0], [0], [1], [0, 0, 1, 1], [], []>} : vector<2x256xbf16>, vector<256x128xbf16>, vector<2x128xf32> -> vector<2x128xf32>
    %c7_i32 = arith.constant 7 : i32
    %8 = arith.subi %c7_i32, %c0_i32 : i32
    %9 = arith.index_cast %8 : i32 to index
    %c0_8 = arith.constant 0 : index
    %c0_9 = arith.constant 0 : index
    %10 = vector.load %arg1[%9, %c0_8, %c0_9] : memref<8x2x256xbf16, #tpu.memory_space<vmem>>, vector<1x2x256xbf16>
    %11 = vector.shape_cast %10 : vector<1x2x256xbf16> to vector<2x256xbf16>
    %cst_10 = arith.constant dense<0.000000e+00> : vector<2x128xf32>
    %12 = tpu.matmul %11, %3, %cst_10 {dimension_numbers = #tpu.dot_dimension_numbers<[1], [0], [0], [1], [0, 0, 1, 1], [], []>} : vector<2x256xbf16>, vector<256x128xbf16>, vector<2x128xf32> -> vector<2x128xf32>
    %13 = tpu.concatenate %7, %12 in 1 : vector<2x128xf32>, vector<2x128xf32> -> vector<2x256xf32>
    %14 = vector.broadcast %0 : vector<1x256xf32> to vector<2x256xf32>
    %15 = arith.addf %13, %14 : vector<2x256xf32>
    %16 = arith.index_cast %c0_i32 : i32 to index
    %c0_11 = arith.constant 0 : index
    %c0_12 = arith.constant 0 : index
    %17 = vector.load %arg6[%16, %c0_11, %c0_12] : memref<8x2x256xf32, #tpu.memory_space<vmem>>, vector<1x2x256xf32>
    %18 = vector.shape_cast %17 : vector<1x2x256xf32> to vector<2x256xf32>
    %19 = vector.shape_cast %15 : vector<2x256xf32> to vector<1x2x256xf32>
    tpu.vector_store %arg6[%16, %c0_11, %c0_12], %19 {strides = array<i32>} : memref<8x2x256xf32, #tpu.memory_space<vmem>>, vector<1x2x256xf32>,
    %c1_i32 = arith.constant 1 : i32
    %20 = arith.index_cast %c1_i32 : i32 to index
    %c0_13 = arith.constant 0 : index
    %c0_14 = arith.constant 0 : index
    %21 = vector.load %arg1[%20, %c0_13, %c0_14] : memref<8x2x256xbf16, #tpu.memory_space<vmem>>, vector<1x2x256xbf16>
    %22 = vector.shape_cast %21 : vector<1x2x256xbf16> to vector<2x256xbf16>
    %cst_15 = arith.constant dense<0.000000e+00> : vector<2x128xf32>
    %23 = tpu.matmul %22, %2, %cst_15 {dimension_numbers = #tpu.dot_dimension_numbers<[1], [0], [0], [1], [0, 0, 1, 1], [], []>} : vector<2x256xbf16>, vector<256x128xbf16>, vector<2x128xf32> -> vector<2x128xf32>
    %c7_i32_16 = arith.constant 7 : i32
    %24 = arith.subi %c7_i32_16, %c1_i32 : i32
    %25 = arith.index_cast %24 : i32 to index
    %c0_17 = arith.constant 0 : index
    %c0_18 = arith.constant 0 : index
    %26 = vector.load %arg1[%25, %c0_17, %c0_18] : memref<8x2x256xbf16, #tpu.memory_space<vmem>>, vector<1x2x256xbf16>
    %27 = vector.shape_cast %26 : vector<1x2x256xbf16> to vector<2x256xbf16>
    %cst_19 = arith.constant dense<0.000000e+00> : vector<2x128xf32>
    %28 = tpu.matmul %27, %3, %cst_19 {dimension_numbers = #tpu.dot_dimension_numbers<[1], [0], [0], [1], [0, 0, 1, 1], [], []>} : vector<2x256xbf16>, vector<256x128xbf16>, vector<2x128xf32> -> vector<2x128xf32>
    %29 = tpu.concatenate %23, %28 in 1 : vector<2x128xf32>, vector<2x128xf32> -> vector<2x256xf32>
    %30 = vector.broadcast %0 : vector<1x256xf32> to vector<2x256xf32>
    %31 = arith.addf %29, %30 : vector<2x256xf32>
    %32 = arith.index_cast %c1_i32 : i32 to index
    %c0_20 = arith.constant 0 : index
    %c0_21 = arith.constant 0 : index
    %33 = vector.load %arg6[%32, %c0_20, %c0_21] : memref<8x2x256xf32, #tpu.memory_space<vmem>>, vector<1x2x256xf32>
    %34 = vector.shape_cast %33 : vector<1x2x256xf32> to vector<2x256xf32>
    %35 = vector.shape_cast %31 : vector<2x256xf32> to vector<1x2x256xf32>
    tpu.vector_store %arg6[%32, %c0_20, %c0_21], %35 {strides = array<i32>} : memref<8x2x256xf32, #tpu.memory_space<vmem>>, vector<1x2x256xf32>,
    %c2_i32 = arith.constant 2 : i32
    %36 = arith.index_cast %c2_i32 : i32 to index
    %c0_22 = arith.constant 0 : index
    %c0_23 = arith.constant 0 : index
    %37 = vector.load %arg1[%36, %c0_22, %c0_23] : memref<8x2x256xbf16, #tpu.memory_space<vmem>>, vector<1x2x256xbf16>
    %38 = vector.shape_cast %37 : vector<1x2x256xbf16> to vector<2x256xbf16>
    %cst_24 = arith.constant dense<0.000000e+00> : vector<2x128xf32>
    %39 = tpu.matmul %38, %2, %cst_24 {dimension_numbers = #tpu.dot_dimension_numbers<[1], [0], [0], [1], [0, 0, 1, 1], [], []>} : vector<2x256xbf16>, vector<256x128xbf16>, vector<2x128xf32> -> vector<2x128xf32>
    %c7_i32_25 = arith.constant 7 : i32
    %40 = arith.subi %c7_i32_25, %c2_i32 : i32
    %41 = arith.index_cast %40 : i32 to index
    %c0_26 = arith.constant 0 : index
    %c0_27 = arith.constant 0 : index
    %42 = vector.load %arg1[%41, %c0_26, %c0_27] : memref<8x2x256xbf16, #tpu.memory_space<vmem>>, vector<1x2x256xbf16>
    %43 = vector.shape_cast %42 : vector<1x2x256xbf16> to vector<2x256xbf16>
    %cst_28 = arith.constant dense<0.000000e+00> : vector<2x128xf32>
    %44 = tpu.matmul %43, %3, %cst_28 {dimension_numbers = #tpu.dot_dimension_numbers<[1], [0], [0], [1], [0, 0, 1, 1], [], []>} : vector<2x256xbf16>, vector<256x128xbf16>, vector<2x128xf32> -> vector<2x128xf32>
    %45 = tpu.concatenate %39, %44 in 1 : vector<2x128xf32>, vector<2x128xf32> -> vector<2x256xf32>
    %46 = vector.broadcast %0 : vector<1x256xf32> to vector<2x256xf32>
    %47 = arith.addf %45, %46 : vector<2x256xf32>
    %48 = arith.index_cast %c2_i32 : i32 to index
    %c0_29 = arith.constant 0 : index
    %c0_30 = arith.constant 0 : index
    %49 = vector.load %arg6[%48, %c0_29, %c0_30] : memref<8x2x256xf32, #tpu.memory_space<vmem>>, vector<1x2x256xf32>
    %50 = vector.shape_cast %49 : vector<1x2x256xf32> to vector<2x256xf32>
    %51 = vector.shape_cast %47 : vector<2x256xf32> to vector<1x2x256xf32>
    tpu.vector_store %arg6[%48, %c0_29, %c0_30], %51 {strides = array<i32>} : memref<8x2x256xf32, #tpu.memory_space<vmem>>, vector<1x2x256xf32>,
    %c3_i32 = arith.constant 3 : i32
    %52 = arith.index_cast %c3_i32 : i32 to index
    %c0_31 = arith.constant 0 : index
    %c0_32 = arith.constant 0 : index
    %53 = vector.load %arg1[%52, %c0_31, %c0_32] : memref<8x2x256xbf16, #tpu.memory_space<vmem>>, vector<1x2x256xbf16>
    %54 = vector.shape_cast %53 : vector<1x2x256xbf16> to vector<2x256xbf16>
    %cst_33 = arith.constant dense<0.000000e+00> : vector<2x128xf32>
    %55 = tpu.matmul %54, %2, %cst_33 {dimension_numbers = #tpu.dot_dimension_numbers<[1], [0], [0], [1], [0, 0, 1, 1], [], []>} : vector<2x256xbf16>, vector<256x128xbf16>, vector<2x128xf32> -> vector<2x128xf32>
    %c7_i32_34 = arith.constant 7 : i32
    %56 = arith.subi %c7_i32_34, %c3_i32 : i32
    %57 = arith.index_cast %56 : i32 to index
    %c0_35 = arith.constant 0 : index
    %c0_36 = arith.constant 0 : index
    %58 = vector.load %arg1[%57, %c0_35, %c0_36] : memref<8x2x256xbf16, #tpu.memory_space<vmem>>, vector<1x2x256xbf16>
    %59 = vector.shape_cast %58 : vector<1x2x256xbf16> to vector<2x256xbf16>
    %cst_37 = arith.constant dense<0.000000e+00> : vector<2x128xf32>
    %60 = tpu.matmul %59, %3, %cst_37 {dimension_numbers = #tpu.dot_dimension_numbers<[1], [0], [0], [1], [0, 0, 1, 1], [], []>} : vector<2x256xbf16>, vector<256x128xbf16>, vector<2x128xf32> -> vector<2x128xf32>
    %61 = tpu.concatenate %55, %60 in 1 : vector<2x128xf32>, vector<2x128xf32> -> vector<2x256xf32>
    %62 = vector.broadcast %0 : vector<1x256xf32> to vector<2x256xf32>
    %63 = arith.addf %61, %62 : vector<2x256xf32>
    %64 = arith.index_cast %c3_i32 : i32 to index
    %c0_38 = arith.constant 0 : index
    %c0_39 = arith.constant 0 : index
    %65 = vector.load %arg6[%64, %c0_38, %c0_39] : memref<8x2x256xf32, #tpu.memory_space<vmem>>, vector<1x2x256xf32>
    %66 = vector.shape_cast %65 : vector<1x2x256xf32> to vector<2x256xf32>
    %67 = vector.shape_cast %63 : vector<2x256xf32> to vector<1x2x256xf32>
    tpu.vector_store %arg6[%64, %c0_38, %c0_39], %67 {strides = array<i32>} : memref<8x2x256xf32, #tpu.memory_space<vmem>>, vector<1x2x256xf32>,
    %c4_i32 = arith.constant 4 : i32
    %68 = arith.index_cast %c4_i32 : i32 to index
    %c0_40 = arith.constant 0 : index
    %c0_41 = arith.constant 0 : index
    %69 = vector.load %arg1[%68, %c0_40, %c0_41] : memref<8x2x256xbf16, #tpu.memory_space<vmem>>, vector<1x2x256xbf16>
    %70 = vector.shape_cast %69 : vector<1x2x256xbf16> to vector<2x256xbf16>
    %cst_42 = arith.constant dense<0.000000e+00> : vector<2x128xf32>
    %71 = tpu.matmul %70, %2, %cst_42 {dimension_numbers = #tpu.dot_dimension_numbers<[1], [0], [0], [1], [0, 0, 1, 1], [], []>} : vector<2x256xbf16>, vector<256x128xbf16>, vector<2x128xf32> -> vector<2x128xf32>
    %c7_i32_43 = arith.constant 7 : i32
    %72 = arith.subi %c7_i32_43, %c4_i32 : i32
    %73 = arith.index_cast %72 : i32 to index
    %c0_44 = arith.constant 0 : index
    %c0_45 = arith.constant 0 : index
    %74 = vector.load %arg1[%73, %c0_44, %c0_45] : memref<8x2x256xbf16, #tpu.memory_space<vmem>>, vector<1x2x256xbf16>
    %75 = vector.shape_cast %74 : vector<1x2x256xbf16> to vector<2x256xbf16>
    %cst_46 = arith.constant dense<0.000000e+00> : vector<2x128xf32>
    %76 = tpu.matmul %75, %3, %cst_46 {dimension_numbers = #tpu.dot_dimension_numbers<[1], [0], [0], [1], [0, 0, 1, 1], [], []>} : vector<2x256xbf16>, vector<256x128xbf16>, vector<2x128xf32> -> vector<2x128xf32>
    %77 = tpu.concatenate %71, %76 in 1 : vector<2x128xf32>, vector<2x128xf32> -> vector<2x256xf32>
    %78 = vector.broadcast %0 : vector<1x256xf32> to vector<2x256xf32>
    %79 = arith.addf %77, %78 : vector<2x256xf32>
    %80 = arith.index_cast %c4_i32 : i32 to index
    %c0_47 = arith.constant 0 : index
    %c0_48 = arith.constant 0 : index
    %81 = vector.load %arg6[%80, %c0_47, %c0_48] : memref<8x2x256xf32, #tpu.memory_space<vmem>>, vector<1x2x256xf32>
    %82 = vector.shape_cast %81 : vector<1x2x256xf32> to vector<2x256xf32>
    %83 = vector.shape_cast %79 : vector<2x256xf32> to vector<1x2x256xf32>
    tpu.vector_store %arg6[%80, %c0_47, %c0_48], %83 {strides = array<i32>} : memref<8x2x256xf32, #tpu.memory_space<vmem>>, vector<1x2x256xf32>,
    %c5_i32 = arith.constant 5 : i32
    %84 = arith.index_cast %c5_i32 : i32 to index
    %c0_49 = arith.constant 0 : index
    %c0_50 = arith.constant 0 : index
    %85 = vector.load %arg1[%84, %c0_49, %c0_50] : memref<8x2x256xbf16, #tpu.memory_space<vmem>>, vector<1x2x256xbf16>
    %86 = vector.shape_cast %85 : vector<1x2x256xbf16> to vector<2x256xbf16>
    %cst_51 = arith.constant dense<0.000000e+00> : vector<2x128xf32>
    %87 = tpu.matmul %86, %2, %cst_51 {dimension_numbers = #tpu.dot_dimension_numbers<[1], [0], [0], [1], [0, 0, 1, 1], [], []>} : vector<2x256xbf16>, vector<256x128xbf16>, vector<2x128xf32> -> vector<2x128xf32>
    %c7_i32_52 = arith.constant 7 : i32
    %88 = arith.subi %c7_i32_52, %c5_i32 : i32
    %89 = arith.index_cast %88 : i32 to index
    %c0_53 = arith.constant 0 : index
    %c0_54 = arith.constant 0 : index
    %90 = vector.load %arg1[%89, %c0_53, %c0_54] : memref<8x2x256xbf16, #tpu.memory_space<vmem>>, vector<1x2x256xbf16>
    %91 = vector.shape_cast %90 : vector<1x2x256xbf16> to vector<2x256xbf16>
    %cst_55 = arith.constant dense<0.000000e+00> : vector<2x128xf32>
    %92 = tpu.matmul %91, %3, %cst_55 {dimension_numbers = #tpu.dot_dimension_numbers<[1], [0], [0], [1], [0, 0, 1, 1], [], []>} : vector<2x256xbf16>, vector<256x128xbf16>, vector<2x128xf32> -> vector<2x128xf32>
    %93 = tpu.concatenate %87, %92 in 1 : vector<2x128xf32>, vector<2x128xf32> -> vector<2x256xf32>
    %94 = vector.broadcast %0 : vector<1x256xf32> to vector<2x256xf32>
    %95 = arith.addf %93, %94 : vector<2x256xf32>
    %96 = arith.index_cast %c5_i32 : i32 to index
    %c0_56 = arith.constant 0 : index
    %c0_57 = arith.constant 0 : index
    %97 = vector.load %arg6[%96, %c0_56, %c0_57] : memref<8x2x256xf32, #tpu.memory_space<vmem>>, vector<1x2x256xf32>
    %98 = vector.shape_cast %97 : vector<1x2x256xf32> to vector<2x256xf32>
    %99 = vector.shape_cast %95 : vector<2x256xf32> to vector<1x2x256xf32>
    tpu.vector_store %arg6[%96, %c0_56, %c0_57], %99 {strides = array<i32>} : memref<8x2x256xf32, #tpu.memory_space<vmem>>, vector<1x2x256xf32>,
    %c6_i32 = arith.constant 6 : i32
    %100 = arith.index_cast %c6_i32 : i32 to index
    %c0_58 = arith.constant 0 : index
    %c0_59 = arith.constant 0 : index
    %101 = vector.load %arg1[%100, %c0_58, %c0_59] : memref<8x2x256xbf16, #tpu.memory_space<vmem>>, vector<1x2x256xbf16>
    %102 = vector.shape_cast %101 : vector<1x2x256xbf16> to vector<2x256xbf16>
    %cst_60 = arith.constant dense<0.000000e+00> : vector<2x128xf32>
    %103 = tpu.matmul %102, %2, %cst_60 {dimension_numbers = #tpu.dot_dimension_numbers<[1], [0], [0], [1], [0, 0, 1, 1], [], []>} : vector<2x256xbf16>, vector<256x128xbf16>, vector<2x128xf32> -> vector<2x128xf32>
    %c7_i32_61 = arith.constant 7 : i32
    %104 = arith.subi %c7_i32_61, %c6_i32 : i32
    %105 = arith.index_cast %104 : i32 to index
    %c0_62 = arith.constant 0 : index
    %c0_63 = arith.constant 0 : index
    %106 = vector.load %arg1[%105, %c0_62, %c0_63] : memref<8x2x256xbf16, #tpu.memory_space<vmem>>, vector<1x2x256xbf16>
    %107 = vector.shape_cast %106 : vector<1x2x256xbf16> to vector<2x256xbf16>
    %cst_64 = arith.constant dense<0.000000e+00> : vector<2x128xf32>
    %108 = tpu.matmul %107, %3, %cst_64 {dimension_numbers = #tpu.dot_dimension_numbers<[1], [0], [0], [1], [0, 0, 1, 1], [], []>} : vector<2x256xbf16>, vector<256x128xbf16>, vector<2x128xf32> -> vector<2x128xf32>
    %109 = tpu.concatenate %103, %108 in 1 : vector<2x128xf32>, vector<2x128xf32> -> vector<2x256xf32>
    %110 = vector.broadcast %0 : vector<1x256xf32> to vector<2x256xf32>
    %111 = arith.addf %109, %110 : vector<2x256xf32>
    %112 = arith.index_cast %c6_i32 : i32 to index
    %c0_65 = arith.constant 0 : index
    %c0_66 = arith.constant 0 : index
    %113 = vector.load %arg6[%112, %c0_65, %c0_66] : memref<8x2x256xf32, #tpu.memory_space<vmem>>, vector<1x2x256xf32>
    %114 = vector.shape_cast %113 : vector<1x2x256xf32> to vector<2x256xf32>
    %115 = vector.shape_cast %111 : vector<2x256xf32> to vector<1x2x256xf32>
    tpu.vector_store %arg6[%112, %c0_65, %c0_66], %115 {strides = array<i32>} : memref<8x2x256xf32, #tpu.memory_space<vmem>>, vector<1x2x256xf32>,
    %c7_i32_67 = arith.constant 7 : i32
    %116 = arith.index_cast %c7_i32_67 : i32 to index
    %c0_68 = arith.constant 0 : index
    %c0_69 = arith.constant 0 : index
    %117 = vector.load %arg1[%116, %c0_68, %c0_69] : memref<8x2x256xbf16, #tpu.memory_space<vmem>>, vector<1x2x256xbf16>
    %118 = vector.shape_cast %117 : vector<1x2x256xbf16> to vector<2x256xbf16>
    %cst_70 = arith.constant dense<0.000000e+00> : vector<2x128xf32>
    %119 = tpu.matmul %118, %2, %cst_70 {dimension_numbers = #tpu.dot_dimension_numbers<[1], [0], [0], [1], [0, 0, 1, 1], [], []>} : vector<2x256xbf16>, vector<256x128xbf16>, vector<2x128xf32> -> vector<2x128xf32>
    %c7_i32_71 = arith.constant 7 : i32
    %120 = arith.subi %c7_i32_71, %c7_i32_67 : i32
    %121 = arith.index_cast %120 : i32 to index
    %c0_72 = arith.constant 0 : index
    %c0_73 = arith.constant 0 : index
    %122 = vector.load %arg1[%121, %c0_72, %c0_73] : memref<8x2x256xbf16, #tpu.memory_space<vmem>>, vector<1x2x256xbf16>
    %123 = vector.shape_cast %122 : vector<1x2x256xbf16> to vector<2x256xbf16>
    %cst_74 = arith.constant dense<0.000000e+00> : vector<2x128xf32>
    %124 = tpu.matmul %123, %3, %cst_74 {dimension_numbers = #tpu.dot_dimension_numbers<[1], [0], [0], [1], [0, 0, 1, 1], [], []>} : vector<2x256xbf16>, vector<256x128xbf16>, vector<2x128xf32> -> vector<2x128xf32>
    %125 = tpu.concatenate %119, %124 in 1 : vector<2x128xf32>, vector<2x128xf32> -> vector<2x256xf32>
    %126 = vector.broadcast %0 : vector<1x256xf32> to vector<2x256xf32>
    %127 = arith.addf %125, %126 : vector<2x256xf32>
    %128 = arith.index_cast %c7_i32_67 : i32 to index
    %c0_75 = arith.constant 0 : index
    %c0_76 = arith.constant 0 : index
    %129 = vector.load %arg6[%128, %c0_75, %c0_76] : memref<8x2x256xf32, #tpu.memory_space<vmem>>, vector<1x2x256xf32>
    %130 = vector.shape_cast %129 : vector<1x2x256xf32> to vector<2x256xf32>
    %131 = vector.shape_cast %127 : vector<2x256xf32> to vector<1x2x256xf32>
    tpu.vector_store %arg6[%128, %c0_75, %c0_76], %131 {strides = array<i32>} : memref<8x2x256xf32, #tpu.memory_space<vmem>>, vector<1x2x256xf32>,
    %c8_i32 = arith.constant 8 : i32
    %cst_77 = arith.constant 0.000000e+00 : f32
    %132 = vector.broadcast %cst_77 : f32 to vector<2x256xf32>
    %c0_78 = arith.constant 0 : index
    %c0_79 = arith.constant 0 : index
    %133 = vector.load %arg7[%c0_78, %c0_79] : memref<2x256xf32, #tpu.memory_space<vmem>>, vector<2x256xf32>
    tpu.vector_store %arg7[%c0_78, %c0_79], %132 {strides = array<i32>} : memref<2x256xf32, #tpu.memory_space<vmem>>, vector<2x256xf32>,
    %c0_i32_80 = arith.constant 0 : i32
    %c0_81 = arith.constant 0 : index
    %c0_82 = arith.constant 0 : index
    %134 = vector.load %arg7[%c0_81, %c0_82] : memref<2x256xf32, #tpu.memory_space<vmem>>, vector<2x256xf32>
    %135 = arith.truncf %134 : vector<2x256xf32> to vector<2x256xbf16>
    %cst_83 = arith.constant dense<0.000000e+00> : vector<2x256xf32>
    %136 = tpu.matmul %135, %1, %cst_83 {dimension_numbers = #tpu.dot_dimension_numbers<[1], [0], [0], [1], [0, 0, 1, 1], [], []>} : vector<2x256xbf16>, vector<256x256xbf16>, vector<2x256xf32> -> vector<2x256xf32>
    %137 = arith.index_cast %c0_i32_80 : i32 to index
    %c0_84 = arith.constant 0 : index
    %c0_85 = arith.constant 0 : index
    %138 = vector.load %arg6[%137, %c0_84, %c0_85] : memref<8x2x256xf32, #tpu.memory_space<vmem>>, vector<1x2x256xf32>
    %139 = vector.shape_cast %138 : vector<1x2x256xf32> to vector<2x256xf32>
    %140 = arith.addf %139, %136 : vector<2x256xf32>
    %141 = math.tanh %140 : vector<2x256xf32>
    %c0_86 = arith.constant 0 : index
    %c0_87 = arith.constant 0 : index
    %142 = vector.load %arg7[%c0_86, %c0_87] : memref<2x256xf32, #tpu.memory_space<vmem>>, vector<2x256xf32>
    tpu.vector_store %arg7[%c0_86, %c0_87], %141 {strides = array<i32>} : memref<2x256xf32, #tpu.memory_space<vmem>>, vector<2x256xf32>,
    %143 = vector.extract_strided_slice %141 {offsets = [0, 0], sizes = [2, 128], strides = [1, 1]} : vector<2x256xf32> to vector<2x128xf32>
    %144 = arith.truncf %143 : vector<2x128xf32> to vector<2x128xbf16>
    %145 = arith.index_cast %c0_i32_80 : i32 to index
    %c0_88 = arith.constant 0 : index
    %c0_89 = arith.constant 0 : index
    %146 = vector.load %arg5[%145, %c0_88, %c0_89] : memref<8x2x256xbf16, #tpu.memory_space<vmem>>, vector<1x2x128xbf16>
    %147 = vector.shape_cast %146 : vector<1x2x128xbf16> to vector<2x128xbf16>
    %148 = vector.shape_cast %144 : vector<2x128xbf16> to vector<1x2x128xbf16>
    tpu.vector_store %arg5[%145, %c0_88, %c0_89], %148 {strides = array<i32>} : memref<8x2x256xbf16, #tpu.memory_space<vmem>>, vector<1x2x128xbf16>,
    %149 = vector.extract_strided_slice %141 {offsets = [0, 128], sizes = [2, 128], strides = [1, 1]} : vector<2x256xf32> to vector<2x128xf32>
    %150 = arith.truncf %149 : vector<2x128xf32> to vector<2x128xbf16>
    %c7_i32_90 = arith.constant 7 : i32
    %151 = arith.subi %c7_i32_90, %c0_i32_80 : i32
    %152 = arith.index_cast %151 : i32 to index
    %c0_91 = arith.constant 0 : index
    %c128_92 = arith.constant 128 : index
    %153 = vector.load %arg5[%152, %c0_91, %c128_92] : memref<8x2x256xbf16, #tpu.memory_space<vmem>>, vector<1x2x128xbf16>
    %154 = vector.shape_cast %153 : vector<1x2x128xbf16> to vector<2x128xbf16>
    %155 = vector.shape_cast %150 : vector<2x128xbf16> to vector<1x2x128xbf16>
    tpu.vector_store %arg5[%152, %c0_91, %c128_92], %155 {strides = array<i32>} : memref<8x2x256xbf16, #tpu.memory_space<vmem>>, vector<1x2x128xbf16>,
    %c1_i32_93 = arith.constant 1 : i32
    %c0_94 = arith.constant 0 : index
    %c0_95 = arith.constant 0 : index
    %156 = vector.load %arg7[%c0_94, %c0_95] : memref<2x256xf32, #tpu.memory_space<vmem>>, vector<2x256xf32>
    %157 = arith.truncf %156 : vector<2x256xf32> to vector<2x256xbf16>
    %cst_96 = arith.constant dense<0.000000e+00> : vector<2x256xf32>
    %158 = tpu.matmul %157, %1, %cst_96 {dimension_numbers = #tpu.dot_dimension_numbers<[1], [0], [0], [1], [0, 0, 1, 1], [], []>} : vector<2x256xbf16>, vector<256x256xbf16>, vector<2x256xf32> -> vector<2x256xf32>
    %159 = arith.index_cast %c1_i32_93 : i32 to index
    %c0_97 = arith.constant 0 : index
    %c0_98 = arith.constant 0 : index
    %160 = vector.load %arg6[%159, %c0_97, %c0_98] : memref<8x2x256xf32, #tpu.memory_space<vmem>>, vector<1x2x256xf32>
    %161 = vector.shape_cast %160 : vector<1x2x256xf32> to vector<2x256xf32>
    %162 = arith.addf %161, %158 : vector<2x256xf32>
    %163 = math.tanh %162 : vector<2x256xf32>
    %c0_99 = arith.constant 0 : index
    %c0_100 = arith.constant 0 : index
    %164 = vector.load %arg7[%c0_99, %c0_100] : memref<2x256xf32, #tpu.memory_space<vmem>>, vector<2x256xf32>
    tpu.vector_store %arg7[%c0_99, %c0_100], %163 {strides = array<i32>} : memref<2x256xf32, #tpu.memory_space<vmem>>, vector<2x256xf32>,
    %165 = vector.extract_strided_slice %163 {offsets = [0, 0], sizes = [2, 128], strides = [1, 1]} : vector<2x256xf32> to vector<2x128xf32>
    %166 = arith.truncf %165 : vector<2x128xf32> to vector<2x128xbf16>
    %167 = arith.index_cast %c1_i32_93 : i32 to index
    %c0_101 = arith.constant 0 : index
    %c0_102 = arith.constant 0 : index
    %168 = vector.load %arg5[%167, %c0_101, %c0_102] : memref<8x2x256xbf16, #tpu.memory_space<vmem>>, vector<1x2x128xbf16>
    %169 = vector.shape_cast %168 : vector<1x2x128xbf16> to vector<2x128xbf16>
    %170 = vector.shape_cast %166 : vector<2x128xbf16> to vector<1x2x128xbf16>
    tpu.vector_store %arg5[%167, %c0_101, %c0_102], %170 {strides = array<i32>} : memref<8x2x256xbf16, #tpu.memory_space<vmem>>, vector<1x2x128xbf16>,
    %171 = vector.extract_strided_slice %163 {offsets = [0, 128], sizes = [2, 128], strides = [1, 1]} : vector<2x256xf32> to vector<2x128xf32>
    %172 = arith.truncf %171 : vector<2x128xf32> to vector<2x128xbf16>
    %c7_i32_103 = arith.constant 7 : i32
    %173 = arith.subi %c7_i32_103, %c1_i32_93 : i32
    %174 = arith.index_cast %173 : i32 to index
    %c0_104 = arith.constant 0 : index
    %c128_105 = arith.constant 128 : index
    %175 = vector.load %arg5[%174, %c0_104, %c128_105] : memref<8x2x256xbf16, #tpu.memory_space<vmem>>, vector<1x2x128xbf16>
    %176 = vector.shape_cast %175 : vector<1x2x128xbf16> to vector<2x128xbf16>
    %177 = vector.shape_cast %172 : vector<2x128xbf16> to vector<1x2x128xbf16>
    tpu.vector_store %arg5[%174, %c0_104, %c128_105], %177 {strides = array<i32>} : memref<8x2x256xbf16, #tpu.memory_space<vmem>>, vector<1x2x128xbf16>,
    %c2_i32_106 = arith.constant 2 : i32
    %c0_107 = arith.constant 0 : index
    %c0_108 = arith.constant 0 : index
    %178 = vector.load %arg7[%c0_107, %c0_108] : memref<2x256xf32, #tpu.memory_space<vmem>>, vector<2x256xf32>
    %179 = arith.truncf %178 : vector<2x256xf32> to vector<2x256xbf16>
    %cst_109 = arith.constant dense<0.000000e+00> : vector<2x256xf32>
    %180 = tpu.matmul %179, %1, %cst_109 {dimension_numbers = #tpu.dot_dimension_numbers<[1], [0], [0], [1], [0, 0, 1, 1], [], []>} : vector<2x256xbf16>, vector<256x256xbf16>, vector<2x256xf32> -> vector<2x256xf32>
    %181 = arith.index_cast %c2_i32_106 : i32 to index
    %c0_110 = arith.constant 0 : index
    %c0_111 = arith.constant 0 : index
    %182 = vector.load %arg6[%181, %c0_110, %c0_111] : memref<8x2x256xf32, #tpu.memory_space<vmem>>, vector<1x2x256xf32>
    %183 = vector.shape_cast %182 : vector<1x2x256xf32> to vector<2x256xf32>
    %184 = arith.addf %183, %180 : vector<2x256xf32>
    %185 = math.tanh %184 : vector<2x256xf32>
    %c0_112 = arith.constant 0 : index
    %c0_113 = arith.constant 0 : index
    %186 = vector.load %arg7[%c0_112, %c0_113] : memref<2x256xf32, #tpu.memory_space<vmem>>, vector<2x256xf32>
    tpu.vector_store %arg7[%c0_112, %c0_113], %185 {strides = array<i32>} : memref<2x256xf32, #tpu.memory_space<vmem>>, vector<2x256xf32>,
    %187 = vector.extract_strided_slice %185 {offsets = [0, 0], sizes = [2, 128], strides = [1, 1]} : vector<2x256xf32> to vector<2x128xf32>
    %188 = arith.truncf %187 : vector<2x128xf32> to vector<2x128xbf16>
    %189 = arith.index_cast %c2_i32_106 : i32 to index
    %c0_114 = arith.constant 0 : index
    %c0_115 = arith.constant 0 : index
    %190 = vector.load %arg5[%189, %c0_114, %c0_115] : memref<8x2x256xbf16, #tpu.memory_space<vmem>>, vector<1x2x128xbf16>
    %191 = vector.shape_cast %190 : vector<1x2x128xbf16> to vector<2x128xbf16>
    %192 = vector.shape_cast %188 : vector<2x128xbf16> to vector<1x2x128xbf16>
    tpu.vector_store %arg5[%189, %c0_114, %c0_115], %192 {strides = array<i32>} : memref<8x2x256xbf16, #tpu.memory_space<vmem>>, vector<1x2x128xbf16>,
    %193 = vector.extract_strided_slice %185 {offsets = [0, 128], sizes = [2, 128], strides = [1, 1]} : vector<2x256xf32> to vector<2x128xf32>
    %194 = arith.truncf %193 : vector<2x128xf32> to vector<2x128xbf16>
    %c7_i32_116 = arith.constant 7 : i32
    %195 = arith.subi %c7_i32_116, %c2_i32_106 : i32
    %196 = arith.index_cast %195 : i32 to index
    %c0_117 = arith.constant 0 : index
    %c128_118 = arith.constant 128 : index
    %197 = vector.load %arg5[%196, %c0_117, %c128_118] : memref<8x2x256xbf16, #tpu.memory_space<vmem>>, vector<1x2x128xbf16>
    %198 = vector.shape_cast %197 : vector<1x2x128xbf16> to vector<2x128xbf16>
    %199 = vector.shape_cast %194 : vector<2x128xbf16> to vector<1x2x128xbf16>
    tpu.vector_store %arg5[%196, %c0_117, %c128_118], %199 {strides = array<i32>} : memref<8x2x256xbf16, #tpu.memory_space<vmem>>, vector<1x2x128xbf16>,
    %c3_i32_119 = arith.constant 3 : i32
    %c0_120 = arith.constant 0 : index
    %c0_121 = arith.constant 0 : index
    %200 = vector.load %arg7[%c0_120, %c0_121] : memref<2x256xf32, #tpu.memory_space<vmem>>, vector<2x256xf32>
    %201 = arith.truncf %200 : vector<2x256xf32> to vector<2x256xbf16>
    %cst_122 = arith.constant dense<0.000000e+00> : vector<2x256xf32>
    %202 = tpu.matmul %201, %1, %cst_122 {dimension_numbers = #tpu.dot_dimension_numbers<[1], [0], [0], [1], [0, 0, 1, 1], [], []>} : vector<2x256xbf16>, vector<256x256xbf16>, vector<2x256xf32> -> vector<2x256xf32>
    %203 = arith.index_cast %c3_i32_119 : i32 to index
    %c0_123 = arith.constant 0 : index
    %c0_124 = arith.constant 0 : index
    %204 = vector.load %arg6[%203, %c0_123, %c0_124] : memref<8x2x256xf32, #tpu.memory_space<vmem>>, vector<1x2x256xf32>
    %205 = vector.shape_cast %204 : vector<1x2x256xf32> to vector<2x256xf32>
    %206 = arith.addf %205, %202 : vector<2x256xf32>
    %207 = math.tanh %206 : vector<2x256xf32>
    %c0_125 = arith.constant 0 : index
    %c0_126 = arith.constant 0 : index
    %208 = vector.load %arg7[%c0_125, %c0_126] : memref<2x256xf32, #tpu.memory_space<vmem>>, vector<2x256xf32>
    tpu.vector_store %arg7[%c0_125, %c0_126], %207 {strides = array<i32>} : memref<2x256xf32, #tpu.memory_space<vmem>>, vector<2x256xf32>,
    %209 = vector.extract_strided_slice %207 {offsets = [0, 0], sizes = [2, 128], strides = [1, 1]} : vector<2x256xf32> to vector<2x128xf32>
    %210 = arith.truncf %209 : vector<2x128xf32> to vector<2x128xbf16>
    %211 = arith.index_cast %c3_i32_119 : i32 to index
    %c0_127 = arith.constant 0 : index
    %c0_128 = arith.constant 0 : index
    %212 = vector.load %arg5[%211, %c0_127, %c0_128] : memref<8x2x256xbf16, #tpu.memory_space<vmem>>, vector<1x2x128xbf16>
    %213 = vector.shape_cast %212 : vector<1x2x128xbf16> to vector<2x128xbf16>
    %214 = vector.shape_cast %210 : vector<2x128xbf16> to vector<1x2x128xbf16>
    tpu.vector_store %arg5[%211, %c0_127, %c0_128], %214 {strides = array<i32>} : memref<8x2x256xbf16, #tpu.memory_space<vmem>>, vector<1x2x128xbf16>,
    %215 = vector.extract_strided_slice %207 {offsets = [0, 128], sizes = [2, 128], strides = [1, 1]} : vector<2x256xf32> to vector<2x128xf32>
    %216 = arith.truncf %215 : vector<2x128xf32> to vector<2x128xbf16>
    %c7_i32_129 = arith.constant 7 : i32
    %217 = arith.subi %c7_i32_129, %c3_i32_119 : i32
    %218 = arith.index_cast %217 : i32 to index
    %c0_130 = arith.constant 0 : index
    %c128_131 = arith.constant 128 : index
    %219 = vector.load %arg5[%218, %c0_130, %c128_131] : memref<8x2x256xbf16, #tpu.memory_space<vmem>>, vector<1x2x128xbf16>
    %220 = vector.shape_cast %219 : vector<1x2x128xbf16> to vector<2x128xbf16>
    %221 = vector.shape_cast %216 : vector<2x128xbf16> to vector<1x2x128xbf16>
    tpu.vector_store %arg5[%218, %c0_130, %c128_131], %221 {strides = array<i32>} : memref<8x2x256xbf16, #tpu.memory_space<vmem>>, vector<1x2x128xbf16>,
    %c4_i32_132 = arith.constant 4 : i32
    %c0_133 = arith.constant 0 : index
    %c0_134 = arith.constant 0 : index
    %222 = vector.load %arg7[%c0_133, %c0_134] : memref<2x256xf32, #tpu.memory_space<vmem>>, vector<2x256xf32>
    %223 = arith.truncf %222 : vector<2x256xf32> to vector<2x256xbf16>
    %cst_135 = arith.constant dense<0.000000e+00> : vector<2x256xf32>
    %224 = tpu.matmul %223, %1, %cst_135 {dimension_numbers = #tpu.dot_dimension_numbers<[1], [0], [0], [1], [0, 0, 1, 1], [], []>} : vector<2x256xbf16>, vector<256x256xbf16>, vector<2x256xf32> -> vector<2x256xf32>
    %225 = arith.index_cast %c4_i32_132 : i32 to index
    %c0_136 = arith.constant 0 : index
    %c0_137 = arith.constant 0 : index
    %226 = vector.load %arg6[%225, %c0_136, %c0_137] : memref<8x2x256xf32, #tpu.memory_space<vmem>>, vector<1x2x256xf32>
    %227 = vector.shape_cast %226 : vector<1x2x256xf32> to vector<2x256xf32>
    %228 = arith.addf %227, %224 : vector<2x256xf32>
    %229 = math.tanh %228 : vector<2x256xf32>
    %c0_138 = arith.constant 0 : index
    %c0_139 = arith.constant 0 : index
    %230 = vector.load %arg7[%c0_138, %c0_139] : memref<2x256xf32, #tpu.memory_space<vmem>>, vector<2x256xf32>
    tpu.vector_store %arg7[%c0_138, %c0_139], %229 {strides = array<i32>} : memref<2x256xf32, #tpu.memory_space<vmem>>, vector<2x256xf32>,
    %231 = vector.extract_strided_slice %229 {offsets = [0, 0], sizes = [2, 128], strides = [1, 1]} : vector<2x256xf32> to vector<2x128xf32>
    %232 = arith.truncf %231 : vector<2x128xf32> to vector<2x128xbf16>
    %233 = arith.index_cast %c4_i32_132 : i32 to index
    %c0_140 = arith.constant 0 : index
    %c0_141 = arith.constant 0 : index
    %234 = vector.load %arg5[%233, %c0_140, %c0_141] : memref<8x2x256xbf16, #tpu.memory_space<vmem>>, vector<1x2x128xbf16>
    %235 = vector.shape_cast %234 : vector<1x2x128xbf16> to vector<2x128xbf16>
    %236 = vector.shape_cast %232 : vector<2x128xbf16> to vector<1x2x128xbf16>
    tpu.vector_store %arg5[%233, %c0_140, %c0_141], %236 {strides = array<i32>} : memref<8x2x256xbf16, #tpu.memory_space<vmem>>, vector<1x2x128xbf16>,
    %237 = vector.extract_strided_slice %229 {offsets = [0, 128], sizes = [2, 128], strides = [1, 1]} : vector<2x256xf32> to vector<2x128xf32>
    %238 = arith.truncf %237 : vector<2x128xf32> to vector<2x128xbf16>
    %c7_i32_142 = arith.constant 7 : i32
    %239 = arith.subi %c7_i32_142, %c4_i32_132 : i32
    %240 = arith.index_cast %239 : i32 to index
    %c0_143 = arith.constant 0 : index
    %c128_144 = arith.constant 128 : index
    %241 = vector.load %arg5[%240, %c0_143, %c128_144] : memref<8x2x256xbf16, #tpu.memory_space<vmem>>, vector<1x2x128xbf16>
    %242 = vector.shape_cast %241 : vector<1x2x128xbf16> to vector<2x128xbf16>
    %243 = vector.shape_cast %238 : vector<2x128xbf16> to vector<1x2x128xbf16>
    tpu.vector_store %arg5[%240, %c0_143, %c128_144], %243 {strides = array<i32>} : memref<8x2x256xbf16, #tpu.memory_space<vmem>>, vector<1x2x128xbf16>,
    %c5_i32_145 = arith.constant 5 : i32
    %c0_146 = arith.constant 0 : index
    %c0_147 = arith.constant 0 : index
    %244 = vector.load %arg7[%c0_146, %c0_147] : memref<2x256xf32, #tpu.memory_space<vmem>>, vector<2x256xf32>
    %245 = arith.truncf %244 : vector<2x256xf32> to vector<2x256xbf16>
    %cst_148 = arith.constant dense<0.000000e+00> : vector<2x256xf32>
    %246 = tpu.matmul %245, %1, %cst_148 {dimension_numbers = #tpu.dot_dimension_numbers<[1], [0], [0], [1], [0, 0, 1, 1], [], []>} : vector<2x256xbf16>, vector<256x256xbf16>, vector<2x256xf32> -> vector<2x256xf32>
    %247 = arith.index_cast %c5_i32_145 : i32 to index
    %c0_149 = arith.constant 0 : index
    %c0_150 = arith.constant 0 : index
    %248 = vector.load %arg6[%247, %c0_149, %c0_150] : memref<8x2x256xf32, #tpu.memory_space<vmem>>, vector<1x2x256xf32>
    %249 = vector.shape_cast %248 : vector<1x2x256xf32> to vector<2x256xf32>
    %250 = arith.addf %249, %246 : vector<2x256xf32>
    %251 = math.tanh %250 : vector<2x256xf32>
    %c0_151 = arith.constant 0 : index
    %c0_152 = arith.constant 0 : index
    %252 = vector.load %arg7[%c0_151, %c0_152] : memref<2x256xf32, #tpu.memory_space<vmem>>, vector<2x256xf32>
    tpu.vector_store %arg7[%c0_151, %c0_152], %251 {strides = array<i32>} : memref<2x256xf32, #tpu.memory_space<vmem>>, vector<2x256xf32>,
    %253 = vector.extract_strided_slice %251 {offsets = [0, 0], sizes = [2, 128], strides = [1, 1]} : vector<2x256xf32> to vector<2x128xf32>
    %254 = arith.truncf %253 : vector<2x128xf32> to vector<2x128xbf16>
    %255 = arith.index_cast %c5_i32_145 : i32 to index
    %c0_153 = arith.constant 0 : index
    %c0_154 = arith.constant 0 : index
    %256 = vector.load %arg5[%255, %c0_153, %c0_154] : memref<8x2x256xbf16, #tpu.memory_space<vmem>>, vector<1x2x128xbf16>
    %257 = vector.shape_cast %256 : vector<1x2x128xbf16> to vector<2x128xbf16>
    %258 = vector.shape_cast %254 : vector<2x128xbf16> to vector<1x2x128xbf16>
    tpu.vector_store %arg5[%255, %c0_153, %c0_154], %258 {strides = array<i32>} : memref<8x2x256xbf16, #tpu.memory_space<vmem>>, vector<1x2x128xbf16>,
    %259 = vector.extract_strided_slice %251 {offsets = [0, 128], sizes = [2, 128], strides = [1, 1]} : vector<2x256xf32> to vector<2x128xf32>
    %260 = arith.truncf %259 : vector<2x128xf32> to vector<2x128xbf16>
    %c7_i32_155 = arith.constant 7 : i32
    %261 = arith.subi %c7_i32_155, %c5_i32_145 : i32
    %262 = arith.index_cast %261 : i32 to index
    %c0_156 = arith.constant 0 : index
    %c128_157 = arith.constant 128 : index
    %263 = vector.load %arg5[%262, %c0_156, %c128_157] : memref<8x2x256xbf16, #tpu.memory_space<vmem>>, vector<1x2x128xbf16>
    %264 = vector.shape_cast %263 : vector<1x2x128xbf16> to vector<2x128xbf16>
    %265 = vector.shape_cast %260 : vector<2x128xbf16> to vector<1x2x128xbf16>
    tpu.vector_store %arg5[%262, %c0_156, %c128_157], %265 {strides = array<i32>} : memref<8x2x256xbf16, #tpu.memory_space<vmem>>, vector<1x2x128xbf16>,
    %c6_i32_158 = arith.constant 6 : i32
    %c0_159 = arith.constant 0 : index
    %c0_160 = arith.constant 0 : index
    %266 = vector.load %arg7[%c0_159, %c0_160] : memref<2x256xf32, #tpu.memory_space<vmem>>, vector<2x256xf32>
    %267 = arith.truncf %266 : vector<2x256xf32> to vector<2x256xbf16>
    %cst_161 = arith.constant dense<0.000000e+00> : vector<2x256xf32>
    %268 = tpu.matmul %267, %1, %cst_161 {dimension_numbers = #tpu.dot_dimension_numbers<[1], [0], [0], [1], [0, 0, 1, 1], [], []>} : vector<2x256xbf16>, vector<256x256xbf16>, vector<2x256xf32> -> vector<2x256xf32>
    %269 = arith.index_cast %c6_i32_158 : i32 to index
    %c0_162 = arith.constant 0 : index
    %c0_163 = arith.constant 0 : index
    %270 = vector.load %arg6[%269, %c0_162, %c0_163] : memref<8x2x256xf32, #tpu.memory_space<vmem>>, vector<1x2x256xf32>
    %271 = vector.shape_cast %270 : vector<1x2x256xf32> to vector<2x256xf32>
    %272 = arith.addf %271, %268 : vector<2x256xf32>
    %273 = math.tanh %272 : vector<2x256xf32>
    %c0_164 = arith.constant 0 : index
    %c0_165 = arith.constant 0 : index
    %274 = vector.load %arg7[%c0_164, %c0_165] : memref<2x256xf32, #tpu.memory_space<vmem>>, vector<2x256xf32>
    tpu.vector_store %arg7[%c0_164, %c0_165], %273 {strides = array<i32>} : memref<2x256xf32, #tpu.memory_space<vmem>>, vector<2x256xf32>,
    %275 = vector.extract_strided_slice %273 {offsets = [0, 0], sizes = [2, 128], strides = [1, 1]} : vector<2x256xf32> to vector<2x128xf32>
    %276 = arith.truncf %275 : vector<2x128xf32> to vector<2x128xbf16>
    %277 = arith.index_cast %c6_i32_158 : i32 to index
    %c0_166 = arith.constant 0 : index
    %c0_167 = arith.constant 0 : index
    %278 = vector.load %arg5[%277, %c0_166, %c0_167] : memref<8x2x256xbf16, #tpu.memory_space<vmem>>, vector<1x2x128xbf16>
    %279 = vector.shape_cast %278 : vector<1x2x128xbf16> to vector<2x128xbf16>
    %280 = vector.shape_cast %276 : vector<2x128xbf16> to vector<1x2x128xbf16>
    tpu.vector_store %arg5[%277, %c0_166, %c0_167], %280 {strides = array<i32>} : memref<8x2x256xbf16, #tpu.memory_space<vmem>>, vector<1x2x128xbf16>,
    %281 = vector.extract_strided_slice %273 {offsets = [0, 128], sizes = [2, 128], strides = [1, 1]} : vector<2x256xf32> to vector<2x128xf32>
    %282 = arith.truncf %281 : vector<2x128xf32> to vector<2x128xbf16>
    %c7_i32_168 = arith.constant 7 : i32
    %283 = arith.subi %c7_i32_168, %c6_i32_158 : i32
    %284 = arith.index_cast %283 : i32 to index
    %c0_169 = arith.constant 0 : index
    %c128_170 = arith.constant 128 : index
    %285 = vector.load %arg5[%284, %c0_169, %c128_170] : memref<8x2x256xbf16, #tpu.memory_space<vmem>>, vector<1x2x128xbf16>
    %286 = vector.shape_cast %285 : vector<1x2x128xbf16> to vector<2x128xbf16>
    %287 = vector.shape_cast %282 : vector<2x128xbf16> to vector<1x2x128xbf16>
    tpu.vector_store %arg5[%284, %c0_169, %c128_170], %287 {strides = array<i32>} : memref<8x2x256xbf16, #tpu.memory_space<vmem>>, vector<1x2x128xbf16>,
    %c7_i32_171 = arith.constant 7 : i32
    %c0_172 = arith.constant 0 : index
    %c0_173 = arith.constant 0 : index
    %288 = vector.load %arg7[%c0_172, %c0_173] : memref<2x256xf32, #tpu.memory_space<vmem>>, vector<2x256xf32>
    %289 = arith.truncf %288 : vector<2x256xf32> to vector<2x256xbf16>
    %cst_174 = arith.constant dense<0.000000e+00> : vector<2x256xf32>
    %290 = tpu.matmul %289, %1, %cst_174 {dimension_numbers = #tpu.dot_dimension_numbers<[1], [0], [0], [1], [0, 0, 1, 1], [], []>} : vector<2x256xbf16>, vector<256x256xbf16>, vector<2x256xf32> -> vector<2x256xf32>
    %291 = arith.index_cast %c7_i32_171 : i32 to index
    %c0_175 = arith.constant 0 : index
    %c0_176 = arith.constant 0 : index
    %292 = vector.load %arg6[%291, %c0_175, %c0_176] : memref<8x2x256xf32, #tpu.memory_space<vmem>>, vector<1x2x256xf32>
    %293 = vector.shape_cast %292 : vector<1x2x256xf32> to vector<2x256xf32>
    %294 = arith.addf %293, %290 : vector<2x256xf32>
    %295 = math.tanh %294 : vector<2x256xf32>
    %c0_177 = arith.constant 0 : index
    %c0_178 = arith.constant 0 : index
    %296 = vector.load %arg7[%c0_177, %c0_178] : memref<2x256xf32, #tpu.memory_space<vmem>>, vector<2x256xf32>
    tpu.vector_store %arg7[%c0_177, %c0_178], %295 {strides = array<i32>} : memref<2x256xf32, #tpu.memory_space<vmem>>, vector<2x256xf32>,
    %297 = vector.extract_strided_slice %295 {offsets = [0, 0], sizes = [2, 128], strides = [1, 1]} : vector<2x256xf32> to vector<2x128xf32>
    %298 = arith.truncf %297 : vector<2x128xf32> to vector<2x128xbf16>
    %299 = arith.index_cast %c7_i32_171 : i32 to index
    %c0_179 = arith.constant 0 : index
    %c0_180 = arith.constant 0 : index
    %300 = vector.load %arg5[%299, %c0_179, %c0_180] : memref<8x2x256xbf16, #tpu.memory_space<vmem>>, vector<1x2x128xbf16>
    %301 = vector.shape_cast %300 : vector<1x2x128xbf16> to vector<2x128xbf16>
    %302 = vector.shape_cast %298 : vector<2x128xbf16> to vector<1x2x128xbf16>
    tpu.vector_store %arg5[%299, %c0_179, %c0_180], %302 {strides = array<i32>} : memref<8x2x256xbf16, #tpu.memory_space<vmem>>, vector<1x2x128xbf16>,
    %303 = vector.extract_strided_slice %295 {offsets = [0, 128], sizes = [2, 128], strides = [1, 1]} : vector<2x256xf32> to vector<2x128xf32>
    %304 = arith.truncf %303 : vector<2x128xf32> to vector<2x128xbf16>
    %c7_i32_181 = arith.constant 7 : i32
    %305 = arith.subi %c7_i32_181, %c7_i32_171 : i32
    %306 = arith.index_cast %305 : i32 to index
    %c0_182 = arith.constant 0 : index
    %c128_183 = arith.constant 128 : index
    %307 = vector.load %arg5[%306, %c0_182, %c128_183] : memref<8x2x256xbf16, #tpu.memory_space<vmem>>, vector<1x2x128xbf16>
    %308 = vector.shape_cast %307 : vector<1x2x128xbf16> to vector<2x128xbf16>
    %309 = vector.shape_cast %304 : vector<2x128xbf16> to vector<1x2x128xbf16>
    tpu.vector_store %arg5[%306, %c0_182, %c128_183], %309 {strides = array<i32>} : memref<8x2x256xbf16, #tpu.memory_space<vmem>>, vector<1x2x128xbf16>,
    %c8_i32_184 = arith.constant 8 : i32
    return
  }
  func.func @transform_0(%arg0: i32) -> (i32, i32, i32) {
    %c0_i32 = arith.constant 0 : i32
    %c0_i32_0 = arith.constant 0 : i32
    %c0_i32_1 = arith.constant 0 : i32
    return %c0_i32, %arg0, %c0_i32_0 : i32, i32, i32
  }
  func.func @transform_1(%arg0: i32) -> (i32, i32) {
    %c0_i32 = arith.constant 0 : i32
    %c0_i32_0 = arith.constant 0 : i32
    %c0_i32_1 = arith.constant 0 : i32
    return %c0_i32, %c0_i32_0 : i32, i32
  }
  func.func @transform_2(%arg0: i32) -> (i32, i32) {
    %c0_i32 = arith.constant 0 : i32
    %c0_i32_0 = arith.constant 0 : i32
    %c0_i32_1 = arith.constant 0 : i32
    return %c0_i32, %c0_i32_0 : i32, i32
  }
  func.func @transform_3(%arg0: i32) -> (i32, i32) {
    %c0_i32 = arith.constant 0 : i32
    %c0_i32_0 = arith.constant 0 : i32
    %c0_i32_1 = arith.constant 0 : i32
    return %c0_i32, %c0_i32_0 : i32, i32
  }
  func.func @transform_4(%arg0: i32) -> (i32, i32, i32) {
    %c0_i32 = arith.constant 0 : i32
    %c0_i32_0 = arith.constant 0 : i32
    %c0_i32_1 = arith.constant 0 : i32
    return %c0_i32, %arg0, %c0_i32_0 : i32, i32, i32
  }
}

module attributes {stable_mosaic.version = 11 : i64} {
  func.func @kernel(%arg0: i32, %arg1: memref<128x256xbf16, #tpu.memory_space<vmem>>, %arg2: memref<8x256xbf16, #tpu.memory_space<vmem>>, %arg3: memref<8x1xf32, #tpu.memory_space<vmem>>, %arg4: memref<1x128xi32, #tpu.memory_space<vmem>>) attributes {dimension_semantics = [#tpu.dimension_semantics<parallel>], iteration_bounds = array<i64: 1>, scalar_prefetch = 0 : i64, scratch_operands = 0 : i64, tpu.core_type = #tpu.core_type<tc>, window_params = [{transform_indices = @transform_0, window_bounds = array<i64: 128, 256>}, {pipeline_mode = #tpu.pipeline_mode<synchronous>, transform_indices = @transform_1, window_bounds = array<i64: 8, 256>}, {pipeline_mode = #tpu.pipeline_mode<synchronous>, transform_indices = @transform_2, window_bounds = array<i64: 8, 1>}, {transform_indices = @transform_3, window_bounds = array<i64: 1, 128>}]} {
    %c0 = arith.constant 0 : index
    %c0_0 = arith.constant 0 : index
    %0 = vector.load %arg2[%c0, %c0_0] : memref<8x256xbf16, #tpu.memory_space<vmem>>, vector<8x256xbf16>
    %c0_1 = arith.constant 0 : index
    %c0_2 = arith.constant 0 : index
    %1 = vector.load %arg1[%c0_1, %c0_2] : memref<128x256xbf16, #tpu.memory_space<vmem>>, vector<128x256xbf16>
    %cst = arith.constant dense<0.000000e+00> : vector<8x128xf32>
    %2 = tpu.matmul %0, %1, %cst {dimension_numbers = #tpu.dot_dimension_numbers<[1], [1], [0], [0], [0, 0, 1, 0], [], []>} : vector<8x256xbf16>, vector<128x256xbf16>, vector<8x128xf32> -> vector<8x128xf32>
    %c0_3 = arith.constant 0 : index
    %c0_4 = arith.constant 0 : index
    %3 = vector.load %arg3[%c0_3, %c0_4] : memref<8x1xf32, #tpu.memory_space<vmem>>, vector<8x1xf32>
    %4 = vector.broadcast %3 : vector<8x1xf32> to vector<8x128xf32>
    %5 = arith.addf %2, %4 : vector<8x128xf32>
    %cst_5 = arith.constant dense<0xFF800000> : vector<128xf32>
    %6 = vector.multi_reduction <maximumf>, %5, %cst_5 [0] : vector<8x128xf32> to vector<128xf32>
    %7 = vector.shape_cast %6 : vector<128xf32> to vector<1x128xf32>
    %8 = tpu.iota {dimensions = array<i32: 0>} : vector<8x128xi32>
    %9 = arith.sitofp %8 : vector<8x128xi32> to vector<8x128xf32>
    %10 = vector.broadcast %7 : vector<1x128xf32> to vector<8x128xf32>
    %11 = arith.cmpf oeq, %5, %10 : vector<8x128xf32>
    %cst_6 = arith.constant 8.000000e+00 : f32
    %12 = vector.broadcast %cst_6 : f32 to vector<8x128xf32>
    %13 = arith.select %11, %9, %12 : vector<8x128xi1>, vector<8x128xf32>
    %cst_7 = arith.constant dense<0x7F800000> : vector<128xf32>
    %14 = vector.multi_reduction <minimumf>, %13, %cst_7 [0] : vector<8x128xf32> to vector<128xf32>
    %15 = vector.shape_cast %14 : vector<128xf32> to vector<1x128xf32>
    %16 = arith.fptosi %15 : vector<1x128xf32> to vector<1x128xi32>
    %c0_8 = arith.constant 0 : index
    %c0_9 = arith.constant 0 : index
    %17 = vector.load %arg4[%c0_8, %c0_9] : memref<1x128xi32, #tpu.memory_space<vmem>>, vector<1x128xi32>
    tpu.vector_store %arg4[%c0_8, %c0_9], %16 {strides = array<i32>} : memref<1x128xi32, #tpu.memory_space<vmem>>, vector<1x128xi32>,
    return
  }
  func.func @transform_0(%arg0: i32) -> (i32, i32) {
    %c0_i32 = arith.constant 0 : i32
    %c0_i32_0 = arith.constant 0 : i32
    return %arg0, %c0_i32 : i32, i32
  }
  func.func @transform_1(%arg0: i32) -> (i32, i32) {
    %c0_i32 = arith.constant 0 : i32
    %c0_i32_0 = arith.constant 0 : i32
    %c0_i32_1 = arith.constant 0 : i32
    return %c0_i32, %c0_i32_0 : i32, i32
  }
  func.func @transform_2(%arg0: i32) -> (i32, i32) {
    %c0_i32 = arith.constant 0 : i32
    %c0_i32_0 = arith.constant 0 : i32
    %c0_i32_1 = arith.constant 0 : i32
    return %c0_i32, %c0_i32_0 : i32, i32
  }
  func.func @transform_3(%arg0: i32) -> (i32, i32) {
    %c0_i32 = arith.constant 0 : i32
    %c0_i32_0 = arith.constant 0 : i32
    return %c0_i32, %arg0 : i32, i32
  }
}

</mosaic_0001>

<llo_original>
// kernel: squeeze.1
$region0: #{squeeze.1}
  %s0 = inlined_call_operand.vmem [shape: s32[16], index: 0, kind: input, shape index: {}]
  %s1 = inlined_call_operand.vmem [shape: s32[8,2], index: 1, kind: output, shape index: {}]
  $region1: #{squeeze.1} parent=0
    #allocation0 [shape = 'u8[4096]{0}', space=vmem, size = 0x1000, scoped, tag = 'scoped mem for input reshape']
    %s3 = sshll.u32 1, 1
    %s4 = ssub.s32 %s3, 1
    %v5 = vld [vmem:[%s0] sm:%s4]
    %6 = vst [vmem:[#allocation0] sm:%s4] %v5
    %v7 = vld [vmem:[#allocation0] sm:$0x1]
    %vm8 = vcmask 15360
    %9 = vst.msk [vmem:[%s1] sm:$0x1] %vm8, %v7
    %v10 = vld [vmem:[#allocation0] sm:$0x1]
    %11 = vrot.lane.b32.xlu0 %v10, 126
    %v12 = vpop.permute.xlu0 %11
    %vm13 = vcmask 15360
    %s14 = scalar_lea.vmem %s1, 1
    %15 = vst.msk [vmem:[%s14] sm:$0x1] %vm13, %v12
    %v16 = vld [vmem:[#allocation0] sm:$0x1]
    %17 = vrot.lane.b32.xlu0 %v16, 124
    %v18 = vpop.permute.xlu0 %17
    %vm19 = vcmask 15360
    %s20 = scalar_lea.vmem %s1, 2
    %21 = vst.msk [vmem:[%s20] sm:$0x1] %vm19, %v18
    %v22 = vld [vmem:[#allocation0] sm:$0x1]
    %23 = vrot.lane.b32.xlu0 %v22, 122
    %v24 = vpop.permute.xlu0 %23
    %vm25 = vcmask 15360
    %s26 = scalar_lea.vmem %s1, 3
    %27 = vst.msk [vmem:[%s26] sm:$0x1] %vm25, %v24
    %v28 = vld [vmem:[#allocation0] sm:$0x1]
    %29 = vrot.lane.b32.xlu0 %v28, 120
    %v30 = vpop.permute.xlu0 %29
    %vm31 = vcmask 15360
    %s32 = scalar_lea.vmem %s1, 4
    %33 = vst.msk [vmem:[%s32] sm:$0x1] %vm31, %v30
    %v34 = vld [vmem:[#allocation0] sm:$0x1]
    %35 = vrot.lane.b32.xlu0 %v34, 118
    %v36 = vpop.permute.xlu0 %35
    %vm37 = vcmask 15360
    %s38 = scalar_lea.vmem %s1, 5
    %39 = vst.msk [vmem:[%s38] sm:$0x1] %vm37, %v36
    %v40 = vld [vmem:[#allocation0] sm:$0x1]
    %41 = vrot.lane.b32.xlu0 %v40, 116
    %v42 = vpop.permute.xlu0 %41
    %vm43 = vcmask 15360
    %s44 = scalar_lea.vmem %s1, 6
    %45 = vst.msk [vmem:[%s44] sm:$0x1] %vm43, %v42
    %v46 = vld [vmem:[#allocation0] sm:$0x1]
    %47 = vrot.lane.b32.xlu0 %v46, 114
    %v48 = vpop.permute.xlu0 %47
    %vm49 = vcmask 15360
    %s50 = scalar_lea.vmem %s1, 7
    %51 = vst.msk [vmem:[%s50] sm:$0x1] %vm49, %v48

// kernel: forward.5
$region0: #{forward.5}
  #allocation0 [shape = 'u32[]', space=smem, size = 0x4, offset = 0x4, fixed_abs, tag = 'smem constant byte address 0x4 - core index']
  #allocation1 [shape = 'u32[144,128]{1,0:T(1,128)}', space=vmem, size = 0x12000, scoped, tag = 'internal scratch']
  %s0 = inlined_call_operand.vmem [shape: bf16[128,256], index: 0, kind: input, shape index: {}]
  %s1 = inlined_call_operand.vmem [shape: bf16[8,256], index: 1, kind: input, shape index: {}]
  %s2 = inlined_call_operand.vmem [shape: f32[8,1], index: 2, kind: input, shape index: {}]
  %s3 = inlined_call_operand.vmem [shape: s32[1,128], index: 3, kind: output, shape index: {}]
  %s4 = sld [smem:[#allocation0]]
  $region22: #{forward.5} parent=0
    _
  %s6 = ssub.s32 1, %s4
  %s7 = scalar_select 0, %s6, %s4
  // Predicated region
  $region2: #{forward.5} parent=0 // pred_check
    _
  $region3: #{forward.5} parent=0 // pred_check_branch
    %9 = sbr.rel (0) target = $region5
  $region4: #{forward.5} parent=0 // pred_region
    _
  $region5: #{forward.5} parent=0 // pred_fallthru
    _
  // Predicated region
  $region6: #{forward.5} parent=0 // pred_check
    _
  $region7: #{forward.5} parent=0 // pred_check_branch
    %11 = sbr.rel (0) target = $region9
  $region8: #{forward.5} parent=0 // pred_region
    _
  $region9: #{forward.5} parent=0 // pred_fallthru
    _
  // Predicated region
  $region10: #{forward.5} parent=0 // pred_check
    _
  $region11: #{forward.5} parent=0 // pred_check_branch
    %13 = sbr.rel (0) target = $region13
  $region12: #{forward.5} parent=0 // pred_region
    _
  $region13: #{forward.5} parent=0 // pred_fallthru
    _
  %v15 = vld [vmem:[%s1] sm:$0xff]
  %v16 = vld [vmem:[%s0] sm:$0xff]
  %v17 = vld [vmem:[%s0 + $0x8] sm:$0xff]
  %v18 = vld [vmem:[%s0 + $0x10] sm:$0xff]
  %v19 = vld [vmem:[%s0 + $0x18] sm:$0xff]
  %v20 = vld [vmem:[%s0 + $0x20] sm:$0xff]
  %v21 = vld [vmem:[%s0 + $0x28] sm:$0xff]
  %v22 = vld [vmem:[%s0 + $0x30] sm:$0xff]
  %v23 = vld [vmem:[%s0 + $0x38] sm:$0xff]
  %v24 = vld [vmem:[%s0 + $0x40] sm:$0xff]
  %v25 = vld [vmem:[%s0 + $0x48] sm:$0xff]
  %v26 = vld [vmem:[%s0 + $0x50] sm:$0xff]
  %v27 = vld [vmem:[%s0 + $0x58] sm:$0xff]
  %v28 = vld [vmem:[%s0 + $0x60] sm:$0xff]
  %v29 = vld [vmem:[%s0 + $0x68] sm:$0xff]
  %v30 = vld [vmem:[%s0 + $0x70] sm:$0xff]
  %v31 = vld [vmem:[%s0 + $0x78] sm:$0xff]
  %v32 = vld [vmem:[%s2] sm:$0xff]
  %34 = vset.pattern.permute.xlu0 0
  %35 = vperm.xlu0 %34, %v32
  %v36 = vpop.permute.xlu0 %35
  %v39 = vunpack.c.l.b16 %v15
  %v40 = vunpack.c.h.b16 %v15
  %v41 = vpack.c.b16 %v39, %v39
  %v42 = vpack.c.b16 %v40, %v40
  %v61 = vunpack.c.l.b16 %v16
  %v62 = vunpack.c.h.b16 %v16
  %v63 = vunpack.c.l.b16 %v17
  %v64 = vunpack.c.h.b16 %v17
  %v65 = vunpack.c.l.b16 %v18
  %v66 = vunpack.c.h.b16 %v18
  %v67 = vunpack.c.l.b16 %v19
  %v68 = vunpack.c.h.b16 %v19
  %v69 = vunpack.c.l.b16 %v20
  %v70 = vunpack.c.h.b16 %v20
  %v71 = vunpack.c.l.b16 %v21
  %v72 = vunpack.c.h.b16 %v21
  %v73 = vunpack.c.l.b16 %v22
  %v74 = vunpack.c.h.b16 %v22
  %v75 = vunpack.c.l.b16 %v23
  %v76 = vunpack.c.h.b16 %v23
  %v77 = vunpack.c.l.b16 %v24
  %v78 = vunpack.c.h.b16 %v24
  %v79 = vunpack.c.l.b16 %v25
  %v80 = vunpack.c.h.b16 %v25
  %v81 = vunpack.c.l.b16 %v26
  %v82 = vunpack.c.h.b16 %v26
  %v83 = vunpack.c.l.b16 %v27
  %v84 = vunpack.c.h.b16 %v27
  %v85 = vunpack.c.l.b16 %v28
  %v86 = vunpack.c.h.b16 %v28
  %v87 = vunpack.c.l.b16 %v29
  %v88 = vunpack.c.h.b16 %v29
  %v89 = vunpack.c.l.b16 %v30
  %v90 = vunpack.c.h.b16 %v30
  %v91 = vunpack.c.l.b16 %v31
  %v92 = vunpack.c.h.b16 %v31
  %v93 = vpack.c.b16 %v63, %v61
  %v94 = vpack.c.b16 %v64, %v62
  %v95 = vpack.c.b16 %v67, %v65
  %v96 = vpack.c.b16 %v68, %v66
  %v97 = vpack.c.b16 %v71, %v69
  %v98 = vpack.c.b16 %v72, %v70
  %v99 = vpack.c.b16 %v75, %v73
  %v100 = vpack.c.b16 %v76, %v74
  %v101 = vpack.c.b16 %v79, %v77
  %v102 = vpack.c.b16 %v80, %v78
  %v103 = vpack.c.b16 %v83, %v81
  %v104 = vpack.c.b16 %v84, %v82
  %v105 = vpack.c.b16 %v87, %v85
  %v106 = vpack.c.b16 %v88, %v86
  %v107 = vpack.c.b16 %v91, %v89
  %v108 = vpack.c.b16 %v92, %v90
  %125 = vmatprep.subr.bf16.mxu0 %v108
  %126 = vmatpush1.bf16.xpose.msra.mxu0 %v107
  %127 = vmatprep.subr.bf16.mxu0 %v106
  %128 = vmatpush1.bf16.xpose.msra.mxu0 %v105
  %129 = vmatprep.subr.bf16.mxu0 %v104
  %130 = vmatpush1.bf16.xpose.msra.mxu0 %v103
  %131 = vmatprep.subr.bf16.mxu0 %v102
  %132 = vmatpush1.bf16.xpose.msra.mxu0 %v101
  %133 = vmatprep.subr.bf16.mxu0 %v100
  %134 = vmatpush1.bf16.xpose.msra.mxu0 %v99
  %135 = vmatprep.subr.bf16.mxu0 %v98
  %136 = vmatpush1.bf16.xpose.msra.mxu0 %v97
  %137 = vmatprep.subr.bf16.mxu0 %v96
  %138 = vmatpush1.bf16.xpose.msra.mxu0 %v95
  %139 = vmatprep.subr.bf16.mxu0 %v94
  %140 = vmatpush1.bf16.xpose.msra.mxu0 %v93
  %141 = vmatprep.subr.bf16.mxu0 0
  %142 = vmatpush2.bf16.xpose.msra.mxu0 0
  %143 = vmatprep.subr.bf16.mxu0 0
  %144 = vmatpush2.bf16.xpose.msra.mxu0 0
  %145 = vmatprep.subr.bf16.mxu0 0
  %146 = vmatpush2.bf16.xpose.msra.mxu0 0
  %147 = vmatprep.subr.bf16.mxu0 0
  %148 = vmatpush2.bf16.xpose.msra.mxu0 0
  %149 = vmatprep.subr.bf16.mxu0 0
  %150 = vmatpush2.bf16.xpose.msra.mxu0 0
  %151 = vmatprep.subr.bf16.mxu0 0
  %152 = vmatpush2.bf16.xpose.msra.mxu0 0
  %153 = vmatprep.subr.bf16.mxu0 0
  %154 = vmatpush2.bf16.xpose.msra.mxu0 0
  %155 = vmatprep.subr.bf16.mxu0 0
  %156 = vmatpush2.bf16.xpose.msra.mxu0 0
  %157 = vmatprep.mubr.bf16.mxu0 %v42
  %158 = vmatmul.mubr.bf16.gmra.mxu0 %v41
  %v159 = vpop.f32.mrf.mxu0
  %v160 = vadd.f32 %v36, %v159
  %v161 = vpop.f32.mrf.mxu0
  %v162 = vpop.f32.mrf.mxu0
  %v163 = vpop.f32.mrf.mxu0
  %164 = vdwg.mxu0
  %v165 = vrot.slane %v160, 4
  %v166 = vmax.f32 %v160, %v165
  %v167 = vrot.slane %v166, 2
  %v168 = vmax.f32 %v166, %v167
  %v169 = vrot.slane %v168, 1
  %v170 = vmax.f32 %v168, %v169
  %v171 = vlaneseq
  %v172 = vshrl.u32 %v171, 7
  %v173 = vcvt.s32.f32 %v172
  %vm174 = vcmp.eq.f32.partialorder %v160, %v170
  %v175 = vsel %vm174, %v173, 8.0
  %v176 = vrot.slane %v175, 4
  %v177 = vmin.f32 %v175, %v176
  %v178 = vrot.slane %v177, 2
  %v179 = vmin.f32 %v177, %v178
  %v180 = vrot.slane %v179, 1
  %v181 = vmin.f32 %v179, %v180
  %v182 = vcvt.f32.s32.to.zero.pseudo %v181
  %183 = vst [vmem:[%s3] sm:$0x1] %v182
  // Predicated region
  $region14: #{forward.5} parent=0 // pred_check
    _
  $region15: #{forward.5} parent=0 // pred_check_branch
    %185 = sbr.rel (0) target = $region17
  $region16: #{forward.5} parent=0 // pred_region
    _
  $region17: #{forward.5} parent=0 // pred_fallthru
    _
  // Predicated region
  $region18: #{forward.5} parent=0 // pred_check
    _
  $region19: #{forward.5} parent=0 // pred_check_branch
    %187 = sbr.rel (0) target = $region21
  $region20: #{forward.5} parent=0 // pred_region
    _
  $region21: #{forward.5} parent=0 // pred_fallthru
    _

// kernel: forward.3
$region0: #{forward.3}
  #allocation0 [shape = 'u32[]', space=smem, size = 0x4, offset = 0x4, fixed_abs, tag = 'smem constant byte address 0x4 - core index']
  #allocation1 [shape = 'u32[144,128]{1,0:T(1,128)}', space=vmem, size = 0x12000, scoped, tag = 'internal scratch']
  #allocation2 [shape = 'f32[8,2,256]{2,1,0:T(2,128)}', space=vmem, size = 0x4000, scoped, tag = 'scratch operand']
  #allocation3 [shape = 'f32[2,256]{1,0:T(2,128)}', space=vmem, size = 0x800, scoped, tag = 'scratch operand']
  %s0 = inlined_call_operand.vmem [shape: bf16[8,2,768], index: 0, kind: input, shape index: {}]
  %s1 = inlined_call_operand.vmem [shape: bf16[768,256], index: 1, kind: input, shape index: {}]
  %s2 = inlined_call_operand.vmem [shape: bf16[256,256], index: 2, kind: input, shape index: {}]
  %s3 = inlined_call_operand.vmem [shape: f32[1,256], index: 3, kind: input, shape index: {}]
  %s4 = inlined_call_operand.vmem [shape: bf16[8,2,256], index: 4, kind: output, shape index: {}]
  %s5 = sld [smem:[#allocation0]]
  $region26: #{forward.3} parent=0
    _
  %s7 = ssub.s32 1, %s5
  %s8 = scalar_select 0, %s7, %s5
  // Predicated region
  $region2: #{forward.3} parent=0 // pred_check
    _
  $region3: #{forward.3} parent=0 // pred_check_branch
    %10 = sbr.rel (0) target = $region5
  $region4: #{forward.3} parent=0 // pred_region
    _
  $region5: #{forward.3} parent=0 // pred_fallthru
    _
  // Predicated region
  $region6: #{forward.3} parent=0 // pred_check
    _
  $region7: #{forward.3} parent=0 // pred_check_branch
    %12 = sbr.rel (0) target = $region9
  $region8: #{forward.3} parent=0 // pred_region
    _
  $region9: #{forward.3} parent=0 // pred_fallthru
    _
  // Predicated region
  $region10: #{forward.3} parent=0 // pred_check
    _
  $region11: #{forward.3} parent=0 // pred_check_branch
    %14 = sbr.rel (0) target = $region13
  $region12: #{forward.3} parent=0 // pred_region
    _
  $region13: #{forward.3} parent=0 // pred_fallthru
    _
  // Predicated region
  $region14: #{forward.3} parent=0 // pred_check
    _
  $region15: #{forward.3} parent=0 // pred_check_branch
    %16 = sbr.rel (0) target = $region17
  $region16: #{forward.3} parent=0 // pred_region
    _
  $region17: #{forward.3} parent=0 // pred_fallthru
    _
  %v18 = vld [vmem:[%s3] sm:$0x3]
  %v19 = vld [vmem:[%s2] sm:$0xff]
  %v20 = vld [vmem:[%s2 + $0x8] sm:$0xff]
  %v21 = vld [vmem:[%s2 + $0x10] sm:$0xff]
  %v22 = vld [vmem:[%s2 + $0x18] sm:$0xff]
  %v23 = vld [vmem:[%s2 + $0x20] sm:$0xff]
  %v24 = vld [vmem:[%s2 + $0x28] sm:$0xff]
  %v25 = vld [vmem:[%s2 + $0x30] sm:$0xff]
  %v26 = vld [vmem:[%s2 + $0x38] sm:$0xff]
  %v27 = vld [vmem:[%s2 + $0x40] sm:$0xff]
  %v28 = vld [vmem:[%s2 + $0x48] sm:$0xff]
  %v29 = vld [vmem:[%s2 + $0x50] sm:$0xff]
  %v30 = vld [vmem:[%s2 + $0x58] sm:$0xff]
  %v31 = vld [vmem:[%s2 + $0x60] sm:$0xff]
  %v32 = vld [vmem:[%s2 + $0x68] sm:$0xff]
  %v33 = vld [vmem:[%s2 + $0x70] sm:$0xff]
  %v34 = vld [vmem:[%s2 + $0x78] sm:$0xff]
  %v35 = vld [vmem:[%s2 + $0x80] sm:$0xff]
  %v36 = vld [vmem:[%s2 + $0x88] sm:$0xff]
  %v37 = vld [vmem:[%s2 + $0x90] sm:$0xff]
  %v38 = vld [vmem:[%s2 + $0x98] sm:$0xff]
  %v39 = vld [vmem:[%s2 + $0xa0] sm:$0xff]
  %v40 = vld [vmem:[%s2 + $0xa8] sm:$0xff]
  %v41 = vld [vmem:[%s2 + $0xb0] sm:$0xff]
  %v42 = vld [vmem:[%s2 + $0xb8] sm:$0xff]
  %v43 = vld [vmem:[%s2 + $0xc0] sm:$0xff]
  %v44 = vld [vmem:[%s2 + $0xc8] sm:$0xff]
  %v45 = vld [vmem:[%s2 + $0xd0] sm:$0xff]
  %v46 = vld [vmem:[%s2 + $0xd8] sm:$0xff]
  %v47 = vld [vmem:[%s2 + $0xe0] sm:$0xff]
  %v48 = vld [vmem:[%s2 + $0xe8] sm:$0xff]
  %v49 = vld [vmem:[%s2 + $0xf0] sm:$0xff]
  %v50 = vld [vmem:[%s2 + $0xf8] sm:$0xff]
  %v51 = vld [vmem:[%s1] sm:$0xf]
  %v52 = vld [vmem:[%s1 + $0x8] sm:$0xf]
  %v53 = vld [vmem:[%s1 + $0x10] sm:$0xf]
  %v54 = vld [vmem:[%s1 + $0x18] sm:$0xf]
  %v55 = vld [vmem:[%s1 + $0x20] sm:$0xf]
  %v56 = vld [vmem:[%s1 + $0x28] sm:$0xf]
  %v57 = vld [vmem:[%s1 + $0x30] sm:$0xf]
  %v58 = vld [vmem:[%s1 + $0x38] sm:$0xf]
  %v59 = vld [vmem:[%s1 + $0x40] sm:$0xf]
  %v60 = vld [vmem:[%s1 + $0x48] sm:$0xf]
  %v61 = vld [vmem:[%s1 + $0x50] sm:$0xf]
  %v62 = vld [vmem:[%s1 + $0x58] sm:$0xf]
  %v63 = vld [vmem:[%s1 + $0x60] sm:$0xf]
  %v64 = vld [vmem:[%s1 + $0x68] sm:$0xf]
  %v65 = vld [vmem:[%s1 + $0x70] sm:$0xf]
  %v66 = vld [vmem:[%s1 + $0x78] sm:$0xf]
  %v67 = vld [vmem:[%s1 + $0x80] sm:$0xf]
  %v68 = vld [vmem:[%s1 + $0x88] sm:$0xf]
  %v69 = vld [vmem:[%s1 + $0x90] sm:$0xf]
  %v70 = vld [vmem:[%s1 + $0x98] sm:$0xf]
  %v71 = vld [vmem:[%s1 + $0xa0] sm:$0xf]
  %v72 = vld [vmem:[%s1 + $0xa8] sm:$0xf]
  %v73 = vld [vmem:[%s1 + $0xb0] sm:$0xf]
  %v74 = vld [vmem:[%s1 + $0xb8] sm:$0xf]
  %v75 = vld [vmem:[%s1 + $0xc0] sm:$0xf]
  %v76 = vld [vmem:[%s1 + $0xc8] sm:$0xf]
  %v77 = vld [vmem:[%s1 + $0xd0] sm:$0xf]
  %v78 = vld [vmem:[%s1 + $0xd8] sm:$0xf]
  %v79 = vld [vmem:[%s1 + $0xe0] sm:$0xf]
  %v80 = vld [vmem:[%s1 + $0xe8] sm:$0xf]
  %v81 = vld [vmem:[%s1 + $0xf0] sm:$0xf]
  %v82 = vld [vmem:[%s1 + $0xf8] sm:$0xf]
  %v83 = vld [vmem:[%s1 + $0x100] sm:$0xf]
  %v84 = vld [vmem:[%s1 + $0x108] sm:$0xf]
  %v85 = vld [vmem:[%s1 + $0x110] sm:$0xf]
  %v86 = vld [vmem:[%s1 + $0x118] sm:$0xf]
  %v87 = vld [vmem:[%s1 + $0x120] sm:$0xf]
  %v88 = vld [vmem:[%s1 + $0x128] sm:$0xf]
  %v89 = vld [vmem:[%s1 + $0x130] sm:$0xf]
  %v90 = vld [vmem:[%s1 + $0x138] sm:$0xf]
  %v91 = vld [vmem:[%s1 + $0x140] sm:$0xf]
  %v92 = vld [vmem:[%s1 + $0x148] sm:$0xf]
  %v93 = vld [vmem:[%s1 + $0x150] sm:$0xf]
  %v94 = vld [vmem:[%s1 + $0x158] sm:$0xf]
  %v95 = vld [vmem:[%s1 + $0x160] sm:$0xf]
  %v96 = vld [vmem:[%s1 + $0x168] sm:$0xf]
  %v97 = vld [vmem:[%s1 + $0x170] sm:$0xf]
  %v98 = vld [vmem:[%s1 + $0x178] sm:$0xf]
  %v99 = vld [vmem:[%s1 + $0x180] sm:$0xf]
  %v100 = vld [vmem:[%s1 + $0x188] sm:$0xf]
  %v101 = vld [vmem:[%s1 + $0x190] sm:$0xf]
  %v102 = vld [vmem:[%s1 + $0x198] sm:$0xf]
  %v103 = vld [vmem:[%s1 + $0x1a0] sm:$0xf]
  %v104 = vld [vmem:[%s1 + $0x1a8] sm:$0xf]
  %v105 = vld [vmem:[%s1 + $0x1b0] sm:$0xf]
  %v106 = vld [vmem:[%s1 + $0x1b8] sm:$0xf]
  %v107 = vld [vmem:[%s1 + $0x1c0] sm:$0xf]
  %v108 = vld [vmem:[%s1 + $0x1c8] sm:$0xf]
  %v109 = vld [vmem:[%s1 + $0x1d0] sm:$0xf]
  %v110 = vld [vmem:[%s1 + $0x1d8] sm:$0xf]
  %v111 = vld [vmem:[%s1 + $0x1e0] sm:$0xf]
  %v112 = vld [vmem:[%s1 + $0x1e8] sm:$0xf]
  %v113 = vld [vmem:[%s1 + $0x1f0] sm:$0xf]
  %v114 = vld [vmem:[%s1 + $0x1f8] sm:$0xf]
  %v115 = vld [vmem:[%s1 + $0x200] sm:$0xf]
  %v116 = vld [vmem:[%s1 + $0x208] sm:$0xf]
  %v117 = vld [vmem:[%s1 + $0x210] sm:$0xf]
  %v118 = vld [vmem:[%s1 + $0x218] sm:$0xf]
  %v119 = vld [vmem:[%s1 + $0x220] sm:$0xf]
  %v120 = vld [vmem:[%s1 + $0x228] sm:$0xf]
  %v121 = vld [vmem:[%s1 + $0x230] sm:$0xf]
  %v122 = vld [vmem:[%s1 + $0x238] sm:$0xf]
  %v123 = vld [vmem:[%s1 + $0x240] sm:$0xf]
  %v124 = vld [vmem:[%s1 + $0x248] sm:$0xf]
  %v125 = vld [vmem:[%s1 + $0x250] sm:$0xf]
  %v126 = vld [vmem:[%s1 + $0x258] sm:$0xf]
  %v127 = vld [vmem:[%s1 + $0x260] sm:$0xf]
  %v128 = vld [vmem:[%s1 + $0x268] sm:$0xf]
  %v129 = vld [vmem:[%s1 + $0x270] sm:$0xf]
  %v130 = vld [vmem:[%s1 + $0x278] sm:$0xf]
  %v131 = vld [vmem:[%s1 + $0x280] sm:$0xf]
  %v132 = vld [vmem:[%s1 + $0x288] sm:$0xf]
  %v133 = vld [vmem:[%s1 + $0x290] sm:$0xf]
  %v134 = vld [vmem:[%s1 + $0x298] sm:$0xf]
  %v135 = vld [vmem:[%s1 + $0x2a0] sm:$0xf]
  %v136 = vld [vmem:[%s1 + $0x2a8] sm:$0xf]
  %v137 = vld [vmem:[%s1 + $0x2b0] sm:$0xf]
  %v138 = vld [vmem:[%s1 + $0x2b8] sm:$0xf]
  %v139 = vld [vmem:[%s1 + $0x2c0] sm:$0xf]
  %v140 = vld [vmem:[%s1 + $0x2c8] sm:$0xf]
  %v141 = vld [vmem:[%s1 + $0x2d0] sm:$0xf]
  %v142 = vld [vmem:[%s1 + $0x2d8] sm:$0xf]
  %v143 = vld [vmem:[%s1 + $0x2e0] sm:$0xf]
  %v144 = vld [vmem:[%s1 + $0x2e8] sm:$0xf]
  %v145 = vld [vmem:[%s1 + $0x2f0] sm:$0xf]
  %v146 = vld [vmem:[%s1 + $0x2f8] sm:$0xf]
  %v147 = vld [vmem:[%s1 + $0x4] sm:$0xf]
  %v148 = vld [vmem:[%s1 + $0xc] sm:$0xf]
  %v149 = vld [vmem:[%s1 + $0x14] sm:$0xf]
  %v150 = vld [vmem:[%s1 + $0x1c] sm:$0xf]
  %v151 = vld [vmem:[%s1 + $0x24] sm:$0xf]
  %v152 = vld [vmem:[%s1 + $0x2c] sm:$0xf]
  %v153 = vld [vmem:[%s1 + $0x34] sm:$0xf]
  %v154 = vld [vmem:[%s1 + $0x3c] sm:$0xf]
  %v155 = vld [vmem:[%s1 + $0x44] sm:$0xf]
  %v156 = vld [vmem:[%s1 + $0x4c] sm:$0xf]
  %v157 = vld [vmem:[%s1 + $0x54] sm:$0xf]
  %v158 = vld [vmem:[%s1 + $0x5c] sm:$0xf]
  %v159 = vld [vmem:[%s1 + $0x64] sm:$0xf]
  %v160 = vld [vmem:[%s1 + $0x6c] sm:$0xf]
  %v161 = vld [vmem:[%s1 + $0x74] sm:$0xf]
  %v162 = vld [vmem:[%s1 + $0x7c] sm:$0xf]
  %v163 = vld [vmem:[%s1 + $0x84] sm:$0xf]
  %v164 = vld [vmem:[%s1 + $0x8c] sm:$0xf]
  %v165 = vld [vmem:[%s1 + $0x94] sm:$0xf]
  %v166 = vld [vmem:[%s1 + $0x9c] sm:$0xf]
  %v167 = vld [vmem:[%s1 + $0xa4] sm:$0xf]
  %v168 = vld [vmem:[%s1 + $0xac] sm:$0xf]
  %v169 = vld [vmem:[%s1 + $0xb4] sm:$0xf]
  %v170 = vld [vmem:[%s1 + $0xbc] sm:$0xf]
  %v171 = vld [vmem:[%s1 + $0xc4] sm:$0xf]
  %v172 = vld [vmem:[%s1 + $0xcc] sm:$0xf]
  %v173 = vld [vmem:[%s1 + $0xd4] sm:$0xf]
  %v174 = vld [vmem:[%s1 + $0xdc] sm:$0xf]
  %v175 = vld [vmem:[%s1 + $0xe4] sm:$0xf]
  %v176 = vld [vmem:[%s1 + $0xec] sm:$0xf]
  %v177 = vld [vmem:[%s1 + $0xf4] sm:$0xf]
  %v178 = vld [vmem:[%s1 + $0xfc] sm:$0xf]
  %v179 = vld [vmem:[%s1 + $0x104] sm:$0xf]
  %v180 = vld [vmem:[%s1 + $0x10c] sm:$0xf]
  %v181 = vld [vmem:[%s1 + $0x114] sm:$0xf]
  %v182 = vld [vmem:[%s1 + $0x11c] sm:$0xf]
  %v183 = vld [vmem:[%s1 + $0x124] sm:$0xf]
  %v184 = vld [vmem:[%s1 + $0x12c] sm:$0xf]
  %v185 = vld [vmem:[%s1 + $0x134] sm:$0xf]
  %v186 = vld [vmem:[%s1 + $0x13c] sm:$0xf]
  %v187 = vld [vmem:[%s1 + $0x144] sm:$0xf]
  %v188 = vld [vmem:[%s1 + $0x14c] sm:$0xf]
  %v189 = vld [vmem:[%s1 + $0x154] sm:$0xf]
  %v190 = vld [vmem:[%s1 + $0x15c] sm:$0xf]
  %v191 = vld [vmem:[%s1 + $0x164] sm:$0xf]
  %v192 = vld [vmem:[%s1 + $0x16c] sm:$0xf]
  %v193 = vld [vmem:[%s1 + $0x174] sm:$0xf]
  %v194 = vld [vmem:[%s1 + $0x17c] sm:$0xf]
  %v195 = vld [vmem:[%s1 + $0x184] sm:$0xf]
  %v196 = vld [vmem:[%s1 + $0x18c] sm:$0xf]
  %v197 = vld [vmem:[%s1 + $0x194] sm:$0xf]
  %v198 = vld [vmem:[%s1 + $0x19c] sm:$0xf]
  %v199 = vld [vmem:[%s1 + $0x1a4] sm:$0xf]
  %v200 = vld [vmem:[%s1 + $0x1ac] sm:$0xf]
  %v201 = vld [vmem:[%s1 + $0x1b4] sm:$0xf]
  %v202 = vld [vmem:[%s1 + $0x1bc] sm:$0xf]
  %v203 = vld [vmem:[%s1 + $0x1c4] sm:$0xf]
  %v204 = vld [vmem:[%s1 + $0x1cc] sm:$0xf]
  %v205 = vld [vmem:[%s1 + $0x1d4] sm:$0xf]
  %v206 = vld [vmem:[%s1 + $0x1dc] sm:$0xf]
  %v207 = vld [vmem:[%s1 + $0x1e4] sm:$0xf]
  %v208 = vld [vmem:[%s1 + $0x1ec] sm:$0xf]
  %v209 = vld [vmem:[%s1 + $0x1f4] sm:$0xf]
  %v210 = vld [vmem:[%s1 + $0x1fc] sm:$0xf]
  %v211 = vld [vmem:[%s1 + $0x204] sm:$0xf]
  %v212 = vld [vmem:[%s1 + $0x20c] sm:$0xf]
  %v213 = vld [vmem:[%s1 + $0x214] sm:$0xf]
  %v214 = vld [vmem:[%s1 + $0x21c] sm:$0xf]
  %v215 = vld [vmem:[%s1 + $0x224] sm:$0xf]
  %v216 = vld [vmem:[%s1 + $0x22c] sm:$0xf]
  %v217 = vld [vmem:[%s1 + $0x234] sm:$0xf]
  %v218 = vld [vmem:[%s1 + $0x23c] sm:$0xf]
  %v219 = vld [vmem:[%s1 + $0x244] sm:$0xf]
  %v220 = vld [vmem:[%s1 + $0x24c] sm:$0xf]
  %v221 = vld [vmem:[%s1 + $0x254] sm:$0xf]
  %v222 = vld [vmem:[%s1 + $0x25c] sm:$0xf]
  %v223 = vld [vmem:[%s1 + $0x264] sm:$0xf]
  %v224 = vld [vmem:[%s1 + $0x26c] sm:$0xf]
  %v225 = vld [vmem:[%s1 + $0x274] sm:$0xf]
  %v226 = vld [vmem:[%s1 + $0x27c] sm:$0xf]
  %v227 = vld [vmem:[%s1 + $0x284] sm:$0xf]
  %v228 = vld [vmem:[%s1 + $0x28c] sm:$0xf]
  %v229 = vld [vmem:[%s1 + $0x294] sm:$0xf]
  %v230 = vld [vmem:[%s1 + $0x29c] sm:$0xf]
  %v231 = vld [vmem:[%s1 + $0x2a4] sm:$0xf]
  %v232 = vld [vmem:[%s1 + $0x2ac] sm:$0xf]
  %v233 = vld [vmem:[%s1 + $0x2b4] sm:$0xf]
  %v234 = vld [vmem:[%s1 + $0x2bc] sm:$0xf]
  %v235 = vld [vmem:[%s1 + $0x2c4] sm:$0xf]
  %v236 = vld [vmem:[%s1 + $0x2cc] sm:$0xf]
  %v237 = vld [vmem:[%s1 + $0x2d4] sm:$0xf]
  %v238 = vld [vmem:[%s1 + $0x2dc] sm:$0xf]
  %v239 = vld [vmem:[%s1 + $0x2e4] sm:$0xf]
  %v240 = vld [vmem:[%s1 + $0x2ec] sm:$0xf]
  %v241 = vld [vmem:[%s1 + $0x2f4] sm:$0xf]
  %v242 = vld [vmem:[%s1 + $0x2fc] sm:$0xf]
  %v243 = vld [vmem:[%s0] sm:$0x3f]
  %v245 = vcombine.high %v243, %v243
  %v247 = vunpack.c.l.s4 1966171168
  %v248 = vunpack.c.0.s8 %v247
  %v249 = vlaneseq
  %v250 = vshrl.u32 %v249, 7
  %v251 = vsub.s32 %v248, %v250
  %v252 = vrot.slane %v243, %v251
  %v254 = vunpack.c.l.s4 1966171168
  %v255 = vunpack.c.0.s8 %v254
  %v256 = vlaneseq
  %v257 = vshrl.u32 %v256, 7
  %v258 = vsub.s32 %v255, %v257
  %v259 = vrot.slane %v245, %v258
  %v260 = vcombine.high %v252, %v252
  %v261 = vcombine.high %v259, %v259
  %v263 = vunpack.c.l.s4 1966171168
  %v264 = vunpack.c.0.s8 %v263
  %v265 = vlaneseq
  %v266 = vshrl.u32 %v265, 7
  %v267 = vsub.s32 %v264, %v266
  %v268 = vrot.slane %v252, %v267
  %v270 = vunpack.c.l.s4 1966171168
  %v271 = vunpack.c.0.s8 %v270
  %v272 = vlaneseq
  %v273 = vshrl.u32 %v272, 7
  %v274 = vsub.s32 %v271, %v273
  %v275 = vrot.slane %v259, %v274
  %v277 = vunpack.c.l.s4 1966171168
  %v278 = vunpack.c.0.s8 %v277
  %v279 = vlaneseq
  %v280 = vshrl.u32 %v279, 7
  %v281 = vsub.s32 %v278, %v280
  %v282 = vrot.slane %v260, %v281
  %v284 = vunpack.c.l.s4 1966171168
  %v285 = vunpack.c.0.s8 %v284
  %v286 = vlaneseq
  %v287 = vshrl.u32 %v286, 7
  %v288 = vsub.s32 %v285, %v287
  %v289 = vrot.slane %v261, %v288
  %v290 = vcombine.high %v268, %v268
  %v291 = vcombine.high %v282, %v282
  %v394 = vunpack.c.l.b16 %v51
  %v395 = vunpack.c.l.b16 %v52
  %v396 = vunpack.c.l.b16 %v53
  %v397 = vunpack.c.l.b16 %v54
  %v398 = vunpack.c.l.b16 %v55
  %v399 = vunpack.c.l.b16 %v56
  %v400 = vunpack.c.l.b16 %v57
  %v401 = vunpack.c.l.b16 %v58
  %v402 = vunpack.c.l.b16 %v59
  %v403 = vunpack.c.l.b16 %v60
  %v404 = vunpack.c.l.b16 %v61
  %v405 = vunpack.c.l.b16 %v62
  %v406 = vunpack.c.l.b16 %v63
  %v407 = vunpack.c.l.b16 %v64
  %v408 = vunpack.c.l.b16 %v65
  %v409 = vunpack.c.l.b16 %v66
  %v410 = vunpack.c.l.b16 %v67
  %v411 = vunpack.c.l.b16 %v68
  %v412 = vunpack.c.l.b16 %v69
  %v413 = vunpack.c.l.b16 %v70
  %v414 = vunpack.c.l.b16 %v71
  %v415 = vunpack.c.l.b16 %v72
  %v416 = vunpack.c.l.b16 %v73
  %v417 = vunpack.c.l.b16 %v74
  %v418 = vunpack.c.l.b16 %v75
  %v419 = vunpack.c.l.b16 %v76
  %v420 = vunpack.c.l.b16 %v77
  %v421 = vunpack.c.l.b16 %v78
  %v422 = vunpack.c.l.b16 %v79
  %v423 = vunpack.c.l.b16 %v80
  %v424 = vunpack.c.l.b16 %v81
  %v425 = vunpack.c.l.b16 %v82
  %v426 = vunpack.c.l.b16 %v83
  %v427 = vunpack.c.l.b16 %v84
  %v428 = vunpack.c.l.b16 %v85
  %v429 = vunpack.c.l.b16 %v86
  %v430 = vunpack.c.l.b16 %v87
  %v431 = vunpack.c.l.b16 %v88
  %v432 = vunpack.c.l.b16 %v89
  %v433 = vunpack.c.l.b16 %v90
  %v434 = vunpack.c.l.b16 %v91
  %v435 = vunpack.c.l.b16 %v92
  %v436 = vunpack.c.l.b16 %v93
  %v437 = vunpack.c.l.b16 %v94
  %v438 = vunpack.c.l.b16 %v95
  %v439 = vunpack.c.l.b16 %v96
  %v440 = vunpack.c.l.b16 %v97
  %v441 = vunpack.c.l.b16 %v98
  %v442 = vunpack.c.l.b16 %v99
  %v443 = vunpack.c.l.b16 %v100
  %v444 = vunpack.c.l.b16 %v101
  %v445 = vunpack.c.l.b16 %v102
  %v446 = vunpack.c.l.b16 %v103
  %v447 = vunpack.c.l.b16 %v104
  %v448 = vunpack.c.l.b16 %v105
  %v449 = vunpack.c.l.b16 %v106
  %v450 = vunpack.c.l.b16 %v107
  %v451 = vunpack.c.l.b16 %v108
  %v452 = vunpack.c.l.b16 %v109
  %v453 = vunpack.c.l.b16 %v110
  %v454 = vunpack.c.l.b16 %v111
  %v455 = vunpack.c.l.b16 %v112
  %v456 = vunpack.c.l.b16 %v113
  %v457 = vunpack.c.l.b16 %v114
  %v458 = vunpack.c.l.b16 %v115
  %v459 = vunpack.c.l.b16 %v116
  %v460 = vunpack.c.l.b16 %v117
  %v461 = vunpack.c.l.b16 %v118
  %v462 = vunpack.c.l.b16 %v119
  %v463 = vunpack.c.l.b16 %v120
  %v464 = vunpack.c.l.b16 %v121
  %v465 = vunpack.c.l.b16 %v122
  %v466 = vunpack.c.l.b16 %v123
  %v467 = vunpack.c.l.b16 %v124
  %v468 = vunpack.c.l.b16 %v125
  %v469 = vunpack.c.l.b16 %v126
  %v470 = vunpack.c.l.b16 %v127
  %v471 = vunpack.c.l.b16 %v128
  %v472 = vunpack.c.l.b16 %v129
  %v473 = vunpack.c.l.b16 %v130
  %v474 = vunpack.c.l.b16 %v131
  %v475 = vunpack.c.l.b16 %v132
  %v476 = vunpack.c.l.b16 %v133
  %v477 = vunpack.c.l.b16 %v134
  %v478 = vunpack.c.l.b16 %v135
  %v479 = vunpack.c.l.b16 %v136
  %v480 = vunpack.c.l.b16 %v137
  %v481 = vunpack.c.l.b16 %v138
  %v482 = vunpack.c.l.b16 %v139
  %v483 = vunpack.c.l.b16 %v140
  %v484 = vunpack.c.l.b16 %v141
  %v485 = vunpack.c.l.b16 %v142
  %v486 = vunpack.c.l.b16 %v143
  %v487 = vunpack.c.l.b16 %v144
  %v488 = vunpack.c.l.b16 %v145
  %v489 = vunpack.c.l.b16 %v146
  %v490 = vpack.c.b16 %v395, %v394
  %v491 = vpack.c.b16 %v397, %v396
  %v492 = vpack.c.b16 %v399, %v398
  %v493 = vpack.c.b16 %v401, %v400
  %v494 = vpack.c.b16 %v403, %v402
  %v495 = vpack.c.b16 %v405, %v404
  %v496 = vpack.c.b16 %v407, %v406
  %v497 = vpack.c.b16 %v409, %v408
  %v498 = vpack.c.b16 %v411, %v410
  %v499 = vpack.c.b16 %v413, %v412
  %v500 = vpack.c.b16 %v415, %v414
  %v501 = vpack.c.b16 %v417, %v416
  %v502 = vpack.c.b16 %v419, %v418
  %v503 = vpack.c.b16 %v421, %v420
  %v504 = vpack.c.b16 %v423, %v422
  %v505 = vpack.c.b16 %v425, %v424
  %v506 = vpack.c.b16 %v427, %v426
  %v507 = vpack.c.b16 %v429, %v428
  %v508 = vpack.c.b16 %v431, %v430
  %v509 = vpack.c.b16 %v433, %v432
  %v510 = vpack.c.b16 %v435, %v434
  %v511 = vpack.c.b16 %v437, %v436
  %v512 = vpack.c.b16 %v439, %v438
  %v513 = vpack.c.b16 %v441, %v440
  %v514 = vpack.c.b16 %v443, %v442
  %v515 = vpack.c.b16 %v445, %v444
  %v516 = vpack.c.b16 %v447, %v446
  %v517 = vpack.c.b16 %v449, %v448
  %v518 = vpack.c.b16 %v451, %v450
  %v519 = vpack.c.b16 %v453, %v452
  %v520 = vpack.c.b16 %v455, %v454
  %v521 = vpack.c.b16 %v457, %v456
  %v522 = vpack.c.b16 %v459, %v458
  %v523 = vpack.c.b16 %v461, %v460
  %v524 = vpack.c.b16 %v463, %v462
  %v525 = vpack.c.b16 %v465, %v464
  %v526 = vpack.c.b16 %v467, %v466
  %v527 = vpack.c.b16 %v469, %v468
  %v528 = vpack.c.b16 %v471, %v470
  %v529 = vpack.c.b16 %v473, %v472
  %v530 = vpack.c.b16 %v475, %v474
  %v531 = vpack.c.b16 %v477, %v476
  %v532 = vpack.c.b16 %v479, %v478
  %v533 = vpack.c.b16 %v481, %v480
  %v534 = vpack.c.b16 %v483, %v482
  %v535 = vpack.c.b16 %v485, %v484
  %v536 = vpack.c.b16 %v487, %v486
  %v537 = vpack.c.b16 %v489, %v488
  %586 = vmatprep.subr.bf16.mxu0 0
  %587 = vmatpush1.bf16.msra.mxu0 %v497
  %588 = vmatprep.subr.bf16.mxu0 0
  %589 = vmatpush1.bf16.msra.mxu0 %v496
  %590 = vmatprep.subr.bf16.mxu0 0
  %591 = vmatpush1.bf16.msra.mxu0 %v495
  %592 = vmatprep.subr.bf16.mxu0 0
  %593 = vmatpush1.bf16.msra.mxu0 %v494
  %594 = vmatprep.subr.bf16.mxu0 0
  %595 = vmatpush1.bf16.msra.mxu0 %v493
  %596 = vmatprep.subr.bf16.mxu0 0
  %597 = vmatpush1.bf16.msra.mxu0 %v492
  %598 = vmatprep.subr.bf16.mxu0 0
  %599 = vmatpush1.bf16.msra.mxu0 %v491
  %600 = vmatprep.subr.bf16.mxu0 0
  %601 = vmatpush1.bf16.msra.mxu0 %v490
  %602 = vmatprep.subr.bf16.mxu0 0
  %603 = vmatpush2.bf16.msra.mxu0 %v505
  %604 = vmatprep.subr.bf16.mxu0 0
  %605 = vmatpush2.bf16.msra.mxu0 %v504
  %606 = vmatprep.subr.bf16.mxu0 0
  %607 = vmatpush2.bf16.msra.mxu0 %v503
  %608 = vmatprep.subr.bf16.mxu0 0
  %609 = vmatpush2.bf16.msra.mxu0 %v502
  %610 = vmatprep.subr.bf16.mxu0 0
  %611 = vmatpush2.bf16.msra.mxu0 %v501
  %612 = vmatprep.subr.bf16.mxu0 0
  %613 = vmatpush2.bf16.msra.mxu0 %v500
  %614 = vmatprep.subr.bf16.mxu0 0
  %615 = vmatpush2.bf16.msra.mxu0 %v499
  %616 = vmatprep.subr.bf16.mxu0 0
  %617 = vmatpush2.bf16.msra.mxu0 %v498
  %618 = vmatprep.mubr.bf16.mxu0 %v282
  %619 = vmatmul.mubr.bf16.gmra.mxu0 %v268
  %v620 = vpop.f32.mrf.mxu0
  %v621 = vadd.f32 0.0, %v620
  %v622 = vpop.f32.mrf.mxu0
  %v623 = vpop.f32.mrf.mxu0
  %v624 = vpop.f32.mrf.mxu0
  %625 = vdwg.mxu0
  %626 = vmatprep.subr.bf16.mxu0 0
  %627 = vmatpush1.bf16.msra.mxu0 %v513
  %628 = vmatprep.subr.bf16.mxu0 0
  %629 = vmatpush1.bf16.msra.mxu0 %v512
  %630 = vmatprep.subr.bf16.mxu0 0
  %631 = vmatpush1.bf16.msra.mxu0 %v511
  %632 = vmatprep.subr.bf16.mxu0 0
  %633 = vmatpush1.bf16.msra.mxu0 %v510
  %634 = vmatprep.subr.bf16.mxu0 0
  %635 = vmatpush1.bf16.msra.mxu0 %v509
  %636 = vmatprep.subr.bf16.mxu0 0
  %637 = vmatpush1.bf16.msra.mxu0 %v508
  %638 = vmatprep.subr.bf16.mxu0 0
  %639 = vmatpush1.bf16.msra.mxu0 %v507
  %640 = vmatprep.subr.bf16.mxu0 0
  %641 = vmatpush1.bf16.msra.mxu0 %v506
  %642 = vmatprep.subr.bf16.mxu0 0
  %643 = vmatpush2.bf16.msra.mxu0 %v521
  %644 = vmatprep.subr.bf16.mxu0 0
  %645 = vmatpush2.bf16.msra.mxu0 %v520
  %646 = vmatprep.subr.bf16.mxu0 0
  %647 = vmatpush2.bf16.msra.mxu0 %v519
  %648 = vmatprep.subr.bf16.mxu0 0
  %649 = vmatpush2.bf16.msra.mxu0 %v518
  %650 = vmatprep.subr.bf16.mxu0 0
  %651 = vmatpush2.bf16.msra.mxu0 %v517
  %652 = vmatprep.subr.bf16.mxu0 0
  %653 = vmatpush2.bf16.msra.mxu0 %v516
  %654 = vmatprep.subr.bf16.mxu0 0
  %655 = vmatpush2.bf16.msra.mxu0 %v515
  %656 = vmatprep.subr.bf16.mxu0 0
  %657 = vmatpush2.bf16.msra.mxu0 %v514
  %658 = vmatprep.mubr.bf16.mxu0 %v291
  %659 = vmatmul.mubr.bf16.gmra.mxu0 %v290
  %v660 = vpop.f32.mrf.mxu0
  %v661 = vadd.f32 %v621, %v660
  %v662 = vpop.f32.mrf.mxu0
  %v663 = vpop.f32.mrf.mxu0
  %v664 = vpop.f32.mrf.mxu0
  %665 = vdwg.mxu0
  %666 = vmatprep.subr.bf16.mxu0 0
  %667 = vmatpush1.bf16.msra.mxu0 %v529
  %668 = vmatprep.subr.bf16.mxu0 0
  %669 = vmatpush1.bf16.msra.mxu0 %v528
  %670 = vmatprep.subr.bf16.mxu0 0
  %671 = vmatpush1.bf16.msra.mxu0 %v527
  %672 = vmatprep.subr.bf16.mxu0 0
  %673 = vmatpush1.bf16.msra.mxu0 %v526
  %674 = vmatprep.subr.bf16.mxu0 0
  %675 = vmatpush1.bf16.msra.mxu0 %v525
  %676 = vmatprep.subr.bf16.mxu0 0
  %677 = vmatpush1.bf16.msra.mxu0 %v524
  %678 = vmatprep.subr.bf16.mxu0 0
  %679 = vmatpush1.bf16.msra.mxu0 %v523
  %680 = vmatprep.subr.bf16.mxu0 0
  %681 = vmatpush1.bf16.msra.mxu0 %v522
  %682 = vmatprep.subr.bf16.mxu0 0
  %683 = vmatpush2.bf16.msra.mxu0 %v537
  %684 = vmatprep.subr.bf16.mxu0 0
  %685 = vmatpush2.bf16.msra.mxu0 %v536
  %686 = vmatprep.subr.bf16.mxu0 0
  %687 = vmatpush2.bf16.msra.mxu0 %v535
  %688 = vmatprep.subr.bf16.mxu0 0
  %689 = vmatpush2.bf16.msra.mxu0 %v534
  %690 = vmatprep.subr.bf16.mxu0 0
  %691 = vmatpush2.bf16.msra.mxu0 %v533
  %692 = vmatprep.subr.bf16.mxu0 0
  %693 = vmatpush2.bf16.msra.mxu0 %v532
  %694 = vmatprep.subr.bf16.mxu0 0
  %695 = vmatpush2.bf16.msra.mxu0 %v531
  %696 = vmatprep.subr.bf16.mxu0 0
  %697 = vmatpush2.bf16.msra.mxu0 %v530
  %698 = vmatprep.mubr.bf16.mxu0 %v289
  %699 = vmatmul.mubr.bf16.gmra.mxu0 %v275
  %v700 = vpop.f32.mrf.mxu0
  %v701 = vadd.f32 %v661, %v700
  %v702 = vpop.f32.mrf.mxu0
  %v703 = vpop.f32.mrf.mxu0
  %v704 = vpop.f32.mrf.mxu0
  %705 = vdwg.mxu0
  %s706 = scalar_lea.vmem %s0, 42
  %v707 = vld [vmem:[%s706] sm:$0x3f]
  %v709 = vcombine.high %v707, %v707
  %v711 = vunpack.c.l.s4 1966171168
  %v712 = vunpack.c.0.s8 %v711
  %v713 = vlaneseq
  %v714 = vshrl.u32 %v713, 7
  %v715 = vsub.s32 %v712, %v714
  %v716 = vrot.slane %v707, %v715
  %v718 = vunpack.c.l.s4 1966171168
  %v719 = vunpack.c.0.s8 %v718
  %v720 = vlaneseq
  %v721 = vshrl.u32 %v720, 7
  %v722 = vsub.s32 %v719, %v721
  %v723 = vrot.slane %v709, %v722
  %v724 = vcombine.high %v716, %v716
  %v725 = vcombine.high %v723, %v723
  %v727 = vunpack.c.l.s4 1966171168
  %v728 = vunpack.c.0.s8 %v727
  %v729 = vlaneseq
  %v730 = vshrl.u32 %v729, 7
  %v731 = vsub.s32 %v728, %v730
  %v732 = vrot.slane %v716, %v731
  %v734 = vunpack.c.l.s4 1966171168
  %v735 = vunpack.c.0.s8 %v734
  %v736 = vlaneseq
  %v737 = vshrl.u32 %v736, 7
  %v738 = vsub.s32 %v735, %v737
  %v739 = vrot.slane %v723, %v738
  %v741 = vunpack.c.l.s4 1966171168
  %v742 = vunpack.c.0.s8 %v741
  %v743 = vlaneseq
  %v744 = vshrl.u32 %v743, 7
  %v745 = vsub.s32 %v742, %v744
  %v746 = vrot.slane %v724, %v745
  %v748 = vunpack.c.l.s4 1966171168
  %v749 = vunpack.c.0.s8 %v748
  %v750 = vlaneseq
  %v751 = vshrl.u32 %v750, 7
  %v752 = vsub.s32 %v749, %v751
  %v753 = vrot.slane %v725, %v752
  %v754 = vcombine.high %v732, %v732
  %v755 = vcombine.high %v746, %v746
  %v858 = vunpack.c.l.b16 %v147
  %v859 = vunpack.c.l.b16 %v148
  %v860 = vunpack.c.l.b16 %v149
  %v861 = vunpack.c.l.b16 %v150
  %v862 = vunpack.c.l.b16 %v151
  %v863 = vunpack.c.l.b16 %v152
  %v864 = vunpack.c.l.b16 %v153
  %v865 = vunpack.c.l.b16 %v154
  %v866 = vunpack.c.l.b16 %v155
  %v867 = vunpack.c.l.b16 %v156
  %v868 = vunpack.c.l.b16 %v157
  %v869 = vunpack.c.l.b16 %v158
  %v870 = vunpack.c.l.b16 %v159
  %v871 = vunpack.c.l.b16 %v160
  %v872 = vunpack.c.l.b16 %v161
  %v873 = vunpack.c.l.b16 %v162
  %v874 = vunpack.c.l.b16 %v163
  %v875 = vunpack.c.l.b16 %v164
  %v876 = vunpack.c.l.b16 %v165
  %v877 = vunpack.c.l.b16 %v166
  %v878 = vunpack.c.l.b16 %v167
  %v879 = vunpack.c.l.b16 %v168
  %v880 = vunpack.c.l.b16 %v169
  %v881 = vunpack.c.l.b16 %v170
  %v882 = vunpack.c.l.b16 %v171
  %v883 = vunpack.c.l.b16 %v172
  %v884 = vunpack.c.l.b16 %v173
  %v885 = vunpack.c.l.b16 %v174
  %v886 = vunpack.c.l.b16 %v175
  %v887 = vunpack.c.l.b16 %v176
  %v888 = vunpack.c.l.b16 %v177
  %v889 = vunpack.c.l.b16 %v178
  %v890 = vunpack.c.l.b16 %v179
  %v891 = vunpack.c.l.b16 %v180
  %v892 = vunpack.c.l.b16 %v181
  %v893 = vunpack.c.l.b16 %v182
  %v894 = vunpack.c.l.b16 %v183
  %v895 = vunpack.c.l.b16 %v184
  %v896 = vunpack.c.l.b16 %v185
  %v897 = vunpack.c.l.b16 %v186
  %v898 = vunpack.c.l.b16 %v187
  %v899 = vunpack.c.l.b16 %v188
  %v900 = vunpack.c.l.b16 %v189
  %v901 = vunpack.c.l.b16 %v190
  %v902 = vunpack.c.l.b16 %v191
  %v903 = vunpack.c.l.b16 %v192
  %v904 = vunpack.c.l.b16 %v193
  %v905 = vunpack.c.l.b16 %v194
  %v906 = vunpack.c.l.b16 %v195
  %v907 = vunpack.c.l.b16 %v196
  %v908 = vunpack.c.l.b16 %v197
  %v909 = vunpack.c.l.b16 %v198
  %v910 = vunpack.c.l.b16 %v199
  %v911 = vunpack.c.l.b16 %v200
  %v912 = vunpack.c.l.b16 %v201
  %v913 = vunpack.c.l.b16 %v202
  %v914 = vunpack.c.l.b16 %v203
  %v915 = vunpack.c.l.b16 %v204
  %v916 = vunpack.c.l.b16 %v205
  %v917 = vunpack.c.l.b16 %v206
  %v918 = vunpack.c.l.b16 %v207
  %v919 = vunpack.c.l.b16 %v208
  %v920 = vunpack.c.l.b16 %v209
  %v921 = vunpack.c.l.b16 %v210
  %v922 = vunpack.c.l.b16 %v211
  %v923 = vunpack.c.l.b16 %v212
  %v924 = vunpack.c.l.b16 %v213
  %v925 = vunpack.c.l.b16 %v214
  %v926 = vunpack.c.l.b16 %v215
  %v927 = vunpack.c.l.b16 %v216
  %v928 = vunpack.c.l.b16 %v217
  %v929 = vunpack.c.l.b16 %v218
  %v930 = vunpack.c.l.b16 %v219
  %v931 = vunpack.c.l.b16 %v220
  %v932 = vunpack.c.l.b16 %v221
  %v933 = vunpack.c.l.b16 %v222
  %v934 = vunpack.c.l.b16 %v223
  %v935 = vunpack.c.l.b16 %v224
  %v936 = vunpack.c.l.b16 %v225
  %v937 = vunpack.c.l.b16 %v226
  %v938 = vunpack.c.l.b16 %v227
  %v939 = vunpack.c.l.b16 %v228
  %v940 = vunpack.c.l.b16 %v229
  %v941 = vunpack.c.l.b16 %v230
  %v942 = vunpack.c.l.b16 %v231
  %v943 = vunpack.c.l.b16 %v232
  %v944 = vunpack.c.l.b16 %v233
  %v945 = vunpack.c.l.b16 %v234
  %v946 = vunpack.c.l.b16 %v235
  %v947 = vunpack.c.l.b16 %v236
  %v948 = vunpack.c.l.b16 %v237
  %v949 = vunpack.c.l.b16 %v238
  %v950 = vunpack.c.l.b16 %v239
  %v951 = vunpack.c.l.b16 %v240
  %v952 = vunpack.c.l.b16 %v241
  %v953 = vunpack.c.l.b16 %v242
  %v954 = vpack.c.b16 %v859, %v858
  %v955 = vpack.c.b16 %v861, %v860
  %v956 = vpack.c.b16 %v863, %v862
  %v957 = vpack.c.b16 %v865, %v864
  %v958 = vpack.c.b16 %v867, %v866
  %v959 = vpack.c.b16 %v869, %v868
  %v960 = vpack.c.b16 %v871, %v870
  %v961 = vpack.c.b16 %v873, %v872
  %v962 = vpack.c.b16 %v875, %v874
  %v963 = vpack.c.b16 %v877, %v876
  %v964 = vpack.c.b16 %v879, %v878
  %v965 = vpack.c.b16 %v881, %v880
  %v966 = vpack.c.b16 %v883, %v882
  %v967 = vpack.c.b16 %v885, %v884
  %v968 = vpack.c.b16 %v887, %v886
  %v969 = vpack.c.b16 %v889, %v888
  %v970 = vpack.c.b16 %v891, %v890
  %v971 = vpack.c.b16 %v893, %v892
  %v972 = vpack.c.b16 %v895, %v894
  %v973 = vpack.c.b16 %v897, %v896
  %v974 = vpack.c.b16 %v899, %v898
  %v975 = vpack.c.b16 %v901, %v900
  %v976 = vpack.c.b16 %v903, %v902
  %v977 = vpack.c.b16 %v905, %v904
  %v978 = vpack.c.b16 %v907, %v906
  %v979 = vpack.c.b16 %v909, %v908
  %v980 = vpack.c.b16 %v911, %v910
  %v981 = vpack.c.b16 %v913, %v912
  %v982 = vpack.c.b16 %v915, %v914
  %v983 = vpack.c.b16 %v917, %v916
  %v984 = vpack.c.b16 %v919, %v918
  %v985 = vpack.c.b16 %v921, %v920
  %v986 = vpack.c.b16 %v923, %v922
  %v987 = vpack.c.b16 %v925, %v924
  %v988 = vpack.c.b16 %v927, %v926
  %v989 = vpack.c.b16 %v929, %v928
  %v990 = vpack.c.b16 %v931, %v930
  %v991 = vpack.c.b16 %v933, %v932
  %v992 = vpack.c.b16 %v935, %v934
  %v993 = vpack.c.b16 %v937, %v936
  %v994 = vpack.c.b16 %v939, %v938
  %v995 = vpack.c.b16 %v941, %v940
  %v996 = vpack.c.b16 %v943, %v942
  %v997 = vpack.c.b16 %v945, %v944
  %v998 = vpack.c.b16 %v947, %v946
  %v999 = vpack.c.b16 %v949, %v948
  %v1000 = vpack.c.b16 %v951, %v950
  %v1001 = vpack.c.b16 %v953, %v952
  %1050 = vmatprep.subr.bf16.mxu0 0
  %1051 = vmatpush1.bf16.msra.mxu0 %v961
  %1052 = vmatprep.subr.bf16.mxu0 0
  %1053 = vmatpush1.bf16.msra.mxu0 %v960
  %1054 = vmatprep.subr.bf16.mxu0 0
  %1055 = vmatpush1.bf16.msra.mxu0 %v959
  %1056 = vmatprep.subr.bf16.mxu0 0
  %1057 = vmatpush1.bf16.msra.mxu0 %v958
  %1058 = vmatprep.subr.bf16.mxu0 0
  %1059 = vmatpush1.bf16.msra.mxu0 %v957
  %1060 = vmatprep.subr.bf16.mxu0 0
  %1061 = vmatpush1.bf16.msra.mxu0 %v956
  %1062 = vmatprep.subr.bf16.mxu0 0
  %1063 = vmatpush1.bf16.msra.mxu0 %v955
  %1064 = vmatprep.subr.bf16.mxu0 0
  %1065 = vmatpush1.bf16.msra.mxu0 %v954
  %1066 = vmatprep.subr.bf16.mxu0 0
  %1067 = vmatpush2.bf16.msra.mxu0 %v969
  %1068 = vmatprep.subr.bf16.mxu0 0
  %1069 = vmatpush2.bf16.msra.mxu0 %v968
  %1070 = vmatprep.subr.bf16.mxu0 0
  %1071 = vmatpush2.bf16.msra.mxu0 %v967
  %1072 = vmatprep.subr.bf16.mxu0 0
  %1073 = vmatpush2.bf16.msra.mxu0 %v966
  %1074 = vmatprep.subr.bf16.mxu0 0
  %1075 = vmatpush2.bf16.msra.mxu0 %v965
  %1076 = vmatprep.subr.bf16.mxu0 0
  %1077 = vmatpush2.bf16.msra.mxu0 %v964
  %1078 = vmatprep.subr.bf16.mxu0 0
  %1079 = vmatpush2.bf16.msra.mxu0 %v963
  %1080 = vmatprep.subr.bf16.mxu0 0
  %1081 = vmatpush2.bf16.msra.mxu0 %v962
  %1082 = vmatprep.mubr.bf16.mxu0 %v746
  %1083 = vmatmul.mubr.bf16.gmra.mxu0 %v732
  %v1084 = vpop.f32.mrf.mxu0
  %v1085 = vadd.f32 0.0, %v1084
  %v1086 = vpop.f32.mrf.mxu0
  %v1087 = vpop.f32.mrf.mxu0
  %v1088 = vpop.f32.mrf.mxu0
  %1089 = vdwg.mxu0
  %1090 = vmatprep.subr.bf16.mxu0 0
  %1091 = vmatpush1.bf16.msra.mxu0 %v977
  %1092 = vmatprep.subr.bf16.mxu0 0
  %1093 = vmatpush1.bf16.msra.mxu0 %v976
  %1094 = vmatprep.subr.bf16.mxu0 0
  %1095 = vmatpush1.bf16.msra.mxu0 %v975
  %1096 = vmatprep.subr.bf16.mxu0 0
  %1097 = vmatpush1.bf16.msra.mxu0 %v974
  %1098 = vmatprep.subr.bf16.mxu0 0
  %1099 = vmatpush1.bf16.msra.mxu0 %v973
  %1100 = vmatprep.subr.bf16.mxu0 0
  %1101 = vmatpush1.bf16.msra.mxu0 %v972
  %1102 = vmatprep.subr.bf16.mxu0 0
  %1103 = vmatpush1.bf16.msra.mxu0 %v971
  %1104 = vmatprep.subr.bf16.mxu0 0
  %1105 = vmatpush1.bf16.msra.mxu0 %v970
  %1106 = vmatprep.subr.bf16.mxu0 0
  %1107 = vmatpush2.bf16.msra.mxu0 %v985
  %1108 = vmatprep.subr.bf16.mxu0 0
  %1109 = vmatpush2.bf16.msra.mxu0 %v984
  %1110 = vmatprep.subr.bf16.mxu0 0
  %1111 = vmatpush2.bf16.msra.mxu0 %v983
  %1112 = vmatprep.subr.bf16.mxu0 0
  %1113 = vmatpush2.bf16.msra.mxu0 %v982
  %1114 = vmatprep.subr.bf16.mxu0 0
  %1115 = vmatpush2.bf16.msra.mxu0 %v981
  %1116 = vmatprep.subr.bf16.mxu0 0
  %1117 = vmatpush2.bf16.msra.mxu0 %v980
  %1118 = vmatprep.subr.bf16.mxu0 0
  %1119 = vmatpush2.bf16.msra.mxu0 %v979
  %1120 = vmatprep.subr.bf16.mxu0 0
  %1121 = vmatpush2.bf16.msra.mxu0 %v978
  %1122 = vmatprep.mubr.bf16.mxu0 %v755
  %1123 = vmatmul.mubr.bf16.gmra.mxu0 %v754
  %v1124 = vpop.f32.mrf.mxu0
  %v1125 = vadd.f32 %v1085, %v1124
  %v1126 = vpop.f32.mrf.mxu0
  %v1127 = vpop.f32.mrf.mxu0
  %v1128 = vpop.f32.mrf.mxu0
  %1129 = vdwg.mxu0
  %1130 = vmatprep.subr.bf16.mxu0 0
  %1131 = vmatpush1.bf16.msra.mxu0 %v993
  %1132 = vmatprep.subr.bf16.mxu0 0
  %1133 = vmatpush1.bf16.msra.mxu0 %v992
  %1134 = vmatprep.subr.bf16.mxu0 0
  %1135 = vmatpush1.bf16.msra.mxu0 %v991
  %1136 = vmatprep.subr.bf16.mxu0 0
  %1137 = vmatpush1.bf16.msra.mxu0 %v990
  %1138 = vmatprep.subr.bf16.mxu0 0
  %1139 = vmatpush1.bf16.msra.mxu0 %v989
  %1140 = vmatprep.subr.bf16.mxu0 0
  %1141 = vmatpush1.bf16.msra.mxu0 %v988
  %1142 = vmatprep.subr.bf16.mxu0 0
  %1143 = vmatpush1.bf16.msra.mxu0 %v987
  %1144 = vmatprep.subr.bf16.mxu0 0
  %1145 = vmatpush1.bf16.msra.mxu0 %v986
  %1146 = vmatprep.subr.bf16.mxu0 0
  %1147 = vmatpush2.bf16.msra.mxu0 %v1001
  %1148 = vmatprep.subr.bf16.mxu0 0
  %1149 = vmatpush2.bf16.msra.mxu0 %v1000
  %1150 = vmatprep.subr.bf16.mxu0 0
  %1151 = vmatpush2.bf16.msra.mxu0 %v999
  %1152 = vmatprep.subr.bf16.mxu0 0
  %1153 = vmatpush2.bf16.msra.mxu0 %v998
  %1154 = vmatprep.subr.bf16.mxu0 0
  %1155 = vmatpush2.bf16.msra.mxu0 %v997
  %1156 = vmatprep.subr.bf16.mxu0 0
  %1157 = vmatpush2.bf16.msra.mxu0 %v996
  %1158 = vmatprep.subr.bf16.mxu0 0
  %1159 = vmatpush2.bf16.msra.mxu0 %v995
  %1160 = vmatprep.subr.bf16.mxu0 0
  %1161 = vmatpush2.bf16.msra.mxu0 %v994
  %1162 = vmatprep.mubr.bf16.mxu0 %v753
  %1163 = vmatmul.mubr.bf16.gmra.mxu0 %v739
  %v1164 = vpop.f32.mrf.mxu0
  %v1165 = vadd.f32 %v1125, %v1164
  %v1166 = vpop.f32.mrf.mxu0
  %v1167 = vpop.f32.mrf.mxu0
  %v1168 = vpop.f32.mrf.mxu0
  %1169 = vdwg.mxu0
  %v1171 = vlaneseq
  %v1172 = vshrl.u32 %v1171, 7
  %v1173 = vsub.s32 0, %v1172
  %v1174 = vrot.slane %v18, %v1173
  %v1175 = vlaneseq
  %v1176 = vshrl.u32 %v1175, 7
  %v1177 = vsub.s32 1, %v1176
  %v1178 = vrot.slane %v18, %v1177
  %v1181 = vadd.f32 %v701, %v1174
  %v1182 = vadd.f32 %v1165, %v1178
  %v1185 = vcombine.low %v1181, %v1182
  %v1187 = vunpack.c.l.s4 1983009808
  %v1188 = vunpack.c.0.s8 %v1187
  %v1189 = vlaneseq
  %v1190 = vshrl.u32 %v1189, 7
  %v1191 = vsub.s32 %v1188, %v1190
  %v1192 = vrot.slane %v1185, %v1191
  %1194 = vst [vmem:[#allocation2] sm:$0xf] %v1192
  %s1195 = scalar_lea.vmem %s0, 6
  %v1196 = vld [vmem:[%s1195] sm:$0x3f]
  %v1198 = vcombine.high %v1196, %v1196
  %v1200 = vunpack.c.l.s4 1966171168
  %v1201 = vunpack.c.0.s8 %v1200
  %v1202 = vlaneseq
  %v1203 = vshrl.u32 %v1202, 7
  %v1204 = vsub.s32 %v1201, %v1203
  %v1205 = vrot.slane %v1196, %v1204
  %v1207 = vunpack.c.l.s4 1966171168
  %v1208 = vunpack.c.0.s8 %v1207
  %v1209 = vlaneseq
  %v1210 = vshrl.u32 %v1209, 7
  %v1211 = vsub.s32 %v1208, %v1210
  %v1212 = vrot.slane %v1198, %v1211
  %v1213 = vcombine.high %v1205, %v1205
  %v1214 = vcombine.high %v1212, %v1212
  %v1216 = vunpack.c.l.s4 1966171168
  %v1217 = vunpack.c.0.s8 %v1216
  %v1218 = vlaneseq
  %v1219 = vshrl.u32 %v1218, 7
  %v1220 = vsub.s32 %v1217, %v1219
  %v1221 = vrot.slane %v1205, %v1220
  %v1223 = vunpack.c.l.s4 1966171168
  %v1224 = vunpack.c.0.s8 %v1223
  %v1225 = vlaneseq
  %v1226 = vshrl.u32 %v1225, 7
  %v1227 = vsub.s32 %v1224, %v1226
  %v1228 = vrot.slane %v1212, %v1227
  %v1230 = vunpack.c.l.s4 1966171168
  %v1231 = vunpack.c.0.s8 %v1230
  %v1232 = vlaneseq
  %v1233 = vshrl.u32 %v1232, 7
  %v1234 = vsub.s32 %v1231, %v1233
  %v1235 = vrot.slane %v1213, %v1234
  %v1237 = vunpack.c.l.s4 1966171168
  %v1238 = vunpack.c.0.s8 %v1237
  %v1239 = vlaneseq
  %v1240 = vshrl.u32 %v1239, 7
  %v1241 = vsub.s32 %v1238, %v1240
  %v1242 = vrot.slane %v1214, %v1241
  %v1243 = vcombine.high %v1221, %v1221
  %v1244 = vcombine.high %v1235, %v1235
  %1251 = vmatprep.subr.bf16.mxu0 0
  %1252 = vmatpush1.bf16.msra.mxu0 %v497
  %1253 = vmatprep.subr.bf16.mxu0 0
  %1254 = vmatpush1.bf16.msra.mxu0 %v496
  %1255 = vmatprep.subr.bf16.mxu0 0
  %1256 = vmatpush1.bf16.msra.mxu0 %v495
  %1257 = vmatprep.subr.bf16.mxu0 0
  %1258 = vmatpush1.bf16.msra.mxu0 %v494
  %1259 = vmatprep.subr.bf16.mxu0 0
  %1260 = vmatpush1.bf16.msra.mxu0 %v493
  %1261 = vmatprep.subr.bf16.mxu0 0
  %1262 = vmatpush1.bf16.msra.mxu0 %v492
  %1263 = vmatprep.subr.bf16.mxu0 0
  %1264 = vmatpush1.bf16.msra.mxu0 %v491
  %1265 = vmatprep.subr.bf16.mxu0 0
  %1266 = vmatpush1.bf16.msra.mxu0 %v490
  %1267 = vmatprep.subr.bf16.mxu0 0
  %1268 = vmatpush2.bf16.msra.mxu0 %v505
  %1269 = vmatprep.subr.bf16.mxu0 0
  %1270 = vmatpush2.bf16.msra.mxu0 %v504
  %1271 = vmatprep.subr.bf16.mxu0 0
  %1272 = vmatpush2.bf16.msra.mxu0 %v503
  %1273 = vmatprep.subr.bf16.mxu0 0
  %1274 = vmatpush2.bf16.msra.mxu0 %v502
  %1275 = vmatprep.subr.bf16.mxu0 0
  %1276 = vmatpush2.bf16.msra.mxu0 %v501
  %1277 = vmatprep.subr.bf16.mxu0 0
  %1278 = vmatpush2.bf16.msra.mxu0 %v500
  %1279 = vmatprep.subr.bf16.mxu0 0
  %1280 = vmatpush2.bf16.msra.mxu0 %v499
  %1281 = vmatprep.subr.bf16.mxu0 0
  %1282 = vmatpush2.bf16.msra.mxu0 %v498
  %1283 = vmatprep.mubr.bf16.mxu0 %v1235
  %1284 = vmatmul.mubr.bf16.gmra.mxu0 %v1221
  %v1285 = vpop.f32.mrf.mxu0
  %v1286 = vadd.f32 0.0, %v1285
  %v1287 = vpop.f32.mrf.mxu0
  %v1288 = vpop.f32.mrf.mxu0
  %v1289 = vpop.f32.mrf.mxu0
  %1290 = vdwg.mxu0
  %1291 = vmatprep.subr.bf16.mxu0 0
  %1292 = vmatpush1.bf16.msra.mxu0 %v513
  %1293 = vmatprep.subr.bf16.mxu0 0
  %1294 = vmatpush1.bf16.msra.mxu0 %v512
  %1295 = vmatprep.subr.bf16.mxu0 0
  %1296 = vmatpush1.bf16.msra.mxu0 %v511
  %1297 = vmatprep.subr.bf16.mxu0 0
  %1298 = vmatpush1.bf16.msra.mxu0 %v510
  %1299 = vmatprep.subr.bf16.mxu0 0
  %1300 = vmatpush1.bf16.msra.mxu0 %v509
  %1301 = vmatprep.subr.bf16.mxu0 0
  %1302 = vmatpush1.bf16.msra.mxu0 %v508
  %1303 = vmatprep.subr.bf16.mxu0 0
  %1304 = vmatpush1.bf16.msra.mxu0 %v507
  %1305 = vmatprep.subr.bf16.mxu0 0
  %1306 = vmatpush1.bf16.msra.mxu0 %v506
  %1307 = vmatprep.subr.bf16.mxu0 0
  %1308 = vmatpush2.bf16.msra.mxu0 %v521
  %1309 = vmatprep.subr.bf16.mxu0 0
  %1310 = vmatpush2.bf16.msra.mxu0 %v520
  %1311 = vmatprep.subr.bf16.mxu0 0
  %1312 = vmatpush2.bf16.msra.mxu0 %v519
  %1313 = vmatprep.subr.bf16.mxu0 0
  %1314 = vmatpush2.bf16.msra.mxu0 %v518
  %1315 = vmatprep.subr.bf16.mxu0 0
  %1316 = vmatpush2.bf16.msra.mxu0 %v517
  %1317 = vmatprep.subr.bf16.mxu0 0
  %1318 = vmatpush2.bf16.msra.mxu0 %v516
  %1319 = vmatprep.subr.bf16.mxu0 0
  %1320 = vmatpush2.bf16.msra.mxu0 %v515
  %1321 = vmatprep.subr.bf16.mxu0 0
  %1322 = vmatpush2.bf16.msra.mxu0 %v514
  %1323 = vmatprep.mubr.bf16.mxu0 %v1244
  %1324 = vmatmul.mubr.bf16.gmra.mxu0 %v1243
  %v1325 = vpop.f32.mrf.mxu0
  %v1326 = vadd.f32 %v1286, %v1325
  %v1327 = vpop.f32.mrf.mxu0
  %v1328 = vpop.f32.mrf.mxu0
  %v1329 = vpop.f32.mrf.mxu0
  %1330 = vdwg.mxu0
  %1331 = vmatprep.subr.bf16.mxu0 0
  %1332 = vmatpush1.bf16.msra.mxu0 %v529
  %1333 = vmatprep.subr.bf16.mxu0 0
  %1334 = vmatpush1.bf16.msra.mxu0 %v528
  %1335 = vmatprep.subr.bf16.mxu0 0
  %1336 = vmatpush1.bf16.msra.mxu0 %v527
  %1337 = vmatprep.subr.bf16.mxu0 0
  %1338 = vmatpush1.bf16.msra.mxu0 %v526
  %1339 = vmatprep.subr.bf16.mxu0 0
  %1340 = vmatpush1.bf16.msra.mxu0 %v525
  %1341 = vmatprep.subr.bf16.mxu0 0
  %1342 = vmatpush1.bf16.msra.mxu0 %v524
  %1343 = vmatprep.subr.bf16.mxu0 0
  %1344 = vmatpush1.bf16.msra.mxu0 %v523
  %1345 = vmatprep.subr.bf16.mxu0 0
  %1346 = vmatpush1.bf16.msra.mxu0 %v522
  %1347 = vmatprep.subr.bf16.mxu0 0
  %1348 = vmatpush2.bf16.msra.mxu0 %v537
  %1349 = vmatprep.subr.bf16.mxu0 0
  %1350 = vmatpush2.bf16.msra.mxu0 %v536
  %1351 = vmatprep.subr.bf16.mxu0 0
  %1352 = vmatpush2.bf16.msra.mxu0 %v535
  %1353 = vmatprep.subr.bf16.mxu0 0
  %1354 = vmatpush2.bf16.msra.mxu0 %v534
  %1355 = vmatprep.subr.bf16.mxu0 0
  %1356 = vmatpush2.bf16.msra.mxu0 %v533
  %1357 = vmatprep.subr.bf16.mxu0 0
  %1358 = vmatpush2.bf16.msra.mxu0 %v532
  %1359 = vmatprep.subr.bf16.mxu0 0
  %1360 = vmatpush2.bf16.msra.mxu0 %v531
  %1361 = vmatprep.subr.bf16.mxu0 0
  %1362 = vmatpush2.bf16.msra.mxu0 %v530
  %1363 = vmatprep.mubr.bf16.mxu0 %v1242
  %1364 = vmatmul.mubr.bf16.gmra.mxu0 %v1228
  %v1365 = vpop.f32.mrf.mxu0
  %v1366 = vadd.f32 %v1326, %v1365
  %v1367 = vpop.f32.mrf.mxu0
  %v1368 = vpop.f32.mrf.mxu0
  %v1369 = vpop.f32.mrf.mxu0
  %1370 = vdwg.mxu0
  %s1371 = scalar_lea.vmem %s0, 36
  %v1372 = vld [vmem:[%s1371] sm:$0x3f]
  %v1374 = vcombine.high %v1372, %v1372
  %v1376 = vunpack.c.l.s4 1966171168
  %v1377 = vunpack.c.0.s8 %v1376
  %v1378 = vlaneseq
  %v1379 = vshrl.u32 %v1378, 7
  %v1380 = vsub.s32 %v1377, %v1379
  %v1381 = vrot.slane %v1372, %v1380
  %v1383 = vunpack.c.l.s4 1966171168
  %v1384 = vunpack.c.0.s8 %v1383
  %v1385 = vlaneseq
  %v1386 = vshrl.u32 %v1385, 7
  %v1387 = vsub.s32 %v1384, %v1386
  %v1388 = vrot.slane %v1374, %v1387
  %v1389 = vcombine.high %v1381, %v1381
  %v1390 = vcombine.high %v1388, %v1388
  %v1392 = vunpack.c.l.s4 1966171168
  %v1393 = vunpack.c.0.s8 %v1392
  %v1394 = vlaneseq
  %v1395 = vshrl.u32 %v1394, 7
  %v1396 = vsub.s32 %v1393, %v1395
  %v1397 = vrot.slane %v1381, %v1396
  %v1399 = vunpack.c.l.s4 1966171168
  %v1400 = vunpack.c.0.s8 %v1399
  %v1401 = vlaneseq
  %v1402 = vshrl.u32 %v1401, 7
  %v1403 = vsub.s32 %v1400, %v1402
  %v1404 = vrot.slane %v1388, %v1403
  %v1406 = vunpack.c.l.s4 1966171168
  %v1407 = vunpack.c.0.s8 %v1406
  %v1408 = vlaneseq
  %v1409 = vshrl.u32 %v1408, 7
  %v1410 = vsub.s32 %v1407, %v1409
  %v1411 = vrot.slane %v1389, %v1410
  %v1413 = vunpack.c.l.s4 1966171168
  %v1414 = vunpack.c.0.s8 %v1413
  %v1415 = vlaneseq
  %v1416 = vshrl.u32 %v1415, 7
  %v1417 = vsub.s32 %v1414, %v1416
  %v1418 = vrot.slane %v1390, %v1417
  %v1419 = vcombine.high %v1397, %v1397
  %v1420 = vcombine.high %v1411, %v1411
  %1427 = vmatprep.subr.bf16.mxu0 0
  %1428 = vmatpush1.bf16.msra.mxu0 %v961
  %1429 = vmatprep.subr.bf16.mxu0 0
  %1430 = vmatpush1.bf16.msra.mxu0 %v960
  %1431 = vmatprep.subr.bf16.mxu0 0
  %1432 = vmatpush1.bf16.msra.mxu0 %v959
  %1433 = vmatprep.subr.bf16.mxu0 0
  %1434 = vmatpush1.bf16.msra.mxu0 %v958
  %1435 = vmatprep.subr.bf16.mxu0 0
  %1436 = vmatpush1.bf16.msra.mxu0 %v957
  %1437 = vmatprep.subr.bf16.mxu0 0
  %1438 = vmatpush1.bf16.msra.mxu0 %v956
  %1439 = vmatprep.subr.bf16.mxu0 0
  %1440 = vmatpush1.bf16.msra.mxu0 %v955
  %1441 = vmatprep.subr.bf16.mxu0 0
  %1442 = vmatpush1.bf16.msra.mxu0 %v954
  %1443 = vmatprep.subr.bf16.mxu0 0
  %1444 = vmatpush2.bf16.msra.mxu0 %v969
  %1445 = vmatprep.subr.bf16.mxu0 0
  %1446 = vmatpush2.bf16.msra.mxu0 %v968
  %1447 = vmatprep.subr.bf16.mxu0 0
  %1448 = vmatpush2.bf16.msra.mxu0 %v967
  %1449 = vmatprep.subr.bf16.mxu0 0
  %1450 = vmatpush2.bf16.msra.mxu0 %v966
  %1451 = vmatprep.subr.bf16.mxu0 0
  %1452 = vmatpush2.bf16.msra.mxu0 %v965
  %1453 = vmatprep.subr.bf16.mxu0 0
  %1454 = vmatpush2.bf16.msra.mxu0 %v964
  %1455 = vmatprep.subr.bf16.mxu0 0
  %1456 = vmatpush2.bf16.msra.mxu0 %v963
  %1457 = vmatprep.subr.bf16.mxu0 0
  %1458 = vmatpush2.bf16.msra.mxu0 %v962
  %1459 = vmatprep.mubr.bf16.mxu0 %v1411
  %1460 = vmatmul.mubr.bf16.gmra.mxu0 %v1397
  %v1461 = vpop.f32.mrf.mxu0
  %v1462 = vadd.f32 0.0, %v1461
  %v1463 = vpop.f32.mrf.mxu0
  %v1464 = vpop.f32.mrf.mxu0
  %v1465 = vpop.f32.mrf.mxu0
  %1466 = vdwg.mxu0
  %1467 = vmatprep.subr.bf16.mxu0 0
  %1468 = vmatpush1.bf16.msra.mxu0 %v977
  %1469 = vmatprep.subr.bf16.mxu0 0
  %1470 = vmatpush1.bf16.msra.mxu0 %v976
  %1471 = vmatprep.subr.bf16.mxu0 0
  %1472 = vmatpush1.bf16.msra.mxu0 %v975
  %1473 = vmatprep.subr.bf16.mxu0 0
  %1474 = vmatpush1.bf16.msra.mxu0 %v974
  %1475 = vmatprep.subr.bf16.mxu0 0
  %1476 = vmatpush1.bf16.msra.mxu0 %v973
  %1477 = vmatprep.subr.bf16.mxu0 0
  %1478 = vmatpush1.bf16.msra.mxu0 %v972
  %1479 = vmatprep.subr.bf16.mxu0 0
  %1480 = vmatpush1.bf16.msra.mxu0 %v971
  %1481 = vmatprep.subr.bf16.mxu0 0
  %1482 = vmatpush1.bf16.msra.mxu0 %v970
  %1483 = vmatprep.subr.bf16.mxu0 0
  %1484 = vmatpush2.bf16.msra.mxu0 %v985
  %1485 = vmatprep.subr.bf16.mxu0 0
  %1486 = vmatpush2.bf16.msra.mxu0 %v984
  %1487 = vmatprep.subr.bf16.mxu0 0
  %1488 = vmatpush2.bf16.msra.mxu0 %v983
  %1489 = vmatprep.subr.bf16.mxu0 0
  %1490 = vmatpush2.bf16.msra.mxu0 %v982
  %1491 = vmatprep.subr.bf16.mxu0 0
  %1492 = vmatpush2.bf16.msra.mxu0 %v981
  %1493 = vmatprep.subr.bf16.mxu0 0
  %1494 = vmatpush2.bf16.msra.mxu0 %v980
  %1495 = vmatprep.subr.bf16.mxu0 0
  %1496 = vmatpush2.bf16.msra.mxu0 %v979
  %1497 = vmatprep.subr.bf16.mxu0 0
  %1498 = vmatpush2.bf16.msra.mxu0 %v978
  %1499 = vmatprep.mubr.bf16.mxu0 %v1420
  %1500 = vmatmul.mubr.bf16.gmra.mxu0 %v1419
  %v1501 = vpop.f32.mrf.mxu0
  %v1502 = vadd.f32 %v1462, %v1501
  %v1503 = vpop.f32.mrf.mxu0
  %v1504 = vpop.f32.mrf.mxu0
  %v1505 = vpop.f32.mrf.mxu0
  %1506 = vdwg.mxu0
  %1507 = vmatprep.subr.bf16.mxu0 0
  %1508 = vmatpush1.bf16.msra.mxu0 %v993
  %1509 = vmatprep.subr.bf16.mxu0 0
  %1510 = vmatpush1.bf16.msra.mxu0 %v992
  %1511 = vmatprep.subr.bf16.mxu0 0
  %1512 = vmatpush1.bf16.msra.mxu0 %v991
  %1513 = vmatprep.subr.bf16.mxu0 0
  %1514 = vmatpush1.bf16.msra.mxu0 %v990
  %1515 = vmatprep.subr.bf16.mxu0 0
  %1516 = vmatpush1.bf16.msra.mxu0 %v989
  %1517 = vmatprep.subr.bf16.mxu0 0
  %1518 = vmatpush1.bf16.msra.mxu0 %v988
  %1519 = vmatprep.subr.bf16.mxu0 0
  %1520 = vmatpush1.bf16.msra.mxu0 %v987
  %1521 = vmatprep.subr.bf16.mxu0 0
  %1522 = vmatpush1.bf16.msra.mxu0 %v986
  %1523 = vmatprep.subr.bf16.mxu0 0
  %1524 = vmatpush2.bf16.msra.mxu0 %v1001
  %1525 = vmatprep.subr.bf16.mxu0 0
  %1526 = vmatpush2.bf16.msra.mxu0 %v1000
  %1527 = vmatprep.subr.bf16.mxu0 0
  %1528 = vmatpush2.bf16.msra.mxu0 %v999
  %1529 = vmatprep.subr.bf16.mxu0 0
  %1530 = vmatpush2.bf16.msra.mxu0 %v998
  %1531 = vmatprep.subr.bf16.mxu0 0
  %1532 = vmatpush2.bf16.msra.mxu0 %v997
  %1533 = vmatprep.subr.bf16.mxu0 0
  %1534 = vmatpush2.bf16.msra.mxu0 %v996
  %1535 = vmatprep.subr.bf16.mxu0 0
  %1536 = vmatpush2.bf16.msra.mxu0 %v995
  %1537 = vmatprep.subr.bf16.mxu0 0
  %1538 = vmatpush2.bf16.msra.mxu0 %v994
  %1539 = vmatprep.mubr.bf16.mxu0 %v1418
  %1540 = vmatmul.mubr.bf16.gmra.mxu0 %v1404
  %v1541 = vpop.f32.mrf.mxu0
  %v1542 = vadd.f32 %v1502, %v1541
  %v1543 = vpop.f32.mrf.mxu0
  %v1544 = vpop.f32.mrf.mxu0
  %v1545 = vpop.f32.mrf.mxu0
  %1546 = vdwg.mxu0
  %v1547 = vadd.f32 %v1366, %v1174
  %v1548 = vadd.f32 %v1542, %v1178
  %v1551 = vcombine.low %v1547, %v1548
  %v1553 = vunpack.c.l.s4 1983009808
  %v1554 = vunpack.c.0.s8 %v1553
  %v1555 = vlaneseq
  %v1556 = vshrl.u32 %v1555, 7
  %v1557 = vsub.s32 %v1554, %v1556
  %v1558 = vrot.slane %v1551, %v1557
  %s1560 = scalar_lea.vmem [#allocation2], 4
  %1561 = vst [vmem:[%s1560] sm:$0xf] %v1558
  %s1562 = scalar_lea.vmem %s0, 12
  %v1563 = vld [vmem:[%s1562] sm:$0x3f]
  %v1565 = vcombine.high %v1563, %v1563
  %v1567 = vunpack.c.l.s4 1966171168
  %v1568 = vunpack.c.0.s8 %v1567
  %v1569 = vlaneseq
  %v1570 = vshrl.u32 %v1569, 7
  %v1571 = vsub.s32 %v1568, %v1570
  %v1572 = vrot.slane %v1563, %v1571
  %v1574 = vunpack.c.l.s4 1966171168
  %v1575 = vunpack.c.0.s8 %v1574
  %v1576 = vlaneseq
  %v1577 = vshrl.u32 %v1576, 7
  %v1578 = vsub.s32 %v1575, %v1577
  %v1579 = vrot.slane %v1565, %v1578
  %v1580 = vcombine.high %v1572, %v1572
  %v1581 = vcombine.high %v1579, %v1579
  %v1583 = vunpack.c.l.s4 1966171168
  %v1584 = vunpack.c.0.s8 %v1583
  %v1585 = vlaneseq
  %v1586 = vshrl.u32 %v1585, 7
  %v1587 = vsub.s32 %v1584, %v1586
  %v1588 = vrot.slane %v1572, %v1587
  %v1590 = vunpack.c.l.s4 1966171168
  %v1591 = vunpack.c.0.s8 %v1590
  %v1592 = vlaneseq
  %v1593 = vshrl.u32 %v1592, 7
  %v1594 = vsub.s32 %v1591, %v1593
  %v1595 = vrot.slane %v1579, %v1594
  %v1597 = vunpack.c.l.s4 1966171168
  %v1598 = vunpack.c.0.s8 %v1597
  %v1599 = vlaneseq
  %v1600 = vshrl.u32 %v1599, 7
  %v1601 = vsub.s32 %v1598, %v1600
  %v1602 = vrot.slane %v1580, %v1601
  %v1604 = vunpack.c.l.s4 1966171168
  %v1605 = vunpack.c.0.s8 %v1604
  %v1606 = vlaneseq
  %v1607 = vshrl.u32 %v1606, 7
  %v1608 = vsub.s32 %v1605, %v1607
  %v1609 = vrot.slane %v1581, %v1608
  %v1610 = vcombine.high %v1588, %v1588
  %v1611 = vcombine.high %v1602, %v1602
  %1618 = vmatprep.subr.bf16.mxu0 0
  %1619 = vmatpush1.bf16.msra.mxu0 %v497
  %1620 = vmatprep.subr.bf16.mxu0 0
  %1621 = vmatpush1.bf16.msra.mxu0 %v496
  %1622 = vmatprep.subr.bf16.mxu0 0
  %1623 = vmatpush1.bf16.msra.mxu0 %v495
  %1624 = vmatprep.subr.bf16.mxu0 0
  %1625 = vmatpush1.bf16.msra.mxu0 %v494
  %1626 = vmatprep.subr.bf16.mxu0 0
  %1627 = vmatpush1.bf16.msra.mxu0 %v493
  %1628 = vmatprep.subr.bf16.mxu0 0
  %1629 = vmatpush1.bf16.msra.mxu0 %v492
  %1630 = vmatprep.subr.bf16.mxu0 0
  %1631 = vmatpush1.bf16.msra.mxu0 %v491
  %1632 = vmatprep.subr.bf16.mxu0 0
  %1633 = vmatpush1.bf16.msra.mxu0 %v490
  %1634 = vmatprep.subr.bf16.mxu0 0
  %1635 = vmatpush2.bf16.msra.mxu0 %v505
  %1636 = vmatprep.subr.bf16.mxu0 0
  %1637 = vmatpush2.bf16.msra.mxu0 %v504
  %1638 = vmatprep.subr.bf16.mxu0 0
  %1639 = vmatpush2.bf16.msra.mxu0 %v503
  %1640 = vmatprep.subr.bf16.mxu0 0
  %1641 = vmatpush2.bf16.msra.mxu0 %v502
  %1642 = vmatprep.subr.bf16.mxu0 0
  %1643 = vmatpush2.bf16.msra.mxu0 %v501
  %1644 = vmatprep.subr.bf16.mxu0 0
  %1645 = vmatpush2.bf16.msra.mxu0 %v500
  %1646 = vmatprep.subr.bf16.mxu0 0
  %1647 = vmatpush2.bf16.msra.mxu0 %v499
  %1648 = vmatprep.subr.bf16.mxu0 0
  %1649 = vmatpush2.bf16.msra.mxu0 %v498
  %1650 = vmatprep.mubr.bf16.mxu0 %v1602
  %1651 = vmatmul.mubr.bf16.gmra.mxu0 %v1588
  %v1652 = vpop.f32.mrf.mxu0
  %v1653 = vadd.f32 0.0, %v1652
  %v1654 = vpop.f32.mrf.mxu0
  %v1655 = vpop.f32.mrf.mxu0
  %v1656 = vpop.f32.mrf.mxu0
  %1657 = vdwg.mxu0
  %1658 = vmatprep.subr.bf16.mxu0 0
  %1659 = vmatpush1.bf16.msra.mxu0 %v513
  %1660 = vmatprep.subr.bf16.mxu0 0
  %1661 = vmatpush1.bf16.msra.mxu0 %v512
  %1662 = vmatprep.subr.bf16.mxu0 0
  %1663 = vmatpush1.bf16.msra.mxu0 %v511
  %1664 = vmatprep.subr.bf16.mxu0 0
  %1665 = vmatpush1.bf16.msra.mxu0 %v510
  %1666 = vmatprep.subr.bf16.mxu0 0
  %1667 = vmatpush1.bf16.msra.mxu0 %v509
  %1668 = vmatprep.subr.bf16.mxu0 0
  %1669 = vmatpush1.bf16.msra.mxu0 %v508
  %1670 = vmatprep.subr.bf16.mxu0 0
  %1671 = vmatpush1.bf16.msra.mxu0 %v507
  %1672 = vmatprep.subr.bf16.mxu0 0
  %1673 = vmatpush1.bf16.msra.mxu0 %v506
  %1674 = vmatprep.subr.bf16.mxu0 0
  %1675 = vmatpush2.bf16.msra.mxu0 %v521
  %1676 = vmatprep.subr.bf16.mxu0 0
  %1677 = vmatpush2.bf16.msra.mxu0 %v520
  %1678 = vmatprep.subr.bf16.mxu0 0
  %1679 = vmatpush2.bf16.msra.mxu0 %v519
  %1680 = vmatprep.subr.bf16.mxu0 0
  %1681 = vmatpush2.bf16.msra.mxu0 %v518
  %1682 = vmatprep.subr.bf16.mxu0 0
  %1683 = vmatpush2.bf16.msra.mxu0 %v517
  %1684 = vmatprep.subr.bf16.mxu0 0
  %1685 = vmatpush2.bf16.msra.mxu0 %v516
  %1686 = vmatprep.subr.bf16.mxu0 0
  %1687 = vmatpush2.bf16.msra.mxu0 %v515
  %1688 = vmatprep.subr.bf16.mxu0 0
  %1689 = vmatpush2.bf16.msra.mxu0 %v514
  %1690 = vmatprep.mubr.bf16.mxu0 %v1611
  %1691 = vmatmul.mubr.bf16.gmra.mxu0 %v1610
  %v1692 = vpop.f32.mrf.mxu0
  %v1693 = vadd.f32 %v1653, %v1692
  %v1694 = vpop.f32.mrf.mxu0
  %v1695 = vpop.f32.mrf.mxu0
  %v1696 = vpop.f32.mrf.mxu0
  %1697 = vdwg.mxu0
  %1698 = vmatprep.subr.bf16.mxu0 0
  %1699 = vmatpush1.bf16.msra.mxu0 %v529
  %1700 = vmatprep.subr.bf16.mxu0 0
  %1701 = vmatpush1.bf16.msra.mxu0 %v528
  %1702 = vmatprep.subr.bf16.mxu0 0
  %1703 = vmatpush1.bf16.msra.mxu0 %v527
  %1704 = vmatprep.subr.bf16.mxu0 0
  %1705 = vmatpush1.bf16.msra.mxu0 %v526
  %1706 = vmatprep.subr.bf16.mxu0 0
  %1707 = vmatpush1.bf16.msra.mxu0 %v525
  %1708 = vmatprep.subr.bf16.mxu0 0
  %1709 = vmatpush1.bf16.msra.mxu0 %v524
  %1710 = vmatprep.subr.bf16.mxu0 0
  %1711 = vmatpush1.bf16.msra.mxu0 %v523
  %1712 = vmatprep.subr.bf16.mxu0 0
  %1713 = vmatpush1.bf16.msra.mxu0 %v522
  %1714 = vmatprep.subr.bf16.mxu0 0
  %1715 = vmatpush2.bf16.msra.mxu0 %v537
  %1716 = vmatprep.subr.bf16.mxu0 0
  %1717 = vmatpush2.bf16.msra.mxu0 %v536
  %1718 = vmatprep.subr.bf16.mxu0 0
  %1719 = vmatpush2.bf16.msra.mxu0 %v535
  %1720 = vmatprep.subr.bf16.mxu0 0
  %1721 = vmatpush2.bf16.msra.mxu0 %v534
  %1722 = vmatprep.subr.bf16.mxu0 0
  %1723 = vmatpush2.bf16.msra.mxu0 %v533
  %1724 = vmatprep.subr.bf16.mxu0 0
  %1725 = vmatpush2.bf16.msra.mxu0 %v532
  %1726 = vmatprep.subr.bf16.mxu0 0
  %1727 = vmatpush2.bf16.msra.mxu0 %v531
  %1728 = vmatprep.subr.bf16.mxu0 0
  %1729 = vmatpush2.bf16.msra.mxu0 %v530
  %1730 = vmatprep.mubr.bf16.mxu0 %v1609
  %1731 = vmatmul.mubr.bf16.gmra.mxu0 %v1595
  %v1732 = vpop.f32.mrf.mxu0
  %v1733 = vadd.f32 %v1693, %v1732
  %v1734 = vpop.f32.mrf.mxu0
  %v1735 = vpop.f32.mrf.mxu0
  %v1736 = vpop.f32.mrf.mxu0
  %1737 = vdwg.mxu0
  %s1738 = scalar_lea.vmem %s0, 30
  %v1739 = vld [vmem:[%s1738] sm:$0x3f]
  %v1741 = vcombine.high %v1739, %v1739
  %v1743 = vunpack.c.l.s4 1966171168
  %v1744 = vunpack.c.0.s8 %v1743
  %v1745 = vlaneseq
  %v1746 = vshrl.u32 %v1745, 7
  %v1747 = vsub.s32 %v1744, %v1746
  %v1748 = vrot.slane %v1739, %v1747
  %v1750 = vunpack.c.l.s4 1966171168
  %v1751 = vunpack.c.0.s8 %v1750
  %v1752 = vlaneseq
  %v1753 = vshrl.u32 %v1752, 7
  %v1754 = vsub.s32 %v1751, %v1753
  %v1755 = vrot.slane %v1741, %v1754
  %v1756 = vcombine.high %v1748, %v1748
  %v1757 = vcombine.high %v1755, %v1755
  %v1759 = vunpack.c.l.s4 1966171168
  %v1760 = vunpack.c.0.s8 %v1759
  %v1761 = vlaneseq
  %v1762 = vshrl.u32 %v1761, 7
  %v1763 = vsub.s32 %v1760, %v1762
  %v1764 = vrot.slane %v1748, %v1763
  %v1766 = vunpack.c.l.s4 1966171168
  %v1767 = vunpack.c.0.s8 %v1766
  %v1768 = vlaneseq
  %v1769 = vshrl.u32 %v1768, 7
  %v1770 = vsub.s32 %v1767, %v1769
  %v1771 = vrot.slane %v1755, %v1770
  %v1773 = vunpack.c.l.s4 1966171168
  %v1774 = vunpack.c.0.s8 %v1773
  %v1775 = vlaneseq
  %v1776 = vshrl.u32 %v1775, 7
  %v1777 = vsub.s32 %v1774, %v1776
  %v1778 = vrot.slane %v1756, %v1777
  %v1780 = vunpack.c.l.s4 1966171168
  %v1781 = vunpack.c.0.s8 %v1780
  %v1782 = vlaneseq
  %v1783 = vshrl.u32 %v1782, 7
  %v1784 = vsub.s32 %v1781, %v1783
  %v1785 = vrot.slane %v1757, %v1784
  %v1786 = vcombine.high %v1764, %v1764
  %v1787 = vcombine.high %v1778, %v1778
  %1794 = vmatprep.subr.bf16.mxu0 0
  %1795 = vmatpush1.bf16.msra.mxu0 %v961
  %1796 = vmatprep.subr.bf16.mxu0 0
  %1797 = vmatpush1.bf16.msra.mxu0 %v960
  %1798 = vmatprep.subr.bf16.mxu0 0
  %1799 = vmatpush1.bf16.msra.mxu0 %v959
  %1800 = vmatprep.subr.bf16.mxu0 0
  %1801 = vmatpush1.bf16.msra.mxu0 %v958
  %1802 = vmatprep.subr.bf16.mxu0 0
  %1803 = vmatpush1.bf16.msra.mxu0 %v957
  %1804 = vmatprep.subr.bf16.mxu0 0
  %1805 = vmatpush1.bf16.msra.mxu0 %v956
  %1806 = vmatprep.subr.bf16.mxu0 0
  %1807 = vmatpush1.bf16.msra.mxu0 %v955
  %1808 = vmatprep.subr.bf16.mxu0 0
  %1809 = vmatpush1.bf16.msra.mxu0 %v954
  %1810 = vmatprep.subr.bf16.mxu0 0
  %1811 = vmatpush2.bf16.msra.mxu0 %v969
  %1812 = vmatprep.subr.bf16.mxu0 0
  %1813 = vmatpush2.bf16.msra.mxu0 %v968
  %1814 = vmatprep.subr.bf16.mxu0 0
  %1815 = vmatpush2.bf16.msra.mxu0 %v967
  %1816 = vmatprep.subr.bf16.mxu0 0
  %1817 = vmatpush2.bf16.msra.mxu0 %v966
  %1818 = vmatprep.subr.bf16.mxu0 0
  %1819 = vmatpush2.bf16.msra.mxu0 %v965
  %1820 = vmatprep.subr.bf16.mxu0 0
  %1821 = vmatpush2.bf16.msra.mxu0 %v964
  %1822 = vmatprep.subr.bf16.mxu0 0
  %1823 = vmatpush2.bf16.msra.mxu0 %v963
  %1824 = vmatprep.subr.bf16.mxu0 0
  %1825 = vmatpush2.bf16.msra.mxu0 %v962
  %1826 = vmatprep.mubr.bf16.mxu0 %v1778
  %1827 = vmatmul.mubr.bf16.gmra.mxu0 %v1764
  %v1828 = vpop.f32.mrf.mxu0
  %v1829 = vadd.f32 0.0, %v1828
  %v1830 = vpop.f32.mrf.mxu0
  %v1831 = vpop.f32.mrf.mxu0
  %v1832 = vpop.f32.mrf.mxu0
  %1833 = vdwg.mxu0
  %1834 = vmatprep.subr.bf16.mxu0 0
  %1835 = vmatpush1.bf16.msra.mxu0 %v977
  %1836 = vmatprep.subr.bf16.mxu0 0
  %1837 = vmatpush1.bf16.msra.mxu0 %v976
  %1838 = vmatprep.subr.bf16.mxu0 0
  %1839 = vmatpush1.bf16.msra.mxu0 %v975
  %1840 = vmatprep.subr.bf16.mxu0 0
  %1841 = vmatpush1.bf16.msra.mxu0 %v974
  %1842 = vmatprep.subr.bf16.mxu0 0
  %1843 = vmatpush1.bf16.msra.mxu0 %v973
  %1844 = vmatprep.subr.bf16.mxu0 0
  %1845 = vmatpush1.bf16.msra.mxu0 %v972
  %1846 = vmatprep.subr.bf16.mxu0 0
  %1847 = vmatpush1.bf16.msra.mxu0 %v971
  %1848 = vmatprep.subr.bf16.mxu0 0
  %1849 = vmatpush1.bf16.msra.mxu0 %v970
  %1850 = vmatprep.subr.bf16.mxu0 0
  %1851 = vmatpush2.bf16.msra.mxu0 %v985
  %1852 = vmatprep.subr.bf16.mxu0 0
  %1853 = vmatpush2.bf16.msra.mxu0 %v984
  %1854 = vmatprep.subr.bf16.mxu0 0
  %1855 = vmatpush2.bf16.msra.mxu0 %v983
  %1856 = vmatprep.subr.bf16.mxu0 0
  %1857 = vmatpush2.bf16.msra.mxu0 %v982
  %1858 = vmatprep.subr.bf16.mxu0 0
  %1859 = vmatpush2.bf16.msra.mxu0 %v981
  %1860 = vmatprep.subr.bf16.mxu0 0
  %1861 = vmatpush2.bf16.msra.mxu0 %v980
  %1862 = vmatprep.subr.bf16.mxu0 0
  %1863 = vmatpush2.bf16.msra.mxu0 %v979
  %1864 = vmatprep.subr.bf16.mxu0 0
  %1865 = vmatpush2.bf16.msra.mxu0 %v978
  %1866 = vmatprep.mubr.bf16.mxu0 %v1787
  %1867 = vmatmul.mubr.bf16.gmra.mxu0 %v1786
  %v1868 = vpop.f32.mrf.mxu0
  %v1869 = vadd.f32 %v1829, %v1868
  %v1870 = vpop.f32.mrf.mxu0
  %v1871 = vpop.f32.mrf.mxu0
  %v1872 = vpop.f32.mrf.mxu0
  %1873 = vdwg.mxu0
  %1874 = vmatprep.subr.bf16.mxu0 0
  %1875 = vmatpush1.bf16.msra.mxu0 %v993
  %1876 = vmatprep.subr.bf16.mxu0 0
  %1877 = vmatpush1.bf16.msra.mxu0 %v992
  %1878 = vmatprep.subr.bf16.mxu0 0
  %1879 = vmatpush1.bf16.msra.mxu0 %v991
  %1880 = vmatprep.subr.bf16.mxu0 0
  %1881 = vmatpush1.bf16.msra.mxu0 %v990
  %1882 = vmatprep.subr.bf16.mxu0 0
  %1883 = vmatpush1.bf16.msra.mxu0 %v989
  %1884 = vmatprep.subr.bf16.mxu0 0
  %1885 = vmatpush1.bf16.msra.mxu0 %v988
  %1886 = vmatprep.subr.bf16.mxu0 0
  %1887 = vmatpush1.bf16.msra.mxu0 %v987
  %1888 = vmatprep.subr.bf16.mxu0 0
  %1889 = vmatpush1.bf16.msra.mxu0 %v986
  %1890 = vmatprep.subr.bf16.mxu0 0
  %1891 = vmatpush2.bf16.msra.mxu0 %v1001
  %1892 = vmatprep.subr.bf16.mxu0 0
  %1893 = vmatpush2.bf16.msra.mxu0 %v1000
  %1894 = vmatprep.subr.bf16.mxu0 0
  %1895 = vmatpush2.bf16.msra.mxu0 %v999
  %1896 = vmatprep.subr.bf16.mxu0 0
  %1897 = vmatpush2.bf16.msra.mxu0 %v998
  %1898 = vmatprep.subr.bf16.mxu0 0
  %1899 = vmatpush2.bf16.msra.mxu0 %v997
  %1900 = vmatprep.subr.bf16.mxu0 0
  %1901 = vmatpush2.bf16.msra.mxu0 %v996
  %1902 = vmatprep.subr.bf16.mxu0 0
  %1903 = vmatpush2.bf16.msra.mxu0 %v995
  %1904 = vmatprep.subr.bf16.mxu0 0
  %1905 = vmatpush2.bf16.msra.mxu0 %v994
  %1906 = vmatprep.mubr.bf16.mxu0 %v1785
  %1907 = vmatmul.mubr.bf16.gmra.mxu0 %v1771
  %v1908 = vpop.f32.mrf.mxu0
  %v1909 = vadd.f32 %v1869, %v1908
  %v1910 = vpop.f32.mrf.mxu0
  %v1911 = vpop.f32.mrf.mxu0
  %v1912 = vpop.f32.mrf.mxu0
  %1913 = vdwg.mxu0
  %v1914 = vadd.f32 %v1733, %v1174
  %v1915 = vadd.f32 %v1909, %v1178
  %v1918 = vcombine.low %v1914, %v1915
  %v1920 = vunpack.c.l.s4 1983009808
  %v1921 = vunpack.c.0.s8 %v1920
  %v1922 = vlaneseq
  %v1923 = vshrl.u32 %v1922, 7
  %v1924 = vsub.s32 %v1921, %v1923
  %v1925 = vrot.slane %v1918, %v1924
  %s1927 = scalar_lea.vmem [#allocation2], 8
  %1928 = vst [vmem:[%s1927] sm:$0xf] %v1925
  %s1929 = scalar_lea.vmem %s0, 18
  %v1930 = vld [vmem:[%s1929] sm:$0x3f]
  %v1932 = vcombine.high %v1930, %v1930
  %v1934 = vunpack.c.l.s4 1966171168
  %v1935 = vunpack.c.0.s8 %v1934
  %v1936 = vlaneseq
  %v1937 = vshrl.u32 %v1936, 7
  %v1938 = vsub.s32 %v1935, %v1937
  %v1939 = vrot.slane %v1930, %v1938
  %v1941 = vunpack.c.l.s4 1966171168
  %v1942 = vunpack.c.0.s8 %v1941
  %v1943 = vlaneseq
  %v1944 = vshrl.u32 %v1943, 7
  %v1945 = vsub.s32 %v1942, %v1944
  %v1946 = vrot.slane %v1932, %v1945
  %v1947 = vcombine.high %v1939, %v1939
  %v1948 = vcombine.high %v1946, %v1946
  %v1950 = vunpack.c.l.s4 1966171168
  %v1951 = vunpack.c.0.s8 %v1950
  %v1952 = vlaneseq
  %v1953 = vshrl.u32 %v1952, 7
  %v1954 = vsub.s32 %v1951, %v1953
  %v1955 = vrot.slane %v1939, %v1954
  %v1957 = vunpack.c.l.s4 1966171168
  %v1958 = vunpack.c.0.s8 %v1957
  %v1959 = vlaneseq
  %v1960 = vshrl.u32 %v1959, 7
  %v1961 = vsub.s32 %v1958, %v1960
  %v1962 = vrot.slane %v1946, %v1961
  %v1964 = vunpack.c.l.s4 1966171168
  %v1965 = vunpack.c.0.s8 %v1964
  %v1966 = vlaneseq
  %v1967 = vshrl.u32 %v1966, 7
  %v1968 = vsub.s32 %v1965, %v1967
  %v1969 = vrot.slane %v1947, %v1968
  %v1971 = vunpack.c.l.s4 1966171168
  %v1972 = vunpack.c.0.s8 %v1971
  %v1973 = vlaneseq
  %v1974 = vshrl.u32 %v1973, 7
  %v1975 = vsub.s32 %v1972, %v1974
  %v1976 = vrot.slane %v1948, %v1975
  %v1977 = vcombine.high %v1955, %v1955
  %v1978 = vcombine.high %v1969, %v1969
  %1985 = vmatprep.subr.bf16.mxu0 0
  %1986 = vmatpush1.bf16.msra.mxu0 %v497
  %1987 = vmatprep.subr.bf16.mxu0 0
  %1988 = vmatpush1.bf16.msra.mxu0 %v496
  %1989 = vmatprep.subr.bf16.mxu0 0
  %1990 = vmatpush1.bf16.msra.mxu0 %v495
  %1991 = vmatprep.subr.bf16.mxu0 0
  %1992 = vmatpush1.bf16.msra.mxu0 %v494
  %1993 = vmatprep.subr.bf16.mxu0 0
  %1994 = vmatpush1.bf16.msra.mxu0 %v493
  %1995 = vmatprep.subr.bf16.mxu0 0
  %1996 = vmatpush1.bf16.msra.mxu0 %v492
  %1997 = vmatprep.subr.bf16.mxu0 0
  %1998 = vmatpush1.bf16.msra.mxu0 %v491
  %1999 = vmatprep.subr.bf16.mxu0 0
  %2000 = vmatpush1.bf16.msra.mxu0 %v490
  %2001 = vmatprep.subr.bf16.mxu0 0
  %2002 = vmatpush2.bf16.msra.mxu0 %v505
  %2003 = vmatprep.subr.bf16.mxu0 0
  %2004 = vmatpush2.bf16.msra.mxu0 %v504
  %2005 = vmatprep.subr.bf16.mxu0 0
  %2006 = vmatpush2.bf16.msra.mxu0 %v503
  %2007 = vmatprep.subr.bf16.mxu0 0
  %2008 = vmatpush2.bf16.msra.mxu0 %v502
  %2009 = vmatprep.subr.bf16.mxu0 0
  %2010 = vmatpush2.bf16.msra.mxu0 %v501
  %2011 = vmatprep.subr.bf16.mxu0 0
  %2012 = vmatpush2.bf16.msra.mxu0 %v500
  %2013 = vmatprep.subr.bf16.mxu0 0
  %2014 = vmatpush2.bf16.msra.mxu0 %v499
  %2015 = vmatprep.subr.bf16.mxu0 0
  %2016 = vmatpush2.bf16.msra.mxu0 %v498
  %2017 = vmatprep.mubr.bf16.mxu0 %v1969
  %2018 = vmatmul.mubr.bf16.gmra.mxu0 %v1955
  %v2019 = vpop.f32.mrf.mxu0
  %v2020 = vadd.f32 0.0, %v2019
  %v2021 = vpop.f32.mrf.mxu0
  %v2022 = vpop.f32.mrf.mxu0
  %v2023 = vpop.f32.mrf.mxu0
  %2024 = vdwg.mxu0
  %2025 = vmatprep.subr.bf16.mxu0 0
  %2026 = vmatpush1.bf16.msra.mxu0 %v513
  %2027 = vmatprep.subr.bf16.mxu0 0
  %2028 = vmatpush1.bf16.msra.mxu0 %v512
  %2029 = vmatprep.subr.bf16.mxu0 0
  %2030 = vmatpush1.bf16.msra.mxu0 %v511
  %2031 = vmatprep.subr.bf16.mxu0 0
  %2032 = vmatpush1.bf16.msra.mxu0 %v510
  %2033 = vmatprep.subr.bf16.mxu0 0
  %2034 = vmatpush1.bf16.msra.mxu0 %v509
  %2035 = vmatprep.subr.bf16.mxu0 0
  %2036 = vmatpush1.bf16.msra.mxu0 %v508
  %2037 = vmatprep.subr.bf16.mxu0 0
  %2038 = vmatpush1.bf16.msra.mxu0 %v507
  %2039 = vmatprep.subr.bf16.mxu0 0
  %2040 = vmatpush1.bf16.msra.mxu0 %v506
  %2041 = vmatprep.subr.bf16.mxu0 0
  %2042 = vmatpush2.bf16.msra.mxu0 %v521
  %2043 = vmatprep.subr.bf16.mxu0 0
  %2044 = vmatpush2.bf16.msra.mxu0 %v520
  %2045 = vmatprep.subr.bf16.mxu0 0
  %2046 = vmatpush2.bf16.msra.mxu0 %v519
  %2047 = vmatprep.subr.bf16.mxu0 0
  %2048 = vmatpush2.bf16.msra.mxu0 %v518
  %2049 = vmatprep.subr.bf16.mxu0 0
  %2050 = vmatpush2.bf16.msra.mxu0 %v517
  %2051 = vmatprep.subr.bf16.mxu0 0
  %2052 = vmatpush2.bf16.msra.mxu0 %v516
  %2053 = vmatprep.subr.bf16.mxu0 0
  %2054 = vmatpush2.bf16.msra.mxu0 %v515
  %2055 = vmatprep.subr.bf16.mxu0 0
  %2056 = vmatpush2.bf16.msra.mxu0 %v514
  %2057 = vmatprep.mubr.bf16.mxu0 %v1978
  %2058 = vmatmul.mubr.bf16.gmra.mxu0 %v1977
  %v2059 = vpop.f32.mrf.mxu0
  %v2060 = vadd.f32 %v2020, %v2059
  %v2061 = vpop.f32.mrf.mxu0
  %v2062 = vpop.f32.mrf.mxu0
  %v2063 = vpop.f32.mrf.mxu0
  %2064 = vdwg.mxu0
  %2065 = vmatprep.subr.bf16.mxu0 0
  %2066 = vmatpush1.bf16.msra.mxu0 %v529
  %2067 = vmatprep.subr.bf16.mxu0 0
  %2068 = vmatpush1.bf16.msra.mxu0 %v528
  %2069 = vmatprep.subr.bf16.mxu0 0
  %2070 = vmatpush1.bf16.msra.mxu0 %v527
  %2071 = vmatprep.subr.bf16.mxu0 0
  %2072 = vmatpush1.bf16.msra.mxu0 %v526
  %2073 = vmatprep.subr.bf16.mxu0 0
  %2074 = vmatpush1.bf16.msra.mxu0 %v525
  %2075 = vmatprep.subr.bf16.mxu0 0
  %2076 = vmatpush1.bf16.msra.mxu0 %v524
  %2077 = vmatprep.subr.bf16.mxu0 0
  %2078 = vmatpush1.bf16.msra.mxu0 %v523
  %2079 = vmatprep.subr.bf16.mxu0 0
  %2080 = vmatpush1.bf16.msra.mxu0 %v522
  %2081 = vmatprep.subr.bf16.mxu0 0
  %2082 = vmatpush2.bf16.msra.mxu0 %v537
  %2083 = vmatprep.subr.bf16.mxu0 0
  %2084 = vmatpush2.bf16.msra.mxu0 %v536
  %2085 = vmatprep.subr.bf16.mxu0 0
  %2086 = vmatpush2.bf16.msra.mxu0 %v535
  %2087 = vmatprep.subr.bf16.mxu0 0
  %2088 = vmatpush2.bf16.msra.mxu0 %v534
  %2089 = vmatprep.subr.bf16.mxu0 0
  %2090 = vmatpush2.bf16.msra.mxu0 %v533
  %2091 = vmatprep.subr.bf16.mxu0 0
  %2092 = vmatpush2.bf16.msra.mxu0 %v532
  %2093 = vmatprep.subr.bf16.mxu0 0
  %2094 = vmatpush2.bf16.msra.mxu0 %v531
  %2095 = vmatprep.subr.bf16.mxu0 0
  %2096 = vmatpush2.bf16.msra.mxu0 %v530
  %2097 = vmatprep.mubr.bf16.mxu0 %v1976
  %2098 = vmatmul.mubr.bf16.gmra.mxu0 %v1962
  %v2099 = vpop.f32.mrf.mxu0
  %v2100 = vadd.f32 %v2060, %v2099
  %v2101 = vpop.f32.mrf.mxu0
  %v2102 = vpop.f32.mrf.mxu0
  %v2103 = vpop.f32.mrf.mxu0
  %2104 = vdwg.mxu0
  %s2105 = scalar_lea.vmem %s0, 24
  %v2106 = vld [vmem:[%s2105] sm:$0x3f]
  %v2108 = vcombine.high %v2106, %v2106
  %v2110 = vunpack.c.l.s4 1966171168
  %v2111 = vunpack.c.0.s8 %v2110
  %v2112 = vlaneseq
  %v2113 = vshrl.u32 %v2112, 7
  %v2114 = vsub.s32 %v2111, %v2113
  %v2115 = vrot.slane %v2106, %v2114
  %v2117 = vunpack.c.l.s4 1966171168
  %v2118 = vunpack.c.0.s8 %v2117
  %v2119 = vlaneseq
  %v2120 = vshrl.u32 %v2119, 7
  %v2121 = vsub.s32 %v2118, %v2120
  %v2122 = vrot.slane %v2108, %v2121
  %v2123 = vcombine.high %v2115, %v2115
  %v2124 = vcombine.high %v2122, %v2122
  %v2126 = vunpack.c.l.s4 1966171168
  %v2127 = vunpack.c.0.s8 %v2126
  %v2128 = vlaneseq
  %v2129 = vshrl.u32 %v2128, 7
  %v2130 = vsub.s32 %v2127, %v2129
  %v2131 = vrot.slane %v2115, %v2130
  %v2133 = vunpack.c.l.s4 1966171168
  %v2134 = vunpack.c.0.s8 %v2133
  %v2135 = vlaneseq
  %v2136 = vshrl.u32 %v2135, 7
  %v2137 = vsub.s32 %v2134, %v2136
  %v2138 = vrot.slane %v2122, %v2137
  %v2140 = vunpack.c.l.s4 1966171168
  %v2141 = vunpack.c.0.s8 %v2140
  %v2142 = vlaneseq
  %v2143 = vshrl.u32 %v2142, 7
  %v2144 = vsub.s32 %v2141, %v2143
  %v2145 = vrot.slane %v2123, %v2144
  %v2147 = vunpack.c.l.s4 1966171168
  %v2148 = vunpack.c.0.s8 %v2147
  %v2149 = vlaneseq
  %v2150 = vshrl.u32 %v2149, 7
  %v2151 = vsub.s32 %v2148, %v2150
  %v2152 = vrot.slane %v2124, %v2151
  %v2153 = vcombine.high %v2131, %v2131
  %v2154 = vcombine.high %v2145, %v2145
  %2161 = vmatprep.subr.bf16.mxu0 0
  %2162 = vmatpush1.bf16.msra.mxu0 %v961
  %2163 = vmatprep.subr.bf16.mxu0 0
  %2164 = vmatpush1.bf16.msra.mxu0 %v960
  %2165 = vmatprep.subr.bf16.mxu0 0
  %2166 = vmatpush1.bf16.msra.mxu0 %v959
  %2167 = vmatprep.subr.bf16.mxu0 0
  %2168 = vmatpush1.bf16.msra.mxu0 %v958
  %2169 = vmatprep.subr.bf16.mxu0 0
  %2170 = vmatpush1.bf16.msra.mxu0 %v957
  %2171 = vmatprep.subr.bf16.mxu0 0
  %2172 = vmatpush1.bf16.msra.mxu0 %v956
  %2173 = vmatprep.subr.bf16.mxu0 0
  %2174 = vmatpush1.bf16.msra.mxu0 %v955
  %2175 = vmatprep.subr.bf16.mxu0 0
  %2176 = vmatpush1.bf16.msra.mxu0 %v954
  %2177 = vmatprep.subr.bf16.mxu0 0
  %2178 = vmatpush2.bf16.msra.mxu0 %v969
  %2179 = vmatprep.subr.bf16.mxu0 0
  %2180 = vmatpush2.bf16.msra.mxu0 %v968
  %2181 = vmatprep.subr.bf16.mxu0 0
  %2182 = vmatpush2.bf16.msra.mxu0 %v967
  %2183 = vmatprep.subr.bf16.mxu0 0
  %2184 = vmatpush2.bf16.msra.mxu0 %v966
  %2185 = vmatprep.subr.bf16.mxu0 0
  %2186 = vmatpush2.bf16.msra.mxu0 %v965
  %2187 = vmatprep.subr.bf16.mxu0 0
  %2188 = vmatpush2.bf16.msra.mxu0 %v964
  %2189 = vmatprep.subr.bf16.mxu0 0
  %2190 = vmatpush2.bf16.msra.mxu0 %v963
  %2191 = vmatprep.subr.bf16.mxu0 0
  %2192 = vmatpush2.bf16.msra.mxu0 %v962
  %2193 = vmatprep.mubr.bf16.mxu0 %v2145
  %2194 = vmatmul.mubr.bf16.gmra.mxu0 %v2131
  %v2195 = vpop.f32.mrf.mxu0
  %v2196 = vadd.f32 0.0, %v2195
  %v2197 = vpop.f32.mrf.mxu0
  %v2198 = vpop.f32.mrf.mxu0
  %v2199 = vpop.f32.mrf.mxu0
  %2200 = vdwg.mxu0
  %2201 = vmatprep.subr.bf16.mxu0 0
  %2202 = vmatpush1.bf16.msra.mxu0 %v977
  %2203 = vmatprep.subr.bf16.mxu0 0
  %2204 = vmatpush1.bf16.msra.mxu0 %v976
  %2205 = vmatprep.subr.bf16.mxu0 0
  %2206 = vmatpush1.bf16.msra.mxu0 %v975
  %2207 = vmatprep.subr.bf16.mxu0 0
  %2208 = vmatpush1.bf16.msra.mxu0 %v974
  %2209 = vmatprep.subr.bf16.mxu0 0
  %2210 = vmatpush1.bf16.msra.mxu0 %v973
  %2211 = vmatprep.subr.bf16.mxu0 0
  %2212 = vmatpush1.bf16.msra.mxu0 %v972
  %2213 = vmatprep.subr.bf16.mxu0 0
  %2214 = vmatpush1.bf16.msra.mxu0 %v971
  %2215 = vmatprep.subr.bf16.mxu0 0
  %2216 = vmatpush1.bf16.msra.mxu0 %v970
  %2217 = vmatprep.subr.bf16.mxu0 0
  %2218 = vmatpush2.bf16.msra.mxu0 %v985
  %2219 = vmatprep.subr.bf16.mxu0 0
  %2220 = vmatpush2.bf16.msra.mxu0 %v984
  %2221 = vmatprep.subr.bf16.mxu0 0
  %2222 = vmatpush2.bf16.msra.mxu0 %v983
  %2223 = vmatprep.subr.bf16.mxu0 0
  %2224 = vmatpush2.bf16.msra.mxu0 %v982
  %2225 = vmatprep.subr.bf16.mxu0 0
  %2226 = vmatpush2.bf16.msra.mxu0 %v981
  %2227 = vmatprep.subr.bf16.mxu0 0
  %2228 = vmatpush2.bf16.msra.mxu0 %v980
  %2229 = vmatprep.subr.bf16.mxu0 0
  %2230 = vmatpush2.bf16.msra.mxu0 %v979
  %2231 = vmatprep.subr.bf16.mxu0 0
  %2232 = vmatpush2.bf16.msra.mxu0 %v978
  %2233 = vmatprep.mubr.bf16.mxu0 %v2154
  %2234 = vmatmul.mubr.bf16.gmra.mxu0 %v2153
  %v2235 = vpop.f32.mrf.mxu0
  %v2236 = vadd.f32 %v2196, %v2235
  %v2237 = vpop.f32.mrf.mxu0
  %v2238 = vpop.f32.mrf.mxu0
  %v2239 = vpop.f32.mrf.mxu0
  %2240 = vdwg.mxu0
  %2241 = vmatprep.subr.bf16.mxu0 0
  %2242 = vmatpush1.bf16.msra.mxu0 %v993
  %2243 = vmatprep.subr.bf16.mxu0 0
  %2244 = vmatpush1.bf16.msra.mxu0 %v992
  %2245 = vmatprep.subr.bf16.mxu0 0
  %2246 = vmatpush1.bf16.msra.mxu0 %v991
  %2247 = vmatprep.subr.bf16.mxu0 0
  %2248 = vmatpush1.bf16.msra.mxu0 %v990
  %2249 = vmatprep.subr.bf16.mxu0 0
  %2250 = vmatpush1.bf16.msra.mxu0 %v989
  %2251 = vmatprep.subr.bf16.mxu0 0
  %2252 = vmatpush1.bf16.msra.mxu0 %v988
  %2253 = vmatprep.subr.bf16.mxu0 0
  %2254 = vmatpush1.bf16.msra.mxu0 %v987
  %2255 = vmatprep.subr.bf16.mxu0 0
  %2256 = vmatpush1.bf16.msra.mxu0 %v986
  %2257 = vmatprep.subr.bf16.mxu0 0
  %2258 = vmatpush2.bf16.msra.mxu0 %v1001
  %2259 = vmatprep.subr.bf16.mxu0 0
  %2260 = vmatpush2.bf16.msra.mxu0 %v1000
  %2261 = vmatprep.subr.bf16.mxu0 0
  %2262 = vmatpush2.bf16.msra.mxu0 %v999
  %2263 = vmatprep.subr.bf16.mxu0 0
  %2264 = vmatpush2.bf16.msra.mxu0 %v998
  %2265 = vmatprep.subr.bf16.mxu0 0
  %2266 = vmatpush2.bf16.msra.mxu0 %v997
  %2267 = vmatprep.subr.bf16.mxu0 0
  %2268 = vmatpush2.bf16.msra.mxu0 %v996
  %2269 = vmatprep.subr.bf16.mxu0 0
  %2270 = vmatpush2.bf16.msra.mxu0 %v995
  %2271 = vmatprep.subr.bf16.mxu0 0
  %2272 = vmatpush2.bf16.msra.mxu0 %v994
  %2273 = vmatprep.mubr.bf16.mxu0 %v2152
  %2274 = vmatmul.mubr.bf16.gmra.mxu0 %v2138
  %v2275 = vpop.f32.mrf.mxu0
  %v2276 = vadd.f32 %v2236, %v2275
  %v2277 = vpop.f32.mrf.mxu0
  %v2278 = vpop.f32.mrf.mxu0
  %v2279 = vpop.f32.mrf.mxu0
  %2280 = vdwg.mxu0
  %v2281 = vadd.f32 %v2100, %v1174
  %v2282 = vadd.f32 %v2276, %v1178
  %v2285 = vcombine.low %v2281, %v2282
  %v2287 = vunpack.c.l.s4 1983009808
  %v2288 = vunpack.c.0.s8 %v2287
  %v2289 = vlaneseq
  %v2290 = vshrl.u32 %v2289, 7
  %v2291 = vsub.s32 %v2288, %v2290
  %v2292 = vrot.slane %v2285, %v2291
  %s2294 = scalar_lea.vmem [#allocation2], 12
  %2295 = vst [vmem:[%s2294] sm:$0xf] %v2292
  %v2296 = vld [vmem:[%s2105] sm:$0x3f]
  %v2298 = vcombine.high %v2296, %v2296
  %v2300 = vunpack.c.l.s4 1966171168
  %v2301 = vunpack.c.0.s8 %v2300
  %v2302 = vlaneseq
  %v2303 = vshrl.u32 %v2302, 7
  %v2304 = vsub.s32 %v2301, %v2303
  %v2305 = vrot.slane %v2296, %v2304
  %v2307 = vunpack.c.l.s4 1966171168
  %v2308 = vunpack.c.0.s8 %v2307
  %v2309 = vlaneseq
  %v2310 = vshrl.u32 %v2309, 7
  %v2311 = vsub.s32 %v2308, %v2310
  %v2312 = vrot.slane %v2298, %v2311
  %v2313 = vcombine.high %v2305, %v2305
  %v2314 = vcombine.high %v2312, %v2312
  %v2316 = vunpack.c.l.s4 1966171168
  %v2317 = vunpack.c.0.s8 %v2316
  %v2318 = vlaneseq
  %v2319 = vshrl.u32 %v2318, 7
  %v2320 = vsub.s32 %v2317, %v2319
  %v2321 = vrot.slane %v2305, %v2320
  %v2323 = vunpack.c.l.s4 1966171168
  %v2324 = vunpack.c.0.s8 %v2323
  %v2325 = vlaneseq
  %v2326 = vshrl.u32 %v2325, 7
  %v2327 = vsub.s32 %v2324, %v2326
  %v2328 = vrot.slane %v2312, %v2327
  %v2330 = vunpack.c.l.s4 1966171168
  %v2331 = vunpack.c.0.s8 %v2330
  %v2332 = vlaneseq
  %v2333 = vshrl.u32 %v2332, 7
  %v2334 = vsub.s32 %v2331, %v2333
  %v2335 = vrot.slane %v2313, %v2334
  %v2337 = vunpack.c.l.s4 1966171168
  %v2338 = vunpack.c.0.s8 %v2337
  %v2339 = vlaneseq
  %v2340 = vshrl.u32 %v2339, 7
  %v2341 = vsub.s32 %v2338, %v2340
  %v2342 = vrot.slane %v2314, %v2341
  %v2343 = vcombine.high %v2321, %v2321
  %v2344 = vcombine.high %v2335, %v2335
  %2351 = vmatprep.subr.bf16.mxu0 0
  %2352 = vmatpush1.bf16.msra.mxu0 %v497
  %2353 = vmatprep.subr.bf16.mxu0 0
  %2354 = vmatpush1.bf16.msra.mxu0 %v496
  %2355 = vmatprep.subr.bf16.mxu0 0
  %2356 = vmatpush1.bf16.msra.mxu0 %v495
  %2357 = vmatprep.subr.bf16.mxu0 0
  %2358 = vmatpush1.bf16.msra.mxu0 %v494
  %2359 = vmatprep.subr.bf16.mxu0 0
  %2360 = vmatpush1.bf16.msra.mxu0 %v493
  %2361 = vmatprep.subr.bf16.mxu0 0
  %2362 = vmatpush1.bf16.msra.mxu0 %v492
  %2363 = vmatprep.subr.bf16.mxu0 0
  %2364 = vmatpush1.bf16.msra.mxu0 %v491
  %2365 = vmatprep.subr.bf16.mxu0 0
  %2366 = vmatpush1.bf16.msra.mxu0 %v490
  %2367 = vmatprep.subr.bf16.mxu0 0
  %2368 = vmatpush2.bf16.msra.mxu0 %v505
  %2369 = vmatprep.subr.bf16.mxu0 0
  %2370 = vmatpush2.bf16.msra.mxu0 %v504
  %2371 = vmatprep.subr.bf16.mxu0 0
  %2372 = vmatpush2.bf16.msra.mxu0 %v503
  %2373 = vmatprep.subr.bf16.mxu0 0
  %2374 = vmatpush2.bf16.msra.mxu0 %v502
  %2375 = vmatprep.subr.bf16.mxu0 0
  %2376 = vmatpush2.bf16.msra.mxu0 %v501
  %2377 = vmatprep.subr.bf16.mxu0 0
  %2378 = vmatpush2.bf16.msra.mxu0 %v500
  %2379 = vmatprep.subr.bf16.mxu0 0
  %2380 = vmatpush2.bf16.msra.mxu0 %v499
  %2381 = vmatprep.subr.bf16.mxu0 0
  %2382 = vmatpush2.bf16.msra.mxu0 %v498
  %2383 = vmatprep.mubr.bf16.mxu0 %v2335
  %2384 = vmatmul.mubr.bf16.gmra.mxu0 %v2321
  %v2385 = vpop.f32.mrf.mxu0
  %v2386 = vadd.f32 0.0, %v2385
  %v2387 = vpop.f32.mrf.mxu0
  %v2388 = vpop.f32.mrf.mxu0
  %v2389 = vpop.f32.mrf.mxu0
  %2390 = vdwg.mxu0
  %2391 = vmatprep.subr.bf16.mxu0 0
  %2392 = vmatpush1.bf16.msra.mxu0 %v513
  %2393 = vmatprep.subr.bf16.mxu0 0
  %2394 = vmatpush1.bf16.msra.mxu0 %v512
  %2395 = vmatprep.subr.bf16.mxu0 0
  %2396 = vmatpush1.bf16.msra.mxu0 %v511
  %2397 = vmatprep.subr.bf16.mxu0 0
  %2398 = vmatpush1.bf16.msra.mxu0 %v510
  %2399 = vmatprep.subr.bf16.mxu0 0
  %2400 = vmatpush1.bf16.msra.mxu0 %v509
  %2401 = vmatprep.subr.bf16.mxu0 0
  %2402 = vmatpush1.bf16.msra.mxu0 %v508
  %2403 = vmatprep.subr.bf16.mxu0 0
  %2404 = vmatpush1.bf16.msra.mxu0 %v507
  %2405 = vmatprep.subr.bf16.mxu0 0
  %2406 = vmatpush1.bf16.msra.mxu0 %v506
  %2407 = vmatprep.subr.bf16.mxu0 0
  %2408 = vmatpush2.bf16.msra.mxu0 %v521
  %2409 = vmatprep.subr.bf16.mxu0 0
  %2410 = vmatpush2.bf16.msra.mxu0 %v520
  %2411 = vmatprep.subr.bf16.mxu0 0
  %2412 = vmatpush2.bf16.msra.mxu0 %v519
  %2413 = vmatprep.subr.bf16.mxu0 0
  %2414 = vmatpush2.bf16.msra.mxu0 %v518
  %2415 = vmatprep.subr.bf16.mxu0 0
  %2416 = vmatpush2.bf16.msra.mxu0 %v517
  %2417 = vmatprep.subr.bf16.mxu0 0
  %2418 = vmatpush2.bf16.msra.mxu0 %v516
  %2419 = vmatprep.subr.bf16.mxu0 0
  %2420 = vmatpush2.bf16.msra.mxu0 %v515
  %2421 = vmatprep.subr.bf16.mxu0 0
  %2422 = vmatpush2.bf16.msra.mxu0 %v514
  %2423 = vmatprep.mubr.bf16.mxu0 %v2344
  %2424 = vmatmul.mubr.bf16.gmra.mxu0 %v2343
  %v2425 = vpop.f32.mrf.mxu0
  %v2426 = vadd.f32 %v2386, %v2425
  %v2427 = vpop.f32.mrf.mxu0
  %v2428 = vpop.f32.mrf.mxu0
  %v2429 = vpop.f32.mrf.mxu0
  %2430 = vdwg.mxu0
  %2431 = vmatprep.subr.bf16.mxu0 0
  %2432 = vmatpush1.bf16.msra.mxu0 %v529
  %2433 = vmatprep.subr.bf16.mxu0 0
  %2434 = vmatpush1.bf16.msra.mxu0 %v528
  %2435 = vmatprep.subr.bf16.mxu0 0
  %2436 = vmatpush1.bf16.msra.mxu0 %v527
  %2437 = vmatprep.subr.bf16.mxu0 0
  %2438 = vmatpush1.bf16.msra.mxu0 %v526
  %2439 = vmatprep.subr.bf16.mxu0 0
  %2440 = vmatpush1.bf16.msra.mxu0 %v525
  %2441 = vmatprep.subr.bf16.mxu0 0
  %2442 = vmatpush1.bf16.msra.mxu0 %v524
  %2443 = vmatprep.subr.bf16.mxu0 0
  %2444 = vmatpush1.bf16.msra.mxu0 %v523
  %2445 = vmatprep.subr.bf16.mxu0 0
  %2446 = vmatpush1.bf16.msra.mxu0 %v522
  %2447 = vmatprep.subr.bf16.mxu0 0
  %2448 = vmatpush2.bf16.msra.mxu0 %v537
  %2449 = vmatprep.subr.bf16.mxu0 0
  %2450 = vmatpush2.bf16.msra.mxu0 %v536
  %2451 = vmatprep.subr.bf16.mxu0 0
  %2452 = vmatpush2.bf16.msra.mxu0 %v535
  %2453 = vmatprep.subr.bf16.mxu0 0
  %2454 = vmatpush2.bf16.msra.mxu0 %v534
  %2455 = vmatprep.subr.bf16.mxu0 0
  %2456 = vmatpush2.bf16.msra.mxu0 %v533
  %2457 = vmatprep.subr.bf16.mxu0 0
  %2458 = vmatpush2.bf16.msra.mxu0 %v532
  %2459 = vmatprep.subr.bf16.mxu0 0
  %2460 = vmatpush2.bf16.msra.mxu0 %v531
  %2461 = vmatprep.subr.bf16.mxu0 0
  %2462 = vmatpush2.bf16.msra.mxu0 %v530
  %2463 = vmatprep.mubr.bf16.mxu0 %v2342
  %2464 = vmatmul.mubr.bf16.gmra.mxu0 %v2328
  %v2465 = vpop.f32.mrf.mxu0
  %v2466 = vadd.f32 %v2426, %v2465
  %v2467 = vpop.f32.mrf.mxu0
  %v2468 = vpop.f32.mrf.mxu0
  %v2469 = vpop.f32.mrf.mxu0
  %2470 = vdwg.mxu0
  %v2471 = vld [vmem:[%s1929] sm:$0x3f]
  %v2473 = vcombine.high %v2471, %v2471
  %v2475 = vunpack.c.l.s4 1966171168
  %v2476 = vunpack.c.0.s8 %v2475
  %v2477 = vlaneseq
  %v2478 = vshrl.u32 %v2477, 7
  %v2479 = vsub.s32 %v2476, %v2478
  %v2480 = vrot.slane %v2471, %v2479
  %v2482 = vunpack.c.l.s4 1966171168
  %v2483 = vunpack.c.0.s8 %v2482
  %v2484 = vlaneseq
  %v2485 = vshrl.u32 %v2484, 7
  %v2486 = vsub.s32 %v2483, %v2485
  %v2487 = vrot.slane %v2473, %v2486
  %v2488 = vcombine.high %v2480, %v2480
  %v2489 = vcombine.high %v2487, %v2487
  %v2491 = vunpack.c.l.s4 1966171168
  %v2492 = vunpack.c.0.s8 %v2491
  %v2493 = vlaneseq
  %v2494 = vshrl.u32 %v2493, 7
  %v2495 = vsub.s32 %v2492, %v2494
  %v2496 = vrot.slane %v2480, %v2495
  %v2498 = vunpack.c.l.s4 1966171168
  %v2499 = vunpack.c.0.s8 %v2498
  %v2500 = vlaneseq
  %v2501 = vshrl.u32 %v2500, 7
  %v2502 = vsub.s32 %v2499, %v2501
  %v2503 = vrot.slane %v2487, %v2502
  %v2505 = vunpack.c.l.s4 1966171168
  %v2506 = vunpack.c.0.s8 %v2505
  %v2507 = vlaneseq
  %v2508 = vshrl.u32 %v2507, 7
  %v2509 = vsub.s32 %v2506, %v2508
  %v2510 = vrot.slane %v2488, %v2509
  %v2512 = vunpack.c.l.s4 1966171168
  %v2513 = vunpack.c.0.s8 %v2512
  %v2514 = vlaneseq
  %v2515 = vshrl.u32 %v2514, 7
  %v2516 = vsub.s32 %v2513, %v2515
  %v2517 = vrot.slane %v2489, %v2516
  %v2518 = vcombine.high %v2496, %v2496
  %v2519 = vcombine.high %v2510, %v2510
  %2526 = vmatprep.subr.bf16.mxu0 0
  %2527 = vmatpush1.bf16.msra.mxu0 %v961
  %2528 = vmatprep.subr.bf16.mxu0 0
  %2529 = vmatpush1.bf16.msra.mxu0 %v960
  %2530 = vmatprep.subr.bf16.mxu0 0
  %2531 = vmatpush1.bf16.msra.mxu0 %v959
  %2532 = vmatprep.subr.bf16.mxu0 0
  %2533 = vmatpush1.bf16.msra.mxu0 %v958
  %2534 = vmatprep.subr.bf16.mxu0 0
  %2535 = vmatpush1.bf16.msra.mxu0 %v957
  %2536 = vmatprep.subr.bf16.mxu0 0
  %2537 = vmatpush1.bf16.msra.mxu0 %v956
  %2538 = vmatprep.subr.bf16.mxu0 0
  %2539 = vmatpush1.bf16.msra.mxu0 %v955
  %2540 = vmatprep.subr.bf16.mxu0 0
  %2541 = vmatpush1.bf16.msra.mxu0 %v954
  %2542 = vmatprep.subr.bf16.mxu0 0
  %2543 = vmatpush2.bf16.msra.mxu0 %v969
  %2544 = vmatprep.subr.bf16.mxu0 0
  %2545 = vmatpush2.bf16.msra.mxu0 %v968
  %2546 = vmatprep.subr.bf16.mxu0 0
  %2547 = vmatpush2.bf16.msra.mxu0 %v967
  %2548 = vmatprep.subr.bf16.mxu0 0
  %2549 = vmatpush2.bf16.msra.mxu0 %v966
  %2550 = vmatprep.subr.bf16.mxu0 0
  %2551 = vmatpush2.bf16.msra.mxu0 %v965
  %2552 = vmatprep.subr.bf16.mxu0 0
  %2553 = vmatpush2.bf16.msra.mxu0 %v964
  %2554 = vmatprep.subr.bf16.mxu0 0
  %2555 = vmatpush2.bf16.msra.mxu0 %v963
  %2556 = vmatprep.subr.bf16.mxu0 0
  %2557 = vmatpush2.bf16.msra.mxu0 %v962
  %2558 = vmatprep.mubr.bf16.mxu0 %v2510
  %2559 = vmatmul.mubr.bf16.gmra.mxu0 %v2496
  %v2560 = vpop.f32.mrf.mxu0
  %v2561 = vadd.f32 0.0, %v2560
  %v2562 = vpop.f32.mrf.mxu0
  %v2563 = vpop.f32.mrf.mxu0
  %v2564 = vpop.f32.mrf.mxu0
  %2565 = vdwg.mxu0
  %2566 = vmatprep.subr.bf16.mxu0 0
  %2567 = vmatpush1.bf16.msra.mxu0 %v977
  %2568 = vmatprep.subr.bf16.mxu0 0
  %2569 = vmatpush1.bf16.msra.mxu0 %v976
  %2570 = vmatprep.subr.bf16.mxu0 0
  %2571 = vmatpush1.bf16.msra.mxu0 %v975
  %2572 = vmatprep.subr.bf16.mxu0 0
  %2573 = vmatpush1.bf16.msra.mxu0 %v974
  %2574 = vmatprep.subr.bf16.mxu0 0
  %2575 = vmatpush1.bf16.msra.mxu0 %v973
  %2576 = vmatprep.subr.bf16.mxu0 0
  %2577 = vmatpush1.bf16.msra.mxu0 %v972
  %2578 = vmatprep.subr.bf16.mxu0 0
  %2579 = vmatpush1.bf16.msra.mxu0 %v971
  %2580 = vmatprep.subr.bf16.mxu0 0
  %2581 = vmatpush1.bf16.msra.mxu0 %v970
  %2582 = vmatprep.subr.bf16.mxu0 0
  %2583 = vmatpush2.bf16.msra.mxu0 %v985
  %2584 = vmatprep.subr.bf16.mxu0 0
  %2585 = vmatpush2.bf16.msra.mxu0 %v984
  %2586 = vmatprep.subr.bf16.mxu0 0
  %2587 = vmatpush2.bf16.msra.mxu0 %v983
  %2588 = vmatprep.subr.bf16.mxu0 0
  %2589 = vmatpush2.bf16.msra.mxu0 %v982
  %2590 = vmatprep.subr.bf16.mxu0 0
  %2591 = vmatpush2.bf16.msra.mxu0 %v981
  %2592 = vmatprep.subr.bf16.mxu0 0
  %2593 = vmatpush2.bf16.msra.mxu0 %v980
  %2594 = vmatprep.subr.bf16.mxu0 0
  %2595 = vmatpush2.bf16.msra.mxu0 %v979
  %2596 = vmatprep.subr.bf16.mxu0 0
  %2597 = vmatpush2.bf16.msra.mxu0 %v978
  %2598 = vmatprep.mubr.bf16.mxu0 %v2519
  %2599 = vmatmul.mubr.bf16.gmra.mxu0 %v2518
  %v2600 = vpop.f32.mrf.mxu0
  %v2601 = vadd.f32 %v2561, %v2600
  %v2602 = vpop.f32.mrf.mxu0
  %v2603 = vpop.f32.mrf.mxu0
  %v2604 = vpop.f32.mrf.mxu0
  %2605 = vdwg.mxu0
  %2606 = vmatprep.subr.bf16.mxu0 0
  %2607 = vmatpush1.bf16.msra.mxu0 %v993
  %2608 = vmatprep.subr.bf16.mxu0 0
  %2609 = vmatpush1.bf16.msra.mxu0 %v992
  %2610 = vmatprep.subr.bf16.mxu0 0
  %2611 = vmatpush1.bf16.msra.mxu0 %v991
  %2612 = vmatprep.subr.bf16.mxu0 0
  %2613 = vmatpush1.bf16.msra.mxu0 %v990
  %2614 = vmatprep.subr.bf16.mxu0 0
  %2615 = vmatpush1.bf16.msra.mxu0 %v989
  %2616 = vmatprep.subr.bf16.mxu0 0
  %2617 = vmatpush1.bf16.msra.mxu0 %v988
  %2618 = vmatprep.subr.bf16.mxu0 0
  %2619 = vmatpush1.bf16.msra.mxu0 %v987
  %2620 = vmatprep.subr.bf16.mxu0 0
  %2621 = vmatpush1.bf16.msra.mxu0 %v986
  %2622 = vmatprep.subr.bf16.mxu0 0
  %2623 = vmatpush2.bf16.msra.mxu0 %v1001
  %2624 = vmatprep.subr.bf16.mxu0 0
  %2625 = vmatpush2.bf16.msra.mxu0 %v1000
  %2626 = vmatprep.subr.bf16.mxu0 0
  %2627 = vmatpush2.bf16.msra.mxu0 %v999
  %2628 = vmatprep.subr.bf16.mxu0 0
  %2629 = vmatpush2.bf16.msra.mxu0 %v998
  %2630 = vmatprep.subr.bf16.mxu0 0
  %2631 = vmatpush2.bf16.msra.mxu0 %v997
  %2632 = vmatprep.subr.bf16.mxu0 0
  %2633 = vmatpush2.bf16.msra.mxu0 %v996
  %2634 = vmatprep.subr.bf16.mxu0 0
  %2635 = vmatpush2.bf16.msra.mxu0 %v995
  %2636 = vmatprep.subr.bf16.mxu0 0
  %2637 = vmatpush2.bf16.msra.mxu0 %v994
  %2638 = vmatprep.mubr.bf16.mxu0 %v2517
  %2639 = vmatmul.mubr.bf16.gmra.mxu0 %v2503
  %v2640 = vpop.f32.mrf.mxu0
  %v2641 = vadd.f32 %v2601, %v2640
  %v2642 = vpop.f32.mrf.mxu0
  %v2643 = vpop.f32.mrf.mxu0
  %v2644 = vpop.f32.mrf.mxu0
  %2645 = vdwg.mxu0
  %v2646 = vadd.f32 %v2466, %v1174
  %v2647 = vadd.f32 %v2641, %v1178
  %v2650 = vcombine.low %v2646, %v2647
  %v2652 = vunpack.c.l.s4 1983009808
  %v2653 = vunpack.c.0.s8 %v2652
  %v2654 = vlaneseq
  %v2655 = vshrl.u32 %v2654, 7
  %v2656 = vsub.s32 %v2653, %v2655
  %v2657 = vrot.slane %v2650, %v2656
  %s2659 = scalar_lea.vmem [#allocation2], 16
  %2660 = vst [vmem:[%s2659] sm:$0xf] %v2657
  %v2661 = vld [vmem:[%s1738] sm:$0x3f]
  %v2663 = vcombine.high %v2661, %v2661
  %v2665 = vunpack.c.l.s4 1966171168
  %v2666 = vunpack.c.0.s8 %v2665
  %v2667 = vlaneseq
  %v2668 = vshrl.u32 %v2667, 7
  %v2669 = vsub.s32 %v2666, %v2668
  %v2670 = vrot.slane %v2661, %v2669
  %v2672 = vunpack.c.l.s4 1966171168
  %v2673 = vunpack.c.0.s8 %v2672
  %v2674 = vlaneseq
  %v2675 = vshrl.u32 %v2674, 7
  %v2676 = vsub.s32 %v2673, %v2675
  %v2677 = vrot.slane %v2663, %v2676
  %v2678 = vcombine.high %v2670, %v2670
  %v2679 = vcombine.high %v2677, %v2677
  %v2681 = vunpack.c.l.s4 1966171168
  %v2682 = vunpack.c.0.s8 %v2681
  %v2683 = vlaneseq
  %v2684 = vshrl.u32 %v2683, 7
  %v2685 = vsub.s32 %v2682, %v2684
  %v2686 = vrot.slane %v2670, %v2685
  %v2688 = vunpack.c.l.s4 1966171168
  %v2689 = vunpack.c.0.s8 %v2688
  %v2690 = vlaneseq
  %v2691 = vshrl.u32 %v2690, 7
  %v2692 = vsub.s32 %v2689, %v2691
  %v2693 = vrot.slane %v2677, %v2692
  %v2695 = vunpack.c.l.s4 1966171168
  %v2696 = vunpack.c.0.s8 %v2695
  %v2697 = vlaneseq
  %v2698 = vshrl.u32 %v2697, 7
  %v2699 = vsub.s32 %v2696, %v2698
  %v2700 = vrot.slane %v2678, %v2699
  %v2702 = vunpack.c.l.s4 1966171168
  %v2703 = vunpack.c.0.s8 %v2702
  %v2704 = vlaneseq
  %v2705 = vshrl.u32 %v2704, 7
  %v2706 = vsub.s32 %v2703, %v2705
  %v2707 = vrot.slane %v2679, %v2706
  %v2708 = vcombine.high %v2686, %v2686
  %v2709 = vcombine.high %v2700, %v2700
  %2716 = vmatprep.subr.bf16.mxu0 0
  %2717 = vmatpush1.bf16.msra.mxu0 %v497
  %2718 = vmatprep.subr.bf16.mxu0 0
  %2719 = vmatpush1.bf16.msra.mxu0 %v496
  %2720 = vmatprep.subr.bf16.mxu0 0
  %2721 = vmatpush1.bf16.msra.mxu0 %v495
  %2722 = vmatprep.subr.bf16.mxu0 0
  %2723 = vmatpush1.bf16.msra.mxu0 %v494
  %2724 = vmatprep.subr.bf16.mxu0 0
  %2725 = vmatpush1.bf16.msra.mxu0 %v493
  %2726 = vmatprep.subr.bf16.mxu0 0
  %2727 = vmatpush1.bf16.msra.mxu0 %v492
  %2728 = vmatprep.subr.bf16.mxu0 0
  %2729 = vmatpush1.bf16.msra.mxu0 %v491
  %2730 = vmatprep.subr.bf16.mxu0 0
  %2731 = vmatpush1.bf16.msra.mxu0 %v490
  %2732 = vmatprep.subr.bf16.mxu0 0
  %2733 = vmatpush2.bf16.msra.mxu0 %v505
  %2734 = vmatprep.subr.bf16.mxu0 0
  %2735 = vmatpush2.bf16.msra.mxu0 %v504
  %2736 = vmatprep.subr.bf16.mxu0 0
  %2737 = vmatpush2.bf16.msra.mxu0 %v503
  %2738 = vmatprep.subr.bf16.mxu0 0
  %2739 = vmatpush2.bf16.msra.mxu0 %v502
  %2740 = vmatprep.subr.bf16.mxu0 0
  %2741 = vmatpush2.bf16.msra.mxu0 %v501
  %2742 = vmatprep.subr.bf16.mxu0 0
  %2743 = vmatpush2.bf16.msra.mxu0 %v500
  %2744 = vmatprep.subr.bf16.mxu0 0
  %2745 = vmatpush2.bf16.msra.mxu0 %v499
  %2746 = vmatprep.subr.bf16.mxu0 0
  %2747 = vmatpush2.bf16.msra.mxu0 %v498
  %2748 = vmatprep.mubr.bf16.mxu0 %v2700
  %2749 = vmatmul.mubr.bf16.gmra.mxu0 %v2686
  %v2750 = vpop.f32.mrf.mxu0
  %v2751 = vadd.f32 0.0, %v2750
  %v2752 = vpop.f32.mrf.mxu0
  %v2753 = vpop.f32.mrf.mxu0
  %v2754 = vpop.f32.mrf.mxu0
  %2755 = vdwg.mxu0
  %2756 = vmatprep.subr.bf16.mxu0 0
  %2757 = vmatpush1.bf16.msra.mxu0 %v513
  %2758 = vmatprep.subr.bf16.mxu0 0
  %2759 = vmatpush1.bf16.msra.mxu0 %v512
  %2760 = vmatprep.subr.bf16.mxu0 0
  %2761 = vmatpush1.bf16.msra.mxu0 %v511
  %2762 = vmatprep.subr.bf16.mxu0 0
  %2763 = vmatpush1.bf16.msra.mxu0 %v510
  %2764 = vmatprep.subr.bf16.mxu0 0
  %2765 = vmatpush1.bf16.msra.mxu0 %v509
  %2766 = vmatprep.subr.bf16.mxu0 0
  %2767 = vmatpush1.bf16.msra.mxu0 %v508
  %2768 = vmatprep.subr.bf16.mxu0 0
  %2769 = vmatpush1.bf16.msra.mxu0 %v507
  %2770 = vmatprep.subr.bf16.mxu0 0
  %2771 = vmatpush1.bf16.msra.mxu0 %v506
  %2772 = vmatprep.subr.bf16.mxu0 0
  %2773 = vmatpush2.bf16.msra.mxu0 %v521
  %2774 = vmatprep.subr.bf16.mxu0 0
  %2775 = vmatpush2.bf16.msra.mxu0 %v520
  %2776 = vmatprep.subr.bf16.mxu0 0
  %2777 = vmatpush2.bf16.msra.mxu0 %v519
  %2778 = vmatprep.subr.bf16.mxu0 0
  %2779 = vmatpush2.bf16.msra.mxu0 %v518
  %2780 = vmatprep.subr.bf16.mxu0 0
  %2781 = vmatpush2.bf16.msra.mxu0 %v517
  %2782 = vmatprep.subr.bf16.mxu0 0
  %2783 = vmatpush2.bf16.msra.mxu0 %v516
  %2784 = vmatprep.subr.bf16.mxu0 0
  %2785 = vmatpush2.bf16.msra.mxu0 %v515
  %2786 = vmatprep.subr.bf16.mxu0 0
  %2787 = vmatpush2.bf16.msra.mxu0 %v514
  %2788 = vmatprep.mubr.bf16.mxu0 %v2709
  %2789 = vmatmul.mubr.bf16.gmra.mxu0 %v2708
  %v2790 = vpop.f32.mrf.mxu0
  %v2791 = vadd.f32 %v2751, %v2790
  %v2792 = vpop.f32.mrf.mxu0
  %v2793 = vpop.f32.mrf.mxu0
  %v2794 = vpop.f32.mrf.mxu0
  %2795 = vdwg.mxu0
  %2796 = vmatprep.subr.bf16.mxu0 0
  %2797 = vmatpush1.bf16.msra.mxu0 %v529
  %2798 = vmatprep.subr.bf16.mxu0 0
  %2799 = vmatpush1.bf16.msra.mxu0 %v528
  %2800 = vmatprep.subr.bf16.mxu0 0
  %2801 = vmatpush1.bf16.msra.mxu0 %v527
  %2802 = vmatprep.subr.bf16.mxu0 0
  %2803 = vmatpush1.bf16.msra.mxu0 %v526
  %2804 = vmatprep.subr.bf16.mxu0 0
  %2805 = vmatpush1.bf16.msra.mxu0 %v525
  %2806 = vmatprep.subr.bf16.mxu0 0
  %2807 = vmatpush1.bf16.msra.mxu0 %v524
  %2808 = vmatprep.subr.bf16.mxu0 0
  %2809 = vmatpush1.bf16.msra.mxu0 %v523
  %2810 = vmatprep.subr.bf16.mxu0 0
  %2811 = vmatpush1.bf16.msra.mxu0 %v522
  %2812 = vmatprep.subr.bf16.mxu0 0
  %2813 = vmatpush2.bf16.msra.mxu0 %v537
  %2814 = vmatprep.subr.bf16.mxu0 0
  %2815 = vmatpush2.bf16.msra.mxu0 %v536
  %2816 = vmatprep.subr.bf16.mxu0 0
  %2817 = vmatpush2.bf16.msra.mxu0 %v535
  %2818 = vmatprep.subr.bf16.mxu0 0
  %2819 = vmatpush2.bf16.msra.mxu0 %v534
  %2820 = vmatprep.subr.bf16.mxu0 0
  %2821 = vmatpush2.bf16.msra.mxu0 %v533
  %2822 = vmatprep.subr.bf16.mxu0 0
  %2823 = vmatpush2.bf16.msra.mxu0 %v532
  %2824 = vmatprep.subr.bf16.mxu0 0
  %2825 = vmatpush2.bf16.msra.mxu0 %v531
  %2826 = vmatprep.subr.bf16.mxu0 0
  %2827 = vmatpush2.bf16.msra.mxu0 %v530
  %2828 = vmatprep.mubr.bf16.mxu0 %v2707
  %2829 = vmatmul.mubr.bf16.gmra.mxu0 %v2693
  %v2830 = vpop.f32.mrf.mxu0
  %v2831 = vadd.f32 %v2791, %v2830
  %v2832 = vpop.f32.mrf.mxu0
  %v2833 = vpop.f32.mrf.mxu0
  %v2834 = vpop.f32.mrf.mxu0
  %2835 = vdwg.mxu0
  %v2836 = vld [vmem:[%s1562] sm:$0x3f]
  %v2838 = vcombine.high %v2836, %v2836
  %v2840 = vunpack.c.l.s4 1966171168
  %v2841 = vunpack.c.0.s8 %v2840
  %v2842 = vlaneseq
  %v2843 = vshrl.u32 %v2842, 7
  %v2844 = vsub.s32 %v2841, %v2843
  %v2845 = vrot.slane %v2836, %v2844
  %v2847 = vunpack.c.l.s4 1966171168
  %v2848 = vunpack.c.0.s8 %v2847
  %v2849 = vlaneseq
  %v2850 = vshrl.u32 %v2849, 7
  %v2851 = vsub.s32 %v2848, %v2850
  %v2852 = vrot.slane %v2838, %v2851
  %v2853 = vcombine.high %v2845, %v2845
  %v2854 = vcombine.high %v2852, %v2852
  %v2856 = vunpack.c.l.s4 1966171168
  %v2857 = vunpack.c.0.s8 %v2856
  %v2858 = vlaneseq
  %v2859 = vshrl.u32 %v2858, 7
  %v2860 = vsub.s32 %v2857, %v2859
  %v2861 = vrot.slane %v2845, %v2860
  %v2863 = vunpack.c.l.s4 1966171168
  %v2864 = vunpack.c.0.s8 %v2863
  %v2865 = vlaneseq
  %v2866 = vshrl.u32 %v2865, 7
  %v2867 = vsub.s32 %v2864, %v2866
  %v2868 = vrot.slane %v2852, %v2867
  %v2870 = vunpack.c.l.s4 1966171168
  %v2871 = vunpack.c.0.s8 %v2870
  %v2872 = vlaneseq
  %v2873 = vshrl.u32 %v2872, 7
  %v2874 = vsub.s32 %v2871, %v2873
  %v2875 = vrot.slane %v2853, %v2874
  %v2877 = vunpack.c.l.s4 1966171168
  %v2878 = vunpack.c.0.s8 %v2877
  %v2879 = vlaneseq
  %v2880 = vshrl.u32 %v2879, 7
  %v2881 = vsub.s32 %v2878, %v2880
  %v2882 = vrot.slane %v2854, %v2881
  %v2883 = vcombine.high %v2861, %v2861
  %v2884 = vcombine.high %v2875, %v2875
  %2891 = vmatprep.subr.bf16.mxu0 0
  %2892 = vmatpush1.bf16.msra.mxu0 %v961
  %2893 = vmatprep.subr.bf16.mxu0 0
  %2894 = vmatpush1.bf16.msra.mxu0 %v960
  %2895 = vmatprep.subr.bf16.mxu0 0
  %2896 = vmatpush1.bf16.msra.mxu0 %v959
  %2897 = vmatprep.subr.bf16.mxu0 0
  %2898 = vmatpush1.bf16.msra.mxu0 %v958
  %2899 = vmatprep.subr.bf16.mxu0 0
  %2900 = vmatpush1.bf16.msra.mxu0 %v957
  %2901 = vmatprep.subr.bf16.mxu0 0
  %2902 = vmatpush1.bf16.msra.mxu0 %v956
  %2903 = vmatprep.subr.bf16.mxu0 0
  %2904 = vmatpush1.bf16.msra.mxu0 %v955
  %2905 = vmatprep.subr.bf16.mxu0 0
  %2906 = vmatpush1.bf16.msra.mxu0 %v954
  %2907 = vmatprep.subr.bf16.mxu0 0
  %2908 = vmatpush2.bf16.msra.mxu0 %v969
  %2909 = vmatprep.subr.bf16.mxu0 0
  %2910 = vmatpush2.bf16.msra.mxu0 %v968
  %2911 = vmatprep.subr.bf16.mxu0 0
  %2912 = vmatpush2.bf16.msra.mxu0 %v967
  %2913 = vmatprep.subr.bf16.mxu0 0
  %2914 = vmatpush2.bf16.msra.mxu0 %v966
  %2915 = vmatprep.subr.bf16.mxu0 0
  %2916 = vmatpush2.bf16.msra.mxu0 %v965
  %2917 = vmatprep.subr.bf16.mxu0 0
  %2918 = vmatpush2.bf16.msra.mxu0 %v964
  %2919 = vmatprep.subr.bf16.mxu0 0
  %2920 = vmatpush2.bf16.msra.mxu0 %v963
  %2921 = vmatprep.subr.bf16.mxu0 0
  %2922 = vmatpush2.bf16.msra.mxu0 %v962
  %2923 = vmatprep.mubr.bf16.mxu0 %v2875
  %2924 = vmatmul.mubr.bf16.gmra.mxu0 %v2861
  %v2925 = vpop.f32.mrf.mxu0
  %v2926 = vadd.f32 0.0, %v2925
  %v2927 = vpop.f32.mrf.mxu0
  %v2928 = vpop.f32.mrf.mxu0
  %v2929 = vpop.f32.mrf.mxu0
  %2930 = vdwg.mxu0
  %2931 = vmatprep.subr.bf16.mxu0 0
  %2932 = vmatpush1.bf16.msra.mxu0 %v977
  %2933 = vmatprep.subr.bf16.mxu0 0
  %2934 = vmatpush1.bf16.msra.mxu0 %v976
  %2935 = vmatprep.subr.bf16.mxu0 0
  %2936 = vmatpush1.bf16.msra.mxu0 %v975
  %2937 = vmatprep.subr.bf16.mxu0 0
  %2938 = vmatpush1.bf16.msra.mxu0 %v974
  %2939 = vmatprep.subr.bf16.mxu0 0
  %2940 = vmatpush1.bf16.msra.mxu0 %v973
  %2941 = vmatprep.subr.bf16.mxu0 0
  %2942 = vmatpush1.bf16.msra.mxu0 %v972
  %2943 = vmatprep.subr.bf16.mxu0 0
  %2944 = vmatpush1.bf16.msra.mxu0 %v971
  %2945 = vmatprep.subr.bf16.mxu0 0
  %2946 = vmatpush1.bf16.msra.mxu0 %v970
  %2947 = vmatprep.subr.bf16.mxu0 0
  %2948 = vmatpush2.bf16.msra.mxu0 %v985
  %2949 = vmatprep.subr.bf16.mxu0 0
  %2950 = vmatpush2.bf16.msra.mxu0 %v984
  %2951 = vmatprep.subr.bf16.mxu0 0
  %2952 = vmatpush2.bf16.msra.mxu0 %v983
  %2953 = vmatprep.subr.bf16.mxu0 0
  %2954 = vmatpush2.bf16.msra.mxu0 %v982
  %2955 = vmatprep.subr.bf16.mxu0 0
  %2956 = vmatpush2.bf16.msra.mxu0 %v981
  %2957 = vmatprep.subr.bf16.mxu0 0
  %2958 = vmatpush2.bf16.msra.mxu0 %v980
  %2959 = vmatprep.subr.bf16.mxu0 0
  %2960 = vmatpush2.bf16.msra.mxu0 %v979
  %2961 = vmatprep.subr.bf16.mxu0 0
  %2962 = vmatpush2.bf16.msra.mxu0 %v978
  %2963 = vmatprep.mubr.bf16.mxu0 %v2884
  %2964 = vmatmul.mubr.bf16.gmra.mxu0 %v2883
  %v2965 = vpop.f32.mrf.mxu0
  %v2966 = vadd.f32 %v2926, %v2965
  %v2967 = vpop.f32.mrf.mxu0
  %v2968 = vpop.f32.mrf.mxu0
  %v2969 = vpop.f32.mrf.mxu0
  %2970 = vdwg.mxu0
  %2971 = vmatprep.subr.bf16.mxu0 0
  %2972 = vmatpush1.bf16.msra.mxu0 %v993
  %2973 = vmatprep.subr.bf16.mxu0 0
  %2974 = vmatpush1.bf16.msra.mxu0 %v992
  %2975 = vmatprep.subr.bf16.mxu0 0
  %2976 = vmatpush1.bf16.msra.mxu0 %v991
  %2977 = vmatprep.subr.bf16.mxu0 0
  %2978 = vmatpush1.bf16.msra.mxu0 %v990
  %2979 = vmatprep.subr.bf16.mxu0 0
  %2980 = vmatpush1.bf16.msra.mxu0 %v989
  %2981 = vmatprep.subr.bf16.mxu0 0
  %2982 = vmatpush1.bf16.msra.mxu0 %v988
  %2983 = vmatprep.subr.bf16.mxu0 0
  %2984 = vmatpush1.bf16.msra.mxu0 %v987
  %2985 = vmatprep.subr.bf16.mxu0 0
  %2986 = vmatpush1.bf16.msra.mxu0 %v986
  %2987 = vmatprep.subr.bf16.mxu0 0
  %2988 = vmatpush2.bf16.msra.mxu0 %v1001
  %2989 = vmatprep.subr.bf16.mxu0 0
  %2990 = vmatpush2.bf16.msra.mxu0 %v1000
  %2991 = vmatprep.subr.bf16.mxu0 0
  %2992 = vmatpush2.bf16.msra.mxu0 %v999
  %2993 = vmatprep.subr.bf16.mxu0 0
  %2994 = vmatpush2.bf16.msra.mxu0 %v998
  %2995 = vmatprep.subr.bf16.mxu0 0
  %2996 = vmatpush2.bf16.msra.mxu0 %v997
  %2997 = vmatprep.subr.bf16.mxu0 0
  %2998 = vmatpush2.bf16.msra.mxu0 %v996
  %2999 = vmatprep.subr.bf16.mxu0 0
  %3000 = vmatpush2.bf16.msra.mxu0 %v995
  %3001 = vmatprep.subr.bf16.mxu0 0
  %3002 = vmatpush2.bf16.msra.mxu0 %v994
  %3003 = vmatprep.mubr.bf16.mxu0 %v2882
  %3004 = vmatmul.mubr.bf16.gmra.mxu0 %v2868
  %v3005 = vpop.f32.mrf.mxu0
  %v3006 = vadd.f32 %v2966, %v3005
  %v3007 = vpop.f32.mrf.mxu0
  %v3008 = vpop.f32.mrf.mxu0
  %v3009 = vpop.f32.mrf.mxu0
  %3010 = vdwg.mxu0
  %v3011 = vadd.f32 %v2831, %v1174
  %v3012 = vadd.f32 %v3006, %v1178
  %v3015 = vcombine.low %v3011, %v3012
  %v3017 = vunpack.c.l.s4 1983009808
  %v3018 = vunpack.c.0.s8 %v3017
  %v3019 = vlaneseq
  %v3020 = vshrl.u32 %v3019, 7
  %v3021 = vsub.s32 %v3018, %v3020
  %v3022 = vrot.slane %v3015, %v3021
  %s3024 = scalar_lea.vmem [#allocation2], 20
  %3025 = vst [vmem:[%s3024] sm:$0xf] %v3022
  %v3026 = vld [vmem:[%s1371] sm:$0x3f]
  %v3028 = vcombine.high %v3026, %v3026
  %v3030 = vunpack.c.l.s4 1966171168
  %v3031 = vunpack.c.0.s8 %v3030
  %v3032 = vlaneseq
  %v3033 = vshrl.u32 %v3032, 7
  %v3034 = vsub.s32 %v3031, %v3033
  %v3035 = vrot.slane %v3026, %v3034
  %v3037 = vunpack.c.l.s4 1966171168
  %v3038 = vunpack.c.0.s8 %v3037
  %v3039 = vlaneseq
  %v3040 = vshrl.u32 %v3039, 7
  %v3041 = vsub.s32 %v3038, %v3040
  %v3042 = vrot.slane %v3028, %v3041
  %v3043 = vcombine.high %v3035, %v3035
  %v3044 = vcombine.high %v3042, %v3042
  %v3046 = vunpack.c.l.s4 1966171168
  %v3047 = vunpack.c.0.s8 %v3046
  %v3048 = vlaneseq
  %v3049 = vshrl.u32 %v3048, 7
  %v3050 = vsub.s32 %v3047, %v3049
  %v3051 = vrot.slane %v3035, %v3050
  %v3053 = vunpack.c.l.s4 1966171168
  %v3054 = vunpack.c.0.s8 %v3053
  %v3055 = vlaneseq
  %v3056 = vshrl.u32 %v3055, 7
  %v3057 = vsub.s32 %v3054, %v3056
  %v3058 = vrot.slane %v3042, %v3057
  %v3060 = vunpack.c.l.s4 1966171168
  %v3061 = vunpack.c.0.s8 %v3060
  %v3062 = vlaneseq
  %v3063 = vshrl.u32 %v3062, 7
  %v3064 = vsub.s32 %v3061, %v3063
  %v3065 = vrot.slane %v3043, %v3064
  %v3067 = vunpack.c.l.s4 1966171168
  %v3068 = vunpack.c.0.s8 %v3067
  %v3069 = vlaneseq
  %v3070 = vshrl.u32 %v3069, 7
  %v3071 = vsub.s32 %v3068, %v3070
  %v3072 = vrot.slane %v3044, %v3071
  %v3073 = vcombine.high %v3051, %v3051
  %v3074 = vcombine.high %v3065, %v3065
  %3081 = vmatprep.subr.bf16.mxu0 0
  %3082 = vmatpush1.bf16.msra.mxu0 %v497
  %3083 = vmatprep.subr.bf16.mxu0 0
  %3084 = vmatpush1.bf16.msra.mxu0 %v496
  %3085 = vmatprep.subr.bf16.mxu0 0
  %3086 = vmatpush1.bf16.msra.mxu0 %v495
  %3087 = vmatprep.subr.bf16.mxu0 0
  %3088 = vmatpush1.bf16.msra.mxu0 %v494
  %3089 = vmatprep.subr.bf16.mxu0 0
  %3090 = vmatpush1.bf16.msra.mxu0 %v493
  %3091 = vmatprep.subr.bf16.mxu0 0
  %3092 = vmatpush1.bf16.msra.mxu0 %v492
  %3093 = vmatprep.subr.bf16.mxu0 0
  %3094 = vmatpush1.bf16.msra.mxu0 %v491
  %3095 = vmatprep.subr.bf16.mxu0 0
  %3096 = vmatpush1.bf16.msra.mxu0 %v490
  %3097 = vmatprep.subr.bf16.mxu0 0
  %3098 = vmatpush2.bf16.msra.mxu0 %v505
  %3099 = vmatprep.subr.bf16.mxu0 0
  %3100 = vmatpush2.bf16.msra.mxu0 %v504
  %3101 = vmatprep.subr.bf16.mxu0 0
  %3102 = vmatpush2.bf16.msra.mxu0 %v503
  %3103 = vmatprep.subr.bf16.mxu0 0
  %3104 = vmatpush2.bf16.msra.mxu0 %v502
  %3105 = vmatprep.subr.bf16.mxu0 0
  %3106 = vmatpush2.bf16.msra.mxu0 %v501
  %3107 = vmatprep.subr.bf16.mxu0 0
  %3108 = vmatpush2.bf16.msra.mxu0 %v500
  %3109 = vmatprep.subr.bf16.mxu0 0
  %3110 = vmatpush2.bf16.msra.mxu0 %v499
  %3111 = vmatprep.subr.bf16.mxu0 0
  %3112 = vmatpush2.bf16.msra.mxu0 %v498
  %3113 = vmatprep.mubr.bf16.mxu0 %v3065
  %3114 = vmatmul.mubr.bf16.gmra.mxu0 %v3051
  %v3115 = vpop.f32.mrf.mxu0
  %v3116 = vadd.f32 0.0, %v3115
  %v3117 = vpop.f32.mrf.mxu0
  %v3118 = vpop.f32.mrf.mxu0
  %v3119 = vpop.f32.mrf.mxu0
  %3120 = vdwg.mxu0
  %3121 = vmatprep.subr.bf16.mxu0 0
  %3122 = vmatpush1.bf16.msra.mxu0 %v513
  %3123 = vmatprep.subr.bf16.mxu0 0
  %3124 = vmatpush1.bf16.msra.mxu0 %v512
  %3125 = vmatprep.subr.bf16.mxu0 0
  %3126 = vmatpush1.bf16.msra.mxu0 %v511
  %3127 = vmatprep.subr.bf16.mxu0 0
  %3128 = vmatpush1.bf16.msra.mxu0 %v510
  %3129 = vmatprep.subr.bf16.mxu0 0
  %3130 = vmatpush1.bf16.msra.mxu0 %v509
  %3131 = vmatprep.subr.bf16.mxu0 0
  %3132 = vmatpush1.bf16.msra.mxu0 %v508
  %3133 = vmatprep.subr.bf16.mxu0 0
  %3134 = vmatpush1.bf16.msra.mxu0 %v507
  %3135 = vmatprep.subr.bf16.mxu0 0
  %3136 = vmatpush1.bf16.msra.mxu0 %v506
  %3137 = vmatprep.subr.bf16.mxu0 0
  %3138 = vmatpush2.bf16.msra.mxu0 %v521
  %3139 = vmatprep.subr.bf16.mxu0 0
  %3140 = vmatpush2.bf16.msra.mxu0 %v520
  %3141 = vmatprep.subr.bf16.mxu0 0
  %3142 = vmatpush2.bf16.msra.mxu0 %v519
  %3143 = vmatprep.subr.bf16.mxu0 0
  %3144 = vmatpush2.bf16.msra.mxu0 %v518
  %3145 = vmatprep.subr.bf16.mxu0 0
  %3146 = vmatpush2.bf16.msra.mxu0 %v517
  %3147 = vmatprep.subr.bf16.mxu0 0
  %3148 = vmatpush2.bf16.msra.mxu0 %v516
  %3149 = vmatprep.subr.bf16.mxu0 0
  %3150 = vmatpush2.bf16.msra.mxu0 %v515
  %3151 = vmatprep.subr.bf16.mxu0 0
  %3152 = vmatpush2.bf16.msra.mxu0 %v514
  %3153 = vmatprep.mubr.bf16.mxu0 %v3074
  %3154 = vmatmul.mubr.bf16.gmra.mxu0 %v3073
  %v3155 = vpop.f32.mrf.mxu0
  %v3156 = vadd.f32 %v3116, %v3155
  %v3157 = vpop.f32.mrf.mxu0
  %v3158 = vpop.f32.mrf.mxu0
  %v3159 = vpop.f32.mrf.mxu0
  %3160 = vdwg.mxu0
  %3161 = vmatprep.subr.bf16.mxu0 0
  %3162 = vmatpush1.bf16.msra.mxu0 %v529
  %3163 = vmatprep.subr.bf16.mxu0 0
  %3164 = vmatpush1.bf16.msra.mxu0 %v528
  %3165 = vmatprep.subr.bf16.mxu0 0
  %3166 = vmatpush1.bf16.msra.mxu0 %v527
  %3167 = vmatprep.subr.bf16.mxu0 0
  %3168 = vmatpush1.bf16.msra.mxu0 %v526
  %3169 = vmatprep.subr.bf16.mxu0 0
  %3170 = vmatpush1.bf16.msra.mxu0 %v525
  %3171 = vmatprep.subr.bf16.mxu0 0
  %3172 = vmatpush1.bf16.msra.mxu0 %v524
  %3173 = vmatprep.subr.bf16.mxu0 0
  %3174 = vmatpush1.bf16.msra.mxu0 %v523
  %3175 = vmatprep.subr.bf16.mxu0 0
  %3176 = vmatpush1.bf16.msra.mxu0 %v522
  %3177 = vmatprep.subr.bf16.mxu0 0
  %3178 = vmatpush2.bf16.msra.mxu0 %v537
  %3179 = vmatprep.subr.bf16.mxu0 0
  %3180 = vmatpush2.bf16.msra.mxu0 %v536
  %3181 = vmatprep.subr.bf16.mxu0 0
  %3182 = vmatpush2.bf16.msra.mxu0 %v535
  %3183 = vmatprep.subr.bf16.mxu0 0
  %3184 = vmatpush2.bf16.msra.mxu0 %v534
  %3185 = vmatprep.subr.bf16.mxu0 0
  %3186 = vmatpush2.bf16.msra.mxu0 %v533
  %3187 = vmatprep.subr.bf16.mxu0 0
  %3188 = vmatpush2.bf16.msra.mxu0 %v532
  %3189 = vmatprep.subr.bf16.mxu0 0
  %3190 = vmatpush2.bf16.msra.mxu0 %v531
  %3191 = vmatprep.subr.bf16.mxu0 0
  %3192 = vmatpush2.bf16.msra.mxu0 %v530
  %3193 = vmatprep.mubr.bf16.mxu0 %v3072
  %3194 = vmatmul.mubr.bf16.gmra.mxu0 %v3058
  %v3195 = vpop.f32.mrf.mxu0
  %v3196 = vadd.f32 %v3156, %v3195
  %v3197 = vpop.f32.mrf.mxu0
  %v3198 = vpop.f32.mrf.mxu0
  %v3199 = vpop.f32.mrf.mxu0
  %3200 = vdwg.mxu0
  %v3201 = vld [vmem:[%s1195] sm:$0x3f]
  %v3203 = vcombine.high %v3201, %v3201
  %v3205 = vunpack.c.l.s4 1966171168
  %v3206 = vunpack.c.0.s8 %v3205
  %v3207 = vlaneseq
  %v3208 = vshrl.u32 %v3207, 7
  %v3209 = vsub.s32 %v3206, %v3208
  %v3210 = vrot.slane %v3201, %v3209
  %v3212 = vunpack.c.l.s4 1966171168
  %v3213 = vunpack.c.0.s8 %v3212
  %v3214 = vlaneseq
  %v3215 = vshrl.u32 %v3214, 7
  %v3216 = vsub.s32 %v3213, %v3215
  %v3217 = vrot.slane %v3203, %v3216
  %v3218 = vcombine.high %v3210, %v3210
  %v3219 = vcombine.high %v3217, %v3217
  %v3221 = vunpack.c.l.s4 1966171168
  %v3222 = vunpack.c.0.s8 %v3221
  %v3223 = vlaneseq
  %v3224 = vshrl.u32 %v3223, 7
  %v3225 = vsub.s32 %v3222, %v3224
  %v3226 = vrot.slane %v3210, %v3225
  %v3228 = vunpack.c.l.s4 1966171168
  %v3229 = vunpack.c.0.s8 %v3228
  %v3230 = vlaneseq
  %v3231 = vshrl.u32 %v3230, 7
  %v3232 = vsub.s32 %v3229, %v3231
  %v3233 = vrot.slane %v3217, %v3232
  %v3235 = vunpack.c.l.s4 1966171168
  %v3236 = vunpack.c.0.s8 %v3235
  %v3237 = vlaneseq
  %v3238 = vshrl.u32 %v3237, 7
  %v3239 = vsub.s32 %v3236, %v3238
  %v3240 = vrot.slane %v3218, %v3239
  %v3242 = vunpack.c.l.s4 1966171168
  %v3243 = vunpack.c.0.s8 %v3242
  %v3244 = vlaneseq
  %v3245 = vshrl.u32 %v3244, 7
  %v3246 = vsub.s32 %v3243, %v3245
  %v3247 = vrot.slane %v3219, %v3246
  %v3248 = vcombine.high %v3226, %v3226
  %v3249 = vcombine.high %v3240, %v3240
  %3256 = vmatprep.subr.bf16.mxu0 0
  %3257 = vmatpush1.bf16.msra.mxu0 %v961
  %3258 = vmatprep.subr.bf16.mxu0 0
  %3259 = vmatpush1.bf16.msra.mxu0 %v960
  %3260 = vmatprep.subr.bf16.mxu0 0
  %3261 = vmatpush1.bf16.msra.mxu0 %v959
  %3262 = vmatprep.subr.bf16.mxu0 0
  %3263 = vmatpush1.bf16.msra.mxu0 %v958
  %3264 = vmatprep.subr.bf16.mxu0 0
  %3265 = vmatpush1.bf16.msra.mxu0 %v957
  %3266 = vmatprep.subr.bf16.mxu0 0
  %3267 = vmatpush1.bf16.msra.mxu0 %v956
  %3268 = vmatprep.subr.bf16.mxu0 0
  %3269 = vmatpush1.bf16.msra.mxu0 %v955
  %3270 = vmatprep.subr.bf16.mxu0 0
  %3271 = vmatpush1.bf16.msra.mxu0 %v954
  %3272 = vmatprep.subr.bf16.mxu0 0
  %3273 = vmatpush2.bf16.msra.mxu0 %v969
  %3274 = vmatprep.subr.bf16.mxu0 0
  %3275 = vmatpush2.bf16.msra.mxu0 %v968
  %3276 = vmatprep.subr.bf16.mxu0 0
  %3277 = vmatpush2.bf16.msra.mxu0 %v967
  %3278 = vmatprep.subr.bf16.mxu0 0
  %3279 = vmatpush2.bf16.msra.mxu0 %v966
  %3280 = vmatprep.subr.bf16.mxu0 0
  %3281 = vmatpush2.bf16.msra.mxu0 %v965
  %3282 = vmatprep.subr.bf16.mxu0 0
  %3283 = vmatpush2.bf16.msra.mxu0 %v964
  %3284 = vmatprep.subr.bf16.mxu0 0
  %3285 = vmatpush2.bf16.msra.mxu0 %v963
  %3286 = vmatprep.subr.bf16.mxu0 0
  %3287 = vmatpush2.bf16.msra.mxu0 %v962
  %3288 = vmatprep.mubr.bf16.mxu0 %v3240
  %3289 = vmatmul.mubr.bf16.gmra.mxu0 %v3226
  %v3290 = vpop.f32.mrf.mxu0
  %v3291 = vadd.f32 0.0, %v3290
  %v3292 = vpop.f32.mrf.mxu0
  %v3293 = vpop.f32.mrf.mxu0
  %v3294 = vpop.f32.mrf.mxu0
  %3295 = vdwg.mxu0
  %3296 = vmatprep.subr.bf16.mxu0 0
  %3297 = vmatpush1.bf16.msra.mxu0 %v977
  %3298 = vmatprep.subr.bf16.mxu0 0
  %3299 = vmatpush1.bf16.msra.mxu0 %v976
  %3300 = vmatprep.subr.bf16.mxu0 0
  %3301 = vmatpush1.bf16.msra.mxu0 %v975
  %3302 = vmatprep.subr.bf16.mxu0 0
  %3303 = vmatpush1.bf16.msra.mxu0 %v974
  %3304 = vmatprep.subr.bf16.mxu0 0
  %3305 = vmatpush1.bf16.msra.mxu0 %v973
  %3306 = vmatprep.subr.bf16.mxu0 0
  %3307 = vmatpush1.bf16.msra.mxu0 %v972
  %3308 = vmatprep.subr.bf16.mxu0 0
  %3309 = vmatpush1.bf16.msra.mxu0 %v971
  %3310 = vmatprep.subr.bf16.mxu0 0
  %3311 = vmatpush1.bf16.msra.mxu0 %v970
  %3312 = vmatprep.subr.bf16.mxu0 0
  %3313 = vmatpush2.bf16.msra.mxu0 %v985
  %3314 = vmatprep.subr.bf16.mxu0 0
  %3315 = vmatpush2.bf16.msra.mxu0 %v984
  %3316 = vmatprep.subr.bf16.mxu0 0
  %3317 = vmatpush2.bf16.msra.mxu0 %v983
  %3318 = vmatprep.subr.bf16.mxu0 0
  %3319 = vmatpush2.bf16.msra.mxu0 %v982
  %3320 = vmatprep.subr.bf16.mxu0 0
  %3321 = vmatpush2.bf16.msra.mxu0 %v981
  %3322 = vmatprep.subr.bf16.mxu0 0
  %3323 = vmatpush2.bf16.msra.mxu0 %v980
  %3324 = vmatprep.subr.bf16.mxu0 0
  %3325 = vmatpush2.bf16.msra.mxu0 %v979
  %3326 = vmatprep.subr.bf16.mxu0 0
  %3327 = vmatpush2.bf16.msra.mxu0 %v978
  %3328 = vmatprep.mubr.bf16.mxu0 %v3249
  %3329 = vmatmul.mubr.bf16.gmra.mxu0 %v3248
  %v3330 = vpop.f32.mrf.mxu0
  %v3331 = vadd.f32 %v3291, %v3330
  %v3332 = vpop.f32.mrf.mxu0
  %v3333 = vpop.f32.mrf.mxu0
  %v3334 = vpop.f32.mrf.mxu0
  %3335 = vdwg.mxu0
  %3336 = vmatprep.subr.bf16.mxu0 0
  %3337 = vmatpush1.bf16.msra.mxu0 %v993
  %3338 = vmatprep.subr.bf16.mxu0 0
  %3339 = vmatpush1.bf16.msra.mxu0 %v992
  %3340 = vmatprep.subr.bf16.mxu0 0
  %3341 = vmatpush1.bf16.msra.mxu0 %v991
  %3342 = vmatprep.subr.bf16.mxu0 0
  %3343 = vmatpush1.bf16.msra.mxu0 %v990
  %3344 = vmatprep.subr.bf16.mxu0 0
  %3345 = vmatpush1.bf16.msra.mxu0 %v989
  %3346 = vmatprep.subr.bf16.mxu0 0
  %3347 = vmatpush1.bf16.msra.mxu0 %v988
  %3348 = vmatprep.subr.bf16.mxu0 0
  %3349 = vmatpush1.bf16.msra.mxu0 %v987
  %3350 = vmatprep.subr.bf16.mxu0 0
  %3351 = vmatpush1.bf16.msra.mxu0 %v986
  %3352 = vmatprep.subr.bf16.mxu0 0
  %3353 = vmatpush2.bf16.msra.mxu0 %v1001
  %3354 = vmatprep.subr.bf16.mxu0 0
  %3355 = vmatpush2.bf16.msra.mxu0 %v1000
  %3356 = vmatprep.subr.bf16.mxu0 0
  %3357 = vmatpush2.bf16.msra.mxu0 %v999
  %3358 = vmatprep.subr.bf16.mxu0 0
  %3359 = vmatpush2.bf16.msra.mxu0 %v998
  %3360 = vmatprep.subr.bf16.mxu0 0
  %3361 = vmatpush2.bf16.msra.mxu0 %v997
  %3362 = vmatprep.subr.bf16.mxu0 0
  %3363 = vmatpush2.bf16.msra.mxu0 %v996
  %3364 = vmatprep.subr.bf16.mxu0 0
  %3365 = vmatpush2.bf16.msra.mxu0 %v995
  %3366 = vmatprep.subr.bf16.mxu0 0
  %3367 = vmatpush2.bf16.msra.mxu0 %v994
  %3368 = vmatprep.mubr.bf16.mxu0 %v3247
  %3369 = vmatmul.mubr.bf16.gmra.mxu0 %v3233
  %v3370 = vpop.f32.mrf.mxu0
  %v3371 = vadd.f32 %v3331, %v3370
  %v3372 = vpop.f32.mrf.mxu0
  %v3373 = vpop.f32.mrf.mxu0
  %v3374 = vpop.f32.mrf.mxu0
  %3375 = vdwg.mxu0
  %v3376 = vadd.f32 %v3196, %v1174
  %v3377 = vadd.f32 %v3371, %v1178
  %v3380 = vcombine.low %v3376, %v3377
  %v3382 = vunpack.c.l.s4 1983009808
  %v3383 = vunpack.c.0.s8 %v3382
  %v3384 = vlaneseq
  %v3385 = vshrl.u32 %v3384, 7
  %v3386 = vsub.s32 %v3383, %v3385
  %v3387 = vrot.slane %v3380, %v3386
  %s3389 = scalar_lea.vmem [#allocation2], 24
  %3390 = vst [vmem:[%s3389] sm:$0xf] %v3387
  %v3391 = vld [vmem:[%s706] sm:$0x3f]
  %v3393 = vcombine.high %v3391, %v3391
  %v3395 = vunpack.c.l.s4 1966171168
  %v3396 = vunpack.c.0.s8 %v3395
  %v3397 = vlaneseq
  %v3398 = vshrl.u32 %v3397, 7
  %v3399 = vsub.s32 %v3396, %v3398
  %v3400 = vrot.slane %v3391, %v3399
  %v3402 = vunpack.c.l.s4 1966171168
  %v3403 = vunpack.c.0.s8 %v3402
  %v3404 = vlaneseq
  %v3405 = vshrl.u32 %v3404, 7
  %v3406 = vsub.s32 %v3403, %v3405
  %v3407 = vrot.slane %v3393, %v3406
  %v3408 = vcombine.high %v3400, %v3400
  %v3409 = vcombine.high %v3407, %v3407
  %v3411 = vunpack.c.l.s4 1966171168
  %v3412 = vunpack.c.0.s8 %v3411
  %v3413 = vlaneseq
  %v3414 = vshrl.u32 %v3413, 7
  %v3415 = vsub.s32 %v3412, %v3414
  %v3416 = vrot.slane %v3400, %v3415
  %v3418 = vunpack.c.l.s4 1966171168
  %v3419 = vunpack.c.0.s8 %v3418
  %v3420 = vlaneseq
  %v3421 = vshrl.u32 %v3420, 7
  %v3422 = vsub.s32 %v3419, %v3421
  %v3423 = vrot.slane %v3407, %v3422
  %v3425 = vunpack.c.l.s4 1966171168
  %v3426 = vunpack.c.0.s8 %v3425
  %v3427 = vlaneseq
  %v3428 = vshrl.u32 %v3427, 7
  %v3429 = vsub.s32 %v3426, %v3428
  %v3430 = vrot.slane %v3408, %v3429
  %v3432 = vunpack.c.l.s4 1966171168
  %v3433 = vunpack.c.0.s8 %v3432
  %v3434 = vlaneseq
  %v3435 = vshrl.u32 %v3434, 7
  %v3436 = vsub.s32 %v3433, %v3435
  %v3437 = vrot.slane %v3409, %v3436
  %v3438 = vcombine.high %v3416, %v3416
  %v3439 = vcombine.high %v3430, %v3430
  %3446 = vmatprep.subr.bf16.mxu0 0
  %3447 = vmatpush1.bf16.msra.mxu0 %v497
  %3448 = vmatprep.subr.bf16.mxu0 0
  %3449 = vmatpush1.bf16.msra.mxu0 %v496
  %3450 = vmatprep.subr.bf16.mxu0 0
  %3451 = vmatpush1.bf16.msra.mxu0 %v495
  %3452 = vmatprep.subr.bf16.mxu0 0
  %3453 = vmatpush1.bf16.msra.mxu0 %v494
  %3454 = vmatprep.subr.bf16.mxu0 0
  %3455 = vmatpush1.bf16.msra.mxu0 %v493
  %3456 = vmatprep.subr.bf16.mxu0 0
  %3457 = vmatpush1.bf16.msra.mxu0 %v492
  %3458 = vmatprep.subr.bf16.mxu0 0
  %3459 = vmatpush1.bf16.msra.mxu0 %v491
  %3460 = vmatprep.subr.bf16.mxu0 0
  %3461 = vmatpush1.bf16.msra.mxu0 %v490
  %3462 = vmatprep.subr.bf16.mxu0 0
  %3463 = vmatpush2.bf16.msra.mxu0 %v505
  %3464 = vmatprep.subr.bf16.mxu0 0
  %3465 = vmatpush2.bf16.msra.mxu0 %v504
  %3466 = vmatprep.subr.bf16.mxu0 0
  %3467 = vmatpush2.bf16.msra.mxu0 %v503
  %3468 = vmatprep.subr.bf16.mxu0 0
  %3469 = vmatpush2.bf16.msra.mxu0 %v502
  %3470 = vmatprep.subr.bf16.mxu0 0
  %3471 = vmatpush2.bf16.msra.mxu0 %v501
  %3472 = vmatprep.subr.bf16.mxu0 0
  %3473 = vmatpush2.bf16.msra.mxu0 %v500
  %3474 = vmatprep.subr.bf16.mxu0 0
  %3475 = vmatpush2.bf16.msra.mxu0 %v499
  %3476 = vmatprep.subr.bf16.mxu0 0
  %3477 = vmatpush2.bf16.msra.mxu0 %v498
  %3478 = vmatprep.mubr.bf16.mxu0 %v3430
  %3479 = vmatmul.mubr.bf16.gmra.mxu0 %v3416
  %v3480 = vpop.f32.mrf.mxu0
  %v3481 = vadd.f32 0.0, %v3480
  %v3482 = vpop.f32.mrf.mxu0
  %v3483 = vpop.f32.mrf.mxu0
  %v3484 = vpop.f32.mrf.mxu0
  %3485 = vdwg.mxu0
  %3486 = vmatprep.subr.bf16.mxu0 0
  %3487 = vmatpush1.bf16.msra.mxu0 %v513
  %3488 = vmatprep.subr.bf16.mxu0 0
  %3489 = vmatpush1.bf16.msra.mxu0 %v512
  %3490 = vmatprep.subr.bf16.mxu0 0
  %3491 = vmatpush1.bf16.msra.mxu0 %v511
  %3492 = vmatprep.subr.bf16.mxu0 0
  %3493 = vmatpush1.bf16.msra.mxu0 %v510
  %3494 = vmatprep.subr.bf16.mxu0 0
  %3495 = vmatpush1.bf16.msra.mxu0 %v509
  %3496 = vmatprep.subr.bf16.mxu0 0
  %3497 = vmatpush1.bf16.msra.mxu0 %v508
  %3498 = vmatprep.subr.bf16.mxu0 0
  %3499 = vmatpush1.bf16.msra.mxu0 %v507
  %3500 = vmatprep.subr.bf16.mxu0 0
  %3501 = vmatpush1.bf16.msra.mxu0 %v506
  %3502 = vmatprep.subr.bf16.mxu0 0
  %3503 = vmatpush2.bf16.msra.mxu0 %v521
  %3504 = vmatprep.subr.bf16.mxu0 0
  %3505 = vmatpush2.bf16.msra.mxu0 %v520
  %3506 = vmatprep.subr.bf16.mxu0 0
  %3507 = vmatpush2.bf16.msra.mxu0 %v519
  %3508 = vmatprep.subr.bf16.mxu0 0
  %3509 = vmatpush2.bf16.msra.mxu0 %v518
  %3510 = vmatprep.subr.bf16.mxu0 0
  %3511 = vmatpush2.bf16.msra.mxu0 %v517
  %3512 = vmatprep.subr.bf16.mxu0 0
  %3513 = vmatpush2.bf16.msra.mxu0 %v516
  %3514 = vmatprep.subr.bf16.mxu0 0
  %3515 = vmatpush2.bf16.msra.mxu0 %v515
  %3516 = vmatprep.subr.bf16.mxu0 0
  %3517 = vmatpush2.bf16.msra.mxu0 %v514
  %3518 = vmatprep.mubr.bf16.mxu0 %v3439
  %3519 = vmatmul.mubr.bf16.gmra.mxu0 %v3438
  %v3520 = vpop.f32.mrf.mxu0
  %v3521 = vadd.f32 %v3481, %v3520
  %v3522 = vpop.f32.mrf.mxu0
  %v3523 = vpop.f32.mrf.mxu0
  %v3524 = vpop.f32.mrf.mxu0
  %3525 = vdwg.mxu0
  %3526 = vmatprep.subr.bf16.mxu0 0
  %3527 = vmatpush1.bf16.msra.mxu0 %v529
  %3528 = vmatprep.subr.bf16.mxu0 0
  %3529 = vmatpush1.bf16.msra.mxu0 %v528
  %3530 = vmatprep.subr.bf16.mxu0 0
  %3531 = vmatpush1.bf16.msra.mxu0 %v527
  %3532 = vmatprep.subr.bf16.mxu0 0
  %3533 = vmatpush1.bf16.msra.mxu0 %v526
  %3534 = vmatprep.subr.bf16.mxu0 0
  %3535 = vmatpush1.bf16.msra.mxu0 %v525
  %3536 = vmatprep.subr.bf16.mxu0 0
  %3537 = vmatpush1.bf16.msra.mxu0 %v524
  %3538 = vmatprep.subr.bf16.mxu0 0
  %3539 = vmatpush1.bf16.msra.mxu0 %v523
  %3540 = vmatprep.subr.bf16.mxu0 0
  %3541 = vmatpush1.bf16.msra.mxu0 %v522
  %3542 = vmatprep.subr.bf16.mxu0 0
  %3543 = vmatpush2.bf16.msra.mxu0 %v537
  %3544 = vmatprep.subr.bf16.mxu0 0
  %3545 = vmatpush2.bf16.msra.mxu0 %v536
  %3546 = vmatprep.subr.bf16.mxu0 0
  %3547 = vmatpush2.bf16.msra.mxu0 %v535
  %3548 = vmatprep.subr.bf16.mxu0 0
  %3549 = vmatpush2.bf16.msra.mxu0 %v534
  %3550 = vmatprep.subr.bf16.mxu0 0
  %3551 = vmatpush2.bf16.msra.mxu0 %v533
  %3552 = vmatprep.subr.bf16.mxu0 0
  %3553 = vmatpush2.bf16.msra.mxu0 %v532
  %3554 = vmatprep.subr.bf16.mxu0 0
  %3555 = vmatpush2.bf16.msra.mxu0 %v531
  %3556 = vmatprep.subr.bf16.mxu0 0
  %3557 = vmatpush2.bf16.msra.mxu0 %v530
  %3558 = vmatprep.mubr.bf16.mxu0 %v3437
  %3559 = vmatmul.mubr.bf16.gmra.mxu0 %v3423
  %v3560 = vpop.f32.mrf.mxu0
  %v3561 = vadd.f32 %v3521, %v3560
  %v3562 = vpop.f32.mrf.mxu0
  %v3563 = vpop.f32.mrf.mxu0
  %v3564 = vpop.f32.mrf.mxu0
  %3565 = vdwg.mxu0
  %v3566 = vld [vmem:[%s0] sm:$0x3f]
  %v3568 = vcombine.high %v3566, %v3566
  %v3570 = vunpack.c.l.s4 1966171168
  %v3571 = vunpack.c.0.s8 %v3570
  %v3572 = vlaneseq
  %v3573 = vshrl.u32 %v3572, 7
  %v3574 = vsub.s32 %v3571, %v3573
  %v3575 = vrot.slane %v3566, %v3574
  %v3577 = vunpack.c.l.s4 1966171168
  %v3578 = vunpack.c.0.s8 %v3577
  %v3579 = vlaneseq
  %v3580 = vshrl.u32 %v3579, 7
  %v3581 = vsub.s32 %v3578, %v3580
  %v3582 = vrot.slane %v3568, %v3581
  %v3583 = vcombine.high %v3575, %v3575
  %v3584 = vcombine.high %v3582, %v3582
  %v3586 = vunpack.c.l.s4 1966171168
  %v3587 = vunpack.c.0.s8 %v3586
  %v3588 = vlaneseq
  %v3589 = vshrl.u32 %v3588, 7
  %v3590 = vsub.s32 %v3587, %v3589
  %v3591 = vrot.slane %v3575, %v3590
  %v3593 = vunpack.c.l.s4 1966171168
  %v3594 = vunpack.c.0.s8 %v3593
  %v3595 = vlaneseq
  %v3596 = vshrl.u32 %v3595, 7
  %v3597 = vsub.s32 %v3594, %v3596
  %v3598 = vrot.slane %v3582, %v3597
  %v3600 = vunpack.c.l.s4 1966171168
  %v3601 = vunpack.c.0.s8 %v3600
  %v3602 = vlaneseq
  %v3603 = vshrl.u32 %v3602, 7
  %v3604 = vsub.s32 %v3601, %v3603
  %v3605 = vrot.slane %v3583, %v3604
  %v3607 = vunpack.c.l.s4 1966171168
  %v3608 = vunpack.c.0.s8 %v3607
  %v3609 = vlaneseq
  %v3610 = vshrl.u32 %v3609, 7
  %v3611 = vsub.s32 %v3608, %v3610
  %v3612 = vrot.slane %v3584, %v3611
  %v3613 = vcombine.high %v3591, %v3591
  %v3614 = vcombine.high %v3605, %v3605
  %3621 = vmatprep.subr.bf16.mxu0 0
  %3622 = vmatpush1.bf16.msra.mxu0 %v961
  %3623 = vmatprep.subr.bf16.mxu0 0
  %3624 = vmatpush1.bf16.msra.mxu0 %v960
  %3625 = vmatprep.subr.bf16.mxu0 0
  %3626 = vmatpush1.bf16.msra.mxu0 %v959
  %3627 = vmatprep.subr.bf16.mxu0 0
  %3628 = vmatpush1.bf16.msra.mxu0 %v958
  %3629 = vmatprep.subr.bf16.mxu0 0
  %3630 = vmatpush1.bf16.msra.mxu0 %v957
  %3631 = vmatprep.subr.bf16.mxu0 0
  %3632 = vmatpush1.bf16.msra.mxu0 %v956
  %3633 = vmatprep.subr.bf16.mxu0 0
  %3634 = vmatpush1.bf16.msra.mxu0 %v955
  %3635 = vmatprep.subr.bf16.mxu0 0
  %3636 = vmatpush1.bf16.msra.mxu0 %v954
  %3637 = vmatprep.subr.bf16.mxu0 0
  %3638 = vmatpush2.bf16.msra.mxu0 %v969
  %3639 = vmatprep.subr.bf16.mxu0 0
  %3640 = vmatpush2.bf16.msra.mxu0 %v968
  %3641 = vmatprep.subr.bf16.mxu0 0
  %3642 = vmatpush2.bf16.msra.mxu0 %v967
  %3643 = vmatprep.subr.bf16.mxu0 0
  %3644 = vmatpush2.bf16.msra.mxu0 %v966
  %3645 = vmatprep.subr.bf16.mxu0 0
  %3646 = vmatpush2.bf16.msra.mxu0 %v965
  %3647 = vmatprep.subr.bf16.mxu0 0
  %3648 = vmatpush2.bf16.msra.mxu0 %v964
  %3649 = vmatprep.subr.bf16.mxu0 0
  %3650 = vmatpush2.bf16.msra.mxu0 %v963
  %3651 = vmatprep.subr.bf16.mxu0 0
  %3652 = vmatpush2.bf16.msra.mxu0 %v962
  %3653 = vmatprep.mubr.bf16.mxu0 %v3605
  %3654 = vmatmul.mubr.bf16.gmra.mxu0 %v3591
  %v3655 = vpop.f32.mrf.mxu0
  %v3656 = vadd.f32 0.0, %v3655
  %v3657 = vpop.f32.mrf.mxu0
  %v3658 = vpop.f32.mrf.mxu0
  %v3659 = vpop.f32.mrf.mxu0
  %3660 = vdwg.mxu0
  %3661 = vmatprep.subr.bf16.mxu0 0
  %3662 = vmatpush1.bf16.msra.mxu0 %v977
  %3663 = vmatprep.subr.bf16.mxu0 0
  %3664 = vmatpush1.bf16.msra.mxu0 %v976
  %3665 = vmatprep.subr.bf16.mxu0 0
  %3666 = vmatpush1.bf16.msra.mxu0 %v975
  %3667 = vmatprep.subr.bf16.mxu0 0
  %3668 = vmatpush1.bf16.msra.mxu0 %v974
  %3669 = vmatprep.subr.bf16.mxu0 0
  %3670 = vmatpush1.bf16.msra.mxu0 %v973
  %3671 = vmatprep.subr.bf16.mxu0 0
  %3672 = vmatpush1.bf16.msra.mxu0 %v972
  %3673 = vmatprep.subr.bf16.mxu0 0
  %3674 = vmatpush1.bf16.msra.mxu0 %v971
  %3675 = vmatprep.subr.bf16.mxu0 0
  %3676 = vmatpush1.bf16.msra.mxu0 %v970
  %3677 = vmatprep.subr.bf16.mxu0 0
  %3678 = vmatpush2.bf16.msra.mxu0 %v985
  %3679 = vmatprep.subr.bf16.mxu0 0
  %3680 = vmatpush2.bf16.msra.mxu0 %v984
  %3681 = vmatprep.subr.bf16.mxu0 0
  %3682 = vmatpush2.bf16.msra.mxu0 %v983
  %3683 = vmatprep.subr.bf16.mxu0 0
  %3684 = vmatpush2.bf16.msra.mxu0 %v982
  %3685 = vmatprep.subr.bf16.mxu0 0
  %3686 = vmatpush2.bf16.msra.mxu0 %v981
  %3687 = vmatprep.subr.bf16.mxu0 0
  %3688 = vmatpush2.bf16.msra.mxu0 %v980
  %3689 = vmatprep.subr.bf16.mxu0 0
  %3690 = vmatpush2.bf16.msra.mxu0 %v979
  %3691 = vmatprep.subr.bf16.mxu0 0
  %3692 = vmatpush2.bf16.msra.mxu0 %v978
  %3693 = vmatprep.mubr.bf16.mxu0 %v3614
  %3694 = vmatmul.mubr.bf16.gmra.mxu0 %v3613
  %v3695 = vpop.f32.mrf.mxu0
  %v3696 = vadd.f32 %v3656, %v3695
  %v3697 = vpop.f32.mrf.mxu0
  %v3698 = vpop.f32.mrf.mxu0
  %v3699 = vpop.f32.mrf.mxu0
  %3700 = vdwg.mxu0
  %3701 = vmatprep.subr.bf16.mxu0 0
  %3702 = vmatpush1.bf16.msra.mxu0 %v993
  %3703 = vmatprep.subr.bf16.mxu0 0
  %3704 = vmatpush1.bf16.msra.mxu0 %v992
  %3705 = vmatprep.subr.bf16.mxu0 0
  %3706 = vmatpush1.bf16.msra.mxu0 %v991
  %3707 = vmatprep.subr.bf16.mxu0 0
  %3708 = vmatpush1.bf16.msra.mxu0 %v990
  %3709 = vmatprep.subr.bf16.mxu0 0
  %3710 = vmatpush1.bf16.msra.mxu0 %v989
  %3711 = vmatprep.subr.bf16.mxu0 0
  %3712 = vmatpush1.bf16.msra.mxu0 %v988
  %3713 = vmatprep.subr.bf16.mxu0 0
  %3714 = vmatpush1.bf16.msra.mxu0 %v987
  %3715 = vmatprep.subr.bf16.mxu0 0
  %3716 = vmatpush1.bf16.msra.mxu0 %v986
  %3717 = vmatprep.subr.bf16.mxu0 0
  %3718 = vmatpush2.bf16.msra.mxu0 %v1001
  %3719 = vmatprep.subr.bf16.mxu0 0
  %3720 = vmatpush2.bf16.msra.mxu0 %v1000
  %3721 = vmatprep.subr.bf16.mxu0 0
  %3722 = vmatpush2.bf16.msra.mxu0 %v999
  %3723 = vmatprep.subr.bf16.mxu0 0
  %3724 = vmatpush2.bf16.msra.mxu0 %v998
  %3725 = vmatprep.subr.bf16.mxu0 0
  %3726 = vmatpush2.bf16.msra.mxu0 %v997
  %3727 = vmatprep.subr.bf16.mxu0 0
  %3728 = vmatpush2.bf16.msra.mxu0 %v996
  %3729 = vmatprep.subr.bf16.mxu0 0
  %3730 = vmatpush2.bf16.msra.mxu0 %v995
  %3731 = vmatprep.subr.bf16.mxu0 0
  %3732 = vmatpush2.bf16.msra.mxu0 %v994
  %3733 = vmatprep.mubr.bf16.mxu0 %v3612
  %3734 = vmatmul.mubr.bf16.gmra.mxu0 %v3598
  %v3735 = vpop.f32.mrf.mxu0
  %v3736 = vadd.f32 %v3696, %v3735
  %v3737 = vpop.f32.mrf.mxu0
  %v3738 = vpop.f32.mrf.mxu0
  %v3739 = vpop.f32.mrf.mxu0
  %3740 = vdwg.mxu0
  %v3741 = vadd.f32 %v3561, %v1174
  %v3742 = vadd.f32 %v3736, %v1178
  %v3745 = vcombine.low %v3741, %v3742
  %v3747 = vunpack.c.l.s4 1983009808
  %v3748 = vunpack.c.0.s8 %v3747
  %v3749 = vlaneseq
  %v3750 = vshrl.u32 %v3749, 7
  %v3751 = vsub.s32 %v3748, %v3750
  %v3752 = vrot.slane %v3745, %v3751
  %s3754 = scalar_lea.vmem [#allocation2], 28
  %3755 = vst [vmem:[%s3754] sm:$0xf] %v3752
  %3756 = vst [vmem:[#allocation3] sm:$0xf] 0.0
  %v3757 = vld [vmem:[#allocation3] sm:$0xf]
  %v3760 = vunpack.c.l.s4 1983009808
  %v3761 = vunpack.c.0.s8 %v3760
  %v3762 = vlaneseq
  %v3763 = vshrl.u32 %v3762, 7
  %v3764 = vsub.s32 %v3761, %v3763
  %v3765 = vrot.slane %v3757, %v3764
  %v3766 = vcombine.high %v3765, %v3765
  %v3769 = vpack.c.bf16 %v3765, %v3765
  %v3770 = vpack.c.bf16 %v3766, %v3766
  %v3803 = vunpack.c.l.b16 %v19
  %v3804 = vunpack.c.h.b16 %v19
  %v3805 = vunpack.c.l.b16 %v20
  %v3806 = vunpack.c.h.b16 %v20
  %v3807 = vunpack.c.l.b16 %v21
  %v3808 = vunpack.c.h.b16 %v21
  %v3809 = vunpack.c.l.b16 %v22
  %v3810 = vunpack.c.h.b16 %v22
  %v3811 = vunpack.c.l.b16 %v23
  %v3812 = vunpack.c.h.b16 %v23
  %v3813 = vunpack.c.l.b16 %v24
  %v3814 = vunpack.c.h.b16 %v24
  %v3815 = vunpack.c.l.b16 %v25
  %v3816 = vunpack.c.h.b16 %v25
  %v3817 = vunpack.c.l.b16 %v26
  %v3818 = vunpack.c.h.b16 %v26
  %v3819 = vunpack.c.l.b16 %v27
  %v3820 = vunpack.c.h.b16 %v27
  %v3821 = vunpack.c.l.b16 %v28
  %v3822 = vunpack.c.h.b16 %v28
  %v3823 = vunpack.c.l.b16 %v29
  %v3824 = vunpack.c.h.b16 %v29
  %v3825 = vunpack.c.l.b16 %v30
  %v3826 = vunpack.c.h.b16 %v30
  %v3827 = vunpack.c.l.b16 %v31
  %v3828 = vunpack.c.h.b16 %v31
  %v3829 = vunpack.c.l.b16 %v32
  %v3830 = vunpack.c.h.b16 %v32
  %v3831 = vunpack.c.l.b16 %v33
  %v3832 = vunpack.c.h.b16 %v33
  %v3833 = vunpack.c.l.b16 %v34
  %v3834 = vunpack.c.h.b16 %v34
  %v3835 = vunpack.c.l.b16 %v35
  %v3836 = vunpack.c.h.b16 %v35
  %v3837 = vunpack.c.l.b16 %v36
  %v3838 = vunpack.c.h.b16 %v36
  %v3839 = vunpack.c.l.b16 %v37
  %v3840 = vunpack.c.h.b16 %v37
  %v3841 = vunpack.c.l.b16 %v38
  %v3842 = vunpack.c.h.b16 %v38
  %v3843 = vunpack.c.l.b16 %v39
  %v3844 = vunpack.c.h.b16 %v39
  %v3845 = vunpack.c.l.b16 %v40
  %v3846 = vunpack.c.h.b16 %v40
  %v3847 = vunpack.c.l.b16 %v41
  %v3848 = vunpack.c.h.b16 %v41
  %v3849 = vunpack.c.l.b16 %v42
  %v3850 = vunpack.c.h.b16 %v42
  %v3851 = vunpack.c.l.b16 %v43
  %v3852 = vunpack.c.h.b16 %v43
  %v3853 = vunpack.c.l.b16 %v44
  %v3854 = vunpack.c.h.b16 %v44
  %v3855 = vunpack.c.l.b16 %v45
  %v3856 = vunpack.c.h.b16 %v45
  %v3857 = vunpack.c.l.b16 %v46
  %v3858 = vunpack.c.h.b16 %v46
  %v3859 = vunpack.c.l.b16 %v47
  %v3860 = vunpack.c.h.b16 %v47
  %v3861 = vunpack.c.l.b16 %v48
  %v3862 = vunpack.c.h.b16 %v48
  %v3863 = vunpack.c.l.b16 %v49
  %v3864 = vunpack.c.h.b16 %v49
  %v3865 = vunpack.c.l.b16 %v50
  %v3866 = vunpack.c.h.b16 %v50
  %v3867 = vpack.c.b16 %v3805, %v3803
  %v3868 = vpack.c.b16 %v3806, %v3804
  %v3869 = vpack.c.b16 %v3809, %v3807
  %v3870 = vpack.c.b16 %v3810, %v3808
  %v3871 = vpack.c.b16 %v3813, %v3811
  %v3872 = vpack.c.b16 %v3814, %v3812
  %v3873 = vpack.c.b16 %v3817, %v3815
  %v3874 = vpack.c.b16 %v3818, %v3816
  %v3875 = vpack.c.b16 %v3821, %v3819
  %v3876 = vpack.c.b16 %v3822, %v3820
  %v3877 = vpack.c.b16 %v3825, %v3823
  %v3878 = vpack.c.b16 %v3826, %v3824
  %v3879 = vpack.c.b16 %v3829, %v3827
  %v3880 = vpack.c.b16 %v3830, %v3828
  %v3881 = vpack.c.b16 %v3833, %v3831
  %v3882 = vpack.c.b16 %v3834, %v3832
  %v3883 = vpack.c.b16 %v3837, %v3835
  %v3884 = vpack.c.b16 %v3838, %v3836
  %v3885 = vpack.c.b16 %v3841, %v3839
  %v3886 = vpack.c.b16 %v3842, %v3840
  %v3887 = vpack.c.b16 %v3845, %v3843
  %v3888 = vpack.c.b16 %v3846, %v3844
  %v3889 = vpack.c.b16 %v3849, %v3847
  %v3890 = vpack.c.b16 %v3850, %v3848
  %v3891 = vpack.c.b16 %v3853, %v3851
  %v3892 = vpack.c.b16 %v3854, %v3852
  %v3893 = vpack.c.b16 %v3857, %v3855
  %v3894 = vpack.c.b16 %v3858, %v3856
  %v3895 = vpack.c.b16 %v3861, %v3859
  %v3896 = vpack.c.b16 %v3862, %v3860
  %v3897 = vpack.c.b16 %v3865, %v3863
  %v3898 = vpack.c.b16 %v3866, %v3864
  %3931 = vmatprep.subr.bf16.mxu0 %v3882
  %3932 = vmatpush1.bf16.msra.mxu0 %v3881
  %3933 = vmatprep.subr.bf16.mxu0 %v3880
  %3934 = vmatpush1.bf16.msra.mxu0 %v3879
  %3935 = vmatprep.subr.bf16.mxu0 %v3878
  %3936 = vmatpush1.bf16.msra.mxu0 %v3877
  %3937 = vmatprep.subr.bf16.mxu0 %v3876
  %3938 = vmatpush1.bf16.msra.mxu0 %v3875
  %3939 = vmatprep.subr.bf16.mxu0 %v3874
  %3940 = vmatpush1.bf16.msra.mxu0 %v3873
  %3941 = vmatprep.subr.bf16.mxu0 %v3872
  %3942 = vmatpush1.bf16.msra.mxu0 %v3871
  %3943 = vmatprep.subr.bf16.mxu0 %v3870
  %3944 = vmatpush1.bf16.msra.mxu0 %v3869
  %3945 = vmatprep.subr.bf16.mxu0 %v3868
  %3946 = vmatpush1.bf16.msra.mxu0 %v3867
  %3947 = vmatprep.subr.bf16.mxu0 %v3898
  %3948 = vmatpush2.bf16.msra.mxu0 %v3897
  %3949 = vmatprep.subr.bf16.mxu0 %v3896
  %3950 = vmatpush2.bf16.msra.mxu0 %v3895
  %3951 = vmatprep.subr.bf16.mxu0 %v3894
  %3952 = vmatpush2.bf16.msra.mxu0 %v3893
  %3953 = vmatprep.subr.bf16.mxu0 %v3892
  %3954 = vmatpush2.bf16.msra.mxu0 %v3891
  %3955 = vmatprep.subr.bf16.mxu0 %v3890
  %3956 = vmatpush2.bf16.msra.mxu0 %v3889
  %3957 = vmatprep.subr.bf16.mxu0 %v3888
  %3958 = vmatpush2.bf16.msra.mxu0 %v3887
  %3959 = vmatprep.subr.bf16.mxu0 %v3886
  %3960 = vmatpush2.bf16.msra.mxu0 %v3885
  %3961 = vmatprep.subr.bf16.mxu0 %v3884
  %3962 = vmatpush2.bf16.msra.mxu0 %v3883
  %3963 = vmatprep.mubr.bf16.mxu0 %v3770
  %3964 = vmatmul.mubr.bf16.gmra.mxu0 %v3769
  %v3965 = vpop.f32.mrf.mxu0
  %v3966 = vadd.f32 0.0, %v3965
  %v3967 = vpop.f32.mrf.mxu0
  %v3968 = vadd.f32 0.0, %v3967
  %v3969 = vpop.f32.mrf.mxu0
  %v3970 = vpop.f32.mrf.mxu0
  %3971 = vdwg.mxu0
  %v3972 = vld [vmem:[#allocation2] sm:$0xf]
  %v3975 = vcombine.low %v3966, %v3968
  %v3977 = vunpack.c.l.s4 1983009808
  %v3978 = vunpack.c.0.s8 %v3977
  %v3979 = vlaneseq
  %v3980 = vshrl.u32 %v3979, 7
  %v3981 = vsub.s32 %v3978, %v3980
  %v3982 = vrot.slane %v3975, %v3981
  %v3984 = vadd.f32 %v3972, %v3982
  %v3985 = vtanh.pop %v3984
  %3986 = vst [vmem:[#allocation3] sm:$0xf] %v3985
  %v3987 = vpack.c.bf16 %v3985, %v3985
  %3988 = vst [vmem:[%s4] sm:$0x1] %v3987
  %v3991 = vunpack.c.l.s4 1983009808
  %v3992 = vunpack.c.0.s8 %v3991
  %v3993 = vlaneseq
  %v3994 = vshrl.u32 %v3993, 7
  %v3995 = vsub.s32 %v3992, %v3994
  %v3996 = vrot.slane %v3985, %v3995
  %v3997 = vcombine.high %v3996, %v3996
  %v3999 = vpack.c.bf16 %v3997, %v3997
  %s4000 = scalar_lea.vmem %s4, 14
  %4001 = vst [vmem:[%s4000 + $0x1] sm:$0x1] %v3999
  %v4002 = vld [vmem:[#allocation3] sm:$0xf]
  %v4005 = vunpack.c.l.s4 1983009808
  %v4006 = vunpack.c.0.s8 %v4005
  %v4007 = vlaneseq
  %v4008 = vshrl.u32 %v4007, 7
  %v4009 = vsub.s32 %v4006, %v4008
  %v4010 = vrot.slane %v4002, %v4009
  %v4011 = vcombine.high %v4010, %v4010
  %v4014 = vpack.c.bf16 %v4010, %v4010
  %v4015 = vpack.c.bf16 %v4011, %v4011
  %4016 = vmatprep.subr.bf16.mxu0 %v3882
  %4017 = vmatpush1.bf16.msra.mxu0 %v3881
  %4018 = vmatprep.subr.bf16.mxu0 %v3880
  %4019 = vmatpush1.bf16.msra.mxu0 %v3879
  %4020 = vmatprep.subr.bf16.mxu0 %v3878
  %4021 = vmatpush1.bf16.msra.mxu0 %v3877
  %4022 = vmatprep.subr.bf16.mxu0 %v3876
  %4023 = vmatpush1.bf16.msra.mxu0 %v3875
  %4024 = vmatprep.subr.bf16.mxu0 %v3874
  %4025 = vmatpush1.bf16.msra.mxu0 %v3873
  %4026 = vmatprep.subr.bf16.mxu0 %v3872
  %4027 = vmatpush1.bf16.msra.mxu0 %v3871
  %4028 = vmatprep.subr.bf16.mxu0 %v3870
  %4029 = vmatpush1.bf16.msra.mxu0 %v3869
  %4030 = vmatprep.subr.bf16.mxu0 %v3868
  %4031 = vmatpush1.bf16.msra.mxu0 %v3867
  %4032 = vmatprep.subr.bf16.mxu0 %v3898
  %4033 = vmatpush2.bf16.msra.mxu0 %v3897
  %4034 = vmatprep.subr.bf16.mxu0 %v3896
  %4035 = vmatpush2.bf16.msra.mxu0 %v3895
  %4036 = vmatprep.subr.bf16.mxu0 %v3894
  %4037 = vmatpush2.bf16.msra.mxu0 %v3893
  %4038 = vmatprep.subr.bf16.mxu0 %v3892
  %4039 = vmatpush2.bf16.msra.mxu0 %v3891
  %4040 = vmatprep.subr.bf16.mxu0 %v3890
  %4041 = vmatpush2.bf16.msra.mxu0 %v3889
  %4042 = vmatprep.subr.bf16.mxu0 %v3888
  %4043 = vmatpush2.bf16.msra.mxu0 %v3887
  %4044 = vmatprep.subr.bf16.mxu0 %v3886
  %4045 = vmatpush2.bf16.msra.mxu0 %v3885
  %4046 = vmatprep.subr.bf16.mxu0 %v3884
  %4047 = vmatpush2.bf16.msra.mxu0 %v3883
  %4048 = vmatprep.mubr.bf16.mxu0 %v4015
  %4049 = vmatmul.mubr.bf16.gmra.mxu0 %v4014
  %v4050 = vpop.f32.mrf.mxu0
  %v4051 = vadd.f32 0.0, %v4050
  %v4052 = vpop.f32.mrf.mxu0
  %v4053 = vadd.f32 0.0, %v4052
  %v4054 = vpop.f32.mrf.mxu0
  %v4055 = vpop.f32.mrf.mxu0
  %4056 = vdwg.mxu0
  %v4057 = vld [vmem:[%s1560] sm:$0xf]
  %v4060 = vcombine.low %v4051, %v4053
  %v4062 = vunpack.c.l.s4 1983009808
  %v4063 = vunpack.c.0.s8 %v4062
  %v4064 = vlaneseq
  %v4065 = vshrl.u32 %v4064, 7
  %v4066 = vsub.s32 %v4063, %v4065
  %v4067 = vrot.slane %v4060, %v4066
  %v4069 = vadd.f32 %v4057, %v4067
  %v4070 = vtanh.pop %v4069
  %4071 = vst [vmem:[#allocation3] sm:$0xf] %v4070
  %v4072 = vpack.c.bf16 %v4070, %v4070
  %s4073 = scalar_lea.vmem %s4, 2
  %4074 = vst [vmem:[%s4073] sm:$0x1] %v4072
  %v4077 = vunpack.c.l.s4 1983009808
  %v4078 = vunpack.c.0.s8 %v4077
  %v4079 = vlaneseq
  %v4080 = vshrl.u32 %v4079, 7
  %v4081 = vsub.s32 %v4078, %v4080
  %v4082 = vrot.slane %v4070, %v4081
  %v4083 = vcombine.high %v4082, %v4082
  %v4085 = vpack.c.bf16 %v4083, %v4083
  %s4086 = scalar_lea.vmem %s4, 12
  %4087 = vst [vmem:[%s4086 + $0x1] sm:$0x1] %v4085
  %v4088 = vld [vmem:[#allocation3] sm:$0xf]
  %v4091 = vunpack.c.l.s4 1983009808
  %v4092 = vunpack.c.0.s8 %v4091
  %v4093 = vlaneseq
  %v4094 = vshrl.u32 %v4093, 7
  %v4095 = vsub.s32 %v4092, %v4094
  %v4096 = vrot.slane %v4088, %v4095
  %v4097 = vcombine.high %v4096, %v4096
  %v4100 = vpack.c.bf16 %v4096, %v4096
  %v4101 = vpack.c.bf16 %v4097, %v4097
  %4102 = vmatprep.subr.bf16.mxu0 %v3882
  %4103 = vmatpush1.bf16.msra.mxu0 %v3881
  %4104 = vmatprep.subr.bf16.mxu0 %v3880
  %4105 = vmatpush1.bf16.msra.mxu0 %v3879
  %4106 = vmatprep.subr.bf16.mxu0 %v3878
  %4107 = vmatpush1.bf16.msra.mxu0 %v3877
  %4108 = vmatprep.subr.bf16.mxu0 %v3876
  %4109 = vmatpush1.bf16.msra.mxu0 %v3875
  %4110 = vmatprep.subr.bf16.mxu0 %v3874
  %4111 = vmatpush1.bf16.msra.mxu0 %v3873
  %4112 = vmatprep.subr.bf16.mxu0 %v3872
  %4113 = vmatpush1.bf16.msra.mxu0 %v3871
  %4114 = vmatprep.subr.bf16.mxu0 %v3870
  %4115 = vmatpush1.bf16.msra.mxu0 %v3869
  %4116 = vmatprep.subr.bf16.mxu0 %v3868
  %4117 = vmatpush1.bf16.msra.mxu0 %v3867
  %4118 = vmatprep.subr.bf16.mxu0 %v3898
  %4119 = vmatpush2.bf16.msra.mxu0 %v3897
  %4120 = vmatprep.subr.bf16.mxu0 %v3896
  %4121 = vmatpush2.bf16.msra.mxu0 %v3895
  %4122 = vmatprep.subr.bf16.mxu0 %v3894
  %4123 = vmatpush2.bf16.msra.mxu0 %v3893
  %4124 = vmatprep.subr.bf16.mxu0 %v3892
  %4125 = vmatpush2.bf16.msra.mxu0 %v3891
  %4126 = vmatprep.subr.bf16.mxu0 %v3890
  %4127 = vmatpush2.bf16.msra.mxu0 %v3889
  %4128 = vmatprep.subr.bf16.mxu0 %v3888
  %4129 = vmatpush2.bf16.msra.mxu0 %v3887
  %4130 = vmatprep.subr.bf16.mxu0 %v3886
  %4131 = vmatpush2.bf16.msra.mxu0 %v3885
  %4132 = vmatprep.subr.bf16.mxu0 %v3884
  %4133 = vmatpush2.bf16.msra.mxu0 %v3883
  %4134 = vmatprep.mubr.bf16.mxu0 %v4101
  %4135 = vmatmul.mubr.bf16.gmra.mxu0 %v4100
  %v4136 = vpop.f32.mrf.mxu0
  %v4137 = vadd.f32 0.0, %v4136
  %v4138 = vpop.f32.mrf.mxu0
  %v4139 = vadd.f32 0.0, %v4138
  %v4140 = vpop.f32.mrf.mxu0
  %v4141 = vpop.f32.mrf.mxu0
  %4142 = vdwg.mxu0
  %v4143 = vld [vmem:[%s1927] sm:$0xf]
  %v4146 = vcombine.low %v4137, %v4139
  %v4148 = vunpack.c.l.s4 1983009808
  %v4149 = vunpack.c.0.s8 %v4148
  %v4150 = vlaneseq
  %v4151 = vshrl.u32 %v4150, 7
  %v4152 = vsub.s32 %v4149, %v4151
  %v4153 = vrot.slane %v4146, %v4152
  %v4155 = vadd.f32 %v4143, %v4153
  %v4156 = vtanh.pop %v4155
  %4157 = vst [vmem:[#allocation3] sm:$0xf] %v4156
  %v4158 = vpack.c.bf16 %v4156, %v4156
  %s4159 = scalar_lea.vmem %s4, 4
  %4160 = vst [vmem:[%s4159] sm:$0x1] %v4158
  %v4163 = vunpack.c.l.s4 1983009808
  %v4164 = vunpack.c.0.s8 %v4163
  %v4165 = vlaneseq
  %v4166 = vshrl.u32 %v4165, 7
  %v4167 = vsub.s32 %v4164, %v4166
  %v4168 = vrot.slane %v4156, %v4167
  %v4169 = vcombine.high %v4168, %v4168
  %v4171 = vpack.c.bf16 %v4169, %v4169
  %s4172 = scalar_lea.vmem %s4, 10
  %4173 = vst [vmem:[%s4172 + $0x1] sm:$0x1] %v4171
  %v4174 = vld [vmem:[#allocation3] sm:$0xf]
  %v4177 = vunpack.c.l.s4 1983009808
  %v4178 = vunpack.c.0.s8 %v4177
  %v4179 = vlaneseq
  %v4180 = vshrl.u32 %v4179, 7
  %v4181 = vsub.s32 %v4178, %v4180
  %v4182 = vrot.slane %v4174, %v4181
  %v4183 = vcombine.high %v4182, %v4182
  %v4186 = vpack.c.bf16 %v4182, %v4182
  %v4187 = vpack.c.bf16 %v4183, %v4183
  %4188 = vmatprep.subr.bf16.mxu0 %v3882
  %4189 = vmatpush1.bf16.msra.mxu0 %v3881
  %4190 = vmatprep.subr.bf16.mxu0 %v3880
  %4191 = vmatpush1.bf16.msra.mxu0 %v3879
  %4192 = vmatprep.subr.bf16.mxu0 %v3878
  %4193 = vmatpush1.bf16.msra.mxu0 %v3877
  %4194 = vmatprep.subr.bf16.mxu0 %v3876
  %4195 = vmatpush1.bf16.msra.mxu0 %v3875
  %4196 = vmatprep.subr.bf16.mxu0 %v3874
  %4197 = vmatpush1.bf16.msra.mxu0 %v3873
  %4198 = vmatprep.subr.bf16.mxu0 %v3872
  %4199 = vmatpush1.bf16.msra.mxu0 %v3871
  %4200 = vmatprep.subr.bf16.mxu0 %v3870
  %4201 = vmatpush1.bf16.msra.mxu0 %v3869
  %4202 = vmatprep.subr.bf16.mxu0 %v3868
  %4203 = vmatpush1.bf16.msra.mxu0 %v3867
  %4204 = vmatprep.subr.bf16.mxu0 %v3898
  %4205 = vmatpush2.bf16.msra.mxu0 %v3897
  %4206 = vmatprep.subr.bf16.mxu0 %v3896
  %4207 = vmatpush2.bf16.msra.mxu0 %v3895
  %4208 = vmatprep.subr.bf16.mxu0 %v3894
  %4209 = vmatpush2.bf16.msra.mxu0 %v3893
  %4210 = vmatprep.subr.bf16.mxu0 %v3892
  %4211 = vmatpush2.bf16.msra.mxu0 %v3891
  %4212 = vmatprep.subr.bf16.mxu0 %v3890
  %4213 = vmatpush2.bf16.msra.mxu0 %v3889
  %4214 = vmatprep.subr.bf16.mxu0 %v3888
  %4215 = vmatpush2.bf16.msra.mxu0 %v3887
  %4216 = vmatprep.subr.bf16.mxu0 %v3886
  %4217 = vmatpush2.bf16.msra.mxu0 %v3885
  %4218 = vmatprep.subr.bf16.mxu0 %v3884
  %4219 = vmatpush2.bf16.msra.mxu0 %v3883
  %4220 = vmatprep.mubr.bf16.mxu0 %v4187
  %4221 = vmatmul.mubr.bf16.gmra.mxu0 %v4186
  %v4222 = vpop.f32.mrf.mxu0
  %v4223 = vadd.f32 0.0, %v4222
  %v4224 = vpop.f32.mrf.mxu0
  %v4225 = vadd.f32 0.0, %v4224
  %v4226 = vpop.f32.mrf.mxu0
  %v4227 = vpop.f32.mrf.mxu0
  %4228 = vdwg.mxu0
  %v4229 = vld [vmem:[%s2294] sm:$0xf]
  %v4232 = vcombine.low %v4223, %v4225
  %v4234 = vunpack.c.l.s4 1983009808
  %v4235 = vunpack.c.0.s8 %v4234
  %v4236 = vlaneseq
  %v4237 = vshrl.u32 %v4236, 7
  %v4238 = vsub.s32 %v4235, %v4237
  %v4239 = vrot.slane %v4232, %v4238
  %v4241 = vadd.f32 %v4229, %v4239
  %v4242 = vtanh.pop %v4241
  %4243 = vst [vmem:[#allocation3] sm:$0xf] %v4242
  %v4244 = vpack.c.bf16 %v4242, %v4242
  %s4245 = scalar_lea.vmem %s4, 6
  %4246 = vst [vmem:[%s4245] sm:$0x1] %v4244
  %v4249 = vunpack.c.l.s4 1983009808
  %v4250 = vunpack.c.0.s8 %v4249
  %v4251 = vlaneseq
  %v4252 = vshrl.u32 %v4251, 7
  %v4253 = vsub.s32 %v4250, %v4252
  %v4254 = vrot.slane %v4242, %v4253
  %v4255 = vcombine.high %v4254, %v4254
  %v4257 = vpack.c.bf16 %v4255, %v4255
  %s4258 = scalar_lea.vmem %s4, 8
  %4259 = vst [vmem:[%s4258 + $0x1] sm:$0x1] %v4257
  %v4260 = vld [vmem:[#allocation3] sm:$0xf]
  %v4263 = vunpack.c.l.s4 1983009808
  %v4264 = vunpack.c.0.s8 %v4263
  %v4265 = vlaneseq
  %v4266 = vshrl.u32 %v4265, 7
  %v4267 = vsub.s32 %v4264, %v4266
  %v4268 = vrot.slane %v4260, %v4267
  %v4269 = vcombine.high %v4268, %v4268
  %v4272 = vpack.c.bf16 %v4268, %v4268
  %v4273 = vpack.c.bf16 %v4269, %v4269
  %4274 = vmatprep.subr.bf16.mxu0 %v3882
  %4275 = vmatpush1.bf16.msra.mxu0 %v3881
  %4276 = vmatprep.subr.bf16.mxu0 %v3880
  %4277 = vmatpush1.bf16.msra.mxu0 %v3879
  %4278 = vmatprep.subr.bf16.mxu0 %v3878
  %4279 = vmatpush1.bf16.msra.mxu0 %v3877
  %4280 = vmatprep.subr.bf16.mxu0 %v3876
  %4281 = vmatpush1.bf16.msra.mxu0 %v3875
  %4282 = vmatprep.subr.bf16.mxu0 %v3874
  %4283 = vmatpush1.bf16.msra.mxu0 %v3873
  %4284 = vmatprep.subr.bf16.mxu0 %v3872
  %4285 = vmatpush1.bf16.msra.mxu0 %v3871
  %4286 = vmatprep.subr.bf16.mxu0 %v3870
  %4287 = vmatpush1.bf16.msra.mxu0 %v3869
  %4288 = vmatprep.subr.bf16.mxu0 %v3868
  %4289 = vmatpush1.bf16.msra.mxu0 %v3867
  %4290 = vmatprep.subr.bf16.mxu0 %v3898
  %4291 = vmatpush2.bf16.msra.mxu0 %v3897
  %4292 = vmatprep.subr.bf16.mxu0 %v3896
  %4293 = vmatpush2.bf16.msra.mxu0 %v3895
  %4294 = vmatprep.subr.bf16.mxu0 %v3894
  %4295 = vmatpush2.bf16.msra.mxu0 %v3893
  %4296 = vmatprep.subr.bf16.mxu0 %v3892
  %4297 = vmatpush2.bf16.msra.mxu0 %v3891
  %4298 = vmatprep.subr.bf16.mxu0 %v3890
  %4299 = vmatpush2.bf16.msra.mxu0 %v3889
  %4300 = vmatprep.subr.bf16.mxu0 %v3888
  %4301 = vmatpush2.bf16.msra.mxu0 %v3887
  %4302 = vmatprep.subr.bf16.mxu0 %v3886
  %4303 = vmatpush2.bf16.msra.mxu0 %v3885
  %4304 = vmatprep.subr.bf16.mxu0 %v3884
  %4305 = vmatpush2.bf16.msra.mxu0 %v3883
  %4306 = vmatprep.mubr.bf16.mxu0 %v4273
  %4307 = vmatmul.mubr.bf16.gmra.mxu0 %v4272
  %v4308 = vpop.f32.mrf.mxu0
  %v4309 = vadd.f32 0.0, %v4308
  %v4310 = vpop.f32.mrf.mxu0
  %v4311 = vadd.f32 0.0, %v4310
  %v4312 = vpop.f32.mrf.mxu0
  %v4313 = vpop.f32.mrf.mxu0
  %4314 = vdwg.mxu0
  %v4315 = vld [vmem:[%s2659] sm:$0xf]
  %v4318 = vcombine.low %v4309, %v4311
  %v4320 = vunpack.c.l.s4 1983009808
  %v4321 = vunpack.c.0.s8 %v4320
  %v4322 = vlaneseq
  %v4323 = vshrl.u32 %v4322, 7
  %v4324 = vsub.s32 %v4321, %v4323
  %v4325 = vrot.slane %v4318, %v4324
  %v4327 = vadd.f32 %v4315, %v4325
  %v4328 = vtanh.pop %v4327
  %4329 = vst [vmem:[#allocation3] sm:$0xf] %v4328
  %v4330 = vpack.c.bf16 %v4328, %v4328
  %4331 = vst [vmem:[%s4258] sm:$0x1] %v4330
  %v4334 = vunpack.c.l.s4 1983009808
  %v4335 = vunpack.c.0.s8 %v4334
  %v4336 = vlaneseq
  %v4337 = vshrl.u32 %v4336, 7
  %v4338 = vsub.s32 %v4335, %v4337
  %v4339 = vrot.slane %v4328, %v4338
  %v4340 = vcombine.high %v4339, %v4339
  %v4342 = vpack.c.bf16 %v4340, %v4340
  %4343 = vst [vmem:[%s4245 + $0x1] sm:$0x1] %v4342
  %v4344 = vld [vmem:[#allocation3] sm:$0xf]
  %v4347 = vunpack.c.l.s4 1983009808
  %v4348 = vunpack.c.0.s8 %v4347
  %v4349 = vlaneseq
  %v4350 = vshrl.u32 %v4349, 7
  %v4351 = vsub.s32 %v4348, %v4350
  %v4352 = vrot.slane %v4344, %v4351
  %v4353 = vcombine.high %v4352, %v4352
  %v4356 = vpack.c.bf16 %v4352, %v4352
  %v4357 = vpack.c.bf16 %v4353, %v4353
  %4358 = vmatprep.subr.bf16.mxu0 %v3882
  %4359 = vmatpush1.bf16.msra.mxu0 %v3881
  %4360 = vmatprep.subr.bf16.mxu0 %v3880
  %4361 = vmatpush1.bf16.msra.mxu0 %v3879
  %4362 = vmatprep.subr.bf16.mxu0 %v3878
  %4363 = vmatpush1.bf16.msra.mxu0 %v3877
  %4364 = vmatprep.subr.bf16.mxu0 %v3876
  %4365 = vmatpush1.bf16.msra.mxu0 %v3875
  %4366 = vmatprep.subr.bf16.mxu0 %v3874
  %4367 = vmatpush1.bf16.msra.mxu0 %v3873
  %4368 = vmatprep.subr.bf16.mxu0 %v3872
  %4369 = vmatpush1.bf16.msra.mxu0 %v3871
  %4370 = vmatprep.subr.bf16.mxu0 %v3870
  %4371 = vmatpush1.bf16.msra.mxu0 %v3869
  %4372 = vmatprep.subr.bf16.mxu0 %v3868
  %4373 = vmatpush1.bf16.msra.mxu0 %v3867
  %4374 = vmatprep.subr.bf16.mxu0 %v3898
  %4375 = vmatpush2.bf16.msra.mxu0 %v3897
  %4376 = vmatprep.subr.bf16.mxu0 %v3896
  %4377 = vmatpush2.bf16.msra.mxu0 %v3895
  %4378 = vmatprep.subr.bf16.mxu0 %v3894
  %4379 = vmatpush2.bf16.msra.mxu0 %v3893
  %4380 = vmatprep.subr.bf16.mxu0 %v3892
  %4381 = vmatpush2.bf16.msra.mxu0 %v3891
  %4382 = vmatprep.subr.bf16.mxu0 %v3890
  %4383 = vmatpush2.bf16.msra.mxu0 %v3889
  %4384 = vmatprep.subr.bf16.mxu0 %v3888
  %4385 = vmatpush2.bf16.msra.mxu0 %v3887
  %4386 = vmatprep.subr.bf16.mxu0 %v3886
  %4387 = vmatpush2.bf16.msra.mxu0 %v3885
  %4388 = vmatprep.subr.bf16.mxu0 %v3884
  %4389 = vmatpush2.bf16.msra.mxu0 %v3883
  %4390 = vmatprep.mubr.bf16.mxu0 %v4357
  %4391 = vmatmul.mubr.bf16.gmra.mxu0 %v4356
  %v4392 = vpop.f32.mrf.mxu0
  %v4393 = vadd.f32 0.0, %v4392
  %v4394 = vpop.f32.mrf.mxu0
  %v4395 = vadd.f32 0.0, %v4394
  %v4396 = vpop.f32.mrf.mxu0
  %v4397 = vpop.f32.mrf.mxu0
  %4398 = vdwg.mxu0
  %v4399 = vld [vmem:[%s3024] sm:$0xf]
  %v4402 = vcombine.low %v4393, %v4395
  %v4404 = vunpack.c.l.s4 1983009808
  %v4405 = vunpack.c.0.s8 %v4404
  %v4406 = vlaneseq
  %v4407 = vshrl.u32 %v4406, 7
  %v4408 = vsub.s32 %v4405, %v4407
  %v4409 = vrot.slane %v4402, %v4408
  %v4411 = vadd.f32 %v4399, %v4409
  %v4412 = vtanh.pop %v4411
  %4413 = vst [vmem:[#allocation3] sm:$0xf] %v4412
  %v4414 = vpack.c.bf16 %v4412, %v4412
  %4415 = vst [vmem:[%s4172] sm:$0x1] %v4414
  %v4418 = vunpack.c.l.s4 1983009808
  %v4419 = vunpack.c.0.s8 %v4418
  %v4420 = vlaneseq
  %v4421 = vshrl.u32 %v4420, 7
  %v4422 = vsub.s32 %v4419, %v4421
  %v4423 = vrot.slane %v4412, %v4422
  %v4424 = vcombine.high %v4423, %v4423
  %v4426 = vpack.c.bf16 %v4424, %v4424
  %4427 = vst [vmem:[%s4159 + $0x1] sm:$0x1] %v4426
  %v4428 = vld [vmem:[#allocation3] sm:$0xf]
  %v4431 = vunpack.c.l.s4 1983009808
  %v4432 = vunpack.c.0.s8 %v4431
  %v4433 = vlaneseq
  %v4434 = vshrl.u32 %v4433, 7
  %v4435 = vsub.s32 %v4432, %v4434
  %v4436 = vrot.slane %v4428, %v4435
  %v4437 = vcombine.high %v4436, %v4436
  %v4440 = vpack.c.bf16 %v4436, %v4436
  %v4441 = vpack.c.bf16 %v4437, %v4437
  %4442 = vmatprep.subr.bf16.mxu0 %v3882
  %4443 = vmatpush1.bf16.msra.mxu0 %v3881
  %4444 = vmatprep.subr.bf16.mxu0 %v3880
  %4445 = vmatpush1.bf16.msra.mxu0 %v3879
  %4446 = vmatprep.subr.bf16.mxu0 %v3878
  %4447 = vmatpush1.bf16.msra.mxu0 %v3877
  %4448 = vmatprep.subr.bf16.mxu0 %v3876
  %4449 = vmatpush1.bf16.msra.mxu0 %v3875
  %4450 = vmatprep.subr.bf16.mxu0 %v3874
  %4451 = vmatpush1.bf16.msra.mxu0 %v3873
  %4452 = vmatprep.subr.bf16.mxu0 %v3872
  %4453 = vmatpush1.bf16.msra.mxu0 %v3871
  %4454 = vmatprep.subr.bf16.mxu0 %v3870
  %4455 = vmatpush1.bf16.msra.mxu0 %v3869
  %4456 = vmatprep.subr.bf16.mxu0 %v3868
  %4457 = vmatpush1.bf16.msra.mxu0 %v3867
  %4458 = vmatprep.subr.bf16.mxu0 %v3898
  %4459 = vmatpush2.bf16.msra.mxu0 %v3897
  %4460 = vmatprep.subr.bf16.mxu0 %v3896
  %4461 = vmatpush2.bf16.msra.mxu0 %v3895
  %4462 = vmatprep.subr.bf16.mxu0 %v3894
  %4463 = vmatpush2.bf16.msra.mxu0 %v3893
  %4464 = vmatprep.subr.bf16.mxu0 %v3892
  %4465 = vmatpush2.bf16.msra.mxu0 %v3891
  %4466 = vmatprep.subr.bf16.mxu0 %v3890
  %4467 = vmatpush2.bf16.msra.mxu0 %v3889
  %4468 = vmatprep.subr.bf16.mxu0 %v3888
  %4469 = vmatpush2.bf16.msra.mxu0 %v3887
  %4470 = vmatprep.subr.bf16.mxu0 %v3886
  %4471 = vmatpush2.bf16.msra.mxu0 %v3885
  %4472 = vmatprep.subr.bf16.mxu0 %v3884
  %4473 = vmatpush2.bf16.msra.mxu0 %v3883
  %4474 = vmatprep.mubr.bf16.mxu0 %v4441
  %4475 = vmatmul.mubr.bf16.gmra.mxu0 %v4440
  %v4476 = vpop.f32.mrf.mxu0
  %v4477 = vadd.f32 0.0, %v4476
  %v4478 = vpop.f32.mrf.mxu0
  %v4479 = vadd.f32 0.0, %v4478
  %v4480 = vpop.f32.mrf.mxu0
  %v4481 = vpop.f32.mrf.mxu0
  %4482 = vdwg.mxu0
  %v4483 = vld [vmem:[%s3389] sm:$0xf]
  %v4486 = vcombine.low %v4477, %v4479
  %v4488 = vunpack.c.l.s4 1983009808
  %v4489 = vunpack.c.0.s8 %v4488
  %v4490 = vlaneseq
  %v4491 = vshrl.u32 %v4490, 7
  %v4492 = vsub.s32 %v4489, %v4491
  %v4493 = vrot.slane %v4486, %v4492
  %v4495 = vadd.f32 %v4483, %v4493
  %v4496 = vtanh.pop %v4495
  %4497 = vst [vmem:[#allocation3] sm:$0xf] %v4496
  %v4498 = vpack.c.bf16 %v4496, %v4496
  %4499 = vst [vmem:[%s4086] sm:$0x1] %v4498
  %v4502 = vunpack.c.l.s4 1983009808
  %v4503 = vunpack.c.0.s8 %v4502
  %v4504 = vlaneseq
  %v4505 = vshrl.u32 %v4504, 7
  %v4506 = vsub.s32 %v4503, %v4505
  %v4507 = vrot.slane %v4496, %v4506
  %v4508 = vcombine.high %v4507, %v4507
  %v4510 = vpack.c.bf16 %v4508, %v4508
  %4511 = vst [vmem:[%s4073 + $0x1] sm:$0x1] %v4510
  %v4512 = vld [vmem:[#allocation3] sm:$0xf]
  %v4515 = vunpack.c.l.s4 1983009808
  %v4516 = vunpack.c.0.s8 %v4515
  %v4517 = vlaneseq
  %v4518 = vshrl.u32 %v4517, 7
  %v4519 = vsub.s32 %v4516, %v4518
  %v4520 = vrot.slane %v4512, %v4519
  %v4521 = vcombine.high %v4520, %v4520
  %v4524 = vpack.c.bf16 %v4520, %v4520
  %v4525 = vpack.c.bf16 %v4521, %v4521
  %4526 = vmatprep.subr.bf16.mxu0 %v3882
  %4527 = vmatpush1.bf16.msra.mxu0 %v3881
  %4528 = vmatprep.subr.bf16.mxu0 %v3880
  %4529 = vmatpush1.bf16.msra.mxu0 %v3879
  %4530 = vmatprep.subr.bf16.mxu0 %v3878
  %4531 = vmatpush1.bf16.msra.mxu0 %v3877
  %4532 = vmatprep.subr.bf16.mxu0 %v3876
  %4533 = vmatpush1.bf16.msra.mxu0 %v3875
  %4534 = vmatprep.subr.bf16.mxu0 %v3874
  %4535 = vmatpush1.bf16.msra.mxu0 %v3873
  %4536 = vmatprep.subr.bf16.mxu0 %v3872
  %4537 = vmatpush1.bf16.msra.mxu0 %v3871
  %4538 = vmatprep.subr.bf16.mxu0 %v3870
  %4539 = vmatpush1.bf16.msra.mxu0 %v3869
  %4540 = vmatprep.subr.bf16.mxu0 %v3868
  %4541 = vmatpush1.bf16.msra.mxu0 %v3867
  %4542 = vmatprep.subr.bf16.mxu0 %v3898
  %4543 = vmatpush2.bf16.msra.mxu0 %v3897
  %4544 = vmatprep.subr.bf16.mxu0 %v3896
  %4545 = vmatpush2.bf16.msra.mxu0 %v3895
  %4546 = vmatprep.subr.bf16.mxu0 %v3894
  %4547 = vmatpush2.bf16.msra.mxu0 %v3893
  %4548 = vmatprep.subr.bf16.mxu0 %v3892
  %4549 = vmatpush2.bf16.msra.mxu0 %v3891
  %4550 = vmatprep.subr.bf16.mxu0 %v3890
  %4551 = vmatpush2.bf16.msra.mxu0 %v3889
  %4552 = vmatprep.subr.bf16.mxu0 %v3888
  %4553 = vmatpush2.bf16.msra.mxu0 %v3887
  %4554 = vmatprep.subr.bf16.mxu0 %v3886
  %4555 = vmatpush2.bf16.msra.mxu0 %v3885
  %4556 = vmatprep.subr.bf16.mxu0 %v3884
  %4557 = vmatpush2.bf16.msra.mxu0 %v3883
  %4558 = vmatprep.mubr.bf16.mxu0 %v4525
  %4559 = vmatmul.mubr.bf16.gmra.mxu0 %v4524
  %v4560 = vpop.f32.mrf.mxu0
  %v4561 = vadd.f32 0.0, %v4560
  %v4562 = vpop.f32.mrf.mxu0
  %v4563 = vadd.f32 0.0, %v4562
  %v4564 = vpop.f32.mrf.mxu0
  %v4565 = vpop.f32.mrf.mxu0
  %4566 = vdwg.mxu0
  %v4567 = vld [vmem:[%s3754] sm:$0xf]
  %v4570 = vcombine.low %v4561, %v4563
  %v4572 = vunpack.c.l.s4 1983009808
  %v4573 = vunpack.c.0.s8 %v4572
  %v4574 = vlaneseq
  %v4575 = vshrl.u32 %v4574, 7
  %v4576 = vsub.s32 %v4573, %v4575
  %v4577 = vrot.slane %v4570, %v4576
  %v4579 = vadd.f32 %v4567, %v4577
  %v4580 = vtanh.pop %v4579
  %4581 = vst [vmem:[#allocation3] sm:$0xf] %v4580
  %v4582 = vpack.c.bf16 %v4580, %v4580
  %4583 = vst [vmem:[%s4000] sm:$0x1] %v4582
  %v4586 = vunpack.c.l.s4 1983009808
  %v4587 = vunpack.c.0.s8 %v4586
  %v4588 = vlaneseq
  %v4589 = vshrl.u32 %v4588, 7
  %v4590 = vsub.s32 %v4587, %v4589
  %v4591 = vrot.slane %v4580, %v4590
  %v4592 = vcombine.high %v4591, %v4591
  %v4594 = vpack.c.bf16 %v4592, %v4592
  %4595 = vst [vmem:[%s4 + $0x1] sm:$0x1] %v4594
  // Predicated region
  $region18: #{forward.3} parent=0 // pred_check
    _
  $region19: #{forward.3} parent=0 // pred_check_branch
    %4597 = sbr.rel (0) target = $region21
  $region20: #{forward.3} parent=0 // pred_region
    _
  $region21: #{forward.3} parent=0 // pred_fallthru
    _
  // Predicated region
  $region22: #{forward.3} parent=0 // pred_check
    _
  $region23: #{forward.3} parent=0 // pred_check_branch
    %4599 = sbr.rel (0) target = $region25
  $region24: #{forward.3} parent=0 // pred_region
    _
  $region25: #{forward.3} parent=0 // pred_fallthru
    _

// kernel: forward.4
$region0: #{forward.4}
  #allocation0 [shape = 'u32[]', space=smem, size = 0x4, offset = 0x4, fixed_abs, tag = 'smem constant byte address 0x4 - core index']
  #allocation1 [shape = 'u32[144,128]{1,0:T(1,128)}', space=vmem, size = 0x12000, scoped, tag = 'internal scratch']
  #allocation2 [shape = 'f32[8,2,256]{2,1,0:T(2,128)}', space=vmem, size = 0x4000, scoped, tag = 'scratch operand']
  #allocation3 [shape = 'f32[2,256]{1,0:T(2,128)}', space=vmem, size = 0x800, scoped, tag = 'scratch operand']
  %s0 = inlined_call_operand.vmem [shape: bf16[8,2,256], index: 0, kind: input, shape index: {}]
  %s1 = inlined_call_operand.vmem [shape: bf16[256,256], index: 1, kind: input, shape index: {}]
  %s2 = inlined_call_operand.vmem [shape: bf16[256,256], index: 2, kind: input, shape index: {}]
  %s3 = inlined_call_operand.vmem [shape: f32[1,256], index: 3, kind: input, shape index: {}]
  %s4 = inlined_call_operand.vmem [shape: bf16[8,2,256], index: 4, kind: output, shape index: {}]
  %s5 = sld [smem:[#allocation0]]
  $region26: #{forward.4} parent=0
    _
  %s7 = ssub.s32 1, %s5
  %s8 = scalar_select 0, %s7, %s5
  // Predicated region
  $region2: #{forward.4} parent=0 // pred_check
    _
  $region3: #{forward.4} parent=0 // pred_check_branch
    %10 = sbr.rel (0) target = $region5
  $region4: #{forward.4} parent=0 // pred_region
    _
  $region5: #{forward.4} parent=0 // pred_fallthru
    _
  // Predicated region
  $region6: #{forward.4} parent=0 // pred_check
    _
  $region7: #{forward.4} parent=0 // pred_check_branch
    %12 = sbr.rel (0) target = $region9
  $region8: #{forward.4} parent=0 // pred_region
    _
  $region9: #{forward.4} parent=0 // pred_fallthru
    _
  // Predicated region
  $region10: #{forward.4} parent=0 // pred_check
    _
  $region11: #{forward.4} parent=0 // pred_check_branch
    %14 = sbr.rel (0) target = $region13
  $region12: #{forward.4} parent=0 // pred_region
    _
  $region13: #{forward.4} parent=0 // pred_fallthru
    _
  // Predicated region
  $region14: #{forward.4} parent=0 // pred_check
    _
  $region15: #{forward.4} parent=0 // pred_check_branch
    %16 = sbr.rel (0) target = $region17
  $region16: #{forward.4} parent=0 // pred_region
    _
  $region17: #{forward.4} parent=0 // pred_fallthru
    _
  %v18 = vld [vmem:[%s3] sm:$0x3]
  %v19 = vld [vmem:[%s2] sm:$0xff]
  %v20 = vld [vmem:[%s2 + $0x8] sm:$0xff]
  %v21 = vld [vmem:[%s2 + $0x10] sm:$0xff]
  %v22 = vld [vmem:[%s2 + $0x18] sm:$0xff]
  %v23 = vld [vmem:[%s2 + $0x20] sm:$0xff]
  %v24 = vld [vmem:[%s2 + $0x28] sm:$0xff]
  %v25 = vld [vmem:[%s2 + $0x30] sm:$0xff]
  %v26 = vld [vmem:[%s2 + $0x38] sm:$0xff]
  %v27 = vld [vmem:[%s2 + $0x40] sm:$0xff]
  %v28 = vld [vmem:[%s2 + $0x48] sm:$0xff]
  %v29 = vld [vmem:[%s2 + $0x50] sm:$0xff]
  %v30 = vld [vmem:[%s2 + $0x58] sm:$0xff]
  %v31 = vld [vmem:[%s2 + $0x60] sm:$0xff]
  %v32 = vld [vmem:[%s2 + $0x68] sm:$0xff]
  %v33 = vld [vmem:[%s2 + $0x70] sm:$0xff]
  %v34 = vld [vmem:[%s2 + $0x78] sm:$0xff]
  %v35 = vld [vmem:[%s2 + $0x80] sm:$0xff]
  %v36 = vld [vmem:[%s2 + $0x88] sm:$0xff]
  %v37 = vld [vmem:[%s2 + $0x90] sm:$0xff]
  %v38 = vld [vmem:[%s2 + $0x98] sm:$0xff]
  %v39 = vld [vmem:[%s2 + $0xa0] sm:$0xff]
  %v40 = vld [vmem:[%s2 + $0xa8] sm:$0xff]
  %v41 = vld [vmem:[%s2 + $0xb0] sm:$0xff]
  %v42 = vld [vmem:[%s2 + $0xb8] sm:$0xff]
  %v43 = vld [vmem:[%s2 + $0xc0] sm:$0xff]
  %v44 = vld [vmem:[%s2 + $0xc8] sm:$0xff]
  %v45 = vld [vmem:[%s2 + $0xd0] sm:$0xff]
  %v46 = vld [vmem:[%s2 + $0xd8] sm:$0xff]
  %v47 = vld [vmem:[%s2 + $0xe0] sm:$0xff]
  %v48 = vld [vmem:[%s2 + $0xe8] sm:$0xff]
  %v49 = vld [vmem:[%s2 + $0xf0] sm:$0xff]
  %v50 = vld [vmem:[%s2 + $0xf8] sm:$0xff]
  %v51 = vld [vmem:[%s1] sm:$0xf]
  %v52 = vld [vmem:[%s1 + $0x8] sm:$0xf]
  %v53 = vld [vmem:[%s1 + $0x10] sm:$0xf]
  %v54 = vld [vmem:[%s1 + $0x18] sm:$0xf]
  %v55 = vld [vmem:[%s1 + $0x20] sm:$0xf]
  %v56 = vld [vmem:[%s1 + $0x28] sm:$0xf]
  %v57 = vld [vmem:[%s1 + $0x30] sm:$0xf]
  %v58 = vld [vmem:[%s1 + $0x38] sm:$0xf]
  %v59 = vld [vmem:[%s1 + $0x40] sm:$0xf]
  %v60 = vld [vmem:[%s1 + $0x48] sm:$0xf]
  %v61 = vld [vmem:[%s1 + $0x50] sm:$0xf]
  %v62 = vld [vmem:[%s1 + $0x58] sm:$0xf]
  %v63 = vld [vmem:[%s1 + $0x60] sm:$0xf]
  %v64 = vld [vmem:[%s1 + $0x68] sm:$0xf]
  %v65 = vld [vmem:[%s1 + $0x70] sm:$0xf]
  %v66 = vld [vmem:[%s1 + $0x78] sm:$0xf]
  %v67 = vld [vmem:[%s1 + $0x80] sm:$0xf]
  %v68 = vld [vmem:[%s1 + $0x88] sm:$0xf]
  %v69 = vld [vmem:[%s1 + $0x90] sm:$0xf]
  %v70 = vld [vmem:[%s1 + $0x98] sm:$0xf]
  %v71 = vld [vmem:[%s1 + $0xa0] sm:$0xf]
  %v72 = vld [vmem:[%s1 + $0xa8] sm:$0xf]
  %v73 = vld [vmem:[%s1 + $0xb0] sm:$0xf]
  %v74 = vld [vmem:[%s1 + $0xb8] sm:$0xf]
  %v75 = vld [vmem:[%s1 + $0xc0] sm:$0xf]
  %v76 = vld [vmem:[%s1 + $0xc8] sm:$0xf]
  %v77 = vld [vmem:[%s1 + $0xd0] sm:$0xf]
  %v78 = vld [vmem:[%s1 + $0xd8] sm:$0xf]
  %v79 = vld [vmem:[%s1 + $0xe0] sm:$0xf]
  %v80 = vld [vmem:[%s1 + $0xe8] sm:$0xf]
  %v81 = vld [vmem:[%s1 + $0xf0] sm:$0xf]
  %v82 = vld [vmem:[%s1 + $0xf8] sm:$0xf]
  %v83 = vld [vmem:[%s1 + $0x4] sm:$0xf]
  %v84 = vld [vmem:[%s1 + $0xc] sm:$0xf]
  %v85 = vld [vmem:[%s1 + $0x14] sm:$0xf]
  %v86 = vld [vmem:[%s1 + $0x1c] sm:$0xf]
  %v87 = vld [vmem:[%s1 + $0x24] sm:$0xf]
  %v88 = vld [vmem:[%s1 + $0x2c] sm:$0xf]
  %v89 = vld [vmem:[%s1 + $0x34] sm:$0xf]
  %v90 = vld [vmem:[%s1 + $0x3c] sm:$0xf]
  %v91 = vld [vmem:[%s1 + $0x44] sm:$0xf]
  %v92 = vld [vmem:[%s1 + $0x4c] sm:$0xf]
  %v93 = vld [vmem:[%s1 + $0x54] sm:$0xf]
  %v94 = vld [vmem:[%s1 + $0x5c] sm:$0xf]
  %v95 = vld [vmem:[%s1 + $0x64] sm:$0xf]
  %v96 = vld [vmem:[%s1 + $0x6c] sm:$0xf]
  %v97 = vld [vmem:[%s1 + $0x74] sm:$0xf]
  %v98 = vld [vmem:[%s1 + $0x7c] sm:$0xf]
  %v99 = vld [vmem:[%s1 + $0x84] sm:$0xf]
  %v100 = vld [vmem:[%s1 + $0x8c] sm:$0xf]
  %v101 = vld [vmem:[%s1 + $0x94] sm:$0xf]
  %v102 = vld [vmem:[%s1 + $0x9c] sm:$0xf]
  %v103 = vld [vmem:[%s1 + $0xa4] sm:$0xf]
  %v104 = vld [vmem:[%s1 + $0xac] sm:$0xf]
  %v105 = vld [vmem:[%s1 + $0xb4] sm:$0xf]
  %v106 = vld [vmem:[%s1 + $0xbc] sm:$0xf]
  %v107 = vld [vmem:[%s1 + $0xc4] sm:$0xf]
  %v108 = vld [vmem:[%s1 + $0xcc] sm:$0xf]
  %v109 = vld [vmem:[%s1 + $0xd4] sm:$0xf]
  %v110 = vld [vmem:[%s1 + $0xdc] sm:$0xf]
  %v111 = vld [vmem:[%s1 + $0xe4] sm:$0xf]
  %v112 = vld [vmem:[%s1 + $0xec] sm:$0xf]
  %v113 = vld [vmem:[%s1 + $0xf4] sm:$0xf]
  %v114 = vld [vmem:[%s1 + $0xfc] sm:$0xf]
  %v115 = vld [vmem:[%s0] sm:$0x3]
  %v118 = vunpack.c.l.s4 1966171168
  %v119 = vunpack.c.0.s8 %v118
  %v120 = vlaneseq
  %v121 = vshrl.u32 %v120, 7
  %v122 = vsub.s32 %v119, %v121
  %v123 = vrot.slane %v115, %v122
  %v124 = vcombine.high %v123, %v123
  %v126 = vunpack.c.l.s4 1966171168
  %v127 = vunpack.c.0.s8 %v126
  %v128 = vlaneseq
  %v129 = vshrl.u32 %v128, 7
  %v130 = vsub.s32 %v127, %v129
  %v131 = vrot.slane %v123, %v130
  %v133 = vunpack.c.l.s4 1966171168
  %v134 = vunpack.c.0.s8 %v133
  %v135 = vlaneseq
  %v136 = vshrl.u32 %v135, 7
  %v137 = vsub.s32 %v134, %v136
  %v138 = vrot.slane %v124, %v137
  %v173 = vunpack.c.l.b16 %v51
  %v174 = vunpack.c.l.b16 %v52
  %v175 = vunpack.c.l.b16 %v53
  %v176 = vunpack.c.l.b16 %v54
  %v177 = vunpack.c.l.b16 %v55
  %v178 = vunpack.c.l.b16 %v56
  %v179 = vunpack.c.l.b16 %v57
  %v180 = vunpack.c.l.b16 %v58
  %v181 = vunpack.c.l.b16 %v59
  %v182 = vunpack.c.l.b16 %v60
  %v183 = vunpack.c.l.b16 %v61
  %v184 = vunpack.c.l.b16 %v62
  %v185 = vunpack.c.l.b16 %v63
  %v186 = vunpack.c.l.b16 %v64
  %v187 = vunpack.c.l.b16 %v65
  %v188 = vunpack.c.l.b16 %v66
  %v189 = vunpack.c.l.b16 %v67
  %v190 = vunpack.c.l.b16 %v68
  %v191 = vunpack.c.l.b16 %v69
  %v192 = vunpack.c.l.b16 %v70
  %v193 = vunpack.c.l.b16 %v71
  %v194 = vunpack.c.l.b16 %v72
  %v195 = vunpack.c.l.b16 %v73
  %v196 = vunpack.c.l.b16 %v74
  %v197 = vunpack.c.l.b16 %v75
  %v198 = vunpack.c.l.b16 %v76
  %v199 = vunpack.c.l.b16 %v77
  %v200 = vunpack.c.l.b16 %v78
  %v201 = vunpack.c.l.b16 %v79
  %v202 = vunpack.c.l.b16 %v80
  %v203 = vunpack.c.l.b16 %v81
  %v204 = vunpack.c.l.b16 %v82
  %v205 = vpack.c.b16 %v174, %v173
  %v206 = vpack.c.b16 %v176, %v175
  %v207 = vpack.c.b16 %v178, %v177
  %v208 = vpack.c.b16 %v180, %v179
  %v209 = vpack.c.b16 %v182, %v181
  %v210 = vpack.c.b16 %v184, %v183
  %v211 = vpack.c.b16 %v186, %v185
  %v212 = vpack.c.b16 %v188, %v187
  %v213 = vpack.c.b16 %v190, %v189
  %v214 = vpack.c.b16 %v192, %v191
  %v215 = vpack.c.b16 %v194, %v193
  %v216 = vpack.c.b16 %v196, %v195
  %v217 = vpack.c.b16 %v198, %v197
  %v218 = vpack.c.b16 %v200, %v199
  %v219 = vpack.c.b16 %v202, %v201
  %v220 = vpack.c.b16 %v204, %v203
  %237 = vmatprep.subr.bf16.mxu0 0
  %238 = vmatpush1.bf16.msra.mxu0 %v212
  %239 = vmatprep.subr.bf16.mxu0 0
  %240 = vmatpush1.bf16.msra.mxu0 %v211
  %241 = vmatprep.subr.bf16.mxu0 0
  %242 = vmatpush1.bf16.msra.mxu0 %v210
  %243 = vmatprep.subr.bf16.mxu0 0
  %244 = vmatpush1.bf16.msra.mxu0 %v209
  %245 = vmatprep.subr.bf16.mxu0 0
  %246 = vmatpush1.bf16.msra.mxu0 %v208
  %247 = vmatprep.subr.bf16.mxu0 0
  %248 = vmatpush1.bf16.msra.mxu0 %v207
  %249 = vmatprep.subr.bf16.mxu0 0
  %250 = vmatpush1.bf16.msra.mxu0 %v206
  %251 = vmatprep.subr.bf16.mxu0 0
  %252 = vmatpush1.bf16.msra.mxu0 %v205
  %253 = vmatprep.subr.bf16.mxu0 0
  %254 = vmatpush2.bf16.msra.mxu0 %v220
  %255 = vmatprep.subr.bf16.mxu0 0
  %256 = vmatpush2.bf16.msra.mxu0 %v219
  %257 = vmatprep.subr.bf16.mxu0 0
  %258 = vmatpush2.bf16.msra.mxu0 %v218
  %259 = vmatprep.subr.bf16.mxu0 0
  %260 = vmatpush2.bf16.msra.mxu0 %v217
  %261 = vmatprep.subr.bf16.mxu0 0
  %262 = vmatpush2.bf16.msra.mxu0 %v216
  %263 = vmatprep.subr.bf16.mxu0 0
  %264 = vmatpush2.bf16.msra.mxu0 %v215
  %265 = vmatprep.subr.bf16.mxu0 0
  %266 = vmatpush2.bf16.msra.mxu0 %v214
  %267 = vmatprep.subr.bf16.mxu0 0
  %268 = vmatpush2.bf16.msra.mxu0 %v213
  %269 = vmatprep.mubr.bf16.mxu0 %v138
  %270 = vmatmul.mubr.bf16.gmra.mxu0 %v131
  %v271 = vpop.f32.mrf.mxu0
  %v272 = vadd.f32 0.0, %v271
  %v273 = vpop.f32.mrf.mxu0
  %v274 = vpop.f32.mrf.mxu0
  %v275 = vpop.f32.mrf.mxu0
  %276 = vdwg.mxu0
  %s277 = scalar_lea.vmem %s0, 14
  %v278 = vld [vmem:[%s277] sm:$0x3]
  %v281 = vunpack.c.l.s4 1966171168
  %v282 = vunpack.c.0.s8 %v281
  %v283 = vlaneseq
  %v284 = vshrl.u32 %v283, 7
  %v285 = vsub.s32 %v282, %v284
  %v286 = vrot.slane %v278, %v285
  %v287 = vcombine.high %v286, %v286
  %v289 = vunpack.c.l.s4 1966171168
  %v290 = vunpack.c.0.s8 %v289
  %v291 = vlaneseq
  %v292 = vshrl.u32 %v291, 7
  %v293 = vsub.s32 %v290, %v292
  %v294 = vrot.slane %v286, %v293
  %v296 = vunpack.c.l.s4 1966171168
  %v297 = vunpack.c.0.s8 %v296
  %v298 = vlaneseq
  %v299 = vshrl.u32 %v298, 7
  %v300 = vsub.s32 %v297, %v299
  %v301 = vrot.slane %v287, %v300
  %v336 = vunpack.c.l.b16 %v83
  %v337 = vunpack.c.l.b16 %v84
  %v338 = vunpack.c.l.b16 %v85
  %v339 = vunpack.c.l.b16 %v86
  %v340 = vunpack.c.l.b16 %v87
  %v341 = vunpack.c.l.b16 %v88
  %v342 = vunpack.c.l.b16 %v89
  %v343 = vunpack.c.l.b16 %v90
  %v344 = vunpack.c.l.b16 %v91
  %v345 = vunpack.c.l.b16 %v92
  %v346 = vunpack.c.l.b16 %v93
  %v347 = vunpack.c.l.b16 %v94
  %v348 = vunpack.c.l.b16 %v95
  %v349 = vunpack.c.l.b16 %v96
  %v350 = vunpack.c.l.b16 %v97
  %v351 = vunpack.c.l.b16 %v98
  %v352 = vunpack.c.l.b16 %v99
  %v353 = vunpack.c.l.b16 %v100
  %v354 = vunpack.c.l.b16 %v101
  %v355 = vunpack.c.l.b16 %v102
  %v356 = vunpack.c.l.b16 %v103
  %v357 = vunpack.c.l.b16 %v104
  %v358 = vunpack.c.l.b16 %v105
  %v359 = vunpack.c.l.b16 %v106
  %v360 = vunpack.c.l.b16 %v107
  %v361 = vunpack.c.l.b16 %v108
  %v362 = vunpack.c.l.b16 %v109
  %v363 = vunpack.c.l.b16 %v110
  %v364 = vunpack.c.l.b16 %v111
  %v365 = vunpack.c.l.b16 %v112
  %v366 = vunpack.c.l.b16 %v113
  %v367 = vunpack.c.l.b16 %v114
  %v368 = vpack.c.b16 %v337, %v336
  %v369 = vpack.c.b16 %v339, %v338
  %v370 = vpack.c.b16 %v341, %v340
  %v371 = vpack.c.b16 %v343, %v342
  %v372 = vpack.c.b16 %v345, %v344
  %v373 = vpack.c.b16 %v347, %v346
  %v374 = vpack.c.b16 %v349, %v348
  %v375 = vpack.c.b16 %v351, %v350
  %v376 = vpack.c.b16 %v353, %v352
  %v377 = vpack.c.b16 %v355, %v354
  %v378 = vpack.c.b16 %v357, %v356
  %v379 = vpack.c.b16 %v359, %v358
  %v380 = vpack.c.b16 %v361, %v360
  %v381 = vpack.c.b16 %v363, %v362
  %v382 = vpack.c.b16 %v365, %v364
  %v383 = vpack.c.b16 %v367, %v366
  %400 = vmatprep.subr.bf16.mxu0 0
  %401 = vmatpush1.bf16.msra.mxu0 %v375
  %402 = vmatprep.subr.bf16.mxu0 0
  %403 = vmatpush1.bf16.msra.mxu0 %v374
  %404 = vmatprep.subr.bf16.mxu0 0
  %405 = vmatpush1.bf16.msra.mxu0 %v373
  %406 = vmatprep.subr.bf16.mxu0 0
  %407 = vmatpush1.bf16.msra.mxu0 %v372
  %408 = vmatprep.subr.bf16.mxu0 0
  %409 = vmatpush1.bf16.msra.mxu0 %v371
  %410 = vmatprep.subr.bf16.mxu0 0
  %411 = vmatpush1.bf16.msra.mxu0 %v370
  %412 = vmatprep.subr.bf16.mxu0 0
  %413 = vmatpush1.bf16.msra.mxu0 %v369
  %414 = vmatprep.subr.bf16.mxu0 0
  %415 = vmatpush1.bf16.msra.mxu0 %v368
  %416 = vmatprep.subr.bf16.mxu0 0
  %417 = vmatpush2.bf16.msra.mxu0 %v383
  %418 = vmatprep.subr.bf16.mxu0 0
  %419 = vmatpush2.bf16.msra.mxu0 %v382
  %420 = vmatprep.subr.bf16.mxu0 0
  %421 = vmatpush2.bf16.msra.mxu0 %v381
  %422 = vmatprep.subr.bf16.mxu0 0
  %423 = vmatpush2.bf16.msra.mxu0 %v380
  %424 = vmatprep.subr.bf16.mxu0 0
  %425 = vmatpush2.bf16.msra.mxu0 %v379
  %426 = vmatprep.subr.bf16.mxu0 0
  %427 = vmatpush2.bf16.msra.mxu0 %v378
  %428 = vmatprep.subr.bf16.mxu0 0
  %429 = vmatpush2.bf16.msra.mxu0 %v377
  %430 = vmatprep.subr.bf16.mxu0 0
  %431 = vmatpush2.bf16.msra.mxu0 %v376
  %432 = vmatprep.mubr.bf16.mxu0 %v301
  %433 = vmatmul.mubr.bf16.gmra.mxu0 %v294
  %v434 = vpop.f32.mrf.mxu0
  %v435 = vadd.f32 0.0, %v434
  %v436 = vpop.f32.mrf.mxu0
  %v437 = vpop.f32.mrf.mxu0
  %v438 = vpop.f32.mrf.mxu0
  %439 = vdwg.mxu0
  %v441 = vlaneseq
  %v442 = vshrl.u32 %v441, 7
  %v443 = vsub.s32 0, %v442
  %v444 = vrot.slane %v18, %v443
  %v445 = vlaneseq
  %v446 = vshrl.u32 %v445, 7
  %v447 = vsub.s32 1, %v446
  %v448 = vrot.slane %v18, %v447
  %v451 = vadd.f32 %v272, %v444
  %v452 = vadd.f32 %v435, %v448
  %v455 = vcombine.low %v451, %v452
  %v457 = vunpack.c.l.s4 1983009808
  %v458 = vunpack.c.0.s8 %v457
  %v459 = vlaneseq
  %v460 = vshrl.u32 %v459, 7
  %v461 = vsub.s32 %v458, %v460
  %v462 = vrot.slane %v455, %v461
  %464 = vst [vmem:[#allocation2] sm:$0xf] %v462
  %s465 = scalar_lea.vmem %s0, 2
  %v466 = vld [vmem:[%s465] sm:$0x3]
  %v469 = vunpack.c.l.s4 1966171168
  %v470 = vunpack.c.0.s8 %v469
  %v471 = vlaneseq
  %v472 = vshrl.u32 %v471, 7
  %v473 = vsub.s32 %v470, %v472
  %v474 = vrot.slane %v466, %v473
  %v475 = vcombine.high %v474, %v474
  %v477 = vunpack.c.l.s4 1966171168
  %v478 = vunpack.c.0.s8 %v477
  %v479 = vlaneseq
  %v480 = vshrl.u32 %v479, 7
  %v481 = vsub.s32 %v478, %v480
  %v482 = vrot.slane %v474, %v481
  %v484 = vunpack.c.l.s4 1966171168
  %v485 = vunpack.c.0.s8 %v484
  %v486 = vlaneseq
  %v487 = vshrl.u32 %v486, 7
  %v488 = vsub.s32 %v485, %v487
  %v489 = vrot.slane %v475, %v488
  %492 = vmatprep.subr.bf16.mxu0 0
  %493 = vmatpush1.bf16.msra.mxu0 %v212
  %494 = vmatprep.subr.bf16.mxu0 0
  %495 = vmatpush1.bf16.msra.mxu0 %v211
  %496 = vmatprep.subr.bf16.mxu0 0
  %497 = vmatpush1.bf16.msra.mxu0 %v210
  %498 = vmatprep.subr.bf16.mxu0 0
  %499 = vmatpush1.bf16.msra.mxu0 %v209
  %500 = vmatprep.subr.bf16.mxu0 0
  %501 = vmatpush1.bf16.msra.mxu0 %v208
  %502 = vmatprep.subr.bf16.mxu0 0
  %503 = vmatpush1.bf16.msra.mxu0 %v207
  %504 = vmatprep.subr.bf16.mxu0 0
  %505 = vmatpush1.bf16.msra.mxu0 %v206
  %506 = vmatprep.subr.bf16.mxu0 0
  %507 = vmatpush1.bf16.msra.mxu0 %v205
  %508 = vmatprep.subr.bf16.mxu0 0
  %509 = vmatpush2.bf16.msra.mxu0 %v220
  %510 = vmatprep.subr.bf16.mxu0 0
  %511 = vmatpush2.bf16.msra.mxu0 %v219
  %512 = vmatprep.subr.bf16.mxu0 0
  %513 = vmatpush2.bf16.msra.mxu0 %v218
  %514 = vmatprep.subr.bf16.mxu0 0
  %515 = vmatpush2.bf16.msra.mxu0 %v217
  %516 = vmatprep.subr.bf16.mxu0 0
  %517 = vmatpush2.bf16.msra.mxu0 %v216
  %518 = vmatprep.subr.bf16.mxu0 0
  %519 = vmatpush2.bf16.msra.mxu0 %v215
  %520 = vmatprep.subr.bf16.mxu0 0
  %521 = vmatpush2.bf16.msra.mxu0 %v214
  %522 = vmatprep.subr.bf16.mxu0 0
  %523 = vmatpush2.bf16.msra.mxu0 %v213
  %524 = vmatprep.mubr.bf16.mxu0 %v489
  %525 = vmatmul.mubr.bf16.gmra.mxu0 %v482
  %v526 = vpop.f32.mrf.mxu0
  %v527 = vadd.f32 0.0, %v526
  %v528 = vpop.f32.mrf.mxu0
  %v529 = vpop.f32.mrf.mxu0
  %v530 = vpop.f32.mrf.mxu0
  %531 = vdwg.mxu0
  %s532 = scalar_lea.vmem %s0, 12
  %v533 = vld [vmem:[%s532] sm:$0x3]
  %v536 = vunpack.c.l.s4 1966171168
  %v537 = vunpack.c.0.s8 %v536
  %v538 = vlaneseq
  %v539 = vshrl.u32 %v538, 7
  %v540 = vsub.s32 %v537, %v539
  %v541 = vrot.slane %v533, %v540
  %v542 = vcombine.high %v541, %v541
  %v544 = vunpack.c.l.s4 1966171168
  %v545 = vunpack.c.0.s8 %v544
  %v546 = vlaneseq
  %v547 = vshrl.u32 %v546, 7
  %v548 = vsub.s32 %v545, %v547
  %v549 = vrot.slane %v541, %v548
  %v551 = vunpack.c.l.s4 1966171168
  %v552 = vunpack.c.0.s8 %v551
  %v553 = vlaneseq
  %v554 = vshrl.u32 %v553, 7
  %v555 = vsub.s32 %v552, %v554
  %v556 = vrot.slane %v542, %v555
  %559 = vmatprep.subr.bf16.mxu0 0
  %560 = vmatpush1.bf16.msra.mxu0 %v375
  %561 = vmatprep.subr.bf16.mxu0 0
  %562 = vmatpush1.bf16.msra.mxu0 %v374
  %563 = vmatprep.subr.bf16.mxu0 0
  %564 = vmatpush1.bf16.msra.mxu0 %v373
  %565 = vmatprep.subr.bf16.mxu0 0
  %566 = vmatpush1.bf16.msra.mxu0 %v372
  %567 = vmatprep.subr.bf16.mxu0 0
  %568 = vmatpush1.bf16.msra.mxu0 %v371
  %569 = vmatprep.subr.bf16.mxu0 0
  %570 = vmatpush1.bf16.msra.mxu0 %v370
  %571 = vmatprep.subr.bf16.mxu0 0
  %572 = vmatpush1.bf16.msra.mxu0 %v369
  %573 = vmatprep.subr.bf16.mxu0 0
  %574 = vmatpush1.bf16.msra.mxu0 %v368
  %575 = vmatprep.subr.bf16.mxu0 0
  %576 = vmatpush2.bf16.msra.mxu0 %v383
  %577 = vmatprep.subr.bf16.mxu0 0
  %578 = vmatpush2.bf16.msra.mxu0 %v382
  %579 = vmatprep.subr.bf16.mxu0 0
  %580 = vmatpush2.bf16.msra.mxu0 %v381
  %581 = vmatprep.subr.bf16.mxu0 0
  %582 = vmatpush2.bf16.msra.mxu0 %v380
  %583 = vmatprep.subr.bf16.mxu0 0
  %584 = vmatpush2.bf16.msra.mxu0 %v379
  %585 = vmatprep.subr.bf16.mxu0 0
  %586 = vmatpush2.bf16.msra.mxu0 %v378
  %587 = vmatprep.subr.bf16.mxu0 0
  %588 = vmatpush2.bf16.msra.mxu0 %v377
  %589 = vmatprep.subr.bf16.mxu0 0
  %590 = vmatpush2.bf16.msra.mxu0 %v376
  %591 = vmatprep.mubr.bf16.mxu0 %v556
  %592 = vmatmul.mubr.bf16.gmra.mxu0 %v549
  %v593 = vpop.f32.mrf.mxu0
  %v594 = vadd.f32 0.0, %v593
  %v595 = vpop.f32.mrf.mxu0
  %v596 = vpop.f32.mrf.mxu0
  %v597 = vpop.f32.mrf.mxu0
  %598 = vdwg.mxu0
  %v599 = vadd.f32 %v527, %v444
  %v600 = vadd.f32 %v594, %v448
  %v603 = vcombine.low %v599, %v600
  %v605 = vunpack.c.l.s4 1983009808
  %v606 = vunpack.c.0.s8 %v605
  %v607 = vlaneseq
  %v608 = vshrl.u32 %v607, 7
  %v609 = vsub.s32 %v606, %v608
  %v610 = vrot.slane %v603, %v609
  %s612 = scalar_lea.vmem [#allocation2], 4
  %613 = vst [vmem:[%s612] sm:$0xf] %v610
  %s614 = scalar_lea.vmem %s0, 4
  %v615 = vld [vmem:[%s614] sm:$0x3]
  %v618 = vunpack.c.l.s4 1966171168
  %v619 = vunpack.c.0.s8 %v618
  %v620 = vlaneseq
  %v621 = vshrl.u32 %v620, 7
  %v622 = vsub.s32 %v619, %v621
  %v623 = vrot.slane %v615, %v622
  %v624 = vcombine.high %v623, %v623
  %v626 = vunpack.c.l.s4 1966171168
  %v627 = vunpack.c.0.s8 %v626
  %v628 = vlaneseq
  %v629 = vshrl.u32 %v628, 7
  %v630 = vsub.s32 %v627, %v629
  %v631 = vrot.slane %v623, %v630
  %v633 = vunpack.c.l.s4 1966171168
  %v634 = vunpack.c.0.s8 %v633
  %v635 = vlaneseq
  %v636 = vshrl.u32 %v635, 7
  %v637 = vsub.s32 %v634, %v636
  %v638 = vrot.slane %v624, %v637
  %641 = vmatprep.subr.bf16.mxu0 0
  %642 = vmatpush1.bf16.msra.mxu0 %v212
  %643 = vmatprep.subr.bf16.mxu0 0
  %644 = vmatpush1.bf16.msra.mxu0 %v211
  %645 = vmatprep.subr.bf16.mxu0 0
  %646 = vmatpush1.bf16.msra.mxu0 %v210
  %647 = vmatprep.subr.bf16.mxu0 0
  %648 = vmatpush1.bf16.msra.mxu0 %v209
  %649 = vmatprep.subr.bf16.mxu0 0
  %650 = vmatpush1.bf16.msra.mxu0 %v208
  %651 = vmatprep.subr.bf16.mxu0 0
  %652 = vmatpush1.bf16.msra.mxu0 %v207
  %653 = vmatprep.subr.bf16.mxu0 0
  %654 = vmatpush1.bf16.msra.mxu0 %v206
  %655 = vmatprep.subr.bf16.mxu0 0
  %656 = vmatpush1.bf16.msra.mxu0 %v205
  %657 = vmatprep.subr.bf16.mxu0 0
  %658 = vmatpush2.bf16.msra.mxu0 %v220
  %659 = vmatprep.subr.bf16.mxu0 0
  %660 = vmatpush2.bf16.msra.mxu0 %v219
  %661 = vmatprep.subr.bf16.mxu0 0
  %662 = vmatpush2.bf16.msra.mxu0 %v218
  %663 = vmatprep.subr.bf16.mxu0 0
  %664 = vmatpush2.bf16.msra.mxu0 %v217
  %665 = vmatprep.subr.bf16.mxu0 0
  %666 = vmatpush2.bf16.msra.mxu0 %v216
  %667 = vmatprep.subr.bf16.mxu0 0
  %668 = vmatpush2.bf16.msra.mxu0 %v215
  %669 = vmatprep.subr.bf16.mxu0 0
  %670 = vmatpush2.bf16.msra.mxu0 %v214
  %671 = vmatprep.subr.bf16.mxu0 0
  %672 = vmatpush2.bf16.msra.mxu0 %v213
  %673 = vmatprep.mubr.bf16.mxu0 %v638
  %674 = vmatmul.mubr.bf16.gmra.mxu0 %v631
  %v675 = vpop.f32.mrf.mxu0
  %v676 = vadd.f32 0.0, %v675
  %v677 = vpop.f32.mrf.mxu0
  %v678 = vpop.f32.mrf.mxu0
  %v679 = vpop.f32.mrf.mxu0
  %680 = vdwg.mxu0
  %s681 = scalar_lea.vmem %s0, 10
  %v682 = vld [vmem:[%s681] sm:$0x3]
  %v685 = vunpack.c.l.s4 1966171168
  %v686 = vunpack.c.0.s8 %v685
  %v687 = vlaneseq
  %v688 = vshrl.u32 %v687, 7
  %v689 = vsub.s32 %v686, %v688
  %v690 = vrot.slane %v682, %v689
  %v691 = vcombine.high %v690, %v690
  %v693 = vunpack.c.l.s4 1966171168
  %v694 = vunpack.c.0.s8 %v693
  %v695 = vlaneseq
  %v696 = vshrl.u32 %v695, 7
  %v697 = vsub.s32 %v694, %v696
  %v698 = vrot.slane %v690, %v697
  %v700 = vunpack.c.l.s4 1966171168
  %v701 = vunpack.c.0.s8 %v700
  %v702 = vlaneseq
  %v703 = vshrl.u32 %v702, 7
  %v704 = vsub.s32 %v701, %v703
  %v705 = vrot.slane %v691, %v704
  %708 = vmatprep.subr.bf16.mxu0 0
  %709 = vmatpush1.bf16.msra.mxu0 %v375
  %710 = vmatprep.subr.bf16.mxu0 0
  %711 = vmatpush1.bf16.msra.mxu0 %v374
  %712 = vmatprep.subr.bf16.mxu0 0
  %713 = vmatpush1.bf16.msra.mxu0 %v373
  %714 = vmatprep.subr.bf16.mxu0 0
  %715 = vmatpush1.bf16.msra.mxu0 %v372
  %716 = vmatprep.subr.bf16.mxu0 0
  %717 = vmatpush1.bf16.msra.mxu0 %v371
  %718 = vmatprep.subr.bf16.mxu0 0
  %719 = vmatpush1.bf16.msra.mxu0 %v370
  %720 = vmatprep.subr.bf16.mxu0 0
  %721 = vmatpush1.bf16.msra.mxu0 %v369
  %722 = vmatprep.subr.bf16.mxu0 0
  %723 = vmatpush1.bf16.msra.mxu0 %v368
  %724 = vmatprep.subr.bf16.mxu0 0
  %725 = vmatpush2.bf16.msra.mxu0 %v383
  %726 = vmatprep.subr.bf16.mxu0 0
  %727 = vmatpush2.bf16.msra.mxu0 %v382
  %728 = vmatprep.subr.bf16.mxu0 0
  %729 = vmatpush2.bf16.msra.mxu0 %v381
  %730 = vmatprep.subr.bf16.mxu0 0
  %731 = vmatpush2.bf16.msra.mxu0 %v380
  %732 = vmatprep.subr.bf16.mxu0 0
  %733 = vmatpush2.bf16.msra.mxu0 %v379
  %734 = vmatprep.subr.bf16.mxu0 0
  %735 = vmatpush2.bf16.msra.mxu0 %v378
  %736 = vmatprep.subr.bf16.mxu0 0
  %737 = vmatpush2.bf16.msra.mxu0 %v377
  %738 = vmatprep.subr.bf16.mxu0 0
  %739 = vmatpush2.bf16.msra.mxu0 %v376
  %740 = vmatprep.mubr.bf16.mxu0 %v705
  %741 = vmatmul.mubr.bf16.gmra.mxu0 %v698
  %v742 = vpop.f32.mrf.mxu0
  %v743 = vadd.f32 0.0, %v742
  %v744 = vpop.f32.mrf.mxu0
  %v745 = vpop.f32.mrf.mxu0
  %v746 = vpop.f32.mrf.mxu0
  %747 = vdwg.mxu0
  %v748 = vadd.f32 %v676, %v444
  %v749 = vadd.f32 %v743, %v448
  %v752 = vcombine.low %v748, %v749
  %v754 = vunpack.c.l.s4 1983009808
  %v755 = vunpack.c.0.s8 %v754
  %v756 = vlaneseq
  %v757 = vshrl.u32 %v756, 7
  %v758 = vsub.s32 %v755, %v757
  %v759 = vrot.slane %v752, %v758
  %s761 = scalar_lea.vmem [#allocation2], 8
  %762 = vst [vmem:[%s761] sm:$0xf] %v759
  %s763 = scalar_lea.vmem %s0, 6
  %v764 = vld [vmem:[%s763] sm:$0x3]
  %v767 = vunpack.c.l.s4 1966171168
  %v768 = vunpack.c.0.s8 %v767
  %v769 = vlaneseq
  %v770 = vshrl.u32 %v769, 7
  %v771 = vsub.s32 %v768, %v770
  %v772 = vrot.slane %v764, %v771
  %v773 = vcombine.high %v772, %v772
  %v775 = vunpack.c.l.s4 1966171168
  %v776 = vunpack.c.0.s8 %v775
  %v777 = vlaneseq
  %v778 = vshrl.u32 %v777, 7
  %v779 = vsub.s32 %v776, %v778
  %v780 = vrot.slane %v772, %v779
  %v782 = vunpack.c.l.s4 1966171168
  %v783 = vunpack.c.0.s8 %v782
  %v784 = vlaneseq
  %v785 = vshrl.u32 %v784, 7
  %v786 = vsub.s32 %v783, %v785
  %v787 = vrot.slane %v773, %v786
  %790 = vmatprep.subr.bf16.mxu0 0
  %791 = vmatpush1.bf16.msra.mxu0 %v212
  %792 = vmatprep.subr.bf16.mxu0 0
  %793 = vmatpush1.bf16.msra.mxu0 %v211
  %794 = vmatprep.subr.bf16.mxu0 0
  %795 = vmatpush1.bf16.msra.mxu0 %v210
  %796 = vmatprep.subr.bf16.mxu0 0
  %797 = vmatpush1.bf16.msra.mxu0 %v209
  %798 = vmatprep.subr.bf16.mxu0 0
  %799 = vmatpush1.bf16.msra.mxu0 %v208
  %800 = vmatprep.subr.bf16.mxu0 0
  %801 = vmatpush1.bf16.msra.mxu0 %v207
  %802 = vmatprep.subr.bf16.mxu0 0
  %803 = vmatpush1.bf16.msra.mxu0 %v206
  %804 = vmatprep.subr.bf16.mxu0 0
  %805 = vmatpush1.bf16.msra.mxu0 %v205
  %806 = vmatprep.subr.bf16.mxu0 0
  %807 = vmatpush2.bf16.msra.mxu0 %v220
  %808 = vmatprep.subr.bf16.mxu0 0
  %809 = vmatpush2.bf16.msra.mxu0 %v219
  %810 = vmatprep.subr.bf16.mxu0 0
  %811 = vmatpush2.bf16.msra.mxu0 %v218
  %812 = vmatprep.subr.bf16.mxu0 0
  %813 = vmatpush2.bf16.msra.mxu0 %v217
  %814 = vmatprep.subr.bf16.mxu0 0
  %815 = vmatpush2.bf16.msra.mxu0 %v216
  %816 = vmatprep.subr.bf16.mxu0 0
  %817 = vmatpush2.bf16.msra.mxu0 %v215
  %818 = vmatprep.subr.bf16.mxu0 0
  %819 = vmatpush2.bf16.msra.mxu0 %v214
  %820 = vmatprep.subr.bf16.mxu0 0
  %821 = vmatpush2.bf16.msra.mxu0 %v213
  %822 = vmatprep.mubr.bf16.mxu0 %v787
  %823 = vmatmul.mubr.bf16.gmra.mxu0 %v780
  %v824 = vpop.f32.mrf.mxu0
  %v825 = vadd.f32 0.0, %v824
  %v826 = vpop.f32.mrf.mxu0
  %v827 = vpop.f32.mrf.mxu0
  %v828 = vpop.f32.mrf.mxu0
  %829 = vdwg.mxu0
  %s830 = scalar_lea.vmem %s0, 8
  %v831 = vld [vmem:[%s830] sm:$0x3]
  %v834 = vunpack.c.l.s4 1966171168
  %v835 = vunpack.c.0.s8 %v834
  %v836 = vlaneseq
  %v837 = vshrl.u32 %v836, 7
  %v838 = vsub.s32 %v835, %v837
  %v839 = vrot.slane %v831, %v838
  %v840 = vcombine.high %v839, %v839
  %v842 = vunpack.c.l.s4 1966171168
  %v843 = vunpack.c.0.s8 %v842
  %v844 = vlaneseq
  %v845 = vshrl.u32 %v844, 7
  %v846 = vsub.s32 %v843, %v845
  %v847 = vrot.slane %v839, %v846
  %v849 = vunpack.c.l.s4 1966171168
  %v850 = vunpack.c.0.s8 %v849
  %v851 = vlaneseq
  %v852 = vshrl.u32 %v851, 7
  %v853 = vsub.s32 %v850, %v852
  %v854 = vrot.slane %v840, %v853
  %857 = vmatprep.subr.bf16.mxu0 0
  %858 = vmatpush1.bf16.msra.mxu0 %v375
  %859 = vmatprep.subr.bf16.mxu0 0
  %860 = vmatpush1.bf16.msra.mxu0 %v374
  %861 = vmatprep.subr.bf16.mxu0 0
  %862 = vmatpush1.bf16.msra.mxu0 %v373
  %863 = vmatprep.subr.bf16.mxu0 0
  %864 = vmatpush1.bf16.msra.mxu0 %v372
  %865 = vmatprep.subr.bf16.mxu0 0
  %866 = vmatpush1.bf16.msra.mxu0 %v371
  %867 = vmatprep.subr.bf16.mxu0 0
  %868 = vmatpush1.bf16.msra.mxu0 %v370
  %869 = vmatprep.subr.bf16.mxu0 0
  %870 = vmatpush1.bf16.msra.mxu0 %v369
  %871 = vmatprep.subr.bf16.mxu0 0
  %872 = vmatpush1.bf16.msra.mxu0 %v368
  %873 = vmatprep.subr.bf16.mxu0 0
  %874 = vmatpush2.bf16.msra.mxu0 %v383
  %875 = vmatprep.subr.bf16.mxu0 0
  %876 = vmatpush2.bf16.msra.mxu0 %v382
  %877 = vmatprep.subr.bf16.mxu0 0
  %878 = vmatpush2.bf16.msra.mxu0 %v381
  %879 = vmatprep.subr.bf16.mxu0 0
  %880 = vmatpush2.bf16.msra.mxu0 %v380
  %881 = vmatprep.subr.bf16.mxu0 0
  %882 = vmatpush2.bf16.msra.mxu0 %v379
  %883 = vmatprep.subr.bf16.mxu0 0
  %884 = vmatpush2.bf16.msra.mxu0 %v378
  %885 = vmatprep.subr.bf16.mxu0 0
  %886 = vmatpush2.bf16.msra.mxu0 %v377
  %887 = vmatprep.subr.bf16.mxu0 0
  %888 = vmatpush2.bf16.msra.mxu0 %v376
  %889 = vmatprep.mubr.bf16.mxu0 %v854
  %890 = vmatmul.mubr.bf16.gmra.mxu0 %v847
  %v891 = vpop.f32.mrf.mxu0
  %v892 = vadd.f32 0.0, %v891
  %v893 = vpop.f32.mrf.mxu0
  %v894 = vpop.f32.mrf.mxu0
  %v895 = vpop.f32.mrf.mxu0
  %896 = vdwg.mxu0
  %v897 = vadd.f32 %v825, %v444
  %v898 = vadd.f32 %v892, %v448
  %v901 = vcombine.low %v897, %v898
  %v903 = vunpack.c.l.s4 1983009808
  %v904 = vunpack.c.0.s8 %v903
  %v905 = vlaneseq
  %v906 = vshrl.u32 %v905, 7
  %v907 = vsub.s32 %v904, %v906
  %v908 = vrot.slane %v901, %v907
  %s910 = scalar_lea.vmem [#allocation2], 12
  %911 = vst [vmem:[%s910] sm:$0xf] %v908
  %v912 = vld [vmem:[%s830] sm:$0x3]
  %v915 = vunpack.c.l.s4 1966171168
  %v916 = vunpack.c.0.s8 %v915
  %v917 = vlaneseq
  %v918 = vshrl.u32 %v917, 7
  %v919 = vsub.s32 %v916, %v918
  %v920 = vrot.slane %v912, %v919
  %v921 = vcombine.high %v920, %v920
  %v923 = vunpack.c.l.s4 1966171168
  %v924 = vunpack.c.0.s8 %v923
  %v925 = vlaneseq
  %v926 = vshrl.u32 %v925, 7
  %v927 = vsub.s32 %v924, %v926
  %v928 = vrot.slane %v920, %v927
  %v930 = vunpack.c.l.s4 1966171168
  %v931 = vunpack.c.0.s8 %v930
  %v932 = vlaneseq
  %v933 = vshrl.u32 %v932, 7
  %v934 = vsub.s32 %v931, %v933
  %v935 = vrot.slane %v921, %v934
  %938 = vmatprep.subr.bf16.mxu0 0
  %939 = vmatpush1.bf16.msra.mxu0 %v212
  %940 = vmatprep.subr.bf16.mxu0 0
  %941 = vmatpush1.bf16.msra.mxu0 %v211
  %942 = vmatprep.subr.bf16.mxu0 0
  %943 = vmatpush1.bf16.msra.mxu0 %v210
  %944 = vmatprep.subr.bf16.mxu0 0
  %945 = vmatpush1.bf16.msra.mxu0 %v209
  %946 = vmatprep.subr.bf16.mxu0 0
  %947 = vmatpush1.bf16.msra.mxu0 %v208
  %948 = vmatprep.subr.bf16.mxu0 0
  %949 = vmatpush1.bf16.msra.mxu0 %v207
  %950 = vmatprep.subr.bf16.mxu0 0
  %951 = vmatpush1.bf16.msra.mxu0 %v206
  %952 = vmatprep.subr.bf16.mxu0 0
  %953 = vmatpush1.bf16.msra.mxu0 %v205
  %954 = vmatprep.subr.bf16.mxu0 0
  %955 = vmatpush2.bf16.msra.mxu0 %v220
  %956 = vmatprep.subr.bf16.mxu0 0
  %957 = vmatpush2.bf16.msra.mxu0 %v219
  %958 = vmatprep.subr.bf16.mxu0 0
  %959 = vmatpush2.bf16.msra.mxu0 %v218
  %960 = vmatprep.subr.bf16.mxu0 0
  %961 = vmatpush2.bf16.msra.mxu0 %v217
  %962 = vmatprep.subr.bf16.mxu0 0
  %963 = vmatpush2.bf16.msra.mxu0 %v216
  %964 = vmatprep.subr.bf16.mxu0 0
  %965 = vmatpush2.bf16.msra.mxu0 %v215
  %966 = vmatprep.subr.bf16.mxu0 0
  %967 = vmatpush2.bf16.msra.mxu0 %v214
  %968 = vmatprep.subr.bf16.mxu0 0
  %969 = vmatpush2.bf16.msra.mxu0 %v213
  %970 = vmatprep.mubr.bf16.mxu0 %v935
  %971 = vmatmul.mubr.bf16.gmra.mxu0 %v928
  %v972 = vpop.f32.mrf.mxu0
  %v973 = vadd.f32 0.0, %v972
  %v974 = vpop.f32.mrf.mxu0
  %v975 = vpop.f32.mrf.mxu0
  %v976 = vpop.f32.mrf.mxu0
  %977 = vdwg.mxu0
  %v978 = vld [vmem:[%s763] sm:$0x3]
  %v981 = vunpack.c.l.s4 1966171168
  %v982 = vunpack.c.0.s8 %v981
  %v983 = vlaneseq
  %v984 = vshrl.u32 %v983, 7
  %v985 = vsub.s32 %v982, %v984
  %v986 = vrot.slane %v978, %v985
  %v987 = vcombine.high %v986, %v986
  %v989 = vunpack.c.l.s4 1966171168
  %v990 = vunpack.c.0.s8 %v989
  %v991 = vlaneseq
  %v992 = vshrl.u32 %v991, 7
  %v993 = vsub.s32 %v990, %v992
  %v994 = vrot.slane %v986, %v993
  %v996 = vunpack.c.l.s4 1966171168
  %v997 = vunpack.c.0.s8 %v996
  %v998 = vlaneseq
  %v999 = vshrl.u32 %v998, 7
  %v1000 = vsub.s32 %v997, %v999
  %v1001 = vrot.slane %v987, %v1000
  %1004 = vmatprep.subr.bf16.mxu0 0
  %1005 = vmatpush1.bf16.msra.mxu0 %v375
  %1006 = vmatprep.subr.bf16.mxu0 0
  %1007 = vmatpush1.bf16.msra.mxu0 %v374
  %1008 = vmatprep.subr.bf16.mxu0 0
  %1009 = vmatpush1.bf16.msra.mxu0 %v373
  %1010 = vmatprep.subr.bf16.mxu0 0
  %1011 = vmatpush1.bf16.msra.mxu0 %v372
  %1012 = vmatprep.subr.bf16.mxu0 0
  %1013 = vmatpush1.bf16.msra.mxu0 %v371
  %1014 = vmatprep.subr.bf16.mxu0 0
  %1015 = vmatpush1.bf16.msra.mxu0 %v370
  %1016 = vmatprep.subr.bf16.mxu0 0
  %1017 = vmatpush1.bf16.msra.mxu0 %v369
  %1018 = vmatprep.subr.bf16.mxu0 0
  %1019 = vmatpush1.bf16.msra.mxu0 %v368
  %1020 = vmatprep.subr.bf16.mxu0 0
  %1021 = vmatpush2.bf16.msra.mxu0 %v383
  %1022 = vmatprep.subr.bf16.mxu0 0
  %1023 = vmatpush2.bf16.msra.mxu0 %v382
  %1024 = vmatprep.subr.bf16.mxu0 0
  %1025 = vmatpush2.bf16.msra.mxu0 %v381
  %1026 = vmatprep.subr.bf16.mxu0 0
  %1027 = vmatpush2.bf16.msra.mxu0 %v380
  %1028 = vmatprep.subr.bf16.mxu0 0
  %1029 = vmatpush2.bf16.msra.mxu0 %v379
  %1030 = vmatprep.subr.bf16.mxu0 0
  %1031 = vmatpush2.bf16.msra.mxu0 %v378
  %1032 = vmatprep.subr.bf16.mxu0 0
  %1033 = vmatpush2.bf16.msra.mxu0 %v377
  %1034 = vmatprep.subr.bf16.mxu0 0
  %1035 = vmatpush2.bf16.msra.mxu0 %v376
  %1036 = vmatprep.mubr.bf16.mxu0 %v1001
  %1037 = vmatmul.mubr.bf16.gmra.mxu0 %v994
  %v1038 = vpop.f32.mrf.mxu0
  %v1039 = vadd.f32 0.0, %v1038
  %v1040 = vpop.f32.mrf.mxu0
  %v1041 = vpop.f32.mrf.mxu0
  %v1042 = vpop.f32.mrf.mxu0
  %1043 = vdwg.mxu0
  %v1044 = vadd.f32 %v973, %v444
  %v1045 = vadd.f32 %v1039, %v448
  %v1048 = vcombine.low %v1044, %v1045
  %v1050 = vunpack.c.l.s4 1983009808
  %v1051 = vunpack.c.0.s8 %v1050
  %v1052 = vlaneseq
  %v1053 = vshrl.u32 %v1052, 7
  %v1054 = vsub.s32 %v1051, %v1053
  %v1055 = vrot.slane %v1048, %v1054
  %s1057 = scalar_lea.vmem [#allocation2], 16
  %1058 = vst [vmem:[%s1057] sm:$0xf] %v1055
  %v1059 = vld [vmem:[%s681] sm:$0x3]
  %v1062 = vunpack.c.l.s4 1966171168
  %v1063 = vunpack.c.0.s8 %v1062
  %v1064 = vlaneseq
  %v1065 = vshrl.u32 %v1064, 7
  %v1066 = vsub.s32 %v1063, %v1065
  %v1067 = vrot.slane %v1059, %v1066
  %v1068 = vcombine.high %v1067, %v1067
  %v1070 = vunpack.c.l.s4 1966171168
  %v1071 = vunpack.c.0.s8 %v1070
  %v1072 = vlaneseq
  %v1073 = vshrl.u32 %v1072, 7
  %v1074 = vsub.s32 %v1071, %v1073
  %v1075 = vrot.slane %v1067, %v1074
  %v1077 = vunpack.c.l.s4 1966171168
  %v1078 = vunpack.c.0.s8 %v1077
  %v1079 = vlaneseq
  %v1080 = vshrl.u32 %v1079, 7
  %v1081 = vsub.s32 %v1078, %v1080
  %v1082 = vrot.slane %v1068, %v1081
  %1085 = vmatprep.subr.bf16.mxu0 0
  %1086 = vmatpush1.bf16.msra.mxu0 %v212
  %1087 = vmatprep.subr.bf16.mxu0 0
  %1088 = vmatpush1.bf16.msra.mxu0 %v211
  %1089 = vmatprep.subr.bf16.mxu0 0
  %1090 = vmatpush1.bf16.msra.mxu0 %v210
  %1091 = vmatprep.subr.bf16.mxu0 0
  %1092 = vmatpush1.bf16.msra.mxu0 %v209
  %1093 = vmatprep.subr.bf16.mxu0 0
  %1094 = vmatpush1.bf16.msra.mxu0 %v208
  %1095 = vmatprep.subr.bf16.mxu0 0
  %1096 = vmatpush1.bf16.msra.mxu0 %v207
  %1097 = vmatprep.subr.bf16.mxu0 0
  %1098 = vmatpush1.bf16.msra.mxu0 %v206
  %1099 = vmatprep.subr.bf16.mxu0 0
  %1100 = vmatpush1.bf16.msra.mxu0 %v205
  %1101 = vmatprep.subr.bf16.mxu0 0
  %1102 = vmatpush2.bf16.msra.mxu0 %v220
  %1103 = vmatprep.subr.bf16.mxu0 0
  %1104 = vmatpush2.bf16.msra.mxu0 %v219
  %1105 = vmatprep.subr.bf16.mxu0 0
  %1106 = vmatpush2.bf16.msra.mxu0 %v218
  %1107 = vmatprep.subr.bf16.mxu0 0
  %1108 = vmatpush2.bf16.msra.mxu0 %v217
  %1109 = vmatprep.subr.bf16.mxu0 0
  %1110 = vmatpush2.bf16.msra.mxu0 %v216
  %1111 = vmatprep.subr.bf16.mxu0 0
  %1112 = vmatpush2.bf16.msra.mxu0 %v215
  %1113 = vmatprep.subr.bf16.mxu0 0
  %1114 = vmatpush2.bf16.msra.mxu0 %v214
  %1115 = vmatprep.subr.bf16.mxu0 0
  %1116 = vmatpush2.bf16.msra.mxu0 %v213
  %1117 = vmatprep.mubr.bf16.mxu0 %v1082
  %1118 = vmatmul.mubr.bf16.gmra.mxu0 %v1075
  %v1119 = vpop.f32.mrf.mxu0
  %v1120 = vadd.f32 0.0, %v1119
  %v1121 = vpop.f32.mrf.mxu0
  %v1122 = vpop.f32.mrf.mxu0
  %v1123 = vpop.f32.mrf.mxu0
  %1124 = vdwg.mxu0
  %v1125 = vld [vmem:[%s614] sm:$0x3]
  %v1128 = vunpack.c.l.s4 1966171168
  %v1129 = vunpack.c.0.s8 %v1128
  %v1130 = vlaneseq
  %v1131 = vshrl.u32 %v1130, 7
  %v1132 = vsub.s32 %v1129, %v1131
  %v1133 = vrot.slane %v1125, %v1132
  %v1134 = vcombine.high %v1133, %v1133
  %v1136 = vunpack.c.l.s4 1966171168
  %v1137 = vunpack.c.0.s8 %v1136
  %v1138 = vlaneseq
  %v1139 = vshrl.u32 %v1138, 7
  %v1140 = vsub.s32 %v1137, %v1139
  %v1141 = vrot.slane %v1133, %v1140
  %v1143 = vunpack.c.l.s4 1966171168
  %v1144 = vunpack.c.0.s8 %v1143
  %v1145 = vlaneseq
  %v1146 = vshrl.u32 %v1145, 7
  %v1147 = vsub.s32 %v1144, %v1146
  %v1148 = vrot.slane %v1134, %v1147
  %1151 = vmatprep.subr.bf16.mxu0 0
  %1152 = vmatpush1.bf16.msra.mxu0 %v375
  %1153 = vmatprep.subr.bf16.mxu0 0
  %1154 = vmatpush1.bf16.msra.mxu0 %v374
  %1155 = vmatprep.subr.bf16.mxu0 0
  %1156 = vmatpush1.bf16.msra.mxu0 %v373
  %1157 = vmatprep.subr.bf16.mxu0 0
  %1158 = vmatpush1.bf16.msra.mxu0 %v372
  %1159 = vmatprep.subr.bf16.mxu0 0
  %1160 = vmatpush1.bf16.msra.mxu0 %v371
  %1161 = vmatprep.subr.bf16.mxu0 0
  %1162 = vmatpush1.bf16.msra.mxu0 %v370
  %1163 = vmatprep.subr.bf16.mxu0 0
  %1164 = vmatpush1.bf16.msra.mxu0 %v369
  %1165 = vmatprep.subr.bf16.mxu0 0
  %1166 = vmatpush1.bf16.msra.mxu0 %v368
  %1167 = vmatprep.subr.bf16.mxu0 0
  %1168 = vmatpush2.bf16.msra.mxu0 %v383
  %1169 = vmatprep.subr.bf16.mxu0 0
  %1170 = vmatpush2.bf16.msra.mxu0 %v382
  %1171 = vmatprep.subr.bf16.mxu0 0
  %1172 = vmatpush2.bf16.msra.mxu0 %v381
  %1173 = vmatprep.subr.bf16.mxu0 0
  %1174 = vmatpush2.bf16.msra.mxu0 %v380
  %1175 = vmatprep.subr.bf16.mxu0 0
  %1176 = vmatpush2.bf16.msra.mxu0 %v379
  %1177 = vmatprep.subr.bf16.mxu0 0
  %1178 = vmatpush2.bf16.msra.mxu0 %v378
  %1179 = vmatprep.subr.bf16.mxu0 0
  %1180 = vmatpush2.bf16.msra.mxu0 %v377
  %1181 = vmatprep.subr.bf16.mxu0 0
  %1182 = vmatpush2.bf16.msra.mxu0 %v376
  %1183 = vmatprep.mubr.bf16.mxu0 %v1148
  %1184 = vmatmul.mubr.bf16.gmra.mxu0 %v1141
  %v1185 = vpop.f32.mrf.mxu0
  %v1186 = vadd.f32 0.0, %v1185
  %v1187 = vpop.f32.mrf.mxu0
  %v1188 = vpop.f32.mrf.mxu0
  %v1189 = vpop.f32.mrf.mxu0
  %1190 = vdwg.mxu0
  %v1191 = vadd.f32 %v1120, %v444
  %v1192 = vadd.f32 %v1186, %v448
  %v1195 = vcombine.low %v1191, %v1192
  %v1197 = vunpack.c.l.s4 1983009808
  %v1198 = vunpack.c.0.s8 %v1197
  %v1199 = vlaneseq
  %v1200 = vshrl.u32 %v1199, 7
  %v1201 = vsub.s32 %v1198, %v1200
  %v1202 = vrot.slane %v1195, %v1201
  %s1204 = scalar_lea.vmem [#allocation2], 20
  %1205 = vst [vmem:[%s1204] sm:$0xf] %v1202
  %v1206 = vld [vmem:[%s532] sm:$0x3]
  %v1209 = vunpack.c.l.s4 1966171168
  %v1210 = vunpack.c.0.s8 %v1209
  %v1211 = vlaneseq
  %v1212 = vshrl.u32 %v1211, 7
  %v1213 = vsub.s32 %v1210, %v1212
  %v1214 = vrot.slane %v1206, %v1213
  %v1215 = vcombine.high %v1214, %v1214
  %v1217 = vunpack.c.l.s4 1966171168
  %v1218 = vunpack.c.0.s8 %v1217
  %v1219 = vlaneseq
  %v1220 = vshrl.u32 %v1219, 7
  %v1221 = vsub.s32 %v1218, %v1220
  %v1222 = vrot.slane %v1214, %v1221
  %v1224 = vunpack.c.l.s4 1966171168
  %v1225 = vunpack.c.0.s8 %v1224
  %v1226 = vlaneseq
  %v1227 = vshrl.u32 %v1226, 7
  %v1228 = vsub.s32 %v1225, %v1227
  %v1229 = vrot.slane %v1215, %v1228
  %1232 = vmatprep.subr.bf16.mxu0 0
  %1233 = vmatpush1.bf16.msra.mxu0 %v212
  %1234 = vmatprep.subr.bf16.mxu0 0
  %1235 = vmatpush1.bf16.msra.mxu0 %v211
  %1236 = vmatprep.subr.bf16.mxu0 0
  %1237 = vmatpush1.bf16.msra.mxu0 %v210
  %1238 = vmatprep.subr.bf16.mxu0 0
  %1239 = vmatpush1.bf16.msra.mxu0 %v209
  %1240 = vmatprep.subr.bf16.mxu0 0
  %1241 = vmatpush1.bf16.msra.mxu0 %v208
  %1242 = vmatprep.subr.bf16.mxu0 0
  %1243 = vmatpush1.bf16.msra.mxu0 %v207
  %1244 = vmatprep.subr.bf16.mxu0 0
  %1245 = vmatpush1.bf16.msra.mxu0 %v206
  %1246 = vmatprep.subr.bf16.mxu0 0
  %1247 = vmatpush1.bf16.msra.mxu0 %v205
  %1248 = vmatprep.subr.bf16.mxu0 0
  %1249 = vmatpush2.bf16.msra.mxu0 %v220
  %1250 = vmatprep.subr.bf16.mxu0 0
  %1251 = vmatpush2.bf16.msra.mxu0 %v219
  %1252 = vmatprep.subr.bf16.mxu0 0
  %1253 = vmatpush2.bf16.msra.mxu0 %v218
  %1254 = vmatprep.subr.bf16.mxu0 0
  %1255 = vmatpush2.bf16.msra.mxu0 %v217
  %1256 = vmatprep.subr.bf16.mxu0 0
  %1257 = vmatpush2.bf16.msra.mxu0 %v216
  %1258 = vmatprep.subr.bf16.mxu0 0
  %1259 = vmatpush2.bf16.msra.mxu0 %v215
  %1260 = vmatprep.subr.bf16.mxu0 0
  %1261 = vmatpush2.bf16.msra.mxu0 %v214
  %1262 = vmatprep.subr.bf16.mxu0 0
  %1263 = vmatpush2.bf16.msra.mxu0 %v213
  %1264 = vmatprep.mubr.bf16.mxu0 %v1229
  %1265 = vmatmul.mubr.bf16.gmra.mxu0 %v1222
  %v1266 = vpop.f32.mrf.mxu0
  %v1267 = vadd.f32 0.0, %v1266
  %v1268 = vpop.f32.mrf.mxu0
  %v1269 = vpop.f32.mrf.mxu0
  %v1270 = vpop.f32.mrf.mxu0
  %1271 = vdwg.mxu0
  %v1272 = vld [vmem:[%s465] sm:$0x3]
  %v1275 = vunpack.c.l.s4 1966171168
  %v1276 = vunpack.c.0.s8 %v1275
  %v1277 = vlaneseq
  %v1278 = vshrl.u32 %v1277, 7
  %v1279 = vsub.s32 %v1276, %v1278
  %v1280 = vrot.slane %v1272, %v1279
  %v1281 = vcombine.high %v1280, %v1280
  %v1283 = vunpack.c.l.s4 1966171168
  %v1284 = vunpack.c.0.s8 %v1283
  %v1285 = vlaneseq
  %v1286 = vshrl.u32 %v1285, 7
  %v1287 = vsub.s32 %v1284, %v1286
  %v1288 = vrot.slane %v1280, %v1287
  %v1290 = vunpack.c.l.s4 1966171168
  %v1291 = vunpack.c.0.s8 %v1290
  %v1292 = vlaneseq
  %v1293 = vshrl.u32 %v1292, 7
  %v1294 = vsub.s32 %v1291, %v1293
  %v1295 = vrot.slane %v1281, %v1294
  %1298 = vmatprep.subr.bf16.mxu0 0
  %1299 = vmatpush1.bf16.msra.mxu0 %v375
  %1300 = vmatprep.subr.bf16.mxu0 0
  %1301 = vmatpush1.bf16.msra.mxu0 %v374
  %1302 = vmatprep.subr.bf16.mxu0 0
  %1303 = vmatpush1.bf16.msra.mxu0 %v373
  %1304 = vmatprep.subr.bf16.mxu0 0
  %1305 = vmatpush1.bf16.msra.mxu0 %v372
  %1306 = vmatprep.subr.bf16.mxu0 0
  %1307 = vmatpush1.bf16.msra.mxu0 %v371
  %1308 = vmatprep.subr.bf16.mxu0 0
  %1309 = vmatpush1.bf16.msra.mxu0 %v370
  %1310 = vmatprep.subr.bf16.mxu0 0
  %1311 = vmatpush1.bf16.msra.mxu0 %v369
  %1312 = vmatprep.subr.bf16.mxu0 0
  %1313 = vmatpush1.bf16.msra.mxu0 %v368
  %1314 = vmatprep.subr.bf16.mxu0 0
  %1315 = vmatpush2.bf16.msra.mxu0 %v383
  %1316 = vmatprep.subr.bf16.mxu0 0
  %1317 = vmatpush2.bf16.msra.mxu0 %v382
  %1318 = vmatprep.subr.bf16.mxu0 0
  %1319 = vmatpush2.bf16.msra.mxu0 %v381
  %1320 = vmatprep.subr.bf16.mxu0 0
  %1321 = vmatpush2.bf16.msra.mxu0 %v380
  %1322 = vmatprep.subr.bf16.mxu0 0
  %1323 = vmatpush2.bf16.msra.mxu0 %v379
  %1324 = vmatprep.subr.bf16.mxu0 0
  %1325 = vmatpush2.bf16.msra.mxu0 %v378
  %1326 = vmatprep.subr.bf16.mxu0 0
  %1327 = vmatpush2.bf16.msra.mxu0 %v377
  %1328 = vmatprep.subr.bf16.mxu0 0
  %1329 = vmatpush2.bf16.msra.mxu0 %v376
  %1330 = vmatprep.mubr.bf16.mxu0 %v1295
  %1331 = vmatmul.mubr.bf16.gmra.mxu0 %v1288
  %v1332 = vpop.f32.mrf.mxu0
  %v1333 = vadd.f32 0.0, %v1332
  %v1334 = vpop.f32.mrf.mxu0
  %v1335 = vpop.f32.mrf.mxu0
  %v1336 = vpop.f32.mrf.mxu0
  %1337 = vdwg.mxu0
  %v1338 = vadd.f32 %v1267, %v444
  %v1339 = vadd.f32 %v1333, %v448
  %v1342 = vcombine.low %v1338, %v1339
  %v1344 = vunpack.c.l.s4 1983009808
  %v1345 = vunpack.c.0.s8 %v1344
  %v1346 = vlaneseq
  %v1347 = vshrl.u32 %v1346, 7
  %v1348 = vsub.s32 %v1345, %v1347
  %v1349 = vrot.slane %v1342, %v1348
  %s1351 = scalar_lea.vmem [#allocation2], 24
  %1352 = vst [vmem:[%s1351] sm:$0xf] %v1349
  %v1353 = vld [vmem:[%s277] sm:$0x3]
  %v1356 = vunpack.c.l.s4 1966171168
  %v1357 = vunpack.c.0.s8 %v1356
  %v1358 = vlaneseq
  %v1359 = vshrl.u32 %v1358, 7
  %v1360 = vsub.s32 %v1357, %v1359
  %v1361 = vrot.slane %v1353, %v1360
  %v1362 = vcombine.high %v1361, %v1361
  %v1364 = vunpack.c.l.s4 1966171168
  %v1365 = vunpack.c.0.s8 %v1364
  %v1366 = vlaneseq
  %v1367 = vshrl.u32 %v1366, 7
  %v1368 = vsub.s32 %v1365, %v1367
  %v1369 = vrot.slane %v1361, %v1368
  %v1371 = vunpack.c.l.s4 1966171168
  %v1372 = vunpack.c.0.s8 %v1371
  %v1373 = vlaneseq
  %v1374 = vshrl.u32 %v1373, 7
  %v1375 = vsub.s32 %v1372, %v1374
  %v1376 = vrot.slane %v1362, %v1375
  %1379 = vmatprep.subr.bf16.mxu0 0
  %1380 = vmatpush1.bf16.msra.mxu0 %v212
  %1381 = vmatprep.subr.bf16.mxu0 0
  %1382 = vmatpush1.bf16.msra.mxu0 %v211
  %1383 = vmatprep.subr.bf16.mxu0 0
  %1384 = vmatpush1.bf16.msra.mxu0 %v210
  %1385 = vmatprep.subr.bf16.mxu0 0
  %1386 = vmatpush1.bf16.msra.mxu0 %v209
  %1387 = vmatprep.subr.bf16.mxu0 0
  %1388 = vmatpush1.bf16.msra.mxu0 %v208
  %1389 = vmatprep.subr.bf16.mxu0 0
  %1390 = vmatpush1.bf16.msra.mxu0 %v207
  %1391 = vmatprep.subr.bf16.mxu0 0
  %1392 = vmatpush1.bf16.msra.mxu0 %v206
  %1393 = vmatprep.subr.bf16.mxu0 0
  %1394 = vmatpush1.bf16.msra.mxu0 %v205
  %1395 = vmatprep.subr.bf16.mxu0 0
  %1396 = vmatpush2.bf16.msra.mxu0 %v220
  %1397 = vmatprep.subr.bf16.mxu0 0
  %1398 = vmatpush2.bf16.msra.mxu0 %v219
  %1399 = vmatprep.subr.bf16.mxu0 0
  %1400 = vmatpush2.bf16.msra.mxu0 %v218
  %1401 = vmatprep.subr.bf16.mxu0 0
  %1402 = vmatpush2.bf16.msra.mxu0 %v217
  %1403 = vmatprep.subr.bf16.mxu0 0
  %1404 = vmatpush2.bf16.msra.mxu0 %v216
  %1405 = vmatprep.subr.bf16.mxu0 0
  %1406 = vmatpush2.bf16.msra.mxu0 %v215
  %1407 = vmatprep.subr.bf16.mxu0 0
  %1408 = vmatpush2.bf16.msra.mxu0 %v214
  %1409 = vmatprep.subr.bf16.mxu0 0
  %1410 = vmatpush2.bf16.msra.mxu0 %v213
  %1411 = vmatprep.mubr.bf16.mxu0 %v1376
  %1412 = vmatmul.mubr.bf16.gmra.mxu0 %v1369
  %v1413 = vpop.f32.mrf.mxu0
  %v1414 = vadd.f32 0.0, %v1413
  %v1415 = vpop.f32.mrf.mxu0
  %v1416 = vpop.f32.mrf.mxu0
  %v1417 = vpop.f32.mrf.mxu0
  %1418 = vdwg.mxu0
  %v1419 = vld [vmem:[%s0] sm:$0x3]
  %v1422 = vunpack.c.l.s4 1966171168
  %v1423 = vunpack.c.0.s8 %v1422
  %v1424 = vlaneseq
  %v1425 = vshrl.u32 %v1424, 7
  %v1426 = vsub.s32 %v1423, %v1425
  %v1427 = vrot.slane %v1419, %v1426
  %v1428 = vcombine.high %v1427, %v1427
  %v1430 = vunpack.c.l.s4 1966171168
  %v1431 = vunpack.c.0.s8 %v1430
  %v1432 = vlaneseq
  %v1433 = vshrl.u32 %v1432, 7
  %v1434 = vsub.s32 %v1431, %v1433
  %v1435 = vrot.slane %v1427, %v1434
  %v1437 = vunpack.c.l.s4 1966171168
  %v1438 = vunpack.c.0.s8 %v1437
  %v1439 = vlaneseq
  %v1440 = vshrl.u32 %v1439, 7
  %v1441 = vsub.s32 %v1438, %v1440
  %v1442 = vrot.slane %v1428, %v1441
  %1445 = vmatprep.subr.bf16.mxu0 0
  %1446 = vmatpush1.bf16.msra.mxu0 %v375
  %1447 = vmatprep.subr.bf16.mxu0 0
  %1448 = vmatpush1.bf16.msra.mxu0 %v374
  %1449 = vmatprep.subr.bf16.mxu0 0
  %1450 = vmatpush1.bf16.msra.mxu0 %v373
  %1451 = vmatprep.subr.bf16.mxu0 0
  %1452 = vmatpush1.bf16.msra.mxu0 %v372
  %1453 = vmatprep.subr.bf16.mxu0 0
  %1454 = vmatpush1.bf16.msra.mxu0 %v371
  %1455 = vmatprep.subr.bf16.mxu0 0
  %1456 = vmatpush1.bf16.msra.mxu0 %v370
  %1457 = vmatprep.subr.bf16.mxu0 0
  %1458 = vmatpush1.bf16.msra.mxu0 %v369
  %1459 = vmatprep.subr.bf16.mxu0 0
  %1460 = vmatpush1.bf16.msra.mxu0 %v368
  %1461 = vmatprep.subr.bf16.mxu0 0
  %1462 = vmatpush2.bf16.msra.mxu0 %v383
  %1463 = vmatprep.subr.bf16.mxu0 0
  %1464 = vmatpush2.bf16.msra.mxu0 %v382
  %1465 = vmatprep.subr.bf16.mxu0 0
  %1466 = vmatpush2.bf16.msra.mxu0 %v381
  %1467 = vmatprep.subr.bf16.mxu0 0
  %1468 = vmatpush2.bf16.msra.mxu0 %v380
  %1469 = vmatprep.subr.bf16.mxu0 0
  %1470 = vmatpush2.bf16.msra.mxu0 %v379
  %1471 = vmatprep.subr.bf16.mxu0 0
  %1472 = vmatpush2.bf16.msra.mxu0 %v378
  %1473 = vmatprep.subr.bf16.mxu0 0
  %1474 = vmatpush2.bf16.msra.mxu0 %v377
  %1475 = vmatprep.subr.bf16.mxu0 0
  %1476 = vmatpush2.bf16.msra.mxu0 %v376
  %1477 = vmatprep.mubr.bf16.mxu0 %v1442
  %1478 = vmatmul.mubr.bf16.gmra.mxu0 %v1435
  %v1479 = vpop.f32.mrf.mxu0
  %v1480 = vadd.f32 0.0, %v1479
  %v1481 = vpop.f32.mrf.mxu0
  %v1482 = vpop.f32.mrf.mxu0
  %v1483 = vpop.f32.mrf.mxu0
  %1484 = vdwg.mxu0
  %v1485 = vadd.f32 %v1414, %v444
  %v1486 = vadd.f32 %v1480, %v448
  %v1489 = vcombine.low %v1485, %v1486
  %v1491 = vunpack.c.l.s4 1983009808
  %v1492 = vunpack.c.0.s8 %v1491
  %v1493 = vlaneseq
  %v1494 = vshrl.u32 %v1493, 7
  %v1495 = vsub.s32 %v1492, %v1494
  %v1496 = vrot.slane %v1489, %v1495
  %s1498 = scalar_lea.vmem [#allocation2], 28
  %1499 = vst [vmem:[%s1498] sm:$0xf] %v1496
  %1500 = vst [vmem:[#allocation3] sm:$0xf] 0.0
  %v1501 = vld [vmem:[#allocation3] sm:$0xf]
  %v1504 = vunpack.c.l.s4 1983009808
  %v1505 = vunpack.c.0.s8 %v1504
  %v1506 = vlaneseq
  %v1507 = vshrl.u32 %v1506, 7
  %v1508 = vsub.s32 %v1505, %v1507
  %v1509 = vrot.slane %v1501, %v1508
  %v1510 = vcombine.high %v1509, %v1509
  %v1513 = vpack.c.bf16 %v1509, %v1509
  %v1514 = vpack.c.bf16 %v1510, %v1510
  %v1547 = vunpack.c.l.b16 %v19
  %v1548 = vunpack.c.h.b16 %v19
  %v1549 = vunpack.c.l.b16 %v20
  %v1550 = vunpack.c.h.b16 %v20
  %v1551 = vunpack.c.l.b16 %v21
  %v1552 = vunpack.c.h.b16 %v21
  %v1553 = vunpack.c.l.b16 %v22
  %v1554 = vunpack.c.h.b16 %v22
  %v1555 = vunpack.c.l.b16 %v23
  %v1556 = vunpack.c.h.b16 %v23
  %v1557 = vunpack.c.l.b16 %v24
  %v1558 = vunpack.c.h.b16 %v24
  %v1559 = vunpack.c.l.b16 %v25
  %v1560 = vunpack.c.h.b16 %v25
  %v1561 = vunpack.c.l.b16 %v26
  %v1562 = vunpack.c.h.b16 %v26
  %v1563 = vunpack.c.l.b16 %v27
  %v1564 = vunpack.c.h.b16 %v27
  %v1565 = vunpack.c.l.b16 %v28
  %v1566 = vunpack.c.h.b16 %v28
  %v1567 = vunpack.c.l.b16 %v29
  %v1568 = vunpack.c.h.b16 %v29
  %v1569 = vunpack.c.l.b16 %v30
  %v1570 = vunpack.c.h.b16 %v30
  %v1571 = vunpack.c.l.b16 %v31
  %v1572 = vunpack.c.h.b16 %v31
  %v1573 = vunpack.c.l.b16 %v32
  %v1574 = vunpack.c.h.b16 %v32
  %v1575 = vunpack.c.l.b16 %v33
  %v1576 = vunpack.c.h.b16 %v33
  %v1577 = vunpack.c.l.b16 %v34
  %v1578 = vunpack.c.h.b16 %v34
  %v1579 = vunpack.c.l.b16 %v35
  %v1580 = vunpack.c.h.b16 %v35
  %v1581 = vunpack.c.l.b16 %v36
  %v1582 = vunpack.c.h.b16 %v36
  %v1583 = vunpack.c.l.b16 %v37
  %v1584 = vunpack.c.h.b16 %v37
  %v1585 = vunpack.c.l.b16 %v38
  %v1586 = vunpack.c.h.b16 %v38
  %v1587 = vunpack.c.l.b16 %v39
  %v1588 = vunpack.c.h.b16 %v39
  %v1589 = vunpack.c.l.b16 %v40
  %v1590 = vunpack.c.h.b16 %v40
  %v1591 = vunpack.c.l.b16 %v41
  %v1592 = vunpack.c.h.b16 %v41
  %v1593 = vunpack.c.l.b16 %v42
  %v1594 = vunpack.c.h.b16 %v42
  %v1595 = vunpack.c.l.b16 %v43
  %v1596 = vunpack.c.h.b16 %v43
  %v1597 = vunpack.c.l.b16 %v44
  %v1598 = vunpack.c.h.b16 %v44
  %v1599 = vunpack.c.l.b16 %v45
  %v1600 = vunpack.c.h.b16 %v45
  %v1601 = vunpack.c.l.b16 %v46
  %v1602 = vunpack.c.h.b16 %v46
  %v1603 = vunpack.c.l.b16 %v47
  %v1604 = vunpack.c.h.b16 %v47
  %v1605 = vunpack.c.l.b16 %v48
  %v1606 = vunpack.c.h.b16 %v48
  %v1607 = vunpack.c.l.b16 %v49
  %v1608 = vunpack.c.h.b16 %v49
  %v1609 = vunpack.c.l.b16 %v50
  %v1610 = vunpack.c.h.b16 %v50
  %v1611 = vpack.c.b16 %v1549, %v1547
  %v1612 = vpack.c.b16 %v1550, %v1548
  %v1613 = vpack.c.b16 %v1553, %v1551
  %v1614 = vpack.c.b16 %v1554, %v1552
  %v1615 = vpack.c.b16 %v1557, %v1555
  %v1616 = vpack.c.b16 %v1558, %v1556
  %v1617 = vpack.c.b16 %v1561, %v1559
  %v1618 = vpack.c.b16 %v1562, %v1560
  %v1619 = vpack.c.b16 %v1565, %v1563
  %v1620 = vpack.c.b16 %v1566, %v1564
  %v1621 = vpack.c.b16 %v1569, %v1567
  %v1622 = vpack.c.b16 %v1570, %v1568
  %v1623 = vpack.c.b16 %v1573, %v1571
  %v1624 = vpack.c.b16 %v1574, %v1572
  %v1625 = vpack.c.b16 %v1577, %v1575
  %v1626 = vpack.c.b16 %v1578, %v1576
  %v1627 = vpack.c.b16 %v1581, %v1579
  %v1628 = vpack.c.b16 %v1582, %v1580
  %v1629 = vpack.c.b16 %v1585, %v1583
  %v1630 = vpack.c.b16 %v1586, %v1584
  %v1631 = vpack.c.b16 %v1589, %v1587
  %v1632 = vpack.c.b16 %v1590, %v1588
  %v1633 = vpack.c.b16 %v1593, %v1591
  %v1634 = vpack.c.b16 %v1594, %v1592
  %v1635 = vpack.c.b16 %v1597, %v1595
  %v1636 = vpack.c.b16 %v1598, %v1596
  %v1637 = vpack.c.b16 %v1601, %v1599
  %v1638 = vpack.c.b16 %v1602, %v1600
  %v1639 = vpack.c.b16 %v1605, %v1603
  %v1640 = vpack.c.b16 %v1606, %v1604
  %v1641 = vpack.c.b16 %v1609, %v1607
  %v1642 = vpack.c.b16 %v1610, %v1608
  %1675 = vmatprep.subr.bf16.mxu0 %v1626
  %1676 = vmatpush1.bf16.msra.mxu0 %v1625
  %1677 = vmatprep.subr.bf16.mxu0 %v1624
  %1678 = vmatpush1.bf16.msra.mxu0 %v1623
  %1679 = vmatprep.subr.bf16.mxu0 %v1622
  %1680 = vmatpush1.bf16.msra.mxu0 %v1621
  %1681 = vmatprep.subr.bf16.mxu0 %v1620
  %1682 = vmatpush1.bf16.msra.mxu0 %v1619
  %1683 = vmatprep.subr.bf16.mxu0 %v1618
  %1684 = vmatpush1.bf16.msra.mxu0 %v1617
  %1685 = vmatprep.subr.bf16.mxu0 %v1616
  %1686 = vmatpush1.bf16.msra.mxu0 %v1615
  %1687 = vmatprep.subr.bf16.mxu0 %v1614
  %1688 = vmatpush1.bf16.msra.mxu0 %v1613
  %1689 = vmatprep.subr.bf16.mxu0 %v1612
  %1690 = vmatpush1.bf16.msra.mxu0 %v1611
  %1691 = vmatprep.subr.bf16.mxu0 %v1642
  %1692 = vmatpush2.bf16.msra.mxu0 %v1641
  %1693 = vmatprep.subr.bf16.mxu0 %v1640
  %1694 = vmatpush2.bf16.msra.mxu0 %v1639
  %1695 = vmatprep.subr.bf16.mxu0 %v1638
  %1696 = vmatpush2.bf16.msra.mxu0 %v1637
  %1697 = vmatprep.subr.bf16.mxu0 %v1636
  %1698 = vmatpush2.bf16.msra.mxu0 %v1635
  %1699 = vmatprep.subr.bf16.mxu0 %v1634
  %1700 = vmatpush2.bf16.msra.mxu0 %v1633
  %1701 = vmatprep.subr.bf16.mxu0 %v1632
  %1702 = vmatpush2.bf16.msra.mxu0 %v1631
  %1703 = vmatprep.subr.bf16.mxu0 %v1630
  %1704 = vmatpush2.bf16.msra.mxu0 %v1629
  %1705 = vmatprep.subr.bf16.mxu0 %v1628
  %1706 = vmatpush2.bf16.msra.mxu0 %v1627
  %1707 = vmatprep.mubr.bf16.mxu0 %v1514
  %1708 = vmatmul.mubr.bf16.gmra.mxu0 %v1513
  %v1709 = vpop.f32.mrf.mxu0
  %v1710 = vadd.f32 0.0, %v1709
  %v1711 = vpop.f32.mrf.mxu0
  %v1712 = vadd.f32 0.0, %v1711
  %v1713 = vpop.f32.mrf.mxu0
  %v1714 = vpop.f32.mrf.mxu0
  %1715 = vdwg.mxu0
  %v1716 = vld [vmem:[#allocation2] sm:$0xf]
  %v1719 = vcombine.low %v1710, %v1712
  %v1721 = vunpack.c.l.s4 1983009808
  %v1722 = vunpack.c.0.s8 %v1721
  %v1723 = vlaneseq
  %v1724 = vshrl.u32 %v1723, 7
  %v1725 = vsub.s32 %v1722, %v1724
  %v1726 = vrot.slane %v1719, %v1725
  %v1728 = vadd.f32 %v1716, %v1726
  %v1729 = vtanh.pop %v1728
  %1730 = vst [vmem:[#allocation3] sm:$0xf] %v1729
  %v1731 = vpack.c.bf16 %v1729, %v1729
  %1732 = vst [vmem:[%s4] sm:$0x1] %v1731
  %v1735 = vunpack.c.l.s4 1983009808
  %v1736 = vunpack.c.0.s8 %v1735
  %v1737 = vlaneseq
  %v1738 = vshrl.u32 %v1737, 7
  %v1739 = vsub.s32 %v1736, %v1738
  %v1740 = vrot.slane %v1729, %v1739
  %v1741 = vcombine.high %v1740, %v1740
  %v1743 = vpack.c.bf16 %v1741, %v1741
  %s1744 = scalar_lea.vmem %s4, 14
  %1745 = vst [vmem:[%s1744 + $0x1] sm:$0x1] %v1743
  %v1746 = vld [vmem:[#allocation3] sm:$0xf]
  %v1749 = vunpack.c.l.s4 1983009808
  %v1750 = vunpack.c.0.s8 %v1749
  %v1751 = vlaneseq
  %v1752 = vshrl.u32 %v1751, 7
  %v1753 = vsub.s32 %v1750, %v1752
  %v1754 = vrot.slane %v1746, %v1753
  %v1755 = vcombine.high %v1754, %v1754
  %v1758 = vpack.c.bf16 %v1754, %v1754
  %v1759 = vpack.c.bf16 %v1755, %v1755
  %1760 = vmatprep.subr.bf16.mxu0 %v1626
  %1761 = vmatpush1.bf16.msra.mxu0 %v1625
  %1762 = vmatprep.subr.bf16.mxu0 %v1624
  %1763 = vmatpush1.bf16.msra.mxu0 %v1623
  %1764 = vmatprep.subr.bf16.mxu0 %v1622
  %1765 = vmatpush1.bf16.msra.mxu0 %v1621
  %1766 = vmatprep.subr.bf16.mxu0 %v1620
  %1767 = vmatpush1.bf16.msra.mxu0 %v1619
  %1768 = vmatprep.subr.bf16.mxu0 %v1618
  %1769 = vmatpush1.bf16.msra.mxu0 %v1617
  %1770 = vmatprep.subr.bf16.mxu0 %v1616
  %1771 = vmatpush1.bf16.msra.mxu0 %v1615
  %1772 = vmatprep.subr.bf16.mxu0 %v1614
  %1773 = vmatpush1.bf16.msra.mxu0 %v1613
  %1774 = vmatprep.subr.bf16.mxu0 %v1612
  %1775 = vmatpush1.bf16.msra.mxu0 %v1611
  %1776 = vmatprep.subr.bf16.mxu0 %v1642
  %1777 = vmatpush2.bf16.msra.mxu0 %v1641
  %1778 = vmatprep.subr.bf16.mxu0 %v1640
  %1779 = vmatpush2.bf16.msra.mxu0 %v1639
  %1780 = vmatprep.subr.bf16.mxu0 %v1638
  %1781 = vmatpush2.bf16.msra.mxu0 %v1637
  %1782 = vmatprep.subr.bf16.mxu0 %v1636
  %1783 = vmatpush2.bf16.msra.mxu0 %v1635
  %1784 = vmatprep.subr.bf16.mxu0 %v1634
  %1785 = vmatpush2.bf16.msra.mxu0 %v1633
  %1786 = vmatprep.subr.bf16.mxu0 %v1632
  %1787 = vmatpush2.bf16.msra.mxu0 %v1631
  %1788 = vmatprep.subr.bf16.mxu0 %v1630
  %1789 = vmatpush2.bf16.msra.mxu0 %v1629
  %1790 = vmatprep.subr.bf16.mxu0 %v1628
  %1791 = vmatpush2.bf16.msra.mxu0 %v1627
  %1792 = vmatprep.mubr.bf16.mxu0 %v1759
  %1793 = vmatmul.mubr.bf16.gmra.mxu0 %v1758
  %v1794 = vpop.f32.mrf.mxu0
  %v1795 = vadd.f32 0.0, %v1794
  %v1796 = vpop.f32.mrf.mxu0
  %v1797 = vadd.f32 0.0, %v1796
  %v1798 = vpop.f32.mrf.mxu0
  %v1799 = vpop.f32.mrf.mxu0
  %1800 = vdwg.mxu0
  %v1801 = vld [vmem:[%s612] sm:$0xf]
  %v1804 = vcombine.low %v1795, %v1797
  %v1806 = vunpack.c.l.s4 1983009808
  %v1807 = vunpack.c.0.s8 %v1806
  %v1808 = vlaneseq
  %v1809 = vshrl.u32 %v1808, 7
  %v1810 = vsub.s32 %v1807, %v1809
  %v1811 = vrot.slane %v1804, %v1810
  %v1813 = vadd.f32 %v1801, %v1811
  %v1814 = vtanh.pop %v1813
  %1815 = vst [vmem:[#allocation3] sm:$0xf] %v1814
  %v1816 = vpack.c.bf16 %v1814, %v1814
  %s1817 = scalar_lea.vmem %s4, 2
  %1818 = vst [vmem:[%s1817] sm:$0x1] %v1816
  %v1821 = vunpack.c.l.s4 1983009808
  %v1822 = vunpack.c.0.s8 %v1821
  %v1823 = vlaneseq
  %v1824 = vshrl.u32 %v1823, 7
  %v1825 = vsub.s32 %v1822, %v1824
  %v1826 = vrot.slane %v1814, %v1825
  %v1827 = vcombine.high %v1826, %v1826
  %v1829 = vpack.c.bf16 %v1827, %v1827
  %s1830 = scalar_lea.vmem %s4, 12
  %1831 = vst [vmem:[%s1830 + $0x1] sm:$0x1] %v1829
  %v1832 = vld [vmem:[#allocation3] sm:$0xf]
  %v1835 = vunpack.c.l.s4 1983009808
  %v1836 = vunpack.c.0.s8 %v1835
  %v1837 = vlaneseq
  %v1838 = vshrl.u32 %v1837, 7
  %v1839 = vsub.s32 %v1836, %v1838
  %v1840 = vrot.slane %v1832, %v1839
  %v1841 = vcombine.high %v1840, %v1840
  %v1844 = vpack.c.bf16 %v1840, %v1840
  %v1845 = vpack.c.bf16 %v1841, %v1841
  %1846 = vmatprep.subr.bf16.mxu0 %v1626
  %1847 = vmatpush1.bf16.msra.mxu0 %v1625
  %1848 = vmatprep.subr.bf16.mxu0 %v1624
  %1849 = vmatpush1.bf16.msra.mxu0 %v1623
  %1850 = vmatprep.subr.bf16.mxu0 %v1622
  %1851 = vmatpush1.bf16.msra.mxu0 %v1621
  %1852 = vmatprep.subr.bf16.mxu0 %v1620
  %1853 = vmatpush1.bf16.msra.mxu0 %v1619
  %1854 = vmatprep.subr.bf16.mxu0 %v1618
  %1855 = vmatpush1.bf16.msra.mxu0 %v1617
  %1856 = vmatprep.subr.bf16.mxu0 %v1616
  %1857 = vmatpush1.bf16.msra.mxu0 %v1615
  %1858 = vmatprep.subr.bf16.mxu0 %v1614
  %1859 = vmatpush1.bf16.msra.mxu0 %v1613
  %1860 = vmatprep.subr.bf16.mxu0 %v1612
  %1861 = vmatpush1.bf16.msra.mxu0 %v1611
  %1862 = vmatprep.subr.bf16.mxu0 %v1642
  %1863 = vmatpush2.bf16.msra.mxu0 %v1641
  %1864 = vmatprep.subr.bf16.mxu0 %v1640
  %1865 = vmatpush2.bf16.msra.mxu0 %v1639
  %1866 = vmatprep.subr.bf16.mxu0 %v1638
  %1867 = vmatpush2.bf16.msra.mxu0 %v1637
  %1868 = vmatprep.subr.bf16.mxu0 %v1636
  %1869 = vmatpush2.bf16.msra.mxu0 %v1635
  %1870 = vmatprep.subr.bf16.mxu0 %v1634
  %1871 = vmatpush2.bf16.msra.mxu0 %v1633
  %1872 = vmatprep.subr.bf16.mxu0 %v1632
  %1873 = vmatpush2.bf16.msra.mxu0 %v1631
  %1874 = vmatprep.subr.bf16.mxu0 %v1630
  %1875 = vmatpush2.bf16.msra.mxu0 %v1629
  %1876 = vmatprep.subr.bf16.mxu0 %v1628
  %1877 = vmatpush2.bf16.msra.mxu0 %v1627
  %1878 = vmatprep.mubr.bf16.mxu0 %v1845
  %1879 = vmatmul.mubr.bf16.gmra.mxu0 %v1844
  %v1880 = vpop.f32.mrf.mxu0
  %v1881 = vadd.f32 0.0, %v1880
  %v1882 = vpop.f32.mrf.mxu0
  %v1883 = vadd.f32 0.0, %v1882
  %v1884 = vpop.f32.mrf.mxu0
  %v1885 = vpop.f32.mrf.mxu0
  %1886 = vdwg.mxu0
  %v1887 = vld [vmem:[%s761] sm:$0xf]
  %v1890 = vcombine.low %v1881, %v1883
  %v1892 = vunpack.c.l.s4 1983009808
  %v1893 = vunpack.c.0.s8 %v1892
  %v1894 = vlaneseq
  %v1895 = vshrl.u32 %v1894, 7
  %v1896 = vsub.s32 %v1893, %v1895
  %v1897 = vrot.slane %v1890, %v1896
  %v1899 = vadd.f32 %v1887, %v1897
  %v1900 = vtanh.pop %v1899
  %1901 = vst [vmem:[#allocation3] sm:$0xf] %v1900
  %v1902 = vpack.c.bf16 %v1900, %v1900
  %s1903 = scalar_lea.vmem %s4, 4
  %1904 = vst [vmem:[%s1903] sm:$0x1] %v1902
  %v1907 = vunpack.c.l.s4 1983009808
  %v1908 = vunpack.c.0.s8 %v1907
  %v1909 = vlaneseq
  %v1910 = vshrl.u32 %v1909, 7
  %v1911 = vsub.s32 %v1908, %v1910
  %v1912 = vrot.slane %v1900, %v1911
  %v1913 = vcombine.high %v1912, %v1912
  %v1915 = vpack.c.bf16 %v1913, %v1913
  %s1916 = scalar_lea.vmem %s4, 10
  %1917 = vst [vmem:[%s1916 + $0x1] sm:$0x1] %v1915
  %v1918 = vld [vmem:[#allocation3] sm:$0xf]
  %v1921 = vunpack.c.l.s4 1983009808
  %v1922 = vunpack.c.0.s8 %v1921
  %v1923 = vlaneseq
  %v1924 = vshrl.u32 %v1923, 7
  %v1925 = vsub.s32 %v1922, %v1924
  %v1926 = vrot.slane %v1918, %v1925
  %v1927 = vcombine.high %v1926, %v1926
  %v1930 = vpack.c.bf16 %v1926, %v1926
  %v1931 = vpack.c.bf16 %v1927, %v1927
  %1932 = vmatprep.subr.bf16.mxu0 %v1626
  %1933 = vmatpush1.bf16.msra.mxu0 %v1625
  %1934 = vmatprep.subr.bf16.mxu0 %v1624
  %1935 = vmatpush1.bf16.msra.mxu0 %v1623
  %1936 = vmatprep.subr.bf16.mxu0 %v1622
  %1937 = vmatpush1.bf16.msra.mxu0 %v1621
  %1938 = vmatprep.subr.bf16.mxu0 %v1620
  %1939 = vmatpush1.bf16.msra.mxu0 %v1619
  %1940 = vmatprep.subr.bf16.mxu0 %v1618
  %1941 = vmatpush1.bf16.msra.mxu0 %v1617
  %1942 = vmatprep.subr.bf16.mxu0 %v1616
  %1943 = vmatpush1.bf16.msra.mxu0 %v1615
  %1944 = vmatprep.subr.bf16.mxu0 %v1614
  %1945 = vmatpush1.bf16.msra.mxu0 %v1613
  %1946 = vmatprep.subr.bf16.mxu0 %v1612
  %1947 = vmatpush1.bf16.msra.mxu0 %v1611
  %1948 = vmatprep.subr.bf16.mxu0 %v1642
  %1949 = vmatpush2.bf16.msra.mxu0 %v1641
  %1950 = vmatprep.subr.bf16.mxu0 %v1640
  %1951 = vmatpush2.bf16.msra.mxu0 %v1639
  %1952 = vmatprep.subr.bf16.mxu0 %v1638
  %1953 = vmatpush2.bf16.msra.mxu0 %v1637
  %1954 = vmatprep.subr.bf16.mxu0 %v1636
  %1955 = vmatpush2.bf16.msra.mxu0 %v1635
  %1956 = vmatprep.subr.bf16.mxu0 %v1634
  %1957 = vmatpush2.bf16.msra.mxu0 %v1633
  %1958 = vmatprep.subr.bf16.mxu0 %v1632
  %1959 = vmatpush2.bf16.msra.mxu0 %v1631
  %1960 = vmatprep.subr.bf16.mxu0 %v1630
  %1961 = vmatpush2.bf16.msra.mxu0 %v1629
  %1962 = vmatprep.subr.bf16.mxu0 %v1628
  %1963 = vmatpush2.bf16.msra.mxu0 %v1627
  %1964 = vmatprep.mubr.bf16.mxu0 %v1931
  %1965 = vmatmul.mubr.bf16.gmra.mxu0 %v1930
  %v1966 = vpop.f32.mrf.mxu0
  %v1967 = vadd.f32 0.0, %v1966
  %v1968 = vpop.f32.mrf.mxu0
  %v1969 = vadd.f32 0.0, %v1968
  %v1970 = vpop.f32.mrf.mxu0
  %v1971 = vpop.f32.mrf.mxu0
  %1972 = vdwg.mxu0
  %v1973 = vld [vmem:[%s910] sm:$0xf]
  %v1976 = vcombine.low %v1967, %v1969
  %v1978 = vunpack.c.l.s4 1983009808
  %v1979 = vunpack.c.0.s8 %v1978
  %v1980 = vlaneseq
  %v1981 = vshrl.u32 %v1980, 7
  %v1982 = vsub.s32 %v1979, %v1981
  %v1983 = vrot.slane %v1976, %v1982
  %v1985 = vadd.f32 %v1973, %v1983
  %v1986 = vtanh.pop %v1985
  %1987 = vst [vmem:[#allocation3] sm:$0xf] %v1986
  %v1988 = vpack.c.bf16 %v1986, %v1986
  %s1989 = scalar_lea.vmem %s4, 6
  %1990 = vst [vmem:[%s1989] sm:$0x1] %v1988
  %v1993 = vunpack.c.l.s4 1983009808
  %v1994 = vunpack.c.0.s8 %v1993
  %v1995 = vlaneseq
  %v1996 = vshrl.u32 %v1995, 7
  %v1997 = vsub.s32 %v1994, %v1996
  %v1998 = vrot.slane %v1986, %v1997
  %v1999 = vcombine.high %v1998, %v1998
  %v2001 = vpack.c.bf16 %v1999, %v1999
  %s2002 = scalar_lea.vmem %s4, 8
  %2003 = vst [vmem:[%s2002 + $0x1] sm:$0x1] %v2001
  %v2004 = vld [vmem:[#allocation3] sm:$0xf]
  %v2007 = vunpack.c.l.s4 1983009808
  %v2008 = vunpack.c.0.s8 %v2007
  %v2009 = vlaneseq
  %v2010 = vshrl.u32 %v2009, 7
  %v2011 = vsub.s32 %v2008, %v2010
  %v2012 = vrot.slane %v2004, %v2011
  %v2013 = vcombine.high %v2012, %v2012
  %v2016 = vpack.c.bf16 %v2012, %v2012
  %v2017 = vpack.c.bf16 %v2013, %v2013
  %2018 = vmatprep.subr.bf16.mxu0 %v1626
  %2019 = vmatpush1.bf16.msra.mxu0 %v1625
  %2020 = vmatprep.subr.bf16.mxu0 %v1624
  %2021 = vmatpush1.bf16.msra.mxu0 %v1623
  %2022 = vmatprep.subr.bf16.mxu0 %v1622
  %2023 = vmatpush1.bf16.msra.mxu0 %v1621
  %2024 = vmatprep.subr.bf16.mxu0 %v1620
  %2025 = vmatpush1.bf16.msra.mxu0 %v1619
  %2026 = vmatprep.subr.bf16.mxu0 %v1618
  %2027 = vmatpush1.bf16.msra.mxu0 %v1617
  %2028 = vmatprep.subr.bf16.mxu0 %v1616
  %2029 = vmatpush1.bf16.msra.mxu0 %v1615
  %2030 = vmatprep.subr.bf16.mxu0 %v1614
  %2031 = vmatpush1.bf16.msra.mxu0 %v1613
  %2032 = vmatprep.subr.bf16.mxu0 %v1612
  %2033 = vmatpush1.bf16.msra.mxu0 %v1611
  %2034 = vmatprep.subr.bf16.mxu0 %v1642
  %2035 = vmatpush2.bf16.msra.mxu0 %v1641
  %2036 = vmatprep.subr.bf16.mxu0 %v1640
  %2037 = vmatpush2.bf16.msra.mxu0 %v1639
  %2038 = vmatprep.subr.bf16.mxu0 %v1638
  %2039 = vmatpush2.bf16.msra.mxu0 %v1637
  %2040 = vmatprep.subr.bf16.mxu0 %v1636
  %2041 = vmatpush2.bf16.msra.mxu0 %v1635
  %2042 = vmatprep.subr.bf16.mxu0 %v1634
  %2043 = vmatpush2.bf16.msra.mxu0 %v1633
  %2044 = vmatprep.subr.bf16.mxu0 %v1632
  %2045 = vmatpush2.bf16.msra.mxu0 %v1631
  %2046 = vmatprep.subr.bf16.mxu0 %v1630
  %2047 = vmatpush2.bf16.msra.mxu0 %v1629
  %2048 = vmatprep.subr.bf16.mxu0 %v1628
  %2049 = vmatpush2.bf16.msra.mxu0 %v1627
  %2050 = vmatprep.mubr.bf16.mxu0 %v2017
  %2051 = vmatmul.mubr.bf16.gmra.mxu0 %v2016
  %v2052 = vpop.f32.mrf.mxu0
  %v2053 = vadd.f32 0.0, %v2052
  %v2054 = vpop.f32.mrf.mxu0
  %v2055 = vadd.f32 0.0, %v2054
  %v2056 = vpop.f32.mrf.mxu0
  %v2057 = vpop.f32.mrf.mxu0
  %2058 = vdwg.mxu0
  %v2059 = vld [vmem:[%s1057] sm:$0xf]
  %v2062 = vcombine.low %v2053, %v2055
  %v2064 = vunpack.c.l.s4 1983009808
  %v2065 = vunpack.c.0.s8 %v2064
  %v2066 = vlaneseq
  %v2067 = vshrl.u32 %v2066, 7
  %v2068 = vsub.s32 %v2065, %v2067
  %v2069 = vrot.slane %v2062, %v2068
  %v2071 = vadd.f32 %v2059, %v2069
  %v2072 = vtanh.pop %v2071
  %2073 = vst [vmem:[#allocation3] sm:$0xf] %v2072
  %v2074 = vpack.c.bf16 %v2072, %v2072
  %2075 = vst [vmem:[%s2002] sm:$0x1] %v2074
  %v2078 = vunpack.c.l.s4 1983009808
  %v2079 = vunpack.c.0.s8 %v2078
  %v2080 = vlaneseq
  %v2081 = vshrl.u32 %v2080, 7
  %v2082 = vsub.s32 %v2079, %v2081
  %v2083 = vrot.slane %v2072, %v2082
  %v2084 = vcombine.high %v2083, %v2083
  %v2086 = vpack.c.bf16 %v2084, %v2084
  %2087 = vst [vmem:[%s1989 + $0x1] sm:$0x1] %v2086
  %v2088 = vld [vmem:[#allocation3] sm:$0xf]
  %v2091 = vunpack.c.l.s4 1983009808
  %v2092 = vunpack.c.0.s8 %v2091
  %v2093 = vlaneseq
  %v2094 = vshrl.u32 %v2093, 7
  %v2095 = vsub.s32 %v2092, %v2094
  %v2096 = vrot.slane %v2088, %v2095
  %v2097 = vcombine.high %v2096, %v2096
  %v2100 = vpack.c.bf16 %v2096, %v2096
  %v2101 = vpack.c.bf16 %v2097, %v2097
  %2102 = vmatprep.subr.bf16.mxu0 %v1626
  %2103 = vmatpush1.bf16.msra.mxu0 %v1625
  %2104 = vmatprep.subr.bf16.mxu0 %v1624
  %2105 = vmatpush1.bf16.msra.mxu0 %v1623
  %2106 = vmatprep.subr.bf16.mxu0 %v1622
  %2107 = vmatpush1.bf16.msra.mxu0 %v1621
  %2108 = vmatprep.subr.bf16.mxu0 %v1620
  %2109 = vmatpush1.bf16.msra.mxu0 %v1619
  %2110 = vmatprep.subr.bf16.mxu0 %v1618
  %2111 = vmatpush1.bf16.msra.mxu0 %v1617
  %2112 = vmatprep.subr.bf16.mxu0 %v1616
  %2113 = vmatpush1.bf16.msra.mxu0 %v1615
  %2114 = vmatprep.subr.bf16.mxu0 %v1614
  %2115 = vmatpush1.bf16.msra.mxu0 %v1613
  %2116 = vmatprep.subr.bf16.mxu0 %v1612
  %2117 = vmatpush1.bf16.msra.mxu0 %v1611
  %2118 = vmatprep.subr.bf16.mxu0 %v1642
  %2119 = vmatpush2.bf16.msra.mxu0 %v1641
  %2120 = vmatprep.subr.bf16.mxu0 %v1640
  %2121 = vmatpush2.bf16.msra.mxu0 %v1639
  %2122 = vmatprep.subr.bf16.mxu0 %v1638
  %2123 = vmatpush2.bf16.msra.mxu0 %v1637
  %2124 = vmatprep.subr.bf16.mxu0 %v1636
  %2125 = vmatpush2.bf16.msra.mxu0 %v1635
  %2126 = vmatprep.subr.bf16.mxu0 %v1634
  %2127 = vmatpush2.bf16.msra.mxu0 %v1633
  %2128 = vmatprep.subr.bf16.mxu0 %v1632
  %2129 = vmatpush2.bf16.msra.mxu0 %v1631
  %2130 = vmatprep.subr.bf16.mxu0 %v1630
  %2131 = vmatpush2.bf16.msra.mxu0 %v1629
  %2132 = vmatprep.subr.bf16.mxu0 %v1628
  %2133 = vmatpush2.bf16.msra.mxu0 %v1627
  %2134 = vmatprep.mubr.bf16.mxu0 %v2101
  %2135 = vmatmul.mubr.bf16.gmra.mxu0 %v2100
  %v2136 = vpop.f32.mrf.mxu0
  %v2137 = vadd.f32 0.0, %v2136
  %v2138 = vpop.f32.mrf.mxu0
  %v2139 = vadd.f32 0.0, %v2138
  %v2140 = vpop.f32.mrf.mxu0
  %v2141 = vpop.f32.mrf.mxu0
  %2142 = vdwg.mxu0
  %v2143 = vld [vmem:[%s1204] sm:$0xf]
  %v2146 = vcombine.low %v2137, %v2139
  %v2148 = vunpack.c.l.s4 1983009808
  %v2149 = vunpack.c.0.s8 %v2148
  %v2150 = vlaneseq
  %v2151 = vshrl.u32 %v2150, 7
  %v2152 = vsub.s32 %v2149, %v2151
  %v2153 = vrot.slane %v2146, %v2152
  %v2155 = vadd.f32 %v2143, %v2153
  %v2156 = vtanh.pop %v2155
  %2157 = vst [vmem:[#allocation3] sm:$0xf] %v2156
  %v2158 = vpack.c.bf16 %v2156, %v2156
  %2159 = vst [vmem:[%s1916] sm:$0x1] %v2158
  %v2162 = vunpack.c.l.s4 1983009808
  %v2163 = vunpack.c.0.s8 %v2162
  %v2164 = vlaneseq
  %v2165 = vshrl.u32 %v2164, 7
  %v2166 = vsub.s32 %v2163, %v2165
  %v2167 = vrot.slane %v2156, %v2166
  %v2168 = vcombine.high %v2167, %v2167
  %v2170 = vpack.c.bf16 %v2168, %v2168
  %2171 = vst [vmem:[%s1903 + $0x1] sm:$0x1] %v2170
  %v2172 = vld [vmem:[#allocation3] sm:$0xf]
  %v2175 = vunpack.c.l.s4 1983009808
  %v2176 = vunpack.c.0.s8 %v2175
  %v2177 = vlaneseq
  %v2178 = vshrl.u32 %v2177, 7
  %v2179 = vsub.s32 %v2176, %v2178
  %v2180 = vrot.slane %v2172, %v2179
  %v2181 = vcombine.high %v2180, %v2180
  %v2184 = vpack.c.bf16 %v2180, %v2180
  %v2185 = vpack.c.bf16 %v2181, %v2181
  %2186 = vmatprep.subr.bf16.mxu0 %v1626
  %2187 = vmatpush1.bf16.msra.mxu0 %v1625
  %2188 = vmatprep.subr.bf16.mxu0 %v1624
  %2189 = vmatpush1.bf16.msra.mxu0 %v1623
  %2190 = vmatprep.subr.bf16.mxu0 %v1622
  %2191 = vmatpush1.bf16.msra.mxu0 %v1621
  %2192 = vmatprep.subr.bf16.mxu0 %v1620
  %2193 = vmatpush1.bf16.msra.mxu0 %v1619
  %2194 = vmatprep.subr.bf16.mxu0 %v1618
  %2195 = vmatpush1.bf16.msra.mxu0 %v1617
  %2196 = vmatprep.subr.bf16.mxu0 %v1616
  %2197 = vmatpush1.bf16.msra.mxu0 %v1615
  %2198 = vmatprep.subr.bf16.mxu0 %v1614
  %2199 = vmatpush1.bf16.msra.mxu0 %v1613
  %2200 = vmatprep.subr.bf16.mxu0 %v1612
  %2201 = vmatpush1.bf16.msra.mxu0 %v1611
  %2202 = vmatprep.subr.bf16.mxu0 %v1642
  %2203 = vmatpush2.bf16.msra.mxu0 %v1641
  %2204 = vmatprep.subr.bf16.mxu0 %v1640
  %2205 = vmatpush2.bf16.msra.mxu0 %v1639
  %2206 = vmatprep.subr.bf16.mxu0 %v1638
  %2207 = vmatpush2.bf16.msra.mxu0 %v1637
  %2208 = vmatprep.subr.bf16.mxu0 %v1636
  %2209 = vmatpush2.bf16.msra.mxu0 %v1635
  %2210 = vmatprep.subr.bf16.mxu0 %v1634
  %2211 = vmatpush2.bf16.msra.mxu0 %v1633
  %2212 = vmatprep.subr.bf16.mxu0 %v1632
  %2213 = vmatpush2.bf16.msra.mxu0 %v1631
  %2214 = vmatprep.subr.bf16.mxu0 %v1630
  %2215 = vmatpush2.bf16.msra.mxu0 %v1629
  %2216 = vmatprep.subr.bf16.mxu0 %v1628
  %2217 = vmatpush2.bf16.msra.mxu0 %v1627
  %2218 = vmatprep.mubr.bf16.mxu0 %v2185
  %2219 = vmatmul.mubr.bf16.gmra.mxu0 %v2184
  %v2220 = vpop.f32.mrf.mxu0
  %v2221 = vadd.f32 0.0, %v2220
  %v2222 = vpop.f32.mrf.mxu0
  %v2223 = vadd.f32 0.0, %v2222
  %v2224 = vpop.f32.mrf.mxu0
  %v2225 = vpop.f32.mrf.mxu0
  %2226 = vdwg.mxu0
  %v2227 = vld [vmem:[%s1351] sm:$0xf]
  %v2230 = vcombine.low %v2221, %v2223
  %v2232 = vunpack.c.l.s4 1983009808
  %v2233 = vunpack.c.0.s8 %v2232
  %v2234 = vlaneseq
  %v2235 = vshrl.u32 %v2234, 7
  %v2236 = vsub.s32 %v2233, %v2235
  %v2237 = vrot.slane %v2230, %v2236
  %v2239 = vadd.f32 %v2227, %v2237
  %v2240 = vtanh.pop %v2239
  %2241 = vst [vmem:[#allocation3] sm:$0xf] %v2240
  %v2242 = vpack.c.bf16 %v2240, %v2240
  %2243 = vst [vmem:[%s1830] sm:$0x1] %v2242
  %v2246 = vunpack.c.l.s4 1983009808
  %v2247 = vunpack.c.0.s8 %v2246
  %v2248 = vlaneseq
  %v2249 = vshrl.u32 %v2248, 7
  %v2250 = vsub.s32 %v2247, %v2249
  %v2251 = vrot.slane %v2240, %v2250
  %v2252 = vcombine.high %v2251, %v2251
  %v2254 = vpack.c.bf16 %v2252, %v2252
  %2255 = vst [vmem:[%s1817 + $0x1] sm:$0x1] %v2254
  %v2256 = vld [vmem:[#allocation3] sm:$0xf]
  %v2259 = vunpack.c.l.s4 1983009808
  %v2260 = vunpack.c.0.s8 %v2259
  %v2261 = vlaneseq
  %v2262 = vshrl.u32 %v2261, 7
  %v2263 = vsub.s32 %v2260, %v2262
  %v2264 = vrot.slane %v2256, %v2263
  %v2265 = vcombine.high %v2264, %v2264
  %v2268 = vpack.c.bf16 %v2264, %v2264
  %v2269 = vpack.c.bf16 %v2265, %v2265
  %2270 = vmatprep.subr.bf16.mxu0 %v1626
  %2271 = vmatpush1.bf16.msra.mxu0 %v1625
  %2272 = vmatprep.subr.bf16.mxu0 %v1624
  %2273 = vmatpush1.bf16.msra.mxu0 %v1623
  %2274 = vmatprep.subr.bf16.mxu0 %v1622
  %2275 = vmatpush1.bf16.msra.mxu0 %v1621
  %2276 = vmatprep.subr.bf16.mxu0 %v1620
  %2277 = vmatpush1.bf16.msra.mxu0 %v1619
  %2278 = vmatprep.subr.bf16.mxu0 %v1618
  %2279 = vmatpush1.bf16.msra.mxu0 %v1617
  %2280 = vmatprep.subr.bf16.mxu0 %v1616
  %2281 = vmatpush1.bf16.msra.mxu0 %v1615
  %2282 = vmatprep.subr.bf16.mxu0 %v1614
  %2283 = vmatpush1.bf16.msra.mxu0 %v1613
  %2284 = vmatprep.subr.bf16.mxu0 %v1612
  %2285 = vmatpush1.bf16.msra.mxu0 %v1611
  %2286 = vmatprep.subr.bf16.mxu0 %v1642
  %2287 = vmatpush2.bf16.msra.mxu0 %v1641
  %2288 = vmatprep.subr.bf16.mxu0 %v1640
  %2289 = vmatpush2.bf16.msra.mxu0 %v1639
  %2290 = vmatprep.subr.bf16.mxu0 %v1638
  %2291 = vmatpush2.bf16.msra.mxu0 %v1637
  %2292 = vmatprep.subr.bf16.mxu0 %v1636
  %2293 = vmatpush2.bf16.msra.mxu0 %v1635
  %2294 = vmatprep.subr.bf16.mxu0 %v1634
  %2295 = vmatpush2.bf16.msra.mxu0 %v1633
  %2296 = vmatprep.subr.bf16.mxu0 %v1632
  %2297 = vmatpush2.bf16.msra.mxu0 %v1631
  %2298 = vmatprep.subr.bf16.mxu0 %v1630
  %2299 = vmatpush2.bf16.msra.mxu0 %v1629
  %2300 = vmatprep.subr.bf16.mxu0 %v1628
  %2301 = vmatpush2.bf16.msra.mxu0 %v1627
  %2302 = vmatprep.mubr.bf16.mxu0 %v2269
  %2303 = vmatmul.mubr.bf16.gmra.mxu0 %v2268
  %v2304 = vpop.f32.mrf.mxu0
  %v2305 = vadd.f32 0.0, %v2304
  %v2306 = vpop.f32.mrf.mxu0
  %v2307 = vadd.f32 0.0, %v2306
  %v2308 = vpop.f32.mrf.mxu0
  %v2309 = vpop.f32.mrf.mxu0
  %2310 = vdwg.mxu0
  %v2311 = vld [vmem:[%s1498] sm:$0xf]
  %v2314 = vcombine.low %v2305, %v2307
  %v2316 = vunpack.c.l.s4 1983009808
  %v2317 = vunpack.c.0.s8 %v2316
  %v2318 = vlaneseq
  %v2319 = vshrl.u32 %v2318, 7
  %v2320 = vsub.s32 %v2317, %v2319
  %v2321 = vrot.slane %v2314, %v2320
  %v2323 = vadd.f32 %v2311, %v2321
  %v2324 = vtanh.pop %v2323
  %2325 = vst [vmem:[#allocation3] sm:$0xf] %v2324
  %v2326 = vpack.c.bf16 %v2324, %v2324
  %2327 = vst [vmem:[%s1744] sm:$0x1] %v2326
  %v2330 = vunpack.c.l.s4 1983009808
  %v2331 = vunpack.c.0.s8 %v2330
  %v2332 = vlaneseq
  %v2333 = vshrl.u32 %v2332, 7
  %v2334 = vsub.s32 %v2331, %v2333
  %v2335 = vrot.slane %v2324, %v2334
  %v2336 = vcombine.high %v2335, %v2335
  %v2338 = vpack.c.bf16 %v2336, %v2336
  %2339 = vst [vmem:[%s4 + $0x1] sm:$0x1] %v2338
  // Predicated region
  $region18: #{forward.4} parent=0 // pred_check
    _
  $region19: #{forward.4} parent=0 // pred_check_branch
    %2341 = sbr.rel (0) target = $region21
  $region20: #{forward.4} parent=0 // pred_region
    _
  $region21: #{forward.4} parent=0 // pred_fallthru
    _
  // Predicated region
  $region22: #{forward.4} parent=0 // pred_check
    _
  $region23: #{forward.4} parent=0 // pred_check_branch
    %2343 = sbr.rel (0) target = $region25
  $region24: #{forward.4} parent=0 // pred_region
    _
  $region25: #{forward.4} parent=0 // pred_fallthru
    _

</llo_original>
